<compile_context>
chip_gen: v6e
topology: v6e:2x2x1
jax: 0.10.0
libtpu: 0.0.40
codegen_flags: <defaults>
</compile_context>

<pallas_src>
import math
from functools import partial

import jax
import jax.numpy as jnp
from jax.experimental import pallas as pl
from jax.experimental.pallas import tpu as pltpu

# ----------------------------------------------------------------------------
# Model configuration (scaled-down ResNet50 + 20-class CAM head)
# ----------------------------------------------------------------------------
WIDTH = 8                      # stands in for ResNet50's base width of 64
NUM_CLASSES = 20
LAYERS = (3, 4, 6, 3)          # bottleneck counts, as in resnet50
STRIDES = (2, 2, 2, 1)         # conv1 stride, layer2, layer3, layer4 strides
PLANES = (WIDTH, WIDTH * 2, WIDTH * 4, WIDTH * 8)
EXPANSION = 4

LANE = 128                      # lane width: all channel dims padded to this
VMEM_LIMIT = 32 * 1024 * 1024   # explicit scoped-VMEM limit (safe on v5e/v6e/v7x)


def _cpad(c):
    """Round a channel count up to a multiple of the 128-lane width."""
    return ((c + LANE - 1) // LANE) * LANE


def _make_block_cfg():
    cfgs = []
    inplanes = WIDTH
    layer_strides = (1, STRIDES[1], STRIDES[2], STRIDES[3])
    for planes, blocks, stride in zip(PLANES, LAYERS, layer_strides):
        layer = [(stride, stride != 1 or inplanes != planes * EXPANSION)]
        layer += [(1, False)] * (blocks - 1)
        cfgs.append(tuple(layer))
        inplanes = planes * EXPANSION
    return tuple(cfgs)


BLOCK_CFG = _make_block_cfg()   # static (stride, has_downsample) per bottleneck


# ----------------------------------------------------------------------------
# Tile pickers
# ----------------------------------------------------------------------------
def _pick_tm(m, cap=256):
    """Largest row tile <= cap that divides m and gives >=2 grid steps (v7x has
    two TensorCores; >=2 'parallel' steps keeps both busy).  Falls back to m."""
    for c in (256, 128, 64, 32, 16, 8):
        if c <= cap and m % c == 0 and m // c >= 2:
            return c
    return m


def _pick_tk(k, max_tk=512):
    """K tile: full K when small, else the largest multiple-of-128 divisor
    <= max_tk (keeps double-buffered input blocks VMEM-safe at big widths)."""
    if k <= max_tk:
        return k
    for c in range(max_tk, 127, -128):
        if k % c == 0:
            return c
    return k


# ----------------------------------------------------------------------------
# Pallas kernels
# ----------------------------------------------------------------------------
def _mm_bn_kernel(x_ref, w_ref, b_ref, o_ref, acc_ref, *, n_k, relu):
    """out = act(x @ w + b): conv (bf16 MXU, f32 acc) with folded-BN epilogue."""
    k = pl.program_id(1)

    @pl.when(k == 0)
    def _():
        acc_ref[...] = jnp.zeros_like(acc_ref)

    acc_ref[...] += jnp.dot(x_ref[...], w_ref[...],
                            preferred_element_type=jnp.float32)

    @pl.when(k == n_k - 1)
    def _():
        y = acc_ref[...] + b_ref[...]
        if relu:
            y = jnp.maximum(y, 0.0)
        o_ref[...] = y.astype(o_ref.dtype)


def _mm_bn_add_relu_kernel(x_ref, w_ref, b_ref, r_ref, o_ref, acc_ref, *, n_k):
    """out = relu(x @ w + b + residual): bottleneck tail, fully fused."""
    k = pl.program_id(1)

    @pl.when(k == 0)
    def _():
        acc_ref[...] = jnp.zeros_like(acc_ref)

    acc_ref[...] += jnp.dot(x_ref[...], w_ref[...],
                            preferred_element_type=jnp.float32)

    @pl.when(k == n_k - 1)
    def _():
        y = acc_ref[...] + b_ref[...] + r_ref[...].astype(jnp.float32)
        o_ref[...] = jnp.maximum(y, 0.0).astype(o_ref.dtype)


def _maxpool9_kernel(x0, x1, x2, x3, x4, x5, x6, x7, x8, o_ref):
    """Elementwise 9-way max over the shifted 3x3 windows (no HBM stack)."""
    m = jnp.maximum(jnp.maximum(jnp.maximum(x0[...], x1[...]),
                                jnp.maximum(x2[...], x3[...])),
                    jnp.maximum(jnp.maximum(x4[...], x5[...]),
                                jnp.maximum(x6[...], x7[...])))
    o_ref[...] = jnp.maximum(m, x8[...])


def _classifier_head_kernel(x_ref, w_ref, pool_ref, score_ref, relu_ref,
                            acc_ref, *, n_k):
    """cam = x @ w (1x1 classifier, no bias); score = spatial mean of cam
    (pool matmul); norm_cam = relu(cam).  Everything in one epilogue."""
    k = pl.program_id(0)

    @pl.when(k == 0)
    def _():
        acc_ref[...] = jnp.zeros_like(acc_ref)

    acc_ref[...] += jnp.dot(x_ref[...], w_ref[...],
                            preferred_element_type=jnp.float32)

    @pl.when(k == n_k - 1)
    def _():
        cam = acc_ref[...]
        relu_ref[...] = jnp.maximum(cam, 0.0)
        score_ref[...] = jnp.dot(pool_ref[...], cam,
                                 preferred_element_type=jnp.float32)


# ----------------------------------------------------------------------------
# Kernel wrappers
# ----------------------------------------------------------------------------
def fused_matmul(x2d, w2d, bias, residual2d=None, relu=True,
                 out_dtype=jnp.bfloat16):
    """x2d: (M, K) bf16, w2d: (K, N) bf16 (BN scale folded), bias: (N,) f32.
    Returns act(x @ w + bias [+ residual]) as (M, N) out_dtype."""
    M, K = x2d.shape
    N = w2d.shape[1]
    tm = _pick_tm(M)
    tk = _pick_tk(K)
    n_m, n_k = M // tm, K // tk

    in_specs = [pl.BlockSpec((tm, tk), lambda i, k: (i, k)),
                pl.BlockSpec((tk, N), lambda i, k: (k, 0)),
                pl.BlockSpec((1, N), lambda i, k: (0, 0))]
    args = [x2d, w2d, bias.reshape(1, N)]
    if residual2d is not None:
        kern = partial(_mm_bn_add_relu_kernel, n_k=n_k)
        in_specs.append(pl.BlockSpec((tm, N), lambda i, k: (i, 0)))
        args.append(residual2d)
    else:
        kern = partial(_mm_bn_kernel, n_k=n_k, relu=relu)

    return pl.pallas_call(
        kern,
        out_shape=jax.ShapeDtypeStruct((M, N), out_dtype),
        grid=(n_m, n_k),
        in_specs=in_specs,
        out_specs=pl.BlockSpec((tm, N), lambda i, k: (i, 0)),
        scratch_shapes=[pltpu.VMEM((tm, N), jnp.float32)],
        compiler_params=pltpu.CompilerParams(
            dimension_semantics=("parallel", "arbitrary"),
            vmem_limit_bytes=VMEM_LIMIT),
    )(*args)


def conv_bn(x, w, bias, *, stride=1, padding=0, relu=True, residual=None):
    """NHWC conv with folded BN (+ReLU)(+residual) via im2col + fused matmul.
    x: bf16 (channels lane-padded); w: (kh,kw,cin_pad,cout_pad) bf16."""
    N, H, W, _ = x.shape
    kh, kw, cin, cout = w.shape
    if kh == 1 and kw == 1 and padding == 0:
        if stride > 1:
            # TODO(synk): express this stride in the BlockSpec instead of a slice.
            x = x[:, ::stride, ::stride, :]
        _, Ho, Wo, _ = x.shape
        lhs = x.reshape(N * Ho * Wo, cin)
    else:
        xp = jnp.pad(x, ((0, 0), (padding, padding), (padding, padding), (0, 0)))
        Ho = (H + 2 * padding - kh) // stride + 1
        Wo = (W + 2 * padding - kw) // stride + 1
        cols = [xp[:, i:i + stride * Ho:stride, j:j + stride * Wo:stride, :]
                for i in range(kh) for j in range(kw)]
        lhs = jnp.concatenate(cols, axis=-1).reshape(N * Ho * Wo, kh * kw * cin)
    res2d = None if residual is None else residual.reshape(N * Ho * Wo, cout)
    out = fused_matmul(lhs, w.reshape(kh * kw * cin, cout), bias,
                       residual2d=res2d, relu=relu)
    return out.reshape(N, Ho, Wo, cout)


def maxpool_3x3_s2(x):
    """MaxPool2d(kernel_size=3, stride=2, padding=1): nine shifted views feed
    one tiled, parallel 9-way max kernel (no stacked HBM tensor)."""
    N, H, W, C = x.shape
    neg = jnp.finfo(x.dtype).min
    xp = jnp.pad(x, ((0, 0), (1, 1), (1, 1), (0, 0)), constant_values=neg)
    Ho = (H + 2 - 3) // 2 + 1
    Wo = (W + 2 - 3) // 2 + 1
    M = N * Ho * Wo
    views = [xp[:, i:i + 2 * Ho:2, j:j + 2 * Wo:2, :].reshape(M, C)
             for i in range(3) for j in range(3)]
    tm = _pick_tm(M)
    out = pl.pallas_call(
        _maxpool9_kernel,
        out_shape=jax.ShapeDtypeStruct((M, C), x.dtype),
        grid=(M // tm,),
        in_specs=[pl.BlockSpec((tm, C), lambda i: (i, 0)) for _ in range(9)],
        out_specs=pl.BlockSpec((tm, C), lambda i: (i, 0)),
        compiler_params=pltpu.CompilerParams(
            dimension_semantics=("parallel",),
            vmem_limit_bytes=VMEM_LIMIT),
    )(*views)
    return out.reshape(N, Ho, Wo, C)


def classifier_head(x, w):
    """Fused classifier: cam = 1x1 conv (no bias); score = adaptive_avg_pool2d
    over cam; norm_cam = relu(cam).  x: NHWC bf16; w: (1,1,cin_pad,C_pad) bf16.
    Returns (score (N, C_pad) f32, relu_cam (N*H*W, C_pad) f32)."""
    N, H, W, cin = x.shape
    C = w.shape[-1]
    hw = H * W
    M = N * hw
    lhs = x.reshape(M, cin)
    w2 = w.reshape(cin, C)
    tk = _pick_tk(cin)
    n_k = cin // tk
    # Per-image spatial averaging matrix: (N, M), row n averages rows of image n.
    pool = jnp.repeat(jnp.eye(N, dtype=jnp.float32), hw, axis=1) * (1.0 / hw)

    score, relu_cam = pl.pallas_call(
        partial(_classifier_head_kernel, n_k=n_k),
        out_shape=(jax.ShapeDtypeStruct((N, C), jnp.float32),
                   jax.ShapeDtypeStruct((M, C), jnp.float32)),
        grid=(n_k,),
        in_specs=[pl.BlockSpec((M, tk), lambda k: (0, k)),
                  pl.BlockSpec((tk, C), lambda k: (k, 0)),
                  pl.BlockSpec((N, M), lambda k: (0, 0))],
        out_specs=(pl.BlockSpec((N, C), lambda k: (0, 0)),
                   pl.BlockSpec((M, C), lambda k: (0, 0))),
        scratch_shapes=[pltpu.VMEM((M, C), jnp.float32)],
        compiler_params=pltpu.CompilerParams(
            dimension_semantics=("arbitrary",),
            vmem_limit_bytes=VMEM_LIMIT),
    )(lhs, w2, pool)
    return score, relu_cam


# ----------------------------------------------------------------------------
# Parameter initialization (deterministic, synthetic; BN folded + lane-padded)
# ----------------------------------------------------------------------------
class KeyGen:
    def __init__(self, key):
        self.key = key

    def __call__(self):
        self.key, k = jax.random.split(self.key)
        return k


def init_folded_conv(kg, kh, kw, cin, cout, cin_pad, cout_pad,
                     with_bn=True, eps=1e-5):
    """Conv weight with inference-BN scale folded in, zero-padded to lane-dense
    channel counts, stored bf16.  Bias (beta - mean*scale) stays f32."""
    std = 1.0 / math.sqrt(kh * kw * cin)
    w = std * jax.random.normal(kg(), (kh, kw, cin, cout))
    if with_bn:
        gamma = 1.0 + 0.05 * jax.random.normal(kg(), (cout,))
        beta = 0.05 * jax.random.normal(kg(), (cout,))
        mean = 0.05 * jax.random.normal(kg(), (cout,))
        var = 1.0 + 0.05 * jnp.abs(jax.random.normal(kg(), (cout,)))
        scale = gamma / jnp.sqrt(var + eps)
        bias = beta - mean * scale
        w = w * scale                      # fold BN scale into the conv weight
    else:
        bias = jnp.zeros((cout,))
    w = jnp.pad(w, ((0, 0), (0, 0), (0, cin_pad - cin), (0, cout_pad - cout)))
    bias = jnp.pad(bias, (0, cout_pad - cout))
    return w.astype(jnp.bfloat16), bias.astype(jnp.float32)


def init_net(key):
    kg = KeyGen(key)
    params = {}
    params['conv1_w'], params['bn1_b'] = init_folded_conv(
        kg, 7, 7, 3, WIDTH, 3, _cpad(WIDTH))
    layers = []
    inplanes = WIDTH
    for planes, layer_cfg in zip(PLANES, BLOCK_CFG):
        blocks = []
        for stride, has_ds in layer_cfg:
            outp = planes * EXPANSION
            p = {}
            p['conv1_w'], p['bn1_b'] = init_folded_conv(
                kg, 1, 1, inplanes, planes, _cpad(inplanes), _cpad(planes))
            p['conv2_w'], p['bn2_b'] = init_folded_conv(
                kg, 3, 3, planes, planes, _cpad(planes), _cpad(planes))
            p['conv3_w'], p['bn3_b'] = init_folded_conv(
                kg, 1, 1, planes, outp, _cpad(planes), _cpad(outp))
            if has_ds:
                p['ds_conv_w'], p['ds_bn_b'] = init_folded_conv(
                    kg, 1, 1, inplanes, outp, _cpad(inplanes), _cpad(outp))
            blocks.append(p)
            inplanes = outp
        layers.append(blocks)
    params['layers'] = layers
    params['classifier_w'], _ = init_folded_conv(
        kg, 1, 1, inplanes, NUM_CLASSES, _cpad(inplanes), _cpad(NUM_CLASSES),
        with_bn=False)
    return params


# ----------------------------------------------------------------------------
# Forward pass (mirrors Net.forward)
# ----------------------------------------------------------------------------
def bottleneck(p, cfg, x):
    stride, has_ds = cfg
    out = conv_bn(x, p['conv1_w'], p['bn1_b'], relu=True)
    out = conv_bn(out, p['conv2_w'], p['bn2_b'],
                  stride=stride, padding=1, relu=True)
    if has_ds:
        identity = conv_bn(x, p['ds_conv_w'], p['ds_bn_b'],
                           stride=stride, relu=False)
    else:
        identity = x
    # relu(bn3(conv3(out)) + identity) fully fused into the matmul epilogue.
    return conv_bn(out, p['conv3_w'], p['bn3_b'], relu=True, residual=identity)


def net_forward(params, x_nchw, feature_name=None):
    del feature_name  # accepted but unused, as in the reference forward
    x = jnp.transpose(x_nchw, (0, 2, 3, 1)).astype(jnp.bfloat16)  # NCHW -> NHWC

    # stage0: conv1 + bn1 + relu (fused) + maxpool
    x = conv_bn(x, params['conv1_w'], params['bn1_b'],
                stride=STRIDES[0], padding=3, relu=True)
    x = maxpool_3x3_s2(x)

    # stage1..stage4 (with .detach() after stage2)
    for li, (layer_p, layer_cfg) in enumerate(zip(params['layers'], BLOCK_CFG)):
        for p, cfg in zip(layer_p, layer_cfg):
            x = bottleneck(p, cfg, x)
        if li == 1:
            x = jax.lax.stop_gradient(x)   # x = self.stage2(x).detach()

    # classifier (1x1 conv, no bias) + avg-pool score + relu CAM, fused
    N, Hc, Wc, _ = x.shape
    score_pad, relu_cam_pad = classifier_head(x, params['classifier_w'])
    score = score_pad[:, :NUM_CLASSES]                              # (N, 20)
    norm_cam = relu_cam_pad.reshape(N, Hc, Wc, -1)[..., :NUM_CLASSES]
    norm_cam = jnp.transpose(norm_cam, (0, 3, 1, 2))                # NCHW
    return score, norm_cam


# ----------------------------------------------------------------------------
# Demo
# ----------------------------------------------------------------------------
if __name__ == "__main__":
    key = jax.random.PRNGKey(0)
    pkey, xkey = jax.random.split(key)
    params = init_net(pkey)
    x = jax.random.normal(xkey, (2, 3, 32, 32), jnp.float32)   # NCHW input

    fwd = jax.jit(lambda p, inp: net_forward(p, inp, feature_name="layer4"))
    score, norm_cam = fwd(params, x)
    jax.block_until_ready((score, norm_cam))

    assert score.shape == (2, NUM_CLASSES)
    assert norm_cam.shape == (2, NUM_CLASSES, 2, 2)
    assert bool(jnp.all(norm_cam >= 0.0))
    print("KERNEL_OK")
</pallas_src>

<mosaic_0001>
module attributes {stable_mosaic.version = 11 : i64} {
  func.func @_mm_bn_kernel(%arg0: i32, %arg1: i32, %arg2: memref<256x147xbf16, #tpu.memory_space<vmem>>, %arg3: memref<147x128xbf16, #tpu.memory_space<vmem>>, %arg4: memref<1x128xf32, #tpu.memory_space<vmem>>, %arg5: memref<256x128xbf16, #tpu.memory_space<vmem>>, %arg6: memref<256x128xf32, #tpu.memory_space<vmem>>) attributes {dimension_semantics = [#tpu.dimension_semantics<parallel>, #tpu.dimension_semantics<arbitrary>], iteration_bounds = array<i64: 2, 1>, scalar_prefetch = 0 : i64, scratch_operands = 1 : i64, tpu.core_type = #tpu.core_type<tc>, window_params = [{transform_indices = @transform_0, window_bounds = array<i64: 256, 147>}, {transform_indices = @transform_1, window_bounds = array<i64: 147, 128>}, {pipeline_mode = #tpu.pipeline_mode<synchronous>, transform_indices = @transform_2, window_bounds = array<i64: 1, 128>}, {transform_indices = @transform_3, window_bounds = array<i64: 256, 128>}]} {
    %c0_i32 = arith.constant 0 : i32
    %0 = arith.cmpi eq, %arg1, %c0_i32 : i32
    %1 = arith.extui %0 : i1 to i32
    %c0_i32_0 = arith.constant 0 : i32
    %2 = arith.cmpi ne, %1, %c0_i32_0 : i32
    scf.if %2 {
      %cst_10 = arith.constant 0.000000e+00 : f32
      %12 = vector.broadcast %cst_10 : f32 to vector<256x128xf32>
      %c0_11 = arith.constant 0 : index
      %c0_12 = arith.constant 0 : index
      %13 = vector.load %arg6[%c0_11, %c0_12] : memref<256x128xf32, #tpu.memory_space<vmem>>, vector<256x128xf32>
      tpu.vector_store %arg6[%c0_11, %c0_12], %12 {strides = array<i32>} : memref<256x128xf32, #tpu.memory_space<vmem>>, vector<256x128xf32>,
    } else {
    }
    %c0 = arith.constant 0 : index
    %c0_1 = arith.constant 0 : index
    %3 = vector.load %arg6[%c0, %c0_1] : memref<256x128xf32, #tpu.memory_space<vmem>>, vector<256x128xf32>
    %c0_2 = arith.constant 0 : index
    %c0_3 = arith.constant 0 : index
    %4 = vector.load %arg2[%c0_2, %c0_3] : memref<256x147xbf16, #tpu.memory_space<vmem>>, vector<256x147xbf16>
    %c0_4 = arith.constant 0 : index
    %c0_5 = arith.constant 0 : index
    %5 = vector.load %arg3[%c0_4, %c0_5] : memref<147x128xbf16, #tpu.memory_space<vmem>>, vector<147x128xbf16>
    %cst = arith.constant dense<0.000000e+00> : vector<256x128xf32>
    %6 = tpu.matmul %4, %5, %cst {dimension_numbers = #tpu.dot_dimension_numbers<[1], [0], [0], [1], [0, 0, 1, 1], [], []>} : vector<256x147xbf16>, vector<147x128xbf16>, vector<256x128xf32> -> vector<256x128xf32>
    %7 = arith.addf %3, %6 : vector<256x128xf32>
    %c0_6 = arith.constant 0 : index
    %c0_7 = arith.constant 0 : index
    %8 = vector.load %arg6[%c0_6, %c0_7] : memref<256x128xf32, #tpu.memory_space<vmem>>, vector<256x128xf32>
    tpu.vector_store %arg6[%c0_6, %c0_7], %7 {strides = array<i32>} : memref<256x128xf32, #tpu.memory_space<vmem>>, vector<256x128xf32>,
    %c0_i32_8 = arith.constant 0 : i32
    %9 = arith.cmpi eq, %arg1, %c0_i32_8 : i32
    %10 = arith.extui %9 : i1 to i32
    %c0_i32_9 = arith.constant 0 : i32
    %11 = arith.cmpi ne, %10, %c0_i32_9 : i32
    scf.if %11 {
      %c0_10 = arith.constant 0 : index
      %c0_11 = arith.constant 0 : index
      %12 = vector.load %arg6[%c0_10, %c0_11] : memref<256x128xf32, #tpu.memory_space<vmem>>, vector<256x128xf32>
      %c0_12 = arith.constant 0 : index
      %c0_13 = arith.constant 0 : index
      %13 = vector.load %arg4[%c0_12, %c0_13] : memref<1x128xf32, #tpu.memory_space<vmem>>, vector<1x128xf32>
      %14 = vector.broadcast %13 : vector<1x128xf32> to vector<256x128xf32>
      %15 = arith.addf %12, %14 : vector<256x128xf32>
      %cst_14 = arith.constant 0.000000e+00 : f32
      %16 = vector.broadcast %cst_14 : f32 to vector<256x128xf32>
      %17 = arith.maximumf %15, %16 : vector<256x128xf32>
      %18 = arith.truncf %17 : vector<256x128xf32> to vector<256x128xbf16>
      %c0_15 = arith.constant 0 : index
      %c0_16 = arith.constant 0 : index
      %19 = vector.load %arg5[%c0_15, %c0_16] : memref<256x128xbf16, #tpu.memory_space<vmem>>, vector<256x128xbf16>
      tpu.vector_store %arg5[%c0_15, %c0_16], %18 {strides = array<i32>} : memref<256x128xbf16, #tpu.memory_space<vmem>>, vector<256x128xbf16>,
    } else {
    }
    return
  }
  func.func @transform_0(%arg0: i32, %arg1: i32) -> (i32, i32) {
    %c0_i32 = arith.constant 0 : i32
    return %arg0, %arg1 : i32, i32
  }
  func.func @transform_1(%arg0: i32, %arg1: i32) -> (i32, i32) {
    %c0_i32 = arith.constant 0 : i32
    %c0_i32_0 = arith.constant 0 : i32
    return %arg1, %c0_i32 : i32, i32
  }
  func.func @transform_2(%arg0: i32, %arg1: i32) -> (i32, i32) {
    %c0_i32 = arith.constant 0 : i32
    %c0_i32_0 = arith.constant 0 : i32
    %c0_i32_1 = arith.constant 0 : i32
    return %c0_i32, %c0_i32_0 : i32, i32
  }
  func.func @transform_3(%arg0: i32, %arg1: i32) -> (i32, i32) {
    %c0_i32 = arith.constant 0 : i32
    %c0_i32_0 = arith.constant 0 : i32
    return %arg0, %c0_i32 : i32, i32
  }
}

module attributes {stable_mosaic.version = 11 : i64} {
  func.func @_maxpool9_kernel(%arg0: i32, %arg1: memref<64x128xbf16, #tpu.memory_space<vmem>>, %arg2: memref<64x128xbf16, #tpu.memory_space<vmem>>, %arg3: memref<64x128xbf16, #tpu.memory_space<vmem>>, %arg4: memref<64x128xbf16, #tpu.memory_space<vmem>>, %arg5: memref<64x128xbf16, #tpu.memory_space<vmem>>, %arg6: memref<64x128xbf16, #tpu.memory_space<vmem>>, %arg7: memref<64x128xbf16, #tpu.memory_space<vmem>>, %arg8: memref<64x128xbf16, #tpu.memory_space<vmem>>, %arg9: memref<64x128xbf16, #tpu.memory_space<vmem>>, %arg10: memref<64x128xbf16, #tpu.memory_space<vmem>>) attributes {dimension_semantics = [#tpu.dimension_semantics<parallel>], iteration_bounds = array<i64: 2>, scalar_prefetch = 0 : i64, scratch_operands = 0 : i64, tpu.core_type = #tpu.core_type<tc>, window_params = [{transform_indices = @transform_0, window_bounds = array<i64: 64, 128>}, {transform_indices = @transform_1, window_bounds = array<i64: 64, 128>}, {transform_indices = @transform_2, window_bounds = array<i64: 64, 128>}, {transform_indices = @transform_3, window_bounds = array<i64: 64, 128>}, {transform_indices = @transform_4, window_bounds = array<i64: 64, 128>}, {transform_indices = @transform_5, window_bounds = array<i64: 64, 128>}, {transform_indices = @transform_6, window_bounds = array<i64: 64, 128>}, {transform_indices = @transform_7, window_bounds = array<i64: 64, 128>}, {transform_indices = @transform_8, window_bounds = array<i64: 64, 128>}, {transform_indices = @transform_9, window_bounds = array<i64: 64, 128>}]} {
    %c0 = arith.constant 0 : index
    %c0_0 = arith.constant 0 : index
    %0 = vector.load %arg1[%c0, %c0_0] : memref<64x128xbf16, #tpu.memory_space<vmem>>, vector<64x128xbf16>
    %c0_1 = arith.constant 0 : index
    %c0_2 = arith.constant 0 : index
    %1 = vector.load %arg2[%c0_1, %c0_2] : memref<64x128xbf16, #tpu.memory_space<vmem>>, vector<64x128xbf16>
    %2 = arith.maximumf %0, %1 : vector<64x128xbf16>
    %c0_3 = arith.constant 0 : index
    %c0_4 = arith.constant 0 : index
    %3 = vector.load %arg3[%c0_3, %c0_4] : memref<64x128xbf16, #tpu.memory_space<vmem>>, vector<64x128xbf16>
    %c0_5 = arith.constant 0 : index
    %c0_6 = arith.constant 0 : index
    %4 = vector.load %arg4[%c0_5, %c0_6] : memref<64x128xbf16, #tpu.memory_space<vmem>>, vector<64x128xbf16>
    %5 = arith.maximumf %3, %4 : vector<64x128xbf16>
    %6 = arith.maximumf %2, %5 : vector<64x128xbf16>
    %c0_7 = arith.constant 0 : index
    %c0_8 = arith.constant 0 : index
    %7 = vector.load %arg5[%c0_7, %c0_8] : memref<64x128xbf16, #tpu.memory_space<vmem>>, vector<64x128xbf16>
    %c0_9 = arith.constant 0 : index
    %c0_10 = arith.constant 0 : index
    %8 = vector.load %arg6[%c0_9, %c0_10] : memref<64x128xbf16, #tpu.memory_space<vmem>>, vector<64x128xbf16>
    %9 = arith.maximumf %7, %8 : vector<64x128xbf16>
    %c0_11 = arith.constant 0 : index
    %c0_12 = arith.constant 0 : index
    %10 = vector.load %arg7[%c0_11, %c0_12] : memref<64x128xbf16, #tpu.memory_space<vmem>>, vector<64x128xbf16>
    %c0_13 = arith.constant 0 : index
    %c0_14 = arith.constant 0 : index
    %11 = vector.load %arg8[%c0_13, %c0_14] : memref<64x128xbf16, #tpu.memory_space<vmem>>, vector<64x128xbf16>
    %12 = arith.maximumf %10, %11 : vector<64x128xbf16>
    %13 = arith.maximumf %9, %12 : vector<64x128xbf16>
    %14 = arith.maximumf %6, %13 : vector<64x128xbf16>
    %c0_15 = arith.constant 0 : index
    %c0_16 = arith.constant 0 : index
    %15 = vector.load %arg9[%c0_15, %c0_16] : memref<64x128xbf16, #tpu.memory_space<vmem>>, vector<64x128xbf16>
    %16 = arith.maximumf %14, %15 : vector<64x128xbf16>
    %c0_17 = arith.constant 0 : index
    %c0_18 = arith.constant 0 : index
    %17 = vector.load %arg10[%c0_17, %c0_18] : memref<64x128xbf16, #tpu.memory_space<vmem>>, vector<64x128xbf16>
    tpu.vector_store %arg10[%c0_17, %c0_18], %16 {strides = array<i32>} : memref<64x128xbf16, #tpu.memory_space<vmem>>, vector<64x128xbf16>,
    return
  }
  func.func @transform_0(%arg0: i32) -> (i32, i32) {
    %c0_i32 = arith.constant 0 : i32
    %c0_i32_0 = arith.constant 0 : i32
    return %arg0, %c0_i32 : i32, i32
  }
  func.func @transform_1(%arg0: i32) -> (i32, i32) {
    %c0_i32 = arith.constant 0 : i32
    %c0_i32_0 = arith.constant 0 : i32
    return %arg0, %c0_i32 : i32, i32
  }
  func.func @transform_2(%arg0: i32) -> (i32, i32) {
    %c0_i32 = arith.constant 0 : i32
    %c0_i32_0 = arith.constant 0 : i32
    return %arg0, %c0_i32 : i32, i32
  }
  func.func @transform_3(%arg0: i32) -> (i32, i32) {
    %c0_i32 = arith.constant 0 : i32
    %c0_i32_0 = arith.constant 0 : i32
    return %arg0, %c0_i32 : i32, i32
  }
  func.func @transform_4(%arg0: i32) -> (i32, i32) {
    %c0_i32 = arith.constant 0 : i32
    %c0_i32_0 = arith.constant 0 : i32
    return %arg0, %c0_i32 : i32, i32
  }
  func.func @transform_5(%arg0: i32) -> (i32, i32) {
    %c0_i32 = arith.constant 0 : i32
    %c0_i32_0 = arith.constant 0 : i32
    return %arg0, %c0_i32 : i32, i32
  }
  func.func @transform_6(%arg0: i32) -> (i32, i32) {
    %c0_i32 = arith.constant 0 : i32
    %c0_i32_0 = arith.constant 0 : i32
    return %arg0, %c0_i32 : i32, i32
  }
  func.func @transform_7(%arg0: i32) -> (i32, i32) {
    %c0_i32 = arith.constant 0 : i32
    %c0_i32_0 = arith.constant 0 : i32
    return %arg0, %c0_i32 : i32, i32
  }
  func.func @transform_8(%arg0: i32) -> (i32, i32) {
    %c0_i32 = arith.constant 0 : i32
    %c0_i32_0 = arith.constant 0 : i32
    return %arg0, %c0_i32 : i32, i32
  }
  func.func @transform_9(%arg0: i32) -> (i32, i32) {
    %c0_i32 = arith.constant 0 : i32
    %c0_i32_0 = arith.constant 0 : i32
    return %arg0, %c0_i32 : i32, i32
  }
}

module attributes {stable_mosaic.version = 11 : i64} {
  func.func @_mm_bn_kernel(%arg0: i32, %arg1: i32, %arg2: memref<64x128xbf16, #tpu.memory_space<vmem>>, %arg3: memref<128x128xbf16, #tpu.memory_space<vmem>>, %arg4: memref<1x128xf32, #tpu.memory_space<vmem>>, %arg5: memref<64x128xbf16, #tpu.memory_space<vmem>>, %arg6: memref<64x128xf32, #tpu.memory_space<vmem>>) attributes {dimension_semantics = [#tpu.dimension_semantics<parallel>, #tpu.dimension_semantics<arbitrary>], iteration_bounds = array<i64: 2, 1>, scalar_prefetch = 0 : i64, scratch_operands = 1 : i64, tpu.core_type = #tpu.core_type<tc>, window_params = [{transform_indices = @transform_0, window_bounds = array<i64: 64, 128>}, {transform_indices = @transform_1, window_bounds = array<i64: 128, 128>}, {pipeline_mode = #tpu.pipeline_mode<synchronous>, transform_indices = @transform_2, window_bounds = array<i64: 1, 128>}, {transform_indices = @transform_3, window_bounds = array<i64: 64, 128>}]} {
    %c0_i32 = arith.constant 0 : i32
    %0 = arith.cmpi eq, %arg1, %c0_i32 : i32
    %1 = arith.extui %0 : i1 to i32
    %c0_i32_0 = arith.constant 0 : i32
    %2 = arith.cmpi ne, %1, %c0_i32_0 : i32
    scf.if %2 {
      %cst_10 = arith.constant 0.000000e+00 : f32
      %12 = vector.broadcast %cst_10 : f32 to vector<64x128xf32>
      %c0_11 = arith.constant 0 : index
      %c0_12 = arith.constant 0 : index
      %13 = vector.load %arg6[%c0_11, %c0_12] : memref<64x128xf32, #tpu.memory_space<vmem>>, vector<64x128xf32>
      tpu.vector_store %arg6[%c0_11, %c0_12], %12 {strides = array<i32>} : memref<64x128xf32, #tpu.memory_space<vmem>>, vector<64x128xf32>,
    } else {
    }
    %c0 = arith.constant 0 : index
    %c0_1 = arith.constant 0 : index
    %3 = vector.load %arg6[%c0, %c0_1] : memref<64x128xf32, #tpu.memory_space<vmem>>, vector<64x128xf32>
    %c0_2 = arith.constant 0 : index
    %c0_3 = arith.constant 0 : index
    %4 = vector.load %arg2[%c0_2, %c0_3] : memref<64x128xbf16, #tpu.memory_space<vmem>>, vector<64x128xbf16>
    %c0_4 = arith.constant 0 : index
    %c0_5 = arith.constant 0 : index
    %5 = vector.load %arg3[%c0_4, %c0_5] : memref<128x128xbf16, #tpu.memory_space<vmem>>, vector<128x128xbf16>
    %cst = arith.constant dense<0.000000e+00> : vector<64x128xf32>
    %6 = tpu.matmul %4, %5, %cst {dimension_numbers = #tpu.dot_dimension_numbers<[1], [0], [0], [1], [0, 0, 1, 1], [], []>} : vector<64x128xbf16>, vector<128x128xbf16>, vector<64x128xf32> -> vector<64x128xf32>
    %7 = arith.addf %3, %6 : vector<64x128xf32>
    %c0_6 = arith.constant 0 : index
    %c0_7 = arith.constant 0 : index
    %8 = vector.load %arg6[%c0_6, %c0_7] : memref<64x128xf32, #tpu.memory_space<vmem>>, vector<64x128xf32>
    tpu.vector_store %arg6[%c0_6, %c0_7], %7 {strides = array<i32>} : memref<64x128xf32, #tpu.memory_space<vmem>>, vector<64x128xf32>,
    %c0_i32_8 = arith.constant 0 : i32
    %9 = arith.cmpi eq, %arg1, %c0_i32_8 : i32
    %10 = arith.extui %9 : i1 to i32
    %c0_i32_9 = arith.constant 0 : i32
    %11 = arith.cmpi ne, %10, %c0_i32_9 : i32
    scf.if %11 {
      %c0_10 = arith.constant 0 : index
      %c0_11 = arith.constant 0 : index
      %12 = vector.load %arg6[%c0_10, %c0_11] : memref<64x128xf32, #tpu.memory_space<vmem>>, vector<64x128xf32>
      %c0_12 = arith.constant 0 : index
      %c0_13 = arith.constant 0 : index
      %13 = vector.load %arg4[%c0_12, %c0_13] : memref<1x128xf32, #tpu.memory_space<vmem>>, vector<1x128xf32>
      %14 = vector.broadcast %13 : vector<1x128xf32> to vector<64x128xf32>
      %15 = arith.addf %12, %14 : vector<64x128xf32>
      %cst_14 = arith.constant 0.000000e+00 : f32
      %16 = vector.broadcast %cst_14 : f32 to vector<64x128xf32>
      %17 = arith.maximumf %15, %16 : vector<64x128xf32>
      %18 = arith.truncf %17 : vector<64x128xf32> to vector<64x128xbf16>
      %c0_15 = arith.constant 0 : index
      %c0_16 = arith.constant 0 : index
      %19 = vector.load %arg5[%c0_15, %c0_16] : memref<64x128xbf16, #tpu.memory_space<vmem>>, vector<64x128xbf16>
      tpu.vector_store %arg5[%c0_15, %c0_16], %18 {strides = array<i32>} : memref<64x128xbf16, #tpu.memory_space<vmem>>, vector<64x128xbf16>,
    } else {
    }
    return
  }
  func.func @transform_0(%arg0: i32, %arg1: i32) -> (i32, i32) {
    %c0_i32 = arith.constant 0 : i32
    return %arg0, %arg1 : i32, i32
  }
  func.func @transform_1(%arg0: i32, %arg1: i32) -> (i32, i32) {
    %c0_i32 = arith.constant 0 : i32
    %c0_i32_0 = arith.constant 0 : i32
    return %arg1, %c0_i32 : i32, i32
  }
  func.func @transform_2(%arg0: i32, %arg1: i32) -> (i32, i32) {
    %c0_i32 = arith.constant 0 : i32
    %c0_i32_0 = arith.constant 0 : i32
    %c0_i32_1 = arith.constant 0 : i32
    return %c0_i32, %c0_i32_0 : i32, i32
  }
  func.func @transform_3(%arg0: i32, %arg1: i32) -> (i32, i32) {
    %c0_i32 = arith.constant 0 : i32
    %c0_i32_0 = arith.constant 0 : i32
    return %arg0, %c0_i32 : i32, i32
  }
}

module attributes {stable_mosaic.version = 11 : i64} {
  func.func @_mm_bn_kernel(%arg0: i32, %arg1: i32, %arg2: memref<64x384xbf16, #tpu.memory_space<vmem>>, %arg3: memref<384x128xbf16, #tpu.memory_space<vmem>>, %arg4: memref<1x128xf32, #tpu.memory_space<vmem>>, %arg5: memref<64x128xbf16, #tpu.memory_space<vmem>>, %arg6: memref<64x128xf32, #tpu.memory_space<vmem>>) attributes {dimension_semantics = [#tpu.dimension_semantics<parallel>, #tpu.dimension_semantics<arbitrary>], iteration_bounds = array<i64: 2, 3>, scalar_prefetch = 0 : i64, scratch_operands = 1 : i64, tpu.core_type = #tpu.core_type<tc>, window_params = [{transform_indices = @transform_0, window_bounds = array<i64: 64, 384>}, {transform_indices = @transform_1, window_bounds = array<i64: 384, 128>}, {pipeline_mode = #tpu.pipeline_mode<synchronous>, transform_indices = @transform_2, window_bounds = array<i64: 1, 128>}, {transform_indices = @transform_3, window_bounds = array<i64: 64, 128>}]} {
    %c0_i32 = arith.constant 0 : i32
    %0 = arith.cmpi eq, %arg1, %c0_i32 : i32
    %1 = arith.extui %0 : i1 to i32
    %c0_i32_0 = arith.constant 0 : i32
    %2 = arith.cmpi ne, %1, %c0_i32_0 : i32
    scf.if %2 {
      %cst_9 = arith.constant 0.000000e+00 : f32
      %12 = vector.broadcast %cst_9 : f32 to vector<64x128xf32>
      %c0_10 = arith.constant 0 : index
      %c0_11 = arith.constant 0 : index
      %13 = vector.load %arg6[%c0_10, %c0_11] : memref<64x128xf32, #tpu.memory_space<vmem>>, vector<64x128xf32>
      tpu.vector_store %arg6[%c0_10, %c0_11], %12 {strides = array<i32>} : memref<64x128xf32, #tpu.memory_space<vmem>>, vector<64x128xf32>,
    } else {
    }
    %c0 = arith.constant 0 : index
    %c0_1 = arith.constant 0 : index
    %3 = vector.load %arg6[%c0, %c0_1] : memref<64x128xf32, #tpu.memory_space<vmem>>, vector<64x128xf32>
    %c0_2 = arith.constant 0 : index
    %c0_3 = arith.constant 0 : index
    %4 = vector.load %arg2[%c0_2, %c0_3] : memref<64x384xbf16, #tpu.memory_space<vmem>>, vector<64x384xbf16>
    %c0_4 = arith.constant 0 : index
    %c0_5 = arith.constant 0 : index
    %5 = vector.load %arg3[%c0_4, %c0_5] : memref<384x128xbf16, #tpu.memory_space<vmem>>, vector<384x128xbf16>
    %cst = arith.constant dense<0.000000e+00> : vector<64x128xf32>
    %6 = tpu.matmul %4, %5, %cst {dimension_numbers = #tpu.dot_dimension_numbers<[1], [0], [0], [1], [0, 0, 1, 1], [], []>} : vector<64x384xbf16>, vector<384x128xbf16>, vector<64x128xf32> -> vector<64x128xf32>
    %7 = arith.addf %3, %6 : vector<64x128xf32>
    %c0_6 = arith.constant 0 : index
    %c0_7 = arith.constant 0 : index
    %8 = vector.load %arg6[%c0_6, %c0_7] : memref<64x128xf32, #tpu.memory_space<vmem>>, vector<64x128xf32>
    tpu.vector_store %arg6[%c0_6, %c0_7], %7 {strides = array<i32>} : memref<64x128xf32, #tpu.memory_space<vmem>>, vector<64x128xf32>,
    %c2_i32 = arith.constant 2 : i32
    %9 = arith.cmpi eq, %arg1, %c2_i32 : i32
    %10 = arith.extui %9 : i1 to i32
    %c0_i32_8 = arith.constant 0 : i32
    %11 = arith.cmpi ne, %10, %c0_i32_8 : i32
    scf.if %11 {
      %c0_9 = arith.constant 0 : index
      %c0_10 = arith.constant 0 : index
      %12 = vector.load %arg6[%c0_9, %c0_10] : memref<64x128xf32, #tpu.memory_space<vmem>>, vector<64x128xf32>
      %c0_11 = arith.constant 0 : index
      %c0_12 = arith.constant 0 : index
      %13 = vector.load %arg4[%c0_11, %c0_12] : memref<1x128xf32, #tpu.memory_space<vmem>>, vector<1x128xf32>
      %14 = vector.broadcast %13 : vector<1x128xf32> to vector<64x128xf32>
      %15 = arith.addf %12, %14 : vector<64x128xf32>
      %cst_13 = arith.constant 0.000000e+00 : f32
      %16 = vector.broadcast %cst_13 : f32 to vector<64x128xf32>
      %17 = arith.maximumf %15, %16 : vector<64x128xf32>
      %18 = arith.truncf %17 : vector<64x128xf32> to vector<64x128xbf16>
      %c0_14 = arith.constant 0 : index
      %c0_15 = arith.constant 0 : index
      %19 = vector.load %arg5[%c0_14, %c0_15] : memref<64x128xbf16, #tpu.memory_space<vmem>>, vector<64x128xbf16>
      tpu.vector_store %arg5[%c0_14, %c0_15], %18 {strides = array<i32>} : memref<64x128xbf16, #tpu.memory_space<vmem>>, vector<64x128xbf16>,
    } else {
    }
    return
  }
  func.func @transform_0(%arg0: i32, %arg1: i32) -> (i32, i32) {
    %c0_i32 = arith.constant 0 : i32
    return %arg0, %arg1 : i32, i32
  }
  func.func @transform_1(%arg0: i32, %arg1: i32) -> (i32, i32) {
    %c0_i32 = arith.constant 0 : i32
    %c0_i32_0 = arith.constant 0 : i32
    return %arg1, %c0_i32 : i32, i32
  }
  func.func @transform_2(%arg0: i32, %arg1: i32) -> (i32, i32) {
    %c0_i32 = arith.constant 0 : i32
    %c0_i32_0 = arith.constant 0 : i32
    %c0_i32_1 = arith.constant 0 : i32
    return %c0_i32, %c0_i32_0 : i32, i32
  }
  func.func @transform_3(%arg0: i32, %arg1: i32) -> (i32, i32) {
    %c0_i32 = arith.constant 0 : i32
    %c0_i32_0 = arith.constant 0 : i32
    return %arg0, %c0_i32 : i32, i32
  }
}

module attributes {stable_mosaic.version = 11 : i64} {
  func.func @_mm_bn_add_relu_kernel(%arg0: i32, %arg1: i32, %arg2: memref<64x128xbf16, #tpu.memory_space<vmem>>, %arg3: memref<128x128xbf16, #tpu.memory_space<vmem>>, %arg4: memref<1x128xf32, #tpu.memory_space<vmem>>, %arg5: memref<64x128xbf16, #tpu.memory_space<vmem>>, %arg6: memref<64x128xbf16, #tpu.memory_space<vmem>>, %arg7: memref<64x128xf32, #tpu.memory_space<vmem>>) attributes {dimension_semantics = [#tpu.dimension_semantics<parallel>, #tpu.dimension_semantics<arbitrary>], iteration_bounds = array<i64: 2, 1>, scalar_prefetch = 0 : i64, scratch_operands = 1 : i64, tpu.core_type = #tpu.core_type<tc>, window_params = [{transform_indices = @transform_0, window_bounds = array<i64: 64, 128>}, {transform_indices = @transform_1, window_bounds = array<i64: 128, 128>}, {pipeline_mode = #tpu.pipeline_mode<synchronous>, transform_indices = @transform_2, window_bounds = array<i64: 1, 128>}, {transform_indices = @transform_3, window_bounds = array<i64: 64, 128>}, {transform_indices = @transform_4, window_bounds = array<i64: 64, 128>}]} {
    %c0_i32 = arith.constant 0 : i32
    %0 = arith.cmpi eq, %arg1, %c0_i32 : i32
    %1 = arith.extui %0 : i1 to i32
    %c0_i32_0 = arith.constant 0 : i32
    %2 = arith.cmpi ne, %1, %c0_i32_0 : i32
    scf.if %2 {
      %cst_10 = arith.constant 0.000000e+00 : f32
      %12 = vector.broadcast %cst_10 : f32 to vector<64x128xf32>
      %c0_11 = arith.constant 0 : index
      %c0_12 = arith.constant 0 : index
      %13 = vector.load %arg7[%c0_11, %c0_12] : memref<64x128xf32, #tpu.memory_space<vmem>>, vector<64x128xf32>
      tpu.vector_store %arg7[%c0_11, %c0_12], %12 {strides = array<i32>} : memref<64x128xf32, #tpu.memory_space<vmem>>, vector<64x128xf32>,
    } else {
    }
    %c0 = arith.constant 0 : index
    %c0_1 = arith.constant 0 : index
    %3 = vector.load %arg7[%c0, %c0_1] : memref<64x128xf32, #tpu.memory_space<vmem>>, vector<64x128xf32>
    %c0_2 = arith.constant 0 : index
    %c0_3 = arith.constant 0 : index
    %4 = vector.load %arg2[%c0_2, %c0_3] : memref<64x128xbf16, #tpu.memory_space<vmem>>, vector<64x128xbf16>
    %c0_4 = arith.constant 0 : index
    %c0_5 = arith.constant 0 : index
    %5 = vector.load %arg3[%c0_4, %c0_5] : memref<128x128xbf16, #tpu.memory_space<vmem>>, vector<128x128xbf16>
    %cst = arith.constant dense<0.000000e+00> : vector<64x128xf32>
    %6 = tpu.matmul %4, %5, %cst {dimension_numbers = #tpu.dot_dimension_numbers<[1], [0], [0], [1], [0, 0, 1, 1], [], []>} : vector<64x128xbf16>, vector<128x128xbf16>, vector<64x128xf32> -> vector<64x128xf32>
    %7 = arith.addf %3, %6 : vector<64x128xf32>
    %c0_6 = arith.constant 0 : index
    %c0_7 = arith.constant 0 : index
    %8 = vector.load %arg7[%c0_6, %c0_7] : memref<64x128xf32, #tpu.memory_space<vmem>>, vector<64x128xf32>
    tpu.vector_store %arg7[%c0_6, %c0_7], %7 {strides = array<i32>} : memref<64x128xf32, #tpu.memory_space<vmem>>, vector<64x128xf32>,
    %c0_i32_8 = arith.constant 0 : i32
    %9 = arith.cmpi eq, %arg1, %c0_i32_8 : i32
    %10 = arith.extui %9 : i1 to i32
    %c0_i32_9 = arith.constant 0 : i32
    %11 = arith.cmpi ne, %10, %c0_i32_9 : i32
    scf.if %11 {
      %c0_10 = arith.constant 0 : index
      %c0_11 = arith.constant 0 : index
      %12 = vector.load %arg7[%c0_10, %c0_11] : memref<64x128xf32, #tpu.memory_space<vmem>>, vector<64x128xf32>
      %c0_12 = arith.constant 0 : index
      %c0_13 = arith.constant 0 : index
      %13 = vector.load %arg4[%c0_12, %c0_13] : memref<1x128xf32, #tpu.memory_space<vmem>>, vector<1x128xf32>
      %14 = vector.broadcast %13 : vector<1x128xf32> to vector<64x128xf32>
      %15 = arith.addf %12, %14 : vector<64x128xf32>
      %c0_14 = arith.constant 0 : index
      %c0_15 = arith.constant 0 : index
      %16 = vector.load %arg5[%c0_14, %c0_15] : memref<64x128xbf16, #tpu.memory_space<vmem>>, vector<64x128xbf16>
      %17 = arith.extf %16 : vector<64x128xbf16> to vector<64x128xf32>
      %18 = arith.addf %15, %17 : vector<64x128xf32>
      %cst_16 = arith.constant 0.000000e+00 : f32
      %19 = vector.broadcast %cst_16 : f32 to vector<64x128xf32>
      %20 = arith.maximumf %18, %19 : vector<64x128xf32>
      %21 = arith.truncf %20 : vector<64x128xf32> to vector<64x128xbf16>
      %c0_17 = arith.constant 0 : index
      %c0_18 = arith.constant 0 : index
      %22 = vector.load %arg6[%c0_17, %c0_18] : memref<64x128xbf16, #tpu.memory_space<vmem>>, vector<64x128xbf16>
      tpu.vector_store %arg6[%c0_17, %c0_18], %21 {strides = array<i32>} : memref<64x128xbf16, #tpu.memory_space<vmem>>, vector<64x128xbf16>,
    } else {
    }
    return
  }
  func.func @transform_0(%arg0: i32, %arg1: i32) -> (i32, i32) {
    %c0_i32 = arith.constant 0 : i32
    return %arg0, %arg1 : i32, i32
  }
  func.func @transform_1(%arg0: i32, %arg1: i32) -> (i32, i32) {
    %c0_i32 = arith.constant 0 : i32
    %c0_i32_0 = arith.constant 0 : i32
    return %arg1, %c0_i32 : i32, i32
  }
  func.func @transform_2(%arg0: i32, %arg1: i32) -> (i32, i32) {
    %c0_i32 = arith.constant 0 : i32
    %c0_i32_0 = arith.constant 0 : i32
    %c0_i32_1 = arith.constant 0 : i32
    return %c0_i32, %c0_i32_0 : i32, i32
  }
  func.func @transform_3(%arg0: i32, %arg1: i32) -> (i32, i32) {
    %c0_i32 = arith.constant 0 : i32
    %c0_i32_0 = arith.constant 0 : i32
    return %arg0, %c0_i32 : i32, i32
  }
  func.func @transform_4(%arg0: i32, %arg1: i32) -> (i32, i32) {
    %c0_i32 = arith.constant 0 : i32
    %c0_i32_0 = arith.constant 0 : i32
    return %arg0, %c0_i32 : i32, i32
  }
}

module attributes {stable_mosaic.version = 11 : i64} {
  func.func @_mm_bn_kernel(%arg0: i32, %arg1: i32, %arg2: memref<64x128xbf16, #tpu.memory_space<vmem>>, %arg3: memref<128x128xbf16, #tpu.memory_space<vmem>>, %arg4: memref<1x128xf32, #tpu.memory_space<vmem>>, %arg5: memref<64x128xbf16, #tpu.memory_space<vmem>>, %arg6: memref<64x128xf32, #tpu.memory_space<vmem>>) attributes {dimension_semantics = [#tpu.dimension_semantics<parallel>, #tpu.dimension_semantics<arbitrary>], iteration_bounds = array<i64: 2, 1>, scalar_prefetch = 0 : i64, scratch_operands = 1 : i64, tpu.core_type = #tpu.core_type<tc>, window_params = [{transform_indices = @transform_0, window_bounds = array<i64: 64, 128>}, {transform_indices = @transform_1, window_bounds = array<i64: 128, 128>}, {pipeline_mode = #tpu.pipeline_mode<synchronous>, transform_indices = @transform_2, window_bounds = array<i64: 1, 128>}, {transform_indices = @transform_3, window_bounds = array<i64: 64, 128>}]} {
    %c0_i32 = arith.constant 0 : i32
    %0 = arith.cmpi eq, %arg1, %c0_i32 : i32
    %1 = arith.extui %0 : i1 to i32
    %c0_i32_0 = arith.constant 0 : i32
    %2 = arith.cmpi ne, %1, %c0_i32_0 : i32
    scf.if %2 {
      %cst_10 = arith.constant 0.000000e+00 : f32
      %12 = vector.broadcast %cst_10 : f32 to vector<64x128xf32>
      %c0_11 = arith.constant 0 : index
      %c0_12 = arith.constant 0 : index
      %13 = vector.load %arg6[%c0_11, %c0_12] : memref<64x128xf32, #tpu.memory_space<vmem>>, vector<64x128xf32>
      tpu.vector_store %arg6[%c0_11, %c0_12], %12 {strides = array<i32>} : memref<64x128xf32, #tpu.memory_space<vmem>>, vector<64x128xf32>,
    } else {
    }
    %c0 = arith.constant 0 : index
    %c0_1 = arith.constant 0 : index
    %3 = vector.load %arg6[%c0, %c0_1] : memref<64x128xf32, #tpu.memory_space<vmem>>, vector<64x128xf32>
    %c0_2 = arith.constant 0 : index
    %c0_3 = arith.constant 0 : index
    %4 = vector.load %arg2[%c0_2, %c0_3] : memref<64x128xbf16, #tpu.memory_space<vmem>>, vector<64x128xbf16>
    %c0_4 = arith.constant 0 : index
    %c0_5 = arith.constant 0 : index
    %5 = vector.load %arg3[%c0_4, %c0_5] : memref<128x128xbf16, #tpu.memory_space<vmem>>, vector<128x128xbf16>
    %cst = arith.constant dense<0.000000e+00> : vector<64x128xf32>
    %6 = tpu.matmul %4, %5, %cst {dimension_numbers = #tpu.dot_dimension_numbers<[1], [0], [0], [1], [0, 0, 1, 1], [], []>} : vector<64x128xbf16>, vector<128x128xbf16>, vector<64x128xf32> -> vector<64x128xf32>
    %7 = arith.addf %3, %6 : vector<64x128xf32>
    %c0_6 = arith.constant 0 : index
    %c0_7 = arith.constant 0 : index
    %8 = vector.load %arg6[%c0_6, %c0_7] : memref<64x128xf32, #tpu.memory_space<vmem>>, vector<64x128xf32>
    tpu.vector_store %arg6[%c0_6, %c0_7], %7 {strides = array<i32>} : memref<64x128xf32, #tpu.memory_space<vmem>>, vector<64x128xf32>,
    %c0_i32_8 = arith.constant 0 : i32
    %9 = arith.cmpi eq, %arg1, %c0_i32_8 : i32
    %10 = arith.extui %9 : i1 to i32
    %c0_i32_9 = arith.constant 0 : i32
    %11 = arith.cmpi ne, %10, %c0_i32_9 : i32
    scf.if %11 {
      %c0_10 = arith.constant 0 : index
      %c0_11 = arith.constant 0 : index
      %12 = vector.load %arg6[%c0_10, %c0_11] : memref<64x128xf32, #tpu.memory_space<vmem>>, vector<64x128xf32>
      %c0_12 = arith.constant 0 : index
      %c0_13 = arith.constant 0 : index
      %13 = vector.load %arg4[%c0_12, %c0_13] : memref<1x128xf32, #tpu.memory_space<vmem>>, vector<1x128xf32>
      %14 = vector.broadcast %13 : vector<1x128xf32> to vector<64x128xf32>
      %15 = arith.addf %12, %14 : vector<64x128xf32>
      %16 = arith.truncf %15 : vector<64x128xf32> to vector<64x128xbf16>
      %c0_14 = arith.constant 0 : index
      %c0_15 = arith.constant 0 : index
      %17 = vector.load %arg5[%c0_14, %c0_15] : memref<64x128xbf16, #tpu.memory_space<vmem>>, vector<64x128xbf16>
      tpu.vector_store %arg5[%c0_14, %c0_15], %16 {strides = array<i32>} : memref<64x128xbf16, #tpu.memory_space<vmem>>, vector<64x128xbf16>,
    } else {
    }
    return
  }
  func.func @transform_0(%arg0: i32, %arg1: i32) -> (i32, i32) {
    %c0_i32 = arith.constant 0 : i32
    return %arg0, %arg1 : i32, i32
  }
  func.func @transform_1(%arg0: i32, %arg1: i32) -> (i32, i32) {
    %c0_i32 = arith.constant 0 : i32
    %c0_i32_0 = arith.constant 0 : i32
    return %arg1, %c0_i32 : i32, i32
  }
  func.func @transform_2(%arg0: i32, %arg1: i32) -> (i32, i32) {
    %c0_i32 = arith.constant 0 : i32
    %c0_i32_0 = arith.constant 0 : i32
    %c0_i32_1 = arith.constant 0 : i32
    return %c0_i32, %c0_i32_0 : i32, i32
  }
  func.func @transform_3(%arg0: i32, %arg1: i32) -> (i32, i32) {
    %c0_i32 = arith.constant 0 : i32
    %c0_i32_0 = arith.constant 0 : i32
    return %arg0, %c0_i32 : i32, i32
  }
}

module attributes {stable_mosaic.version = 11 : i64} {
  func.func @_mm_bn_kernel(%arg0: i32, %arg1: i32, %arg2: memref<16x384xbf16, #tpu.memory_space<vmem>>, %arg3: memref<384x128xbf16, #tpu.memory_space<vmem>>, %arg4: memref<1x128xf32, #tpu.memory_space<vmem>>, %arg5: memref<16x128xbf16, #tpu.memory_space<vmem>>, %arg6: memref<16x128xf32, #tpu.memory_space<vmem>>) attributes {dimension_semantics = [#tpu.dimension_semantics<parallel>, #tpu.dimension_semantics<arbitrary>], iteration_bounds = array<i64: 2, 3>, scalar_prefetch = 0 : i64, scratch_operands = 1 : i64, tpu.core_type = #tpu.core_type<tc>, window_params = [{transform_indices = @transform_0, window_bounds = array<i64: 16, 384>}, {transform_indices = @transform_1, window_bounds = array<i64: 384, 128>}, {pipeline_mode = #tpu.pipeline_mode<synchronous>, transform_indices = @transform_2, window_bounds = array<i64: 1, 128>}, {transform_indices = @transform_3, window_bounds = array<i64: 16, 128>}]} {
    %c0_i32 = arith.constant 0 : i32
    %0 = arith.cmpi eq, %arg1, %c0_i32 : i32
    %1 = arith.extui %0 : i1 to i32
    %c0_i32_0 = arith.constant 0 : i32
    %2 = arith.cmpi ne, %1, %c0_i32_0 : i32
    scf.if %2 {
      %cst_9 = arith.constant 0.000000e+00 : f32
      %12 = vector.broadcast %cst_9 : f32 to vector<16x128xf32>
      %c0_10 = arith.constant 0 : index
      %c0_11 = arith.constant 0 : index
      %13 = vector.load %arg6[%c0_10, %c0_11] : memref<16x128xf32, #tpu.memory_space<vmem>>, vector<16x128xf32>
      tpu.vector_store %arg6[%c0_10, %c0_11], %12 {strides = array<i32>} : memref<16x128xf32, #tpu.memory_space<vmem>>, vector<16x128xf32>,
    } else {
    }
    %c0 = arith.constant 0 : index
    %c0_1 = arith.constant 0 : index
    %3 = vector.load %arg6[%c0, %c0_1] : memref<16x128xf32, #tpu.memory_space<vmem>>, vector<16x128xf32>
    %c0_2 = arith.constant 0 : index
    %c0_3 = arith.constant 0 : index
    %4 = vector.load %arg2[%c0_2, %c0_3] : memref<16x384xbf16, #tpu.memory_space<vmem>>, vector<16x384xbf16>
    %c0_4 = arith.constant 0 : index
    %c0_5 = arith.constant 0 : index
    %5 = vector.load %arg3[%c0_4, %c0_5] : memref<384x128xbf16, #tpu.memory_space<vmem>>, vector<384x128xbf16>
    %cst = arith.constant dense<0.000000e+00> : vector<16x128xf32>
    %6 = tpu.matmul %4, %5, %cst {dimension_numbers = #tpu.dot_dimension_numbers<[1], [0], [0], [1], [0, 0, 1, 1], [], []>} : vector<16x384xbf16>, vector<384x128xbf16>, vector<16x128xf32> -> vector<16x128xf32>
    %7 = arith.addf %3, %6 : vector<16x128xf32>
    %c0_6 = arith.constant 0 : index
    %c0_7 = arith.constant 0 : index
    %8 = vector.load %arg6[%c0_6, %c0_7] : memref<16x128xf32, #tpu.memory_space<vmem>>, vector<16x128xf32>
    tpu.vector_store %arg6[%c0_6, %c0_7], %7 {strides = array<i32>} : memref<16x128xf32, #tpu.memory_space<vmem>>, vector<16x128xf32>,
    %c2_i32 = arith.constant 2 : i32
    %9 = arith.cmpi eq, %arg1, %c2_i32 : i32
    %10 = arith.extui %9 : i1 to i32
    %c0_i32_8 = arith.constant 0 : i32
    %11 = arith.cmpi ne, %10, %c0_i32_8 : i32
    scf.if %11 {
      %c0_9 = arith.constant 0 : index
      %c0_10 = arith.constant 0 : index
      %12 = vector.load %arg6[%c0_9, %c0_10] : memref<16x128xf32, #tpu.memory_space<vmem>>, vector<16x128xf32>
      %c0_11 = arith.constant 0 : index
      %c0_12 = arith.constant 0 : index
      %13 = vector.load %arg4[%c0_11, %c0_12] : memref<1x128xf32, #tpu.memory_space<vmem>>, vector<1x128xf32>
      %14 = vector.broadcast %13 : vector<1x128xf32> to vector<16x128xf32>
      %15 = arith.addf %12, %14 : vector<16x128xf32>
      %cst_13 = arith.constant 0.000000e+00 : f32
      %16 = vector.broadcast %cst_13 : f32 to vector<16x128xf32>
      %17 = arith.maximumf %15, %16 : vector<16x128xf32>
      %18 = arith.truncf %17 : vector<16x128xf32> to vector<16x128xbf16>
      %c0_14 = arith.constant 0 : index
      %c0_15 = arith.constant 0 : index
      %19 = vector.load %arg5[%c0_14, %c0_15] : memref<16x128xbf16, #tpu.memory_space<vmem>>, vector<16x128xbf16>
      tpu.vector_store %arg5[%c0_14, %c0_15], %18 {strides = array<i32>} : memref<16x128xbf16, #tpu.memory_space<vmem>>, vector<16x128xbf16>,
    } else {
    }
    return
  }
  func.func @transform_0(%arg0: i32, %arg1: i32) -> (i32, i32) {
    %c0_i32 = arith.constant 0 : i32
    return %arg0, %arg1 : i32, i32
  }
  func.func @transform_1(%arg0: i32, %arg1: i32) -> (i32, i32) {
    %c0_i32 = arith.constant 0 : i32
    %c0_i32_0 = arith.constant 0 : i32
    return %arg1, %c0_i32 : i32, i32
  }
  func.func @transform_2(%arg0: i32, %arg1: i32) -> (i32, i32) {
    %c0_i32 = arith.constant 0 : i32
    %c0_i32_0 = arith.constant 0 : i32
    %c0_i32_1 = arith.constant 0 : i32
    return %c0_i32, %c0_i32_0 : i32, i32
  }
  func.func @transform_3(%arg0: i32, %arg1: i32) -> (i32, i32) {
    %c0_i32 = arith.constant 0 : i32
    %c0_i32_0 = arith.constant 0 : i32
    return %arg0, %c0_i32 : i32, i32
  }
}

module attributes {stable_mosaic.version = 11 : i64} {
  func.func @_mm_bn_add_relu_kernel(%arg0: i32, %arg1: i32, %arg2: memref<16x128xbf16, #tpu.memory_space<vmem>>, %arg3: memref<128x128xbf16, #tpu.memory_space<vmem>>, %arg4: memref<1x128xf32, #tpu.memory_space<vmem>>, %arg5: memref<16x128xbf16, #tpu.memory_space<vmem>>, %arg6: memref<16x128xbf16, #tpu.memory_space<vmem>>, %arg7: memref<16x128xf32, #tpu.memory_space<vmem>>) attributes {dimension_semantics = [#tpu.dimension_semantics<parallel>, #tpu.dimension_semantics<arbitrary>], iteration_bounds = array<i64: 2, 1>, scalar_prefetch = 0 : i64, scratch_operands = 1 : i64, tpu.core_type = #tpu.core_type<tc>, window_params = [{transform_indices = @transform_0, window_bounds = array<i64: 16, 128>}, {transform_indices = @transform_1, window_bounds = array<i64: 128, 128>}, {pipeline_mode = #tpu.pipeline_mode<synchronous>, transform_indices = @transform_2, window_bounds = array<i64: 1, 128>}, {transform_indices = @transform_3, window_bounds = array<i64: 16, 128>}, {transform_indices = @transform_4, window_bounds = array<i64: 16, 128>}]} {
    %c0_i32 = arith.constant 0 : i32
    %0 = arith.cmpi eq, %arg1, %c0_i32 : i32
    %1 = arith.extui %0 : i1 to i32
    %c0_i32_0 = arith.constant 0 : i32
    %2 = arith.cmpi ne, %1, %c0_i32_0 : i32
    scf.if %2 {
      %cst_10 = arith.constant 0.000000e+00 : f32
      %12 = vector.broadcast %cst_10 : f32 to vector<16x128xf32>
      %c0_11 = arith.constant 0 : index
      %c0_12 = arith.constant 0 : index
      %13 = vector.load %arg7[%c0_11, %c0_12] : memref<16x128xf32, #tpu.memory_space<vmem>>, vector<16x128xf32>
      tpu.vector_store %arg7[%c0_11, %c0_12], %12 {strides = array<i32>} : memref<16x128xf32, #tpu.memory_space<vmem>>, vector<16x128xf32>,
    } else {
    }
    %c0 = arith.constant 0 : index
    %c0_1 = arith.constant 0 : index
    %3 = vector.load %arg7[%c0, %c0_1] : memref<16x128xf32, #tpu.memory_space<vmem>>, vector<16x128xf32>
    %c0_2 = arith.constant 0 : index
    %c0_3 = arith.constant 0 : index
    %4 = vector.load %arg2[%c0_2, %c0_3] : memref<16x128xbf16, #tpu.memory_space<vmem>>, vector<16x128xbf16>
    %c0_4 = arith.constant 0 : index
    %c0_5 = arith.constant 0 : index
    %5 = vector.load %arg3[%c0_4, %c0_5] : memref<128x128xbf16, #tpu.memory_space<vmem>>, vector<128x128xbf16>
    %cst = arith.constant dense<0.000000e+00> : vector<16x128xf32>
    %6 = tpu.matmul %4, %5, %cst {dimension_numbers = #tpu.dot_dimension_numbers<[1], [0], [0], [1], [0, 0, 1, 1], [], []>} : vector<16x128xbf16>, vector<128x128xbf16>, vector<16x128xf32> -> vector<16x128xf32>
    %7 = arith.addf %3, %6 : vector<16x128xf32>
    %c0_6 = arith.constant 0 : index
    %c0_7 = arith.constant 0 : index
    %8 = vector.load %arg7[%c0_6, %c0_7] : memref<16x128xf32, #tpu.memory_space<vmem>>, vector<16x128xf32>
    tpu.vector_store %arg7[%c0_6, %c0_7], %7 {strides = array<i32>} : memref<16x128xf32, #tpu.memory_space<vmem>>, vector<16x128xf32>,
    %c0_i32_8 = arith.constant 0 : i32
    %9 = arith.cmpi eq, %arg1, %c0_i32_8 : i32
    %10 = arith.extui %9 : i1 to i32
    %c0_i32_9 = arith.constant 0 : i32
    %11 = arith.cmpi ne, %10, %c0_i32_9 : i32
    scf.if %11 {
      %c0_10 = arith.constant 0 : index
      %c0_11 = arith.constant 0 : index
      %12 = vector.load %arg7[%c0_10, %c0_11] : memref<16x128xf32, #tpu.memory_space<vmem>>, vector<16x128xf32>
      %c0_12 = arith.constant 0 : index
      %c0_13 = arith.constant 0 : index
      %13 = vector.load %arg4[%c0_12, %c0_13] : memref<1x128xf32, #tpu.memory_space<vmem>>, vector<1x128xf32>
      %14 = vector.broadcast %13 : vector<1x128xf32> to vector<16x128xf32>
      %15 = arith.addf %12, %14 : vector<16x128xf32>
      %c0_14 = arith.constant 0 : index
      %c0_15 = arith.constant 0 : index
      %16 = vector.load %arg5[%c0_14, %c0_15] : memref<16x128xbf16, #tpu.memory_space<vmem>>, vector<16x128xbf16>
      %17 = arith.extf %16 : vector<16x128xbf16> to vector<16x128xf32>
      %18 = arith.addf %15, %17 : vector<16x128xf32>
      %cst_16 = arith.constant 0.000000e+00 : f32
      %19 = vector.broadcast %cst_16 : f32 to vector<16x128xf32>
      %20 = arith.maximumf %18, %19 : vector<16x128xf32>
      %21 = arith.truncf %20 : vector<16x128xf32> to vector<16x128xbf16>
      %c0_17 = arith.constant 0 : index
      %c0_18 = arith.constant 0 : index
      %22 = vector.load %arg6[%c0_17, %c0_18] : memref<16x128xbf16, #tpu.memory_space<vmem>>, vector<16x128xbf16>
      tpu.vector_store %arg6[%c0_17, %c0_18], %21 {strides = array<i32>} : memref<16x128xbf16, #tpu.memory_space<vmem>>, vector<16x128xbf16>,
    } else {
    }
    return
  }
  func.func @transform_0(%arg0: i32, %arg1: i32) -> (i32, i32) {
    %c0_i32 = arith.constant 0 : i32
    return %arg0, %arg1 : i32, i32
  }
  func.func @transform_1(%arg0: i32, %arg1: i32) -> (i32, i32) {
    %c0_i32 = arith.constant 0 : i32
    %c0_i32_0 = arith.constant 0 : i32
    return %arg1, %c0_i32 : i32, i32
  }
  func.func @transform_2(%arg0: i32, %arg1: i32) -> (i32, i32) {
    %c0_i32 = arith.constant 0 : i32
    %c0_i32_0 = arith.constant 0 : i32
    %c0_i32_1 = arith.constant 0 : i32
    return %c0_i32, %c0_i32_0 : i32, i32
  }
  func.func @transform_3(%arg0: i32, %arg1: i32) -> (i32, i32) {
    %c0_i32 = arith.constant 0 : i32
    %c0_i32_0 = arith.constant 0 : i32
    return %arg0, %c0_i32 : i32, i32
  }
  func.func @transform_4(%arg0: i32, %arg1: i32) -> (i32, i32) {
    %c0_i32 = arith.constant 0 : i32
    %c0_i32_0 = arith.constant 0 : i32
    return %arg0, %c0_i32 : i32, i32
  }
}

module attributes {stable_mosaic.version = 11 : i64} {
  func.func @_mm_bn_kernel(%arg0: i32, %arg1: i32, %arg2: memref<16x128xbf16, #tpu.memory_space<vmem>>, %arg3: memref<128x128xbf16, #tpu.memory_space<vmem>>, %arg4: memref<1x128xf32, #tpu.memory_space<vmem>>, %arg5: memref<16x128xbf16, #tpu.memory_space<vmem>>, %arg6: memref<16x128xf32, #tpu.memory_space<vmem>>) attributes {dimension_semantics = [#tpu.dimension_semantics<parallel>, #tpu.dimension_semantics<arbitrary>], iteration_bounds = array<i64: 2, 1>, scalar_prefetch = 0 : i64, scratch_operands = 1 : i64, tpu.core_type = #tpu.core_type<tc>, window_params = [{transform_indices = @transform_0, window_bounds = array<i64: 16, 128>}, {transform_indices = @transform_1, window_bounds = array<i64: 128, 128>}, {pipeline_mode = #tpu.pipeline_mode<synchronous>, transform_indices = @transform_2, window_bounds = array<i64: 1, 128>}, {transform_indices = @transform_3, window_bounds = array<i64: 16, 128>}]} {
    %c0_i32 = arith.constant 0 : i32
    %0 = arith.cmpi eq, %arg1, %c0_i32 : i32
    %1 = arith.extui %0 : i1 to i32
    %c0_i32_0 = arith.constant 0 : i32
    %2 = arith.cmpi ne, %1, %c0_i32_0 : i32
    scf.if %2 {
      %cst_10 = arith.constant 0.000000e+00 : f32
      %12 = vector.broadcast %cst_10 : f32 to vector<16x128xf32>
      %c0_11 = arith.constant 0 : index
      %c0_12 = arith.constant 0 : index
      %13 = vector.load %arg6[%c0_11, %c0_12] : memref<16x128xf32, #tpu.memory_space<vmem>>, vector<16x128xf32>
      tpu.vector_store %arg6[%c0_11, %c0_12], %12 {strides = array<i32>} : memref<16x128xf32, #tpu.memory_space<vmem>>, vector<16x128xf32>,
    } else {
    }
    %c0 = arith.constant 0 : index
    %c0_1 = arith.constant 0 : index
    %3 = vector.load %arg6[%c0, %c0_1] : memref<16x128xf32, #tpu.memory_space<vmem>>, vector<16x128xf32>
    %c0_2 = arith.constant 0 : index
    %c0_3 = arith.constant 0 : index
    %4 = vector.load %arg2[%c0_2, %c0_3] : memref<16x128xbf16, #tpu.memory_space<vmem>>, vector<16x128xbf16>
    %c0_4 = arith.constant 0 : index
    %c0_5 = arith.constant 0 : index
    %5 = vector.load %arg3[%c0_4, %c0_5] : memref<128x128xbf16, #tpu.memory_space<vmem>>, vector<128x128xbf16>
    %cst = arith.constant dense<0.000000e+00> : vector<16x128xf32>
    %6 = tpu.matmul %4, %5, %cst {dimension_numbers = #tpu.dot_dimension_numbers<[1], [0], [0], [1], [0, 0, 1, 1], [], []>} : vector<16x128xbf16>, vector<128x128xbf16>, vector<16x128xf32> -> vector<16x128xf32>
    %7 = arith.addf %3, %6 : vector<16x128xf32>
    %c0_6 = arith.constant 0 : index
    %c0_7 = arith.constant 0 : index
    %8 = vector.load %arg6[%c0_6, %c0_7] : memref<16x128xf32, #tpu.memory_space<vmem>>, vector<16x128xf32>
    tpu.vector_store %arg6[%c0_6, %c0_7], %7 {strides = array<i32>} : memref<16x128xf32, #tpu.memory_space<vmem>>, vector<16x128xf32>,
    %c0_i32_8 = arith.constant 0 : i32
    %9 = arith.cmpi eq, %arg1, %c0_i32_8 : i32
    %10 = arith.extui %9 : i1 to i32
    %c0_i32_9 = arith.constant 0 : i32
    %11 = arith.cmpi ne, %10, %c0_i32_9 : i32
    scf.if %11 {
      %c0_10 = arith.constant 0 : index
      %c0_11 = arith.constant 0 : index
      %12 = vector.load %arg6[%c0_10, %c0_11] : memref<16x128xf32, #tpu.memory_space<vmem>>, vector<16x128xf32>
      %c0_12 = arith.constant 0 : index
      %c0_13 = arith.constant 0 : index
      %13 = vector.load %arg4[%c0_12, %c0_13] : memref<1x128xf32, #tpu.memory_space<vmem>>, vector<1x128xf32>
      %14 = vector.broadcast %13 : vector<1x128xf32> to vector<16x128xf32>
      %15 = arith.addf %12, %14 : vector<16x128xf32>
      %cst_14 = arith.constant 0.000000e+00 : f32
      %16 = vector.broadcast %cst_14 : f32 to vector<16x128xf32>
      %17 = arith.maximumf %15, %16 : vector<16x128xf32>
      %18 = arith.truncf %17 : vector<16x128xf32> to vector<16x128xbf16>
      %c0_15 = arith.constant 0 : index
      %c0_16 = arith.constant 0 : index
      %19 = vector.load %arg5[%c0_15, %c0_16] : memref<16x128xbf16, #tpu.memory_space<vmem>>, vector<16x128xbf16>
      tpu.vector_store %arg5[%c0_15, %c0_16], %18 {strides = array<i32>} : memref<16x128xbf16, #tpu.memory_space<vmem>>, vector<16x128xbf16>,
    } else {
    }
    return
  }
  func.func @transform_0(%arg0: i32, %arg1: i32) -> (i32, i32) {
    %c0_i32 = arith.constant 0 : i32
    return %arg0, %arg1 : i32, i32
  }
  func.func @transform_1(%arg0: i32, %arg1: i32) -> (i32, i32) {
    %c0_i32 = arith.constant 0 : i32
    %c0_i32_0 = arith.constant 0 : i32
    return %arg1, %c0_i32 : i32, i32
  }
  func.func @transform_2(%arg0: i32, %arg1: i32) -> (i32, i32) {
    %c0_i32 = arith.constant 0 : i32
    %c0_i32_0 = arith.constant 0 : i32
    %c0_i32_1 = arith.constant 0 : i32
    return %c0_i32, %c0_i32_0 : i32, i32
  }
  func.func @transform_3(%arg0: i32, %arg1: i32) -> (i32, i32) {
    %c0_i32 = arith.constant 0 : i32
    %c0_i32_0 = arith.constant 0 : i32
    return %arg0, %c0_i32 : i32, i32
  }
}

module attributes {stable_mosaic.version = 11 : i64} {
  func.func @_mm_bn_kernel(%arg0: i32, %arg1: i32, %arg2: memref<16x128xbf16, #tpu.memory_space<vmem>>, %arg3: memref<128x128xbf16, #tpu.memory_space<vmem>>, %arg4: memref<1x128xf32, #tpu.memory_space<vmem>>, %arg5: memref<16x128xbf16, #tpu.memory_space<vmem>>, %arg6: memref<16x128xf32, #tpu.memory_space<vmem>>) attributes {dimension_semantics = [#tpu.dimension_semantics<parallel>, #tpu.dimension_semantics<arbitrary>], iteration_bounds = array<i64: 2, 1>, scalar_prefetch = 0 : i64, scratch_operands = 1 : i64, tpu.core_type = #tpu.core_type<tc>, window_params = [{transform_indices = @transform_0, window_bounds = array<i64: 16, 128>}, {transform_indices = @transform_1, window_bounds = array<i64: 128, 128>}, {pipeline_mode = #tpu.pipeline_mode<synchronous>, transform_indices = @transform_2, window_bounds = array<i64: 1, 128>}, {transform_indices = @transform_3, window_bounds = array<i64: 16, 128>}]} {
    %c0_i32 = arith.constant 0 : i32
    %0 = arith.cmpi eq, %arg1, %c0_i32 : i32
    %1 = arith.extui %0 : i1 to i32
    %c0_i32_0 = arith.constant 0 : i32
    %2 = arith.cmpi ne, %1, %c0_i32_0 : i32
    scf.if %2 {
      %cst_10 = arith.constant 0.000000e+00 : f32
      %12 = vector.broadcast %cst_10 : f32 to vector<16x128xf32>
      %c0_11 = arith.constant 0 : index
      %c0_12 = arith.constant 0 : index
      %13 = vector.load %arg6[%c0_11, %c0_12] : memref<16x128xf32, #tpu.memory_space<vmem>>, vector<16x128xf32>
      tpu.vector_store %arg6[%c0_11, %c0_12], %12 {strides = array<i32>} : memref<16x128xf32, #tpu.memory_space<vmem>>, vector<16x128xf32>,
    } else {
    }
    %c0 = arith.constant 0 : index
    %c0_1 = arith.constant 0 : index
    %3 = vector.load %arg6[%c0, %c0_1] : memref<16x128xf32, #tpu.memory_space<vmem>>, vector<16x128xf32>
    %c0_2 = arith.constant 0 : index
    %c0_3 = arith.constant 0 : index
    %4 = vector.load %arg2[%c0_2, %c0_3] : memref<16x128xbf16, #tpu.memory_space<vmem>>, vector<16x128xbf16>
    %c0_4 = arith.constant 0 : index
    %c0_5 = arith.constant 0 : index
    %5 = vector.load %arg3[%c0_4, %c0_5] : memref<128x128xbf16, #tpu.memory_space<vmem>>, vector<128x128xbf16>
    %cst = arith.constant dense<0.000000e+00> : vector<16x128xf32>
    %6 = tpu.matmul %4, %5, %cst {dimension_numbers = #tpu.dot_dimension_numbers<[1], [0], [0], [1], [0, 0, 1, 1], [], []>} : vector<16x128xbf16>, vector<128x128xbf16>, vector<16x128xf32> -> vector<16x128xf32>
    %7 = arith.addf %3, %6 : vector<16x128xf32>
    %c0_6 = arith.constant 0 : index
    %c0_7 = arith.constant 0 : index
    %8 = vector.load %arg6[%c0_6, %c0_7] : memref<16x128xf32, #tpu.memory_space<vmem>>, vector<16x128xf32>
    tpu.vector_store %arg6[%c0_6, %c0_7], %7 {strides = array<i32>} : memref<16x128xf32, #tpu.memory_space<vmem>>, vector<16x128xf32>,
    %c0_i32_8 = arith.constant 0 : i32
    %9 = arith.cmpi eq, %arg1, %c0_i32_8 : i32
    %10 = arith.extui %9 : i1 to i32
    %c0_i32_9 = arith.constant 0 : i32
    %11 = arith.cmpi ne, %10, %c0_i32_9 : i32
    scf.if %11 {
      %c0_10 = arith.constant 0 : index
      %c0_11 = arith.constant 0 : index
      %12 = vector.load %arg6[%c0_10, %c0_11] : memref<16x128xf32, #tpu.memory_space<vmem>>, vector<16x128xf32>
      %c0_12 = arith.constant 0 : index
      %c0_13 = arith.constant 0 : index
      %13 = vector.load %arg4[%c0_12, %c0_13] : memref<1x128xf32, #tpu.memory_space<vmem>>, vector<1x128xf32>
      %14 = vector.broadcast %13 : vector<1x128xf32> to vector<16x128xf32>
      %15 = arith.addf %12, %14 : vector<16x128xf32>
      %16 = arith.truncf %15 : vector<16x128xf32> to vector<16x128xbf16>
      %c0_14 = arith.constant 0 : index
      %c0_15 = arith.constant 0 : index
      %17 = vector.load %arg5[%c0_14, %c0_15] : memref<16x128xbf16, #tpu.memory_space<vmem>>, vector<16x128xbf16>
      tpu.vector_store %arg5[%c0_14, %c0_15], %16 {strides = array<i32>} : memref<16x128xbf16, #tpu.memory_space<vmem>>, vector<16x128xbf16>,
    } else {
    }
    return
  }
  func.func @transform_0(%arg0: i32, %arg1: i32) -> (i32, i32) {
    %c0_i32 = arith.constant 0 : i32
    return %arg0, %arg1 : i32, i32
  }
  func.func @transform_1(%arg0: i32, %arg1: i32) -> (i32, i32) {
    %c0_i32 = arith.constant 0 : i32
    %c0_i32_0 = arith.constant 0 : i32
    return %arg1, %c0_i32 : i32, i32
  }
  func.func @transform_2(%arg0: i32, %arg1: i32) -> (i32, i32) {
    %c0_i32 = arith.constant 0 : i32
    %c0_i32_0 = arith.constant 0 : i32
    %c0_i32_1 = arith.constant 0 : i32
    return %c0_i32, %c0_i32_0 : i32, i32
  }
  func.func @transform_3(%arg0: i32, %arg1: i32) -> (i32, i32) {
    %c0_i32 = arith.constant 0 : i32
    %c0_i32_0 = arith.constant 0 : i32
    return %arg0, %c0_i32 : i32, i32
  }
}

module attributes {stable_mosaic.version = 11 : i64} {
  func.func @_mm_bn_kernel(%arg0: i32, %arg1: i32, %arg2: memref<8x128xbf16, #tpu.memory_space<vmem>>, %arg3: memref<128x128xbf16, #tpu.memory_space<vmem>>, %arg4: memref<1x128xf32, #tpu.memory_space<vmem>>, %arg5: memref<8x128xbf16, #tpu.memory_space<vmem>>, %arg6: memref<8x128xf32, #tpu.memory_space<vmem>>) attributes {dimension_semantics = [#tpu.dimension_semantics<parallel>, #tpu.dimension_semantics<arbitrary>], iteration_bounds = array<i64: 1, 1>, scalar_prefetch = 0 : i64, scratch_operands = 1 : i64, tpu.core_type = #tpu.core_type<tc>, window_params = [{transform_indices = @transform_0, window_bounds = array<i64: 8, 128>}, {transform_indices = @transform_1, window_bounds = array<i64: 128, 128>}, {pipeline_mode = #tpu.pipeline_mode<synchronous>, transform_indices = @transform_2, window_bounds = array<i64: 1, 128>}, {transform_indices = @transform_3, window_bounds = array<i64: 8, 128>}]} {
    %c0_i32 = arith.constant 0 : i32
    %0 = arith.cmpi eq, %arg1, %c0_i32 : i32
    %1 = arith.extui %0 : i1 to i32
    %c0_i32_0 = arith.constant 0 : i32
    %2 = arith.cmpi ne, %1, %c0_i32_0 : i32
    scf.if %2 {
      %cst_10 = arith.constant 0.000000e+00 : f32
      %12 = vector.broadcast %cst_10 : f32 to vector<8x128xf32>
      %c0_11 = arith.constant 0 : index
      %c0_12 = arith.constant 0 : index
      %13 = vector.load %arg6[%c0_11, %c0_12] : memref<8x128xf32, #tpu.memory_space<vmem>>, vector<8x128xf32>
      tpu.vector_store %arg6[%c0_11, %c0_12], %12 {strides = array<i32>} : memref<8x128xf32, #tpu.memory_space<vmem>>, vector<8x128xf32>,
    } else {
    }
    %c0 = arith.constant 0 : index
    %c0_1 = arith.constant 0 : index
    %3 = vector.load %arg6[%c0, %c0_1] : memref<8x128xf32, #tpu.memory_space<vmem>>, vector<8x128xf32>
    %c0_2 = arith.constant 0 : index
    %c0_3 = arith.constant 0 : index
    %4 = vector.load %arg2[%c0_2, %c0_3] : memref<8x128xbf16, #tpu.memory_space<vmem>>, vector<8x128xbf16>
    %c0_4 = arith.constant 0 : index
    %c0_5 = arith.constant 0 : index
    %5 = vector.load %arg3[%c0_4, %c0_5] : memref<128x128xbf16, #tpu.memory_space<vmem>>, vector<128x128xbf16>
    %cst = arith.constant dense<0.000000e+00> : vector<8x128xf32>
    %6 = tpu.matmul %4, %5, %cst {dimension_numbers = #tpu.dot_dimension_numbers<[1], [0], [0], [1], [0, 0, 1, 1], [], []>} : vector<8x128xbf16>, vector<128x128xbf16>, vector<8x128xf32> -> vector<8x128xf32>
    %7 = arith.addf %3, %6 : vector<8x128xf32>
    %c0_6 = arith.constant 0 : index
    %c0_7 = arith.constant 0 : index
    %8 = vector.load %arg6[%c0_6, %c0_7] : memref<8x128xf32, #tpu.memory_space<vmem>>, vector<8x128xf32>
    tpu.vector_store %arg6[%c0_6, %c0_7], %7 {strides = array<i32>} : memref<8x128xf32, #tpu.memory_space<vmem>>, vector<8x128xf32>,
    %c0_i32_8 = arith.constant 0 : i32
    %9 = arith.cmpi eq, %arg1, %c0_i32_8 : i32
    %10 = arith.extui %9 : i1 to i32
    %c0_i32_9 = arith.constant 0 : i32
    %11 = arith.cmpi ne, %10, %c0_i32_9 : i32
    scf.if %11 {
      %c0_10 = arith.constant 0 : index
      %c0_11 = arith.constant 0 : index
      %12 = vector.load %arg6[%c0_10, %c0_11] : memref<8x128xf32, #tpu.memory_space<vmem>>, vector<8x128xf32>
      %c0_12 = arith.constant 0 : index
      %c0_13 = arith.constant 0 : index
      %13 = vector.load %arg4[%c0_12, %c0_13] : memref<1x128xf32, #tpu.memory_space<vmem>>, vector<1x128xf32>
      %14 = vector.broadcast %13 : vector<1x128xf32> to vector<8x128xf32>
      %15 = arith.addf %12, %14 : vector<8x128xf32>
      %16 = arith.truncf %15 : vector<8x128xf32> to vector<8x128xbf16>
      %c0_14 = arith.constant 0 : index
      %c0_15 = arith.constant 0 : index
      %17 = vector.load %arg5[%c0_14, %c0_15] : memref<8x128xbf16, #tpu.memory_space<vmem>>, vector<8x128xbf16>
      tpu.vector_store %arg5[%c0_14, %c0_15], %16 {strides = array<i32>} : memref<8x128xbf16, #tpu.memory_space<vmem>>, vector<8x128xbf16>,
    } else {
    }
    return
  }
  func.func @transform_0(%arg0: i32, %arg1: i32) -> (i32, i32) {
    %c0_i32 = arith.constant 0 : i32
    return %arg0, %arg1 : i32, i32
  }
  func.func @transform_1(%arg0: i32, %arg1: i32) -> (i32, i32) {
    %c0_i32 = arith.constant 0 : i32
    %c0_i32_0 = arith.constant 0 : i32
    return %arg1, %c0_i32 : i32, i32
  }
  func.func @transform_2(%arg0: i32, %arg1: i32) -> (i32, i32) {
    %c0_i32 = arith.constant 0 : i32
    %c0_i32_0 = arith.constant 0 : i32
    %c0_i32_1 = arith.constant 0 : i32
    return %c0_i32, %c0_i32_0 : i32, i32
  }
  func.func @transform_3(%arg0: i32, %arg1: i32) -> (i32, i32) {
    %c0_i32 = arith.constant 0 : i32
    %c0_i32_0 = arith.constant 0 : i32
    return %arg0, %c0_i32 : i32, i32
  }
}

module attributes {stable_mosaic.version = 11 : i64} {
  func.func @_mm_bn_kernel(%arg0: i32, %arg1: i32, %arg2: memref<8x384xbf16, #tpu.memory_space<vmem>>, %arg3: memref<384x128xbf16, #tpu.memory_space<vmem>>, %arg4: memref<1x128xf32, #tpu.memory_space<vmem>>, %arg5: memref<8x128xbf16, #tpu.memory_space<vmem>>, %arg6: memref<8x128xf32, #tpu.memory_space<vmem>>) attributes {dimension_semantics = [#tpu.dimension_semantics<parallel>, #tpu.dimension_semantics<arbitrary>], iteration_bounds = array<i64: 1, 3>, scalar_prefetch = 0 : i64, scratch_operands = 1 : i64, tpu.core_type = #tpu.core_type<tc>, window_params = [{transform_indices = @transform_0, window_bounds = array<i64: 8, 384>}, {transform_indices = @transform_1, window_bounds = array<i64: 384, 128>}, {pipeline_mode = #tpu.pipeline_mode<synchronous>, transform_indices = @transform_2, window_bounds = array<i64: 1, 128>}, {transform_indices = @transform_3, window_bounds = array<i64: 8, 128>}]} {
    %c0_i32 = arith.constant 0 : i32
    %0 = arith.cmpi eq, %arg1, %c0_i32 : i32
    %1 = arith.extui %0 : i1 to i32
    %c0_i32_0 = arith.constant 0 : i32
    %2 = arith.cmpi ne, %1, %c0_i32_0 : i32
    scf.if %2 {
      %cst_9 = arith.constant 0.000000e+00 : f32
      %12 = vector.broadcast %cst_9 : f32 to vector<8x128xf32>
      %c0_10 = arith.constant 0 : index
      %c0_11 = arith.constant 0 : index
      %13 = vector.load %arg6[%c0_10, %c0_11] : memref<8x128xf32, #tpu.memory_space<vmem>>, vector<8x128xf32>
      tpu.vector_store %arg6[%c0_10, %c0_11], %12 {strides = array<i32>} : memref<8x128xf32, #tpu.memory_space<vmem>>, vector<8x128xf32>,
    } else {
    }
    %c0 = arith.constant 0 : index
    %c0_1 = arith.constant 0 : index
    %3 = vector.load %arg6[%c0, %c0_1] : memref<8x128xf32, #tpu.memory_space<vmem>>, vector<8x128xf32>
    %c0_2 = arith.constant 0 : index
    %c0_3 = arith.constant 0 : index
    %4 = vector.load %arg2[%c0_2, %c0_3] : memref<8x384xbf16, #tpu.memory_space<vmem>>, vector<8x384xbf16>
    %c0_4 = arith.constant 0 : index
    %c0_5 = arith.constant 0 : index
    %5 = vector.load %arg3[%c0_4, %c0_5] : memref<384x128xbf16, #tpu.memory_space<vmem>>, vector<384x128xbf16>
    %cst = arith.constant dense<0.000000e+00> : vector<8x128xf32>
    %6 = tpu.matmul %4, %5, %cst {dimension_numbers = #tpu.dot_dimension_numbers<[1], [0], [0], [1], [0, 0, 1, 1], [], []>} : vector<8x384xbf16>, vector<384x128xbf16>, vector<8x128xf32> -> vector<8x128xf32>
    %7 = arith.addf %3, %6 : vector<8x128xf32>
    %c0_6 = arith.constant 0 : index
    %c0_7 = arith.constant 0 : index
    %8 = vector.load %arg6[%c0_6, %c0_7] : memref<8x128xf32, #tpu.memory_space<vmem>>, vector<8x128xf32>
    tpu.vector_store %arg6[%c0_6, %c0_7], %7 {strides = array<i32>} : memref<8x128xf32, #tpu.memory_space<vmem>>, vector<8x128xf32>,
    %c2_i32 = arith.constant 2 : i32
    %9 = arith.cmpi eq, %arg1, %c2_i32 : i32
    %10 = arith.extui %9 : i1 to i32
    %c0_i32_8 = arith.constant 0 : i32
    %11 = arith.cmpi ne, %10, %c0_i32_8 : i32
    scf.if %11 {
      %c0_9 = arith.constant 0 : index
      %c0_10 = arith.constant 0 : index
      %12 = vector.load %arg6[%c0_9, %c0_10] : memref<8x128xf32, #tpu.memory_space<vmem>>, vector<8x128xf32>
      %c0_11 = arith.constant 0 : index
      %c0_12 = arith.constant 0 : index
      %13 = vector.load %arg4[%c0_11, %c0_12] : memref<1x128xf32, #tpu.memory_space<vmem>>, vector<1x128xf32>
      %14 = vector.broadcast %13 : vector<1x128xf32> to vector<8x128xf32>
      %15 = arith.addf %12, %14 : vector<8x128xf32>
      %cst_13 = arith.constant 0.000000e+00 : f32
      %16 = vector.broadcast %cst_13 : f32 to vector<8x128xf32>
      %17 = arith.maximumf %15, %16 : vector<8x128xf32>
      %18 = arith.truncf %17 : vector<8x128xf32> to vector<8x128xbf16>
      %c0_14 = arith.constant 0 : index
      %c0_15 = arith.constant 0 : index
      %19 = vector.load %arg5[%c0_14, %c0_15] : memref<8x128xbf16, #tpu.memory_space<vmem>>, vector<8x128xbf16>
      tpu.vector_store %arg5[%c0_14, %c0_15], %18 {strides = array<i32>} : memref<8x128xbf16, #tpu.memory_space<vmem>>, vector<8x128xbf16>,
    } else {
    }
    return
  }
  func.func @transform_0(%arg0: i32, %arg1: i32) -> (i32, i32) {
    %c0_i32 = arith.constant 0 : i32
    return %arg0, %arg1 : i32, i32
  }
  func.func @transform_1(%arg0: i32, %arg1: i32) -> (i32, i32) {
    %c0_i32 = arith.constant 0 : i32
    %c0_i32_0 = arith.constant 0 : i32
    return %arg1, %c0_i32 : i32, i32
  }
  func.func @transform_2(%arg0: i32, %arg1: i32) -> (i32, i32) {
    %c0_i32 = arith.constant 0 : i32
    %c0_i32_0 = arith.constant 0 : i32
    %c0_i32_1 = arith.constant 0 : i32
    return %c0_i32, %c0_i32_0 : i32, i32
  }
  func.func @transform_3(%arg0: i32, %arg1: i32) -> (i32, i32) {
    %c0_i32 = arith.constant 0 : i32
    %c0_i32_0 = arith.constant 0 : i32
    return %arg0, %c0_i32 : i32, i32
  }
}

module attributes {stable_mosaic.version = 11 : i64} {
  func.func @_mm_bn_kernel(%arg0: i32, %arg1: i32, %arg2: memref<8x128xbf16, #tpu.memory_space<vmem>>, %arg3: memref<128x128xbf16, #tpu.memory_space<vmem>>, %arg4: memref<1x128xf32, #tpu.memory_space<vmem>>, %arg5: memref<8x128xbf16, #tpu.memory_space<vmem>>, %arg6: memref<8x128xf32, #tpu.memory_space<vmem>>) attributes {dimension_semantics = [#tpu.dimension_semantics<parallel>, #tpu.dimension_semantics<arbitrary>], iteration_bounds = array<i64: 1, 1>, scalar_prefetch = 0 : i64, scratch_operands = 1 : i64, tpu.core_type = #tpu.core_type<tc>, window_params = [{transform_indices = @transform_0, window_bounds = array<i64: 8, 128>}, {transform_indices = @transform_1, window_bounds = array<i64: 128, 128>}, {pipeline_mode = #tpu.pipeline_mode<synchronous>, transform_indices = @transform_2, window_bounds = array<i64: 1, 128>}, {transform_indices = @transform_3, window_bounds = array<i64: 8, 128>}]} {
    %c0_i32 = arith.constant 0 : i32
    %0 = arith.cmpi eq, %arg1, %c0_i32 : i32
    %1 = arith.extui %0 : i1 to i32
    %c0_i32_0 = arith.constant 0 : i32
    %2 = arith.cmpi ne, %1, %c0_i32_0 : i32
    scf.if %2 {
      %cst_10 = arith.constant 0.000000e+00 : f32
      %12 = vector.broadcast %cst_10 : f32 to vector<8x128xf32>
      %c0_11 = arith.constant 0 : index
      %c0_12 = arith.constant 0 : index
      %13 = vector.load %arg6[%c0_11, %c0_12] : memref<8x128xf32, #tpu.memory_space<vmem>>, vector<8x128xf32>
      tpu.vector_store %arg6[%c0_11, %c0_12], %12 {strides = array<i32>} : memref<8x128xf32, #tpu.memory_space<vmem>>, vector<8x128xf32>,
    } else {
    }
    %c0 = arith.constant 0 : index
    %c0_1 = arith.constant 0 : index
    %3 = vector.load %arg6[%c0, %c0_1] : memref<8x128xf32, #tpu.memory_space<vmem>>, vector<8x128xf32>
    %c0_2 = arith.constant 0 : index
    %c0_3 = arith.constant 0 : index
    %4 = vector.load %arg2[%c0_2, %c0_3] : memref<8x128xbf16, #tpu.memory_space<vmem>>, vector<8x128xbf16>
    %c0_4 = arith.constant 0 : index
    %c0_5 = arith.constant 0 : index
    %5 = vector.load %arg3[%c0_4, %c0_5] : memref<128x128xbf16, #tpu.memory_space<vmem>>, vector<128x128xbf16>
    %cst = arith.constant dense<0.000000e+00> : vector<8x128xf32>
    %6 = tpu.matmul %4, %5, %cst {dimension_numbers = #tpu.dot_dimension_numbers<[1], [0], [0], [1], [0, 0, 1, 1], [], []>} : vector<8x128xbf16>, vector<128x128xbf16>, vector<8x128xf32> -> vector<8x128xf32>
    %7 = arith.addf %3, %6 : vector<8x128xf32>
    %c0_6 = arith.constant 0 : index
    %c0_7 = arith.constant 0 : index
    %8 = vector.load %arg6[%c0_6, %c0_7] : memref<8x128xf32, #tpu.memory_space<vmem>>, vector<8x128xf32>
    tpu.vector_store %arg6[%c0_6, %c0_7], %7 {strides = array<i32>} : memref<8x128xf32, #tpu.memory_space<vmem>>, vector<8x128xf32>,
    %c0_i32_8 = arith.constant 0 : i32
    %9 = arith.cmpi eq, %arg1, %c0_i32_8 : i32
    %10 = arith.extui %9 : i1 to i32
    %c0_i32_9 = arith.constant 0 : i32
    %11 = arith.cmpi ne, %10, %c0_i32_9 : i32
    scf.if %11 {
      %c0_10 = arith.constant 0 : index
      %c0_11 = arith.constant 0 : index
      %12 = vector.load %arg6[%c0_10, %c0_11] : memref<8x128xf32, #tpu.memory_space<vmem>>, vector<8x128xf32>
      %c0_12 = arith.constant 0 : index
      %c0_13 = arith.constant 0 : index
      %13 = vector.load %arg4[%c0_12, %c0_13] : memref<1x128xf32, #tpu.memory_space<vmem>>, vector<1x128xf32>
      %14 = vector.broadcast %13 : vector<1x128xf32> to vector<8x128xf32>
      %15 = arith.addf %12, %14 : vector<8x128xf32>
      %cst_14 = arith.constant 0.000000e+00 : f32
      %16 = vector.broadcast %cst_14 : f32 to vector<8x128xf32>
      %17 = arith.maximumf %15, %16 : vector<8x128xf32>
      %18 = arith.truncf %17 : vector<8x128xf32> to vector<8x128xbf16>
      %c0_15 = arith.constant 0 : index
      %c0_16 = arith.constant 0 : index
      %19 = vector.load %arg5[%c0_15, %c0_16] : memref<8x128xbf16, #tpu.memory_space<vmem>>, vector<8x128xbf16>
      tpu.vector_store %arg5[%c0_15, %c0_16], %18 {strides = array<i32>} : memref<8x128xbf16, #tpu.memory_space<vmem>>, vector<8x128xbf16>,
    } else {
    }
    return
  }
  func.func @transform_0(%arg0: i32, %arg1: i32) -> (i32, i32) {
    %c0_i32 = arith.constant 0 : i32
    return %arg0, %arg1 : i32, i32
  }
  func.func @transform_1(%arg0: i32, %arg1: i32) -> (i32, i32) {
    %c0_i32 = arith.constant 0 : i32
    %c0_i32_0 = arith.constant 0 : i32
    return %arg1, %c0_i32 : i32, i32
  }
  func.func @transform_2(%arg0: i32, %arg1: i32) -> (i32, i32) {
    %c0_i32 = arith.constant 0 : i32
    %c0_i32_0 = arith.constant 0 : i32
    %c0_i32_1 = arith.constant 0 : i32
    return %c0_i32, %c0_i32_0 : i32, i32
  }
  func.func @transform_3(%arg0: i32, %arg1: i32) -> (i32, i32) {
    %c0_i32 = arith.constant 0 : i32
    %c0_i32_0 = arith.constant 0 : i32
    return %arg0, %c0_i32 : i32, i32
  }
}

module attributes {stable_mosaic.version = 11 : i64} {
  func.func @_mm_bn_add_relu_kernel(%arg0: i32, %arg1: i32, %arg2: memref<8x128xbf16, #tpu.memory_space<vmem>>, %arg3: memref<128x128xbf16, #tpu.memory_space<vmem>>, %arg4: memref<1x128xf32, #tpu.memory_space<vmem>>, %arg5: memref<8x128xbf16, #tpu.memory_space<vmem>>, %arg6: memref<8x128xbf16, #tpu.memory_space<vmem>>, %arg7: memref<8x128xf32, #tpu.memory_space<vmem>>) attributes {dimension_semantics = [#tpu.dimension_semantics<parallel>, #tpu.dimension_semantics<arbitrary>], iteration_bounds = array<i64: 1, 1>, scalar_prefetch = 0 : i64, scratch_operands = 1 : i64, tpu.core_type = #tpu.core_type<tc>, window_params = [{transform_indices = @transform_0, window_bounds = array<i64: 8, 128>}, {transform_indices = @transform_1, window_bounds = array<i64: 128, 128>}, {pipeline_mode = #tpu.pipeline_mode<synchronous>, transform_indices = @transform_2, window_bounds = array<i64: 1, 128>}, {transform_indices = @transform_3, window_bounds = array<i64: 8, 128>}, {transform_indices = @transform_4, window_bounds = array<i64: 8, 128>}]} {
    %c0_i32 = arith.constant 0 : i32
    %0 = arith.cmpi eq, %arg1, %c0_i32 : i32
    %1 = arith.extui %0 : i1 to i32
    %c0_i32_0 = arith.constant 0 : i32
    %2 = arith.cmpi ne, %1, %c0_i32_0 : i32
    scf.if %2 {
      %cst_10 = arith.constant 0.000000e+00 : f32
      %12 = vector.broadcast %cst_10 : f32 to vector<8x128xf32>
      %c0_11 = arith.constant 0 : index
      %c0_12 = arith.constant 0 : index
      %13 = vector.load %arg7[%c0_11, %c0_12] : memref<8x128xf32, #tpu.memory_space<vmem>>, vector<8x128xf32>
      tpu.vector_store %arg7[%c0_11, %c0_12], %12 {strides = array<i32>} : memref<8x128xf32, #tpu.memory_space<vmem>>, vector<8x128xf32>,
    } else {
    }
    %c0 = arith.constant 0 : index
    %c0_1 = arith.constant 0 : index
    %3 = vector.load %arg7[%c0, %c0_1] : memref<8x128xf32, #tpu.memory_space<vmem>>, vector<8x128xf32>
    %c0_2 = arith.constant 0 : index
    %c0_3 = arith.constant 0 : index
    %4 = vector.load %arg2[%c0_2, %c0_3] : memref<8x128xbf16, #tpu.memory_space<vmem>>, vector<8x128xbf16>
    %c0_4 = arith.constant 0 : index
    %c0_5 = arith.constant 0 : index
    %5 = vector.load %arg3[%c0_4, %c0_5] : memref<128x128xbf16, #tpu.memory_space<vmem>>, vector<128x128xbf16>
    %cst = arith.constant dense<0.000000e+00> : vector<8x128xf32>
    %6 = tpu.matmul %4, %5, %cst {dimension_numbers = #tpu.dot_dimension_numbers<[1], [0], [0], [1], [0, 0, 1, 1], [], []>} : vector<8x128xbf16>, vector<128x128xbf16>, vector<8x128xf32> -> vector<8x128xf32>
    %7 = arith.addf %3, %6 : vector<8x128xf32>
    %c0_6 = arith.constant 0 : index
    %c0_7 = arith.constant 0 : index
    %8 = vector.load %arg7[%c0_6, %c0_7] : memref<8x128xf32, #tpu.memory_space<vmem>>, vector<8x128xf32>
    tpu.vector_store %arg7[%c0_6, %c0_7], %7 {strides = array<i32>} : memref<8x128xf32, #tpu.memory_space<vmem>>, vector<8x128xf32>,
    %c0_i32_8 = arith.constant 0 : i32
    %9 = arith.cmpi eq, %arg1, %c0_i32_8 : i32
    %10 = arith.extui %9 : i1 to i32
    %c0_i32_9 = arith.constant 0 : i32
    %11 = arith.cmpi ne, %10, %c0_i32_9 : i32
    scf.if %11 {
      %c0_10 = arith.constant 0 : index
      %c0_11 = arith.constant 0 : index
      %12 = vector.load %arg7[%c0_10, %c0_11] : memref<8x128xf32, #tpu.memory_space<vmem>>, vector<8x128xf32>
      %c0_12 = arith.constant 0 : index
      %c0_13 = arith.constant 0 : index
      %13 = vector.load %arg4[%c0_12, %c0_13] : memref<1x128xf32, #tpu.memory_space<vmem>>, vector<1x128xf32>
      %14 = vector.broadcast %13 : vector<1x128xf32> to vector<8x128xf32>
      %15 = arith.addf %12, %14 : vector<8x128xf32>
      %c0_14 = arith.constant 0 : index
      %c0_15 = arith.constant 0 : index
      %16 = vector.load %arg5[%c0_14, %c0_15] : memref<8x128xbf16, #tpu.memory_space<vmem>>, vector<8x128xbf16>
      %17 = arith.extf %16 : vector<8x128xbf16> to vector<8x128xf32>
      %18 = arith.addf %15, %17 : vector<8x128xf32>
      %cst_16 = arith.constant 0.000000e+00 : f32
      %19 = vector.broadcast %cst_16 : f32 to vector<8x128xf32>
      %20 = arith.maximumf %18, %19 : vector<8x128xf32>
      %21 = arith.truncf %20 : vector<8x128xf32> to vector<8x128xbf16>
      %c0_17 = arith.constant 0 : index
      %c0_18 = arith.constant 0 : index
      %22 = vector.load %arg6[%c0_17, %c0_18] : memref<8x128xbf16, #tpu.memory_space<vmem>>, vector<8x128xbf16>
      tpu.vector_store %arg6[%c0_17, %c0_18], %21 {strides = array<i32>} : memref<8x128xbf16, #tpu.memory_space<vmem>>, vector<8x128xbf16>,
    } else {
    }
    return
  }
  func.func @transform_0(%arg0: i32, %arg1: i32) -> (i32, i32) {
    %c0_i32 = arith.constant 0 : i32
    return %arg0, %arg1 : i32, i32
  }
  func.func @transform_1(%arg0: i32, %arg1: i32) -> (i32, i32) {
    %c0_i32 = arith.constant 0 : i32
    %c0_i32_0 = arith.constant 0 : i32
    return %arg1, %c0_i32 : i32, i32
  }
  func.func @transform_2(%arg0: i32, %arg1: i32) -> (i32, i32) {
    %c0_i32 = arith.constant 0 : i32
    %c0_i32_0 = arith.constant 0 : i32
    %c0_i32_1 = arith.constant 0 : i32
    return %c0_i32, %c0_i32_0 : i32, i32
  }
  func.func @transform_3(%arg0: i32, %arg1: i32) -> (i32, i32) {
    %c0_i32 = arith.constant 0 : i32
    %c0_i32_0 = arith.constant 0 : i32
    return %arg0, %c0_i32 : i32, i32
  }
  func.func @transform_4(%arg0: i32, %arg1: i32) -> (i32, i32) {
    %c0_i32 = arith.constant 0 : i32
    %c0_i32_0 = arith.constant 0 : i32
    return %arg0, %c0_i32 : i32, i32
  }
}

module attributes {stable_mosaic.version = 11 : i64} {
  func.func @_mm_bn_kernel(%arg0: i32, %arg1: i32, %arg2: memref<8x128xbf16, #tpu.memory_space<vmem>>, %arg3: memref<128x256xbf16, #tpu.memory_space<vmem>>, %arg4: memref<1x256xf32, #tpu.memory_space<vmem>>, %arg5: memref<8x256xbf16, #tpu.memory_space<vmem>>, %arg6: memref<8x256xf32, #tpu.memory_space<vmem>>) attributes {dimension_semantics = [#tpu.dimension_semantics<parallel>, #tpu.dimension_semantics<arbitrary>], iteration_bounds = array<i64: 1, 1>, scalar_prefetch = 0 : i64, scratch_operands = 1 : i64, tpu.core_type = #tpu.core_type<tc>, window_params = [{transform_indices = @transform_0, window_bounds = array<i64: 8, 128>}, {transform_indices = @transform_1, window_bounds = array<i64: 128, 256>}, {pipeline_mode = #tpu.pipeline_mode<synchronous>, transform_indices = @transform_2, window_bounds = array<i64: 1, 256>}, {transform_indices = @transform_3, window_bounds = array<i64: 8, 256>}]} {
    %c0_i32 = arith.constant 0 : i32
    %0 = arith.cmpi eq, %arg1, %c0_i32 : i32
    %1 = arith.extui %0 : i1 to i32
    %c0_i32_0 = arith.constant 0 : i32
    %2 = arith.cmpi ne, %1, %c0_i32_0 : i32
    scf.if %2 {
      %cst_10 = arith.constant 0.000000e+00 : f32
      %12 = vector.broadcast %cst_10 : f32 to vector<8x256xf32>
      %c0_11 = arith.constant 0 : index
      %c0_12 = arith.constant 0 : index
      %13 = vector.load %arg6[%c0_11, %c0_12] : memref<8x256xf32, #tpu.memory_space<vmem>>, vector<8x256xf32>
      tpu.vector_store %arg6[%c0_11, %c0_12], %12 {strides = array<i32>} : memref<8x256xf32, #tpu.memory_space<vmem>>, vector<8x256xf32>,
    } else {
    }
    %c0 = arith.constant 0 : index
    %c0_1 = arith.constant 0 : index
    %3 = vector.load %arg6[%c0, %c0_1] : memref<8x256xf32, #tpu.memory_space<vmem>>, vector<8x256xf32>
    %c0_2 = arith.constant 0 : index
    %c0_3 = arith.constant 0 : index
    %4 = vector.load %arg2[%c0_2, %c0_3] : memref<8x128xbf16, #tpu.memory_space<vmem>>, vector<8x128xbf16>
    %c0_4 = arith.constant 0 : index
    %c0_5 = arith.constant 0 : index
    %5 = vector.load %arg3[%c0_4, %c0_5] : memref<128x256xbf16, #tpu.memory_space<vmem>>, vector<128x256xbf16>
    %cst = arith.constant dense<0.000000e+00> : vector<8x256xf32>
    %6 = tpu.matmul %4, %5, %cst {dimension_numbers = #tpu.dot_dimension_numbers<[1], [0], [0], [1], [0, 0, 1, 1], [], []>} : vector<8x128xbf16>, vector<128x256xbf16>, vector<8x256xf32> -> vector<8x256xf32>
    %7 = arith.addf %3, %6 : vector<8x256xf32>
    %c0_6 = arith.constant 0 : index
    %c0_7 = arith.constant 0 : index
    %8 = vector.load %arg6[%c0_6, %c0_7] : memref<8x256xf32, #tpu.memory_space<vmem>>, vector<8x256xf32>
    tpu.vector_store %arg6[%c0_6, %c0_7], %7 {strides = array<i32>} : memref<8x256xf32, #tpu.memory_space<vmem>>, vector<8x256xf32>,
    %c0_i32_8 = arith.constant 0 : i32
    %9 = arith.cmpi eq, %arg1, %c0_i32_8 : i32
    %10 = arith.extui %9 : i1 to i32
    %c0_i32_9 = arith.constant 0 : i32
    %11 = arith.cmpi ne, %10, %c0_i32_9 : i32
    scf.if %11 {
      %c0_10 = arith.constant 0 : index
      %c0_11 = arith.constant 0 : index
      %12 = vector.load %arg6[%c0_10, %c0_11] : memref<8x256xf32, #tpu.memory_space<vmem>>, vector<8x256xf32>
      %c0_12 = arith.constant 0 : index
      %c0_13 = arith.constant 0 : index
      %13 = vector.load %arg4[%c0_12, %c0_13] : memref<1x256xf32, #tpu.memory_space<vmem>>, vector<1x256xf32>
      %14 = vector.broadcast %13 : vector<1x256xf32> to vector<8x256xf32>
      %15 = arith.addf %12, %14 : vector<8x256xf32>
      %16 = arith.truncf %15 : vector<8x256xf32> to vector<8x256xbf16>
      %c0_14 = arith.constant 0 : index
      %c0_15 = arith.constant 0 : index
      %17 = vector.load %arg5[%c0_14, %c0_15] : memref<8x256xbf16, #tpu.memory_space<vmem>>, vector<8x256xbf16>
      tpu.vector_store %arg5[%c0_14, %c0_15], %16 {strides = array<i32>} : memref<8x256xbf16, #tpu.memory_space<vmem>>, vector<8x256xbf16>,
    } else {
    }
    return
  }
  func.func @transform_0(%arg0: i32, %arg1: i32) -> (i32, i32) {
    %c0_i32 = arith.constant 0 : i32
    return %arg0, %arg1 : i32, i32
  }
  func.func @transform_1(%arg0: i32, %arg1: i32) -> (i32, i32) {
    %c0_i32 = arith.constant 0 : i32
    %c0_i32_0 = arith.constant 0 : i32
    return %arg1, %c0_i32 : i32, i32
  }
  func.func @transform_2(%arg0: i32, %arg1: i32) -> (i32, i32) {
    %c0_i32 = arith.constant 0 : i32
    %c0_i32_0 = arith.constant 0 : i32
    %c0_i32_1 = arith.constant 0 : i32
    return %c0_i32, %c0_i32_0 : i32, i32
  }
  func.func @transform_3(%arg0: i32, %arg1: i32) -> (i32, i32) {
    %c0_i32 = arith.constant 0 : i32
    %c0_i32_0 = arith.constant 0 : i32
    return %arg0, %c0_i32 : i32, i32
  }
}

module attributes {stable_mosaic.version = 11 : i64} {
  func.func @_mm_bn_kernel(%arg0: i32, %arg1: i32, %arg2: memref<8x256xbf16, #tpu.memory_space<vmem>>, %arg3: memref<256x128xbf16, #tpu.memory_space<vmem>>, %arg4: memref<1x128xf32, #tpu.memory_space<vmem>>, %arg5: memref<8x128xbf16, #tpu.memory_space<vmem>>, %arg6: memref<8x128xf32, #tpu.memory_space<vmem>>) attributes {dimension_semantics = [#tpu.dimension_semantics<parallel>, #tpu.dimension_semantics<arbitrary>], iteration_bounds = array<i64: 1, 1>, scalar_prefetch = 0 : i64, scratch_operands = 1 : i64, tpu.core_type = #tpu.core_type<tc>, window_params = [{transform_indices = @transform_0, window_bounds = array<i64: 8, 256>}, {transform_indices = @transform_1, window_bounds = array<i64: 256, 128>}, {pipeline_mode = #tpu.pipeline_mode<synchronous>, transform_indices = @transform_2, window_bounds = array<i64: 1, 128>}, {transform_indices = @transform_3, window_bounds = array<i64: 8, 128>}]} {
    %c0_i32 = arith.constant 0 : i32
    %0 = arith.cmpi eq, %arg1, %c0_i32 : i32
    %1 = arith.extui %0 : i1 to i32
    %c0_i32_0 = arith.constant 0 : i32
    %2 = arith.cmpi ne, %1, %c0_i32_0 : i32
    scf.if %2 {
      %cst_10 = arith.constant 0.000000e+00 : f32
      %12 = vector.broadcast %cst_10 : f32 to vector<8x128xf32>
      %c0_11 = arith.constant 0 : index
      %c0_12 = arith.constant 0 : index
      %13 = vector.load %arg6[%c0_11, %c0_12] : memref<8x128xf32, #tpu.memory_space<vmem>>, vector<8x128xf32>
      tpu.vector_store %arg6[%c0_11, %c0_12], %12 {strides = array<i32>} : memref<8x128xf32, #tpu.memory_space<vmem>>, vector<8x128xf32>,
    } else {
    }
    %c0 = arith.constant 0 : index
    %c0_1 = arith.constant 0 : index
    %3 = vector.load %arg6[%c0, %c0_1] : memref<8x128xf32, #tpu.memory_space<vmem>>, vector<8x128xf32>
    %c0_2 = arith.constant 0 : index
    %c0_3 = arith.constant 0 : index
    %4 = vector.load %arg2[%c0_2, %c0_3] : memref<8x256xbf16, #tpu.memory_space<vmem>>, vector<8x256xbf16>
    %c0_4 = arith.constant 0 : index
    %c0_5 = arith.constant 0 : index
    %5 = vector.load %arg3[%c0_4, %c0_5] : memref<256x128xbf16, #tpu.memory_space<vmem>>, vector<256x128xbf16>
    %cst = arith.constant dense<0.000000e+00> : vector<8x128xf32>
    %6 = tpu.matmul %4, %5, %cst {dimension_numbers = #tpu.dot_dimension_numbers<[1], [0], [0], [1], [0, 0, 1, 1], [], []>} : vector<8x256xbf16>, vector<256x128xbf16>, vector<8x128xf32> -> vector<8x128xf32>
    %7 = arith.addf %3, %6 : vector<8x128xf32>
    %c0_6 = arith.constant 0 : index
    %c0_7 = arith.constant 0 : index
    %8 = vector.load %arg6[%c0_6, %c0_7] : memref<8x128xf32, #tpu.memory_space<vmem>>, vector<8x128xf32>
    tpu.vector_store %arg6[%c0_6, %c0_7], %7 {strides = array<i32>} : memref<8x128xf32, #tpu.memory_space<vmem>>, vector<8x128xf32>,
    %c0_i32_8 = arith.constant 0 : i32
    %9 = arith.cmpi eq, %arg1, %c0_i32_8 : i32
    %10 = arith.extui %9 : i1 to i32
    %c0_i32_9 = arith.constant 0 : i32
    %11 = arith.cmpi ne, %10, %c0_i32_9 : i32
    scf.if %11 {
      %c0_10 = arith.constant 0 : index
      %c0_11 = arith.constant 0 : index
      %12 = vector.load %arg6[%c0_10, %c0_11] : memref<8x128xf32, #tpu.memory_space<vmem>>, vector<8x128xf32>
      %c0_12 = arith.constant 0 : index
      %c0_13 = arith.constant 0 : index
      %13 = vector.load %arg4[%c0_12, %c0_13] : memref<1x128xf32, #tpu.memory_space<vmem>>, vector<1x128xf32>
      %14 = vector.broadcast %13 : vector<1x128xf32> to vector<8x128xf32>
      %15 = arith.addf %12, %14 : vector<8x128xf32>
      %cst_14 = arith.constant 0.000000e+00 : f32
      %16 = vector.broadcast %cst_14 : f32 to vector<8x128xf32>
      %17 = arith.maximumf %15, %16 : vector<8x128xf32>
      %18 = arith.truncf %17 : vector<8x128xf32> to vector<8x128xbf16>
      %c0_15 = arith.constant 0 : index
      %c0_16 = arith.constant 0 : index
      %19 = vector.load %arg5[%c0_15, %c0_16] : memref<8x128xbf16, #tpu.memory_space<vmem>>, vector<8x128xbf16>
      tpu.vector_store %arg5[%c0_15, %c0_16], %18 {strides = array<i32>} : memref<8x128xbf16, #tpu.memory_space<vmem>>, vector<8x128xbf16>,
    } else {
    }
    return
  }
  func.func @transform_0(%arg0: i32, %arg1: i32) -> (i32, i32) {
    %c0_i32 = arith.constant 0 : i32
    return %arg0, %arg1 : i32, i32
  }
  func.func @transform_1(%arg0: i32, %arg1: i32) -> (i32, i32) {
    %c0_i32 = arith.constant 0 : i32
    %c0_i32_0 = arith.constant 0 : i32
    return %arg1, %c0_i32 : i32, i32
  }
  func.func @transform_2(%arg0: i32, %arg1: i32) -> (i32, i32) {
    %c0_i32 = arith.constant 0 : i32
    %c0_i32_0 = arith.constant 0 : i32
    %c0_i32_1 = arith.constant 0 : i32
    return %c0_i32, %c0_i32_0 : i32, i32
  }
  func.func @transform_3(%arg0: i32, %arg1: i32) -> (i32, i32) {
    %c0_i32 = arith.constant 0 : i32
    %c0_i32_0 = arith.constant 0 : i32
    return %arg0, %c0_i32 : i32, i32
  }
}

module attributes {stable_mosaic.version = 11 : i64} {
  func.func @_mm_bn_add_relu_kernel(%arg0: i32, %arg1: i32, %arg2: memref<8x128xbf16, #tpu.memory_space<vmem>>, %arg3: memref<128x256xbf16, #tpu.memory_space<vmem>>, %arg4: memref<1x256xf32, #tpu.memory_space<vmem>>, %arg5: memref<8x256xbf16, #tpu.memory_space<vmem>>, %arg6: memref<8x256xbf16, #tpu.memory_space<vmem>>, %arg7: memref<8x256xf32, #tpu.memory_space<vmem>>) attributes {dimension_semantics = [#tpu.dimension_semantics<parallel>, #tpu.dimension_semantics<arbitrary>], iteration_bounds = array<i64: 1, 1>, scalar_prefetch = 0 : i64, scratch_operands = 1 : i64, tpu.core_type = #tpu.core_type<tc>, window_params = [{transform_indices = @transform_0, window_bounds = array<i64: 8, 128>}, {transform_indices = @transform_1, window_bounds = array<i64: 128, 256>}, {pipeline_mode = #tpu.pipeline_mode<synchronous>, transform_indices = @transform_2, window_bounds = array<i64: 1, 256>}, {transform_indices = @transform_3, window_bounds = array<i64: 8, 256>}, {transform_indices = @transform_4, window_bounds = array<i64: 8, 256>}]} {
    %c0_i32 = arith.constant 0 : i32
    %0 = arith.cmpi eq, %arg1, %c0_i32 : i32
    %1 = arith.extui %0 : i1 to i32
    %c0_i32_0 = arith.constant 0 : i32
    %2 = arith.cmpi ne, %1, %c0_i32_0 : i32
    scf.if %2 {
      %cst_10 = arith.constant 0.000000e+00 : f32
      %12 = vector.broadcast %cst_10 : f32 to vector<8x256xf32>
      %c0_11 = arith.constant 0 : index
      %c0_12 = arith.constant 0 : index
      %13 = vector.load %arg7[%c0_11, %c0_12] : memref<8x256xf32, #tpu.memory_space<vmem>>, vector<8x256xf32>
      tpu.vector_store %arg7[%c0_11, %c0_12], %12 {strides = array<i32>} : memref<8x256xf32, #tpu.memory_space<vmem>>, vector<8x256xf32>,
    } else {
    }
    %c0 = arith.constant 0 : index
    %c0_1 = arith.constant 0 : index
    %3 = vector.load %arg7[%c0, %c0_1] : memref<8x256xf32, #tpu.memory_space<vmem>>, vector<8x256xf32>
    %c0_2 = arith.constant 0 : index
    %c0_3 = arith.constant 0 : index
    %4 = vector.load %arg2[%c0_2, %c0_3] : memref<8x128xbf16, #tpu.memory_space<vmem>>, vector<8x128xbf16>
    %c0_4 = arith.constant 0 : index
    %c0_5 = arith.constant 0 : index
    %5 = vector.load %arg3[%c0_4, %c0_5] : memref<128x256xbf16, #tpu.memory_space<vmem>>, vector<128x256xbf16>
    %cst = arith.constant dense<0.000000e+00> : vector<8x256xf32>
    %6 = tpu.matmul %4, %5, %cst {dimension_numbers = #tpu.dot_dimension_numbers<[1], [0], [0], [1], [0, 0, 1, 1], [], []>} : vector<8x128xbf16>, vector<128x256xbf16>, vector<8x256xf32> -> vector<8x256xf32>
    %7 = arith.addf %3, %6 : vector<8x256xf32>
    %c0_6 = arith.constant 0 : index
    %c0_7 = arith.constant 0 : index
    %8 = vector.load %arg7[%c0_6, %c0_7] : memref<8x256xf32, #tpu.memory_space<vmem>>, vector<8x256xf32>
    tpu.vector_store %arg7[%c0_6, %c0_7], %7 {strides = array<i32>} : memref<8x256xf32, #tpu.memory_space<vmem>>, vector<8x256xf32>,
    %c0_i32_8 = arith.constant 0 : i32
    %9 = arith.cmpi eq, %arg1, %c0_i32_8 : i32
    %10 = arith.extui %9 : i1 to i32
    %c0_i32_9 = arith.constant 0 : i32
    %11 = arith.cmpi ne, %10, %c0_i32_9 : i32
    scf.if %11 {
      %c0_10 = arith.constant 0 : index
      %c0_11 = arith.constant 0 : index
      %12 = vector.load %arg7[%c0_10, %c0_11] : memref<8x256xf32, #tpu.memory_space<vmem>>, vector<8x256xf32>
      %c0_12 = arith.constant 0 : index
      %c0_13 = arith.constant 0 : index
      %13 = vector.load %arg4[%c0_12, %c0_13] : memref<1x256xf32, #tpu.memory_space<vmem>>, vector<1x256xf32>
      %14 = vector.broadcast %13 : vector<1x256xf32> to vector<8x256xf32>
      %15 = arith.addf %12, %14 : vector<8x256xf32>
      %c0_14 = arith.constant 0 : index
      %c0_15 = arith.constant 0 : index
      %16 = vector.load %arg5[%c0_14, %c0_15] : memref<8x256xbf16, #tpu.memory_space<vmem>>, vector<8x256xbf16>
      %17 = arith.extf %16 : vector<8x256xbf16> to vector<8x256xf32>
      %18 = arith.addf %15, %17 : vector<8x256xf32>
      %cst_16 = arith.constant 0.000000e+00 : f32
      %19 = vector.broadcast %cst_16 : f32 to vector<8x256xf32>
      %20 = arith.maximumf %18, %19 : vector<8x256xf32>
      %21 = arith.truncf %20 : vector<8x256xf32> to vector<8x256xbf16>
      %c0_17 = arith.constant 0 : index
      %c0_18 = arith.constant 0 : index
      %22 = vector.load %arg6[%c0_17, %c0_18] : memref<8x256xbf16, #tpu.memory_space<vmem>>, vector<8x256xbf16>
      tpu.vector_store %arg6[%c0_17, %c0_18], %21 {strides = array<i32>} : memref<8x256xbf16, #tpu.memory_space<vmem>>, vector<8x256xbf16>,
    } else {
    }
    return
  }
  func.func @transform_0(%arg0: i32, %arg1: i32) -> (i32, i32) {
    %c0_i32 = arith.constant 0 : i32
    return %arg0, %arg1 : i32, i32
  }
  func.func @transform_1(%arg0: i32, %arg1: i32) -> (i32, i32) {
    %c0_i32 = arith.constant 0 : i32
    %c0_i32_0 = arith.constant 0 : i32
    return %arg1, %c0_i32 : i32, i32
  }
  func.func @transform_2(%arg0: i32, %arg1: i32) -> (i32, i32) {
    %c0_i32 = arith.constant 0 : i32
    %c0_i32_0 = arith.constant 0 : i32
    %c0_i32_1 = arith.constant 0 : i32
    return %c0_i32, %c0_i32_0 : i32, i32
  }
  func.func @transform_3(%arg0: i32, %arg1: i32) -> (i32, i32) {
    %c0_i32 = arith.constant 0 : i32
    %c0_i32_0 = arith.constant 0 : i32
    return %arg0, %c0_i32 : i32, i32
  }
  func.func @transform_4(%arg0: i32, %arg1: i32) -> (i32, i32) {
    %c0_i32 = arith.constant 0 : i32
    %c0_i32_0 = arith.constant 0 : i32
    return %arg0, %c0_i32 : i32, i32
  }
}

module attributes {stable_mosaic.version = 11 : i64} {
  func.func @_classifier_head_kernel(%arg0: i32, %arg1: memref<8x256xbf16, #tpu.memory_space<vmem>>, %arg2: memref<256x128xbf16, #tpu.memory_space<vmem>>, %arg3: memref<2x8xf32, #tpu.memory_space<vmem>>, %arg4: memref<2x128xf32, #tpu.memory_space<vmem>>, %arg5: memref<8x128xf32, #tpu.memory_space<vmem>>, %arg6: memref<8x128xf32, #tpu.memory_space<vmem>>) attributes {dimension_semantics = [#tpu.dimension_semantics<arbitrary>], iteration_bounds = array<i64: 1>, scalar_prefetch = 0 : i64, scratch_operands = 1 : i64, tpu.core_type = #tpu.core_type<tc>, window_params = [{transform_indices = @transform_0, window_bounds = array<i64: 8, 256>}, {transform_indices = @transform_1, window_bounds = array<i64: 256, 128>}, {pipeline_mode = #tpu.pipeline_mode<synchronous>, transform_indices = @transform_2, window_bounds = array<i64: 2, 8>}, {pipeline_mode = #tpu.pipeline_mode<synchronous>, transform_indices = @transform_3, window_bounds = array<i64: 2, 128>}, {pipeline_mode = #tpu.pipeline_mode<synchronous>, transform_indices = @transform_4, window_bounds = array<i64: 8, 128>}]} {
    %c0_i32 = arith.constant 0 : i32
    %0 = arith.cmpi eq, %arg0, %c0_i32 : i32
    %1 = arith.extui %0 : i1 to i32
    %c0_i32_0 = arith.constant 0 : i32
    %2 = arith.cmpi ne, %1, %c0_i32_0 : i32
    scf.if %2 {
      %cst_10 = arith.constant 0.000000e+00 : f32
      %12 = vector.broadcast %cst_10 : f32 to vector<8x128xf32>
      %c0_11 = arith.constant 0 : index
      %c0_12 = arith.constant 0 : index
      %13 = vector.load %arg6[%c0_11, %c0_12] : memref<8x128xf32, #tpu.memory_space<vmem>>, vector<8x128xf32>
      tpu.vector_store %arg6[%c0_11, %c0_12], %12 {strides = array<i32>} : memref<8x128xf32, #tpu.memory_space<vmem>>, vector<8x128xf32>,
    } else {
    }
    %c0 = arith.constant 0 : index
    %c0_1 = arith.constant 0 : index
    %3 = vector.load %arg6[%c0, %c0_1] : memref<8x128xf32, #tpu.memory_space<vmem>>, vector<8x128xf32>
    %c0_2 = arith.constant 0 : index
    %c0_3 = arith.constant 0 : index
    %4 = vector.load %arg1[%c0_2, %c0_3] : memref<8x256xbf16, #tpu.memory_space<vmem>>, vector<8x256xbf16>
    %c0_4 = arith.constant 0 : index
    %c0_5 = arith.constant 0 : index
    %5 = vector.load %arg2[%c0_4, %c0_5] : memref<256x128xbf16, #tpu.memory_space<vmem>>, vector<256x128xbf16>
    %cst = arith.constant dense<0.000000e+00> : vector<8x128xf32>
    %6 = tpu.matmul %4, %5, %cst {dimension_numbers = #tpu.dot_dimension_numbers<[1], [0], [0], [1], [0, 0, 1, 1], [], []>} : vector<8x256xbf16>, vector<256x128xbf16>, vector<8x128xf32> -> vector<8x128xf32>
    %7 = arith.addf %3, %6 : vector<8x128xf32>
    %c0_6 = arith.constant 0 : index
    %c0_7 = arith.constant 0 : index
    %8 = vector.load %arg6[%c0_6, %c0_7] : memref<8x128xf32, #tpu.memory_space<vmem>>, vector<8x128xf32>
    tpu.vector_store %arg6[%c0_6, %c0_7], %7 {strides = array<i32>} : memref<8x128xf32, #tpu.memory_space<vmem>>, vector<8x128xf32>,
    %c0_i32_8 = arith.constant 0 : i32
    %9 = arith.cmpi eq, %arg0, %c0_i32_8 : i32
    %10 = arith.extui %9 : i1 to i32
    %c0_i32_9 = arith.constant 0 : i32
    %11 = arith.cmpi ne, %10, %c0_i32_9 : i32
    scf.if %11 {
      %c0_10 = arith.constant 0 : index
      %c0_11 = arith.constant 0 : index
      %12 = vector.load %arg6[%c0_10, %c0_11] : memref<8x128xf32, #tpu.memory_space<vmem>>, vector<8x128xf32>
      %cst_12 = arith.constant 0.000000e+00 : f32
      %13 = vector.broadcast %cst_12 : f32 to vector<8x128xf32>
      %14 = arith.maximumf %12, %13 : vector<8x128xf32>
      %c0_13 = arith.constant 0 : index
      %c0_14 = arith.constant 0 : index
      %15 = vector.load %arg5[%c0_13, %c0_14] : memref<8x128xf32, #tpu.memory_space<vmem>>, vector<8x128xf32>
      tpu.vector_store %arg5[%c0_13, %c0_14], %14 {strides = array<i32>} : memref<8x128xf32, #tpu.memory_space<vmem>>, vector<8x128xf32>,
      %c0_15 = arith.constant 0 : index
      %c0_16 = arith.constant 0 : index
      %16 = vector.load %arg3[%c0_15, %c0_16] : memref<2x8xf32, #tpu.memory_space<vmem>>, vector<2x8xf32>
      %cst_17 = arith.constant dense<0.000000e+00> : vector<2x128xf32>
      %17 = tpu.matmul %16, %12, %cst_17 {dimension_numbers = #tpu.dot_dimension_numbers<[1], [0], [0], [1], [0, 0, 1, 1], [], []>} : vector<2x8xf32>, vector<8x128xf32>, vector<2x128xf32> -> vector<2x128xf32>
      %c0_18 = arith.constant 0 : index
      %c0_19 = arith.constant 0 : index
      %18 = vector.load %arg4[%c0_18, %c0_19] : memref<2x128xf32, #tpu.memory_space<vmem>>, vector<2x128xf32>
      tpu.vector_store %arg4[%c0_18, %c0_19], %17 {strides = array<i32>} : memref<2x128xf32, #tpu.memory_space<vmem>>, vector<2x128xf32>,
    } else {
    }
    return
  }
  func.func @transform_0(%arg0: i32) -> (i32, i32) {
    %c0_i32 = arith.constant 0 : i32
    %c0_i32_0 = arith.constant 0 : i32
    return %c0_i32, %arg0 : i32, i32
  }
  func.func @transform_1(%arg0: i32) -> (i32, i32) {
    %c0_i32 = arith.constant 0 : i32
    %c0_i32_0 = arith.constant 0 : i32
    return %arg0, %c0_i32 : i32, i32
  }
  func.func @transform_2(%arg0: i32) -> (i32, i32) {
    %c0_i32 = arith.constant 0 : i32
    %c0_i32_0 = arith.constant 0 : i32
    %c0_i32_1 = arith.constant 0 : i32
    return %c0_i32, %c0_i32_0 : i32, i32
  }
  func.func @transform_3(%arg0: i32) -> (i32, i32) {
    %c0_i32 = arith.constant 0 : i32
    %c0_i32_0 = arith.constant 0 : i32
    %c0_i32_1 = arith.constant 0 : i32
    return %c0_i32, %c0_i32_0 : i32, i32
  }
  func.func @transform_4(%arg0: i32) -> (i32, i32) {
    %c0_i32 = arith.constant 0 : i32
    %c0_i32_0 = arith.constant 0 : i32
    %c0_i32_1 = arith.constant 0 : i32
    return %c0_i32, %c0_i32_0 : i32, i32
  }
}

</mosaic_0001>

<llo_original>
// kernel: _lambda_.56
$region0: #{_lambda_.56}
  #allocation0 [shape = 'u32[]', space=smem, size = 0x4, offset = 0x4, fixed_abs, tag = 'smem constant byte address 0x4 - core index']
  #allocation1 [shape = 'u32[144,128]{1,0:T(1,128)}', space=vmem, size = 0x12000, scoped, tag = 'internal scratch']
  %s0 = inlined_call_operand.vmem [shape: bf16[128,128], index: 0, kind: input, shape index: {}]
  %s1 = inlined_call_operand.vmem [shape: bf16[128,128], index: 1, kind: input, shape index: {}]
  %s2 = inlined_call_operand.vmem [shape: bf16[128,128], index: 2, kind: input, shape index: {}]
  %s3 = inlined_call_operand.vmem [shape: bf16[128,128], index: 3, kind: input, shape index: {}]
  %s4 = inlined_call_operand.vmem [shape: bf16[128,128], index: 4, kind: input, shape index: {}]
  %s5 = inlined_call_operand.vmem [shape: bf16[128,128], index: 5, kind: input, shape index: {}]
  %s6 = inlined_call_operand.vmem [shape: bf16[128,128], index: 6, kind: input, shape index: {}]
  %s7 = inlined_call_operand.vmem [shape: bf16[128,128], index: 7, kind: input, shape index: {}]
  %s8 = inlined_call_operand.vmem [shape: bf16[128,128], index: 8, kind: input, shape index: {}]
  %s9 = inlined_call_operand.vmem [shape: bf16[128,128], index: 9, kind: output, shape index: {}]
  %s10 = sld [smem:[#allocation0]]
  $region69: #{_lambda_.56} parent=0
    _
  %s12 = ssub.s32 1, %s10
  %s13 = scalar_select 0, %s12, %s10
  loop: start=0, step=1, limit=4
  $region2: #{_lambda_.56} parent=0 // loop_pre_header
    _
  $region3: #{_lambda_.56} parent=0 // loop_header
    %s15 = sphi 0, %s19
    %p16 = scmp.ge.s32.totalorder %s15, 4
    %s25 = sphi 0, %s27
    %s28 = sphi 0, %s25
    %s29 = sphi 0, %s28
    %s45 = sphi 0, %s29
    %s51 = sphi 0, %s53
    %s54 = sphi 0, %s51
    %s55 = sphi 0, %s54
    %s71 = sphi 0, %s55
    %s77 = sphi 0, %s79
    %s80 = sphi 0, %s77
    %s81 = sphi 0, %s80
    %s97 = sphi 0, %s81
    %s103 = sphi 0, %s105
    %s106 = sphi 0, %s103
    %s107 = sphi 0, %s106
    %s123 = sphi 0, %s107
    %s129 = sphi 0, %s131
    %s132 = sphi 0, %s129
    %s133 = sphi 0, %s132
    %s149 = sphi 0, %s133
    %s155 = sphi 0, %s157
    %s158 = sphi 0, %s155
    %s159 = sphi 0, %s158
    %s175 = sphi 0, %s159
    %s181 = sphi 0, %s183
    %s184 = sphi 0, %s181
    %s185 = sphi 0, %s184
    %s201 = sphi 0, %s185
    %s207 = sphi 0, %s209
    %s210 = sphi 0, %s207
    %s211 = sphi 0, %s210
    %s227 = sphi 0, %s211
    %s233 = sphi 0, %s235
    %s236 = sphi 0, %s233
    %s237 = sphi 0, %s236
    %s253 = sphi 0, %s237
    %s259 = sphi 0, %s261
    %s262 = sphi 0, %s259
    %s263 = sphi 0, %s262
    %s279 = sphi 0, %s263
  $region4: #{_lambda_.56} parent=0 // loop_header_branch
    %18 = sbr.rel (%p16) target = $region8
  $region5: #{_lambda_.56} parent=0 // loop_body
    %s20 = ssub.s32 %s15, 1
    %s21 = ssub.s32 %s15, 2
    %s22 = sadd.s32 %s15, 1
    %s23 = ssub.s32 %s15, %s22
    %p24 = scmp.eq.s32.totalorder %s23, 0
    %s26 = sadd.s32 %s25, 1
    %s27 = scalar_select %p24, %s25, %s26
    %p30 = pneg %p24
    %p31 = scmp.eq.s32.totalorder %s15, 1
    %p32 = por %p30, %p31
    %p33 = scmp.ne.s32.totalorder %s25, %s28
    %p34 = scmp.eq.s32.totalorder %s15, 0
    %p35 = por %p33, %p34
    %p36 = scmp.ne.s32.totalorder %s25, %s28
    %p37 = scmp.eq.s32.totalorder %s20, 1
    %p38 = por %p36, %p37
    %p39 = scmp.ne.s32.totalorder %s28, %s29
    %p40 = scmp.eq.s32.totalorder %s20, 0
    %p41 = por %p39, %p40
    %p42 = scmp.ne.s32.totalorder %s28, %s29
    %p43 = scmp.eq.s32.totalorder %s21, 1
    %p44 = por %p42, %p43
    %p46 = scmp.ne.s32.totalorder %s29, %s45
    %p47 = scmp.eq.s32.totalorder %s21, 0
    %p48 = por %p46, %p47
    %s49 = ssub.s32 %s15, %s22
    %p50 = scmp.eq.s32.totalorder %s49, 0
    %s52 = sadd.s32 %s51, 1
    %s53 = scalar_select %p50, %s51, %s52
    %p56 = pneg %p50
    %p57 = scmp.eq.s32.totalorder %s15, 1
    %p58 = por %p56, %p57
    %p59 = scmp.ne.s32.totalorder %s51, %s54
    %p60 = scmp.eq.s32.totalorder %s15, 0
    %p61 = por %p59, %p60
    %p62 = scmp.ne.s32.totalorder %s51, %s54
    %p63 = scmp.eq.s32.totalorder %s20, 1
    %p64 = por %p62, %p63
    %p65 = scmp.ne.s32.totalorder %s54, %s55
    %p66 = scmp.eq.s32.totalorder %s20, 0
    %p67 = por %p65, %p66
    %p68 = scmp.ne.s32.totalorder %s54, %s55
    %p69 = scmp.eq.s32.totalorder %s21, 1
    %p70 = por %p68, %p69
    %p72 = scmp.ne.s32.totalorder %s55, %s71
    %p73 = scmp.eq.s32.totalorder %s21, 0
    %p74 = por %p72, %p73
    %s75 = ssub.s32 %s15, %s22
    %p76 = scmp.eq.s32.totalorder %s75, 0
    %s78 = sadd.s32 %s77, 1
    %s79 = scalar_select %p76, %s77, %s78
    %p82 = pneg %p76
    %p83 = scmp.eq.s32.totalorder %s15, 1
    %p84 = por %p82, %p83
    %p85 = scmp.ne.s32.totalorder %s77, %s80
    %p86 = scmp.eq.s32.totalorder %s15, 0
    %p87 = por %p85, %p86
    %p88 = scmp.ne.s32.totalorder %s77, %s80
    %p89 = scmp.eq.s32.totalorder %s20, 1
    %p90 = por %p88, %p89
    %p91 = scmp.ne.s32.totalorder %s80, %s81
    %p92 = scmp.eq.s32.totalorder %s20, 0
    %p93 = por %p91, %p92
    %p94 = scmp.ne.s32.totalorder %s80, %s81
    %p95 = scmp.eq.s32.totalorder %s21, 1
    %p96 = por %p94, %p95
    %p98 = scmp.ne.s32.totalorder %s81, %s97
    %p99 = scmp.eq.s32.totalorder %s21, 0
    %p100 = por %p98, %p99
    %s101 = ssub.s32 %s15, %s22
    %p102 = scmp.eq.s32.totalorder %s101, 0
    %s104 = sadd.s32 %s103, 1
    %s105 = scalar_select %p102, %s103, %s104
    %p108 = pneg %p102
    %p109 = scmp.eq.s32.totalorder %s15, 1
    %p110 = por %p108, %p109
    %p111 = scmp.ne.s32.totalorder %s103, %s106
    %p112 = scmp.eq.s32.totalorder %s15, 0
    %p113 = por %p111, %p112
    %p114 = scmp.ne.s32.totalorder %s103, %s106
    %p115 = scmp.eq.s32.totalorder %s20, 1
    %p116 = por %p114, %p115
    %p117 = scmp.ne.s32.totalorder %s106, %s107
    %p118 = scmp.eq.s32.totalorder %s20, 0
    %p119 = por %p117, %p118
    %p120 = scmp.ne.s32.totalorder %s106, %s107
    %p121 = scmp.eq.s32.totalorder %s21, 1
    %p122 = por %p120, %p121
    %p124 = scmp.ne.s32.totalorder %s107, %s123
    %p125 = scmp.eq.s32.totalorder %s21, 0
    %p126 = por %p124, %p125
    %s127 = ssub.s32 %s15, %s22
    %p128 = scmp.eq.s32.totalorder %s127, 0
    %s130 = sadd.s32 %s129, 1
    %s131 = scalar_select %p128, %s129, %s130
    %p134 = pneg %p128
    %p135 = scmp.eq.s32.totalorder %s15, 1
    %p136 = por %p134, %p135
    %p137 = scmp.ne.s32.totalorder %s129, %s132
    %p138 = scmp.eq.s32.totalorder %s15, 0
    %p139 = por %p137, %p138
    %p140 = scmp.ne.s32.totalorder %s129, %s132
    %p141 = scmp.eq.s32.totalorder %s20, 1
    %p142 = por %p140, %p141
    %p143 = scmp.ne.s32.totalorder %s132, %s133
    %p144 = scmp.eq.s32.totalorder %s20, 0
    %p145 = por %p143, %p144
    %p146 = scmp.ne.s32.totalorder %s132, %s133
    %p147 = scmp.eq.s32.totalorder %s21, 1
    %p148 = por %p146, %p147
    %p150 = scmp.ne.s32.totalorder %s133, %s149
    %p151 = scmp.eq.s32.totalorder %s21, 0
    %p152 = por %p150, %p151
    %s153 = ssub.s32 %s15, %s22
    %p154 = scmp.eq.s32.totalorder %s153, 0
    %s156 = sadd.s32 %s155, 1
    %s157 = scalar_select %p154, %s155, %s156
    %p160 = pneg %p154
    %p161 = scmp.eq.s32.totalorder %s15, 1
    %p162 = por %p160, %p161
    %p163 = scmp.ne.s32.totalorder %s155, %s158
    %p164 = scmp.eq.s32.totalorder %s15, 0
    %p165 = por %p163, %p164
    %p166 = scmp.ne.s32.totalorder %s155, %s158
    %p167 = scmp.eq.s32.totalorder %s20, 1
    %p168 = por %p166, %p167
    %p169 = scmp.ne.s32.totalorder %s158, %s159
    %p170 = scmp.eq.s32.totalorder %s20, 0
    %p171 = por %p169, %p170
    %p172 = scmp.ne.s32.totalorder %s158, %s159
    %p173 = scmp.eq.s32.totalorder %s21, 1
    %p174 = por %p172, %p173
    %p176 = scmp.ne.s32.totalorder %s159, %s175
    %p177 = scmp.eq.s32.totalorder %s21, 0
    %p178 = por %p176, %p177
    %s179 = ssub.s32 %s15, %s22
    %p180 = scmp.eq.s32.totalorder %s179, 0
    %s182 = sadd.s32 %s181, 1
    %s183 = scalar_select %p180, %s181, %s182
    %p186 = pneg %p180
    %p187 = scmp.eq.s32.totalorder %s15, 1
    %p188 = por %p186, %p187
    %p189 = scmp.ne.s32.totalorder %s181, %s184
    %p190 = scmp.eq.s32.totalorder %s15, 0
    %p191 = por %p189, %p190
    %p192 = scmp.ne.s32.totalorder %s181, %s184
    %p193 = scmp.eq.s32.totalorder %s20, 1
    %p194 = por %p192, %p193
    %p195 = scmp.ne.s32.totalorder %s184, %s185
    %p196 = scmp.eq.s32.totalorder %s20, 0
    %p197 = por %p195, %p196
    %p198 = scmp.ne.s32.totalorder %s184, %s185
    %p199 = scmp.eq.s32.totalorder %s21, 1
    %p200 = por %p198, %p199
    %p202 = scmp.ne.s32.totalorder %s185, %s201
    %p203 = scmp.eq.s32.totalorder %s21, 0
    %p204 = por %p202, %p203
    %s205 = ssub.s32 %s15, %s22
    %p206 = scmp.eq.s32.totalorder %s205, 0
    %s208 = sadd.s32 %s207, 1
    %s209 = scalar_select %p206, %s207, %s208
    %p212 = pneg %p206
    %p213 = scmp.eq.s32.totalorder %s15, 1
    %p214 = por %p212, %p213
    %p215 = scmp.ne.s32.totalorder %s207, %s210
    %p216 = scmp.eq.s32.totalorder %s15, 0
    %p217 = por %p215, %p216
    %p218 = scmp.ne.s32.totalorder %s207, %s210
    %p219 = scmp.eq.s32.totalorder %s20, 1
    %p220 = por %p218, %p219
    %p221 = scmp.ne.s32.totalorder %s210, %s211
    %p222 = scmp.eq.s32.totalorder %s20, 0
    %p223 = por %p221, %p222
    %p224 = scmp.ne.s32.totalorder %s210, %s211
    %p225 = scmp.eq.s32.totalorder %s21, 1
    %p226 = por %p224, %p225
    %p228 = scmp.ne.s32.totalorder %s211, %s227
    %p229 = scmp.eq.s32.totalorder %s21, 0
    %p230 = por %p228, %p229
    %s231 = ssub.s32 %s15, %s22
    %p232 = scmp.eq.s32.totalorder %s231, 0
    %s234 = sadd.s32 %s233, 1
    %s235 = scalar_select %p232, %s233, %s234
    %p238 = pneg %p232
    %p239 = scmp.eq.s32.totalorder %s15, 1
    %p240 = por %p238, %p239
    %p241 = scmp.ne.s32.totalorder %s233, %s236
    %p242 = scmp.eq.s32.totalorder %s15, 0
    %p243 = por %p241, %p242
    %p244 = scmp.ne.s32.totalorder %s233, %s236
    %p245 = scmp.eq.s32.totalorder %s20, 1
    %p246 = por %p244, %p245
    %p247 = scmp.ne.s32.totalorder %s236, %s237
    %p248 = scmp.eq.s32.totalorder %s20, 0
    %p249 = por %p247, %p248
    %p250 = scmp.ne.s32.totalorder %s236, %s237
    %p251 = scmp.eq.s32.totalorder %s21, 1
    %p252 = por %p250, %p251
    %p254 = scmp.ne.s32.totalorder %s237, %s253
    %p255 = scmp.eq.s32.totalorder %s21, 0
    %p256 = por %p254, %p255
    %s257 = ssub.s32 %s15, %s22
    %p258 = scmp.eq.s32.totalorder %s257, 0
    %s260 = sadd.s32 %s259, 1
    %s261 = scalar_select %p258, %s259, %s260
    %p264 = pneg %p258
    %p265 = scmp.eq.s32.totalorder %s15, 1
    %p266 = por %p264, %p265
    %p267 = scmp.ne.s32.totalorder %s259, %s262
    %p268 = scmp.eq.s32.totalorder %s15, 0
    %p269 = por %p267, %p268
    %p270 = scmp.ne.s32.totalorder %s259, %s262
    %p271 = scmp.eq.s32.totalorder %s20, 1
    %p272 = por %p270, %p271
    %p273 = scmp.ne.s32.totalorder %s262, %s263
    %p274 = scmp.eq.s32.totalorder %s20, 0
    %p275 = por %p273, %p274
    %p276 = scmp.ne.s32.totalorder %s262, %s263
    %p277 = scmp.eq.s32.totalorder %s21, 1
    %p278 = por %p276, %p277
    %p280 = scmp.ne.s32.totalorder %s263, %s279
    %p281 = scmp.eq.s32.totalorder %s21, 0
    %p282 = por %p280, %p281
    %p283 = scmp.le.s32.totalorder 1, %s15
    %p284 = scmp.lt.s32.totalorder %s15, 3
    %p285 = pnand %p283, %p284
    %p286 = pneg %p285
    // Predicated region
    $region9: #{_lambda_.56} parent=5 // pred_check
      _
    $region10: #{_lambda_.56} parent=5 // pred_check_branch
      %288 = sbr.rel (%p285) target = $region12
    $region11: #{_lambda_.56} parent=5 // pred_region
      %s289 = ssub.s32 %s15, 1
    $region12: #{_lambda_.56} parent=5 // pred_fallthru
      _
    %p290 = scmp.lt.s32.totalorder %s15, 2
    // Predicated region
    $region13: #{_lambda_.56} parent=5 // pred_check
      %p291 = pneg %p290
    $region14: #{_lambda_.56} parent=5 // pred_check_branch
      %293 = sbr.rel (%p291) target = $region16
    $region15: #{_lambda_.56} parent=5 // pred_region
      // Predicated region
      $region17: #{_lambda_.56} parent=15 // pred_check
        %p294 = pneg %p35
      $region18: #{_lambda_.56} parent=15 // pred_check_branch
        %296 = sbr.rel (%p294) target = $region20
      $region19: #{_lambda_.56} parent=15 // pred_region
        %s297 = smul.u32 8, %s15
        %p298 = scmp.lt.s32.totalorder %s297, 15
        %s299 = scalar_select %p298, %s297, 15
        %s300 = smul.addr %s299, 4
        %s301 = scalar_lea.vmem %s0, %s300
        %s302 = smul.u32 8, %s15
      $region20: #{_lambda_.56} parent=15 // pred_fallthru
        _
      // Predicated region
      $region21: #{_lambda_.56} parent=15 // pred_check
        %p303 = pneg %p61
      $region22: #{_lambda_.56} parent=15 // pred_check_branch
        %305 = sbr.rel (%p303) target = $region24
      $region23: #{_lambda_.56} parent=15 // pred_region
        %s306 = smul.u32 8, %s15
        %p307 = scmp.lt.s32.totalorder %s306, 15
        %s308 = scalar_select %p307, %s306, 15
        %s309 = smul.addr %s308, 4
        %s310 = scalar_lea.vmem %s1, %s309
        %s311 = smul.u32 8, %s15
      $region24: #{_lambda_.56} parent=15 // pred_fallthru
        _
      // Predicated region
      $region25: #{_lambda_.56} parent=15 // pred_check
        %p312 = pneg %p87
      $region26: #{_lambda_.56} parent=15 // pred_check_branch
        %314 = sbr.rel (%p312) target = $region28
      $region27: #{_lambda_.56} parent=15 // pred_region
        %s315 = smul.u32 8, %s15
        %p316 = scmp.lt.s32.totalorder %s315, 15
        %s317 = scalar_select %p316, %s315, 15
        %s318 = smul.addr %s317, 4
        %s319 = scalar_lea.vmem %s2, %s318
        %s320 = smul.u32 8, %s15
      $region28: #{_lambda_.56} parent=15 // pred_fallthru
        _
      // Predicated region
      $region29: #{_lambda_.56} parent=15 // pred_check
        %p321 = pneg %p113
      $region30: #{_lambda_.56} parent=15 // pred_check_branch
        %323 = sbr.rel (%p321) target = $region32
      $region31: #{_lambda_.56} parent=15 // pred_region
        %s324 = smul.u32 8, %s15
        %p325 = scmp.lt.s32.totalorder %s324, 15
        %s326 = scalar_select %p325, %s324, 15
        %s327 = smul.addr %s326, 4
        %s328 = scalar_lea.vmem %s3, %s327
        %s329 = smul.u32 8, %s15
      $region32: #{_lambda_.56} parent=15 // pred_fallthru
        _
      // Predicated region
      $region33: #{_lambda_.56} parent=15 // pred_check
        %p330 = pneg %p139
      $region34: #{_lambda_.56} parent=15 // pred_check_branch
        %332 = sbr.rel (%p330) target = $region36
      $region35: #{_lambda_.56} parent=15 // pred_region
        %s333 = smul.u32 8, %s15
        %p334 = scmp.lt.s32.totalorder %s333, 15
        %s335 = scalar_select %p334, %s333, 15
        %s336 = smul.addr %s335, 4
        %s337 = scalar_lea.vmem %s4, %s336
        %s338 = smul.u32 8, %s15
      $region36: #{_lambda_.56} parent=15 // pred_fallthru
        _
      // Predicated region
      $region37: #{_lambda_.56} parent=15 // pred_check
        %p339 = pneg %p165
      $region38: #{_lambda_.56} parent=15 // pred_check_branch
        %341 = sbr.rel (%p339) target = $region40
      $region39: #{_lambda_.56} parent=15 // pred_region
        %s342 = smul.u32 8, %s15
        %p343 = scmp.lt.s32.totalorder %s342, 15
        %s344 = scalar_select %p343, %s342, 15
        %s345 = smul.addr %s344, 4
        %s346 = scalar_lea.vmem %s5, %s345
        %s347 = smul.u32 8, %s15
      $region40: #{_lambda_.56} parent=15 // pred_fallthru
        _
      // Predicated region
      $region41: #{_lambda_.56} parent=15 // pred_check
        %p348 = pneg %p191
      $region42: #{_lambda_.56} parent=15 // pred_check_branch
        %350 = sbr.rel (%p348) target = $region44
      $region43: #{_lambda_.56} parent=15 // pred_region
        %s351 = smul.u32 8, %s15
        %p352 = scmp.lt.s32.totalorder %s351, 15
        %s353 = scalar_select %p352, %s351, 15
        %s354 = smul.addr %s353, 4
        %s355 = scalar_lea.vmem %s6, %s354
        %s356 = smul.u32 8, %s15
      $region44: #{_lambda_.56} parent=15 // pred_fallthru
        _
      // Predicated region
      $region45: #{_lambda_.56} parent=15 // pred_check
        %p357 = pneg %p217
      $region46: #{_lambda_.56} parent=15 // pred_check_branch
        %359 = sbr.rel (%p357) target = $region48
      $region47: #{_lambda_.56} parent=15 // pred_region
        %s360 = smul.u32 8, %s15
        %p361 = scmp.lt.s32.totalorder %s360, 15
        %s362 = scalar_select %p361, %s360, 15
        %s363 = smul.addr %s362, 4
        %s364 = scalar_lea.vmem %s7, %s363
        %s365 = smul.u32 8, %s15
      $region48: #{_lambda_.56} parent=15 // pred_fallthru
        _
      // Predicated region
      $region49: #{_lambda_.56} parent=15 // pred_check
        %p366 = pneg %p243
      $region50: #{_lambda_.56} parent=15 // pred_check_branch
        %368 = sbr.rel (%p366) target = $region52
      $region51: #{_lambda_.56} parent=15 // pred_region
        %s369 = smul.u32 8, %s15
        %p370 = scmp.lt.s32.totalorder %s369, 15
        %s371 = scalar_select %p370, %s369, 15
        %s372 = smul.addr %s371, 4
        %s373 = scalar_lea.vmem %s8, %s372
        %s374 = smul.u32 8, %s15
      $region52: #{_lambda_.56} parent=15 // pred_fallthru
        _
    $region16: #{_lambda_.56} parent=5 // pred_fallthru
      _
    %p375 = scmp.le.s32.totalorder 1, %s15
    %p376 = scmp.lt.s32.totalorder %s15, 3
    %p377 = pnand %p375, %p376
    %p378 = pneg %p377
    // Predicated region
    $region53: #{_lambda_.56} parent=5 // pred_check
      _
    $region54: #{_lambda_.56} parent=5 // pred_check_branch
      %380 = sbr.rel (%p377) target = $region56
    $region55: #{_lambda_.56} parent=5 // pred_region
      %s381 = ssub.s32 %s15, 1
      %s382 = smul.u32 8, %s20
      %p383 = scmp.lt.s32.totalorder %s382, 15
      %s384 = scalar_select %p383, %s382, 15
      %s385 = smul.addr %s384, 4
      %s386 = scalar_lea.vmem %s0, %s385
      %p387 = pneg %p41
      %p388 = pneg %p38
      %s389 = smul.u32 8, %s20
      %p390 = scmp.lt.s32.totalorder %s389, 15
      %s391 = scalar_select %p390, %s389, 15
      %s392 = smul.addr %s391, 4
      %s393 = scalar_lea.vmem %s1, %s392
      %p394 = pneg %p67
      %p395 = pneg %p64
      %s396 = smul.u32 8, %s20
      %p397 = scmp.lt.s32.totalorder %s396, 15
      %s398 = scalar_select %p397, %s396, 15
      %s399 = smul.addr %s398, 4
      %s400 = scalar_lea.vmem %s2, %s399
      %p401 = pneg %p93
      %p402 = pneg %p90
      %s403 = smul.u32 8, %s20
      %p404 = scmp.lt.s32.totalorder %s403, 15
      %s405 = scalar_select %p404, %s403, 15
      %s406 = smul.addr %s405, 4
      %s407 = scalar_lea.vmem %s3, %s406
      %p408 = pneg %p119
      %p409 = pneg %p116
      %s410 = smul.u32 8, %s20
      %p411 = scmp.lt.s32.totalorder %s410, 15
      %s412 = scalar_select %p411, %s410, 15
      %s413 = smul.addr %s412, 4
      %s414 = scalar_lea.vmem %s4, %s413
      %p415 = pneg %p145
      %p416 = pneg %p142
      %s417 = smul.u32 8, %s20
      %p418 = scmp.lt.s32.totalorder %s417, 15
      %s419 = scalar_select %p418, %s417, 15
      %s420 = smul.addr %s419, 4
      %s421 = scalar_lea.vmem %s5, %s420
      %p422 = pneg %p171
      %p423 = pneg %p168
      %s424 = smul.u32 8, %s20
      %p425 = scmp.lt.s32.totalorder %s424, 15
      %s426 = scalar_select %p425, %s424, 15
      %s427 = smul.addr %s426, 4
      %s428 = scalar_lea.vmem %s6, %s427
      %p429 = pneg %p197
      %p430 = pneg %p194
      %s431 = smul.u32 8, %s20
      %p432 = scmp.lt.s32.totalorder %s431, 15
      %s433 = scalar_select %p432, %s431, 15
      %s434 = smul.addr %s433, 4
      %s435 = scalar_lea.vmem %s7, %s434
      %p436 = pneg %p223
      %p437 = pneg %p220
      %s438 = smul.u32 8, %s20
      %p439 = scmp.lt.s32.totalorder %s438, 15
      %s440 = scalar_select %p439, %s438, 15
      %s441 = smul.addr %s440, 4
      %s442 = scalar_lea.vmem %s8, %s441
      %p443 = pneg %p249
      %p444 = pneg %p246
      %p445 = pneg %p275
      %p446 = pneg %p272
      %s447 = smul.u32 8, %s20
      %p448 = scmp.lt.s32.totalorder %s447, 15
      %s449 = scalar_select %p448, %s447, 15
      %s450 = smul.addr %s449, 4
      %s451 = scalar_lea.vmem %s9, %s450
      %s452 = smul.u32 8, %s20
      %p453 = scmp.lt.s32.totalorder %s452, 15
      %s454 = scalar_select %p453, %s452, 15
      %s455 = smul.addr %s454, 4
      %s456 = scalar_lea.vmem %s0, %s455
      %s457 = smul.u32 8, %s20
      %s458 = smul.u32 8, %s20
      %p459 = scmp.lt.s32.totalorder %s458, 15
      %s460 = scalar_select %p459, %s458, 15
      %s461 = smul.addr %s460, 4
      %s462 = scalar_lea.vmem %s1, %s461
      %s463 = smul.u32 8, %s20
      %s464 = smul.u32 8, %s20
      %p465 = scmp.lt.s32.totalorder %s464, 15
      %s466 = scalar_select %p465, %s464, 15
      %s467 = smul.addr %s466, 4
      %s468 = scalar_lea.vmem %s2, %s467
      %s469 = smul.u32 8, %s20
      %s470 = smul.u32 8, %s20
      %p471 = scmp.lt.s32.totalorder %s470, 15
      %s472 = scalar_select %p471, %s470, 15
      %s473 = smul.addr %s472, 4
      %s474 = scalar_lea.vmem %s3, %s473
      %s475 = smul.u32 8, %s20
      %s476 = smul.u32 8, %s20
      %p477 = scmp.lt.s32.totalorder %s476, 15
      %s478 = scalar_select %p477, %s476, 15
      %s479 = smul.addr %s478, 4
      %s480 = scalar_lea.vmem %s4, %s479
      %s481 = smul.u32 8, %s20
      %s482 = smul.u32 8, %s20
      %p483 = scmp.lt.s32.totalorder %s482, 15
      %s484 = scalar_select %p483, %s482, 15
      %s485 = smul.addr %s484, 4
      %s486 = scalar_lea.vmem %s5, %s485
      %s487 = smul.u32 8, %s20
      %s488 = smul.u32 8, %s20
      %p489 = scmp.lt.s32.totalorder %s488, 15
      %s490 = scalar_select %p489, %s488, 15
      %s491 = smul.addr %s490, 4
      %s492 = scalar_lea.vmem %s6, %s491
      %s493 = smul.u32 8, %s20
      %s494 = smul.u32 8, %s20
      %p495 = scmp.lt.s32.totalorder %s494, 15
      %s496 = scalar_select %p495, %s494, 15
      %s497 = smul.addr %s496, 4
      %s498 = scalar_lea.vmem %s7, %s497
      %s499 = smul.u32 8, %s20
      %s500 = smul.u32 8, %s20
      %p501 = scmp.lt.s32.totalorder %s500, 15
      %s502 = scalar_select %p501, %s500, 15
      %s503 = smul.addr %s502, 4
      %s504 = scalar_lea.vmem %s8, %s503
      %s505 = smul.u32 8, %s20
      %s506 = smul.u32 8, %s20
      %p507 = scmp.lt.s32.totalorder %s506, 15
      %s508 = scalar_select %p507, %s506, 15
      %s509 = smul.addr %s508, 4
      %s510 = scalar_lea.vmem %s9, %s509
      %s511 = smul.u32 8, %s20
      %v512 = vld [vmem:[%s456] sm:$0xf]
      %v513 = vld [vmem:[%s456 + $0x4] sm:$0xf]
      %v514 = vld [vmem:[%s456 + $0x8] sm:$0xf]
      %v515 = vld [vmem:[%s456 + $0xc] sm:$0xf]
      %v516 = vld [vmem:[%s456 + $0x10] sm:$0xf]
      %v517 = vld [vmem:[%s456 + $0x14] sm:$0xf]
      %v518 = vld [vmem:[%s456 + $0x18] sm:$0xf]
      %v519 = vld [vmem:[%s456 + $0x1c] sm:$0xf]
      %v520 = vld [vmem:[%s462] sm:$0xf]
      %v521 = vld [vmem:[%s462 + $0x4] sm:$0xf]
      %v522 = vld [vmem:[%s462 + $0x8] sm:$0xf]
      %v523 = vld [vmem:[%s462 + $0xc] sm:$0xf]
      %v524 = vld [vmem:[%s462 + $0x10] sm:$0xf]
      %v525 = vld [vmem:[%s462 + $0x14] sm:$0xf]
      %v526 = vld [vmem:[%s462 + $0x18] sm:$0xf]
      %v527 = vld [vmem:[%s462 + $0x1c] sm:$0xf]
      %v528 = vmax.bf16 %v512, %v520
      %v529 = vmax.bf16 %v513, %v521
      %v530 = vmax.bf16 %v514, %v522
      %v531 = vmax.bf16 %v515, %v523
      %v532 = vmax.bf16 %v516, %v524
      %v533 = vmax.bf16 %v517, %v525
      %v534 = vmax.bf16 %v518, %v526
      %v535 = vmax.bf16 %v519, %v527
      %v536 = vld [vmem:[%s468] sm:$0xf]
      %v537 = vld [vmem:[%s468 + $0x4] sm:$0xf]
      %v538 = vld [vmem:[%s468 + $0x8] sm:$0xf]
      %v539 = vld [vmem:[%s468 + $0xc] sm:$0xf]
      %v540 = vld [vmem:[%s468 + $0x10] sm:$0xf]
      %v541 = vld [vmem:[%s468 + $0x14] sm:$0xf]
      %v542 = vld [vmem:[%s468 + $0x18] sm:$0xf]
      %v543 = vld [vmem:[%s468 + $0x1c] sm:$0xf]
      %v544 = vld [vmem:[%s474] sm:$0xf]
      %v545 = vld [vmem:[%s474 + $0x4] sm:$0xf]
      %v546 = vld [vmem:[%s474 + $0x8] sm:$0xf]
      %v547 = vld [vmem:[%s474 + $0xc] sm:$0xf]
      %v548 = vld [vmem:[%s474 + $0x10] sm:$0xf]
      %v549 = vld [vmem:[%s474 + $0x14] sm:$0xf]
      %v550 = vld [vmem:[%s474 + $0x18] sm:$0xf]
      %v551 = vld [vmem:[%s474 + $0x1c] sm:$0xf]
      %v552 = vmax.bf16 %v536, %v544
      %v553 = vmax.bf16 %v537, %v545
      %v554 = vmax.bf16 %v538, %v546
      %v555 = vmax.bf16 %v539, %v547
      %v556 = vmax.bf16 %v540, %v548
      %v557 = vmax.bf16 %v541, %v549
      %v558 = vmax.bf16 %v542, %v550
      %v559 = vmax.bf16 %v543, %v551
      %v560 = vmax.bf16 %v528, %v552
      %v561 = vmax.bf16 %v529, %v553
      %v562 = vmax.bf16 %v530, %v554
      %v563 = vmax.bf16 %v531, %v555
      %v564 = vmax.bf16 %v532, %v556
      %v565 = vmax.bf16 %v533, %v557
      %v566 = vmax.bf16 %v534, %v558
      %v567 = vmax.bf16 %v535, %v559
      %v568 = vld [vmem:[%s480] sm:$0xf]
      %v569 = vld [vmem:[%s480 + $0x4] sm:$0xf]
      %v570 = vld [vmem:[%s480 + $0x8] sm:$0xf]
      %v571 = vld [vmem:[%s480 + $0xc] sm:$0xf]
      %v572 = vld [vmem:[%s480 + $0x10] sm:$0xf]
      %v573 = vld [vmem:[%s480 + $0x14] sm:$0xf]
      %v574 = vld [vmem:[%s480 + $0x18] sm:$0xf]
      %v575 = vld [vmem:[%s480 + $0x1c] sm:$0xf]
      %v576 = vld [vmem:[%s486] sm:$0xf]
      %v577 = vld [vmem:[%s486 + $0x4] sm:$0xf]
      %v578 = vld [vmem:[%s486 + $0x8] sm:$0xf]
      %v579 = vld [vmem:[%s486 + $0xc] sm:$0xf]
      %v580 = vld [vmem:[%s486 + $0x10] sm:$0xf]
      %v581 = vld [vmem:[%s486 + $0x14] sm:$0xf]
      %v582 = vld [vmem:[%s486 + $0x18] sm:$0xf]
      %v583 = vld [vmem:[%s486 + $0x1c] sm:$0xf]
      %v584 = vmax.bf16 %v568, %v576
      %v585 = vmax.bf16 %v569, %v577
      %v586 = vmax.bf16 %v570, %v578
      %v587 = vmax.bf16 %v571, %v579
      %v588 = vmax.bf16 %v572, %v580
      %v589 = vmax.bf16 %v573, %v581
      %v590 = vmax.bf16 %v574, %v582
      %v591 = vmax.bf16 %v575, %v583
      %v592 = vld [vmem:[%s492] sm:$0xf]
      %v593 = vld [vmem:[%s492 + $0x4] sm:$0xf]
      %v594 = vld [vmem:[%s492 + $0x8] sm:$0xf]
      %v595 = vld [vmem:[%s492 + $0xc] sm:$0xf]
      %v596 = vld [vmem:[%s492 + $0x10] sm:$0xf]
      %v597 = vld [vmem:[%s492 + $0x14] sm:$0xf]
      %v598 = vld [vmem:[%s492 + $0x18] sm:$0xf]
      %v599 = vld [vmem:[%s492 + $0x1c] sm:$0xf]
      %v600 = vld [vmem:[%s498] sm:$0xf]
      %v601 = vld [vmem:[%s498 + $0x4] sm:$0xf]
      %v602 = vld [vmem:[%s498 + $0x8] sm:$0xf]
      %v603 = vld [vmem:[%s498 + $0xc] sm:$0xf]
      %v604 = vld [vmem:[%s498 + $0x10] sm:$0xf]
      %v605 = vld [vmem:[%s498 + $0x14] sm:$0xf]
      %v606 = vld [vmem:[%s498 + $0x18] sm:$0xf]
      %v607 = vld [vmem:[%s498 + $0x1c] sm:$0xf]
      %v608 = vmax.bf16 %v592, %v600
      %v609 = vmax.bf16 %v593, %v601
      %v610 = vmax.bf16 %v594, %v602
      %v611 = vmax.bf16 %v595, %v603
      %v612 = vmax.bf16 %v596, %v604
      %v613 = vmax.bf16 %v597, %v605
      %v614 = vmax.bf16 %v598, %v606
      %v615 = vmax.bf16 %v599, %v607
      %v616 = vmax.bf16 %v584, %v608
      %v617 = vmax.bf16 %v585, %v609
      %v618 = vmax.bf16 %v586, %v610
      %v619 = vmax.bf16 %v587, %v611
      %v620 = vmax.bf16 %v588, %v612
      %v621 = vmax.bf16 %v589, %v613
      %v622 = vmax.bf16 %v590, %v614
      %v623 = vmax.bf16 %v591, %v615
      %v624 = vmax.bf16 %v560, %v616
      %v625 = vmax.bf16 %v561, %v617
      %v626 = vmax.bf16 %v562, %v618
      %v627 = vmax.bf16 %v563, %v619
      %v628 = vmax.bf16 %v564, %v620
      %v629 = vmax.bf16 %v565, %v621
      %v630 = vmax.bf16 %v566, %v622
      %v631 = vmax.bf16 %v567, %v623
      %v632 = vld [vmem:[%s504] sm:$0xf]
      %v633 = vld [vmem:[%s504 + $0x4] sm:$0xf]
      %v634 = vld [vmem:[%s504 + $0x8] sm:$0xf]
      %v635 = vld [vmem:[%s504 + $0xc] sm:$0xf]
      %v636 = vld [vmem:[%s504 + $0x10] sm:$0xf]
      %v637 = vld [vmem:[%s504 + $0x14] sm:$0xf]
      %v638 = vld [vmem:[%s504 + $0x18] sm:$0xf]
      %v639 = vld [vmem:[%s504 + $0x1c] sm:$0xf]
      %v640 = vmax.bf16 %v624, %v632
      %v641 = vmax.bf16 %v625, %v633
      %v642 = vmax.bf16 %v626, %v634
      %v643 = vmax.bf16 %v627, %v635
      %v644 = vmax.bf16 %v628, %v636
      %v645 = vmax.bf16 %v629, %v637
      %v646 = vmax.bf16 %v630, %v638
      %v647 = vmax.bf16 %v631, %v639
      %648 = vst [vmem:[%s510] sm:$0xf] %v640
      %649 = vst [vmem:[%s510 + $0x4] sm:$0xf] %v641
      %650 = vst [vmem:[%s510 + $0x8] sm:$0xf] %v642
      %651 = vst [vmem:[%s510 + $0xc] sm:$0xf] %v643
      %652 = vst [vmem:[%s510 + $0x10] sm:$0xf] %v644
      %653 = vst [vmem:[%s510 + $0x14] sm:$0xf] %v645
      %654 = vst [vmem:[%s510 + $0x18] sm:$0xf] %v646
      %655 = vst [vmem:[%s510 + $0x1c] sm:$0xf] %v647
      %s656 = smul.u32 8, %s20
      %p657 = scmp.lt.s32.totalorder %s656, 15
      %s658 = scalar_select %p657, %s656, 15
      %s659 = smul.addr %s658, 4
      %s660 = scalar_lea.vmem %s9, %s659
      // Predicated region
      $region57: #{_lambda_.56} parent=55 // pred_check
        %p661 = pneg %p272
      $region58: #{_lambda_.56} parent=55 // pred_check_branch
        %663 = sbr.rel (%p661) target = $region60
      $region59: #{_lambda_.56} parent=55 // pred_region
        %s664 = smul.u32 8, %s20
      $region60: #{_lambda_.56} parent=55 // pred_fallthru
        _
    $region56: #{_lambda_.56} parent=5 // pred_fallthru
      _
    %p665 = scmp.le.s32.totalorder 2, %s15
    // Predicated region
    $region61: #{_lambda_.56} parent=5 // pred_check
      %p666 = pneg %p665
    $region62: #{_lambda_.56} parent=5 // pred_check_branch
      %668 = sbr.rel (%p666) target = $region64
    $region63: #{_lambda_.56} parent=5 // pred_region
      %s669 = ssub.s32 %s15, 2
      // Predicated region
      $region65: #{_lambda_.56} parent=63 // pred_check
        %p670 = pneg %p278
      $region66: #{_lambda_.56} parent=63 // pred_check_branch
        %672 = sbr.rel (%p670) target = $region68
      $region67: #{_lambda_.56} parent=63 // pred_region
        %s673 = smul.u32 8, %s21
        %p674 = scmp.lt.s32.totalorder %s673, 15
        %s675 = scalar_select %p674, %s673, 15
        %s676 = smul.addr %s675, 4
        %s677 = scalar_lea.vmem %s9, %s676
      $region68: #{_lambda_.56} parent=63 // pred_fallthru
        _
    $region64: #{_lambda_.56} parent=5 // pred_fallthru
      _
  $region6: #{_lambda_.56} parent=0 // loop_footer
    %s19 = sadd.s32 1, %s15
  $region7: #{_lambda_.56} parent=0 // loop_footer_branch
    %14 = sbr.rel target = $region3
  $region8: #{_lambda_.56} parent=0 // loop_exit
    _

// kernel: _lambda_.57
$region0: #{_lambda_.57}
  #allocation0 [shape = 'u32[]', space=smem, size = 0x4, offset = 0x4, fixed_abs, tag = 'smem constant byte address 0x4 - core index']
  #allocation1 [shape = 'u32[144,128]{1,0:T(1,128)}', space=vmem, size = 0x12000, scoped, tag = 'internal scratch']
  #allocation2 [shape = 'f32[64,128]{1,0:T(8,128)}', space=vmem, size = 0x8000, scoped, tag = 'scratch operand']
  %s0 = inlined_call_operand.vmem [shape: bf16[128,128], index: 0, kind: input, shape index: {}]
  %s1 = inlined_call_operand.vmem [shape: bf16[128,128], index: 1, kind: input, shape index: {}]
  %s2 = inlined_call_operand.vmem [shape: f32[1,128], index: 2, kind: input, shape index: {}]
  %s3 = inlined_call_operand.vmem [shape: bf16[128,128], index: 3, kind: output, shape index: {}]
  %s4 = sld [smem:[#allocation0]]
  $region53: #{_lambda_.57} parent=0
    _
  %s6 = ssub.s32 1, %s4
  %s7 = scalar_select 0, %s6, %s4
  loop: start=0, step=1, limit=4
  $region2: #{_lambda_.57} parent=0 // loop_pre_header
    _
  $region3: #{_lambda_.57} parent=0 // loop_header
    %s9 = sphi 0, %s13
    %p10 = scmp.ge.s32.totalorder %s9, 4
    %s16 = sphi 0, %s28
    %s17 = sphi 0, %s24
    %s18 = sphi 0, %s16
    %s19 = sphi 0, %s17
    %s20 = sphi 0, %s18
    %s21 = sphi 0, %s19
    %s33 = sphi 0, %s35
    %s36 = sphi 0, %s33
    %s37 = sphi 0, %s36
    %s53 = sphi 0, %s37
    %s59 = sphi 0, %s61
    %s62 = sphi 0, %s59
    %s63 = sphi 0, %s62
    %s79 = sphi 0, %s63
    %s83 = sphi 0, %s83
    %s85 = sphi 0, %s83
    %s86 = sphi 0, %s85
    %s100 = sphi 0, %s86
    %s106 = sphi 0, %s108
    %s109 = sphi 0, %s106
    %s110 = sphi 0, %s109
    %s126 = sphi 0, %s110
  $region4: #{_lambda_.57} parent=0 // loop_header_branch
    %12 = sbr.rel (%p10) target = $region8
  $region5: #{_lambda_.57} parent=0 // loop_body
    %s14 = ssub.s32 %s9, 1
    %s15 = ssub.s32 %s9, 2
    %s22 = sadd.s32 1, %s17
    %p23 = scmp.ge.s32.totalorder %s22, 1
    %s24 = scalar_select %p23, 0, %s22
    %s25 = sadd.s32 1, %s16
    %s26 = scalar_select %p23, %s25, %s16
    %p27 = scmp.ge.s32.totalorder %s26, 2
    %s28 = scalar_select %p27, 0, %s26
    %s29 = ssub.s32 %s16, %s28
    %s30 = ssub.s32 %s17, %s24
    %s31 = sor.u32 %s29, %s30
    %p32 = scmp.eq.s32.totalorder %s31, 0
    %s34 = sadd.s32 %s33, 1
    %s35 = scalar_select %p32, %s33, %s34
    %p38 = pneg %p32
    %p39 = scmp.eq.s32.totalorder %s9, 1
    %p40 = por %p38, %p39
    %p41 = scmp.ne.s32.totalorder %s33, %s36
    %p42 = scmp.eq.s32.totalorder %s9, 0
    %p43 = por %p41, %p42
    %p44 = scmp.ne.s32.totalorder %s33, %s36
    %p45 = scmp.eq.s32.totalorder %s14, 1
    %p46 = por %p44, %p45
    %p47 = scmp.ne.s32.totalorder %s36, %s37
    %p48 = scmp.eq.s32.totalorder %s14, 0
    %p49 = por %p47, %p48
    %p50 = scmp.ne.s32.totalorder %s36, %s37
    %p51 = scmp.eq.s32.totalorder %s15, 1
    %p52 = por %p50, %p51
    %p54 = scmp.ne.s32.totalorder %s37, %s53
    %p55 = scmp.eq.s32.totalorder %s15, 0
    %p56 = por %p54, %p55
    %s57 = ssub.s32 %s17, %s24
    %p58 = scmp.eq.s32.totalorder %s57, 0
    %s60 = sadd.s32 %s59, 1
    %s61 = scalar_select %p58, %s59, %s60
    %p64 = pneg %p58
    %p65 = scmp.eq.s32.totalorder %s9, 1
    %p66 = por %p64, %p65
    %p67 = scmp.ne.s32.totalorder %s59, %s62
    %p68 = scmp.eq.s32.totalorder %s9, 0
    %p69 = por %p67, %p68
    %p70 = scmp.ne.s32.totalorder %s59, %s62
    %p71 = scmp.eq.s32.totalorder %s14, 1
    %p72 = por %p70, %p71
    %p73 = scmp.ne.s32.totalorder %s62, %s63
    %p74 = scmp.eq.s32.totalorder %s14, 0
    %p75 = por %p73, %p74
    %p76 = scmp.ne.s32.totalorder %s62, %s63
    %p77 = scmp.eq.s32.totalorder %s15, 1
    %p78 = por %p76, %p77
    %p80 = scmp.ne.s32.totalorder %s63, %s79
    %p81 = scmp.eq.s32.totalorder %s15, 0
    %p82 = por %p80, %p81
    %s84 = sadd.s32 %s83, 1
    %p87 = scmp.eq.s32.totalorder %s9, 1
    %p88 = scmp.ne.s32.totalorder %s83, %s85
    %p89 = scmp.eq.s32.totalorder %s9, 0
    %p90 = por %p88, %p89
    %p91 = scmp.ne.s32.totalorder %s83, %s85
    %p92 = scmp.eq.s32.totalorder %s14, 1
    %p93 = por %p91, %p92
    %p94 = scmp.ne.s32.totalorder %s85, %s86
    %p95 = scmp.eq.s32.totalorder %s14, 0
    %p96 = por %p94, %p95
    %p97 = scmp.ne.s32.totalorder %s85, %s86
    %p98 = scmp.eq.s32.totalorder %s15, 1
    %p99 = por %p97, %p98
    %p101 = scmp.ne.s32.totalorder %s86, %s100
    %p102 = scmp.eq.s32.totalorder %s15, 0
    %p103 = por %p101, %p102
    %s104 = ssub.s32 %s16, %s28
    %p105 = scmp.eq.s32.totalorder %s104, 0
    %s107 = sadd.s32 %s106, 1
    %s108 = scalar_select %p105, %s106, %s107
    %p111 = pneg %p105
    %p112 = scmp.eq.s32.totalorder %s9, 1
    %p113 = por %p111, %p112
    %p114 = scmp.ne.s32.totalorder %s106, %s109
    %p115 = scmp.eq.s32.totalorder %s9, 0
    %p116 = por %p114, %p115
    %p117 = scmp.ne.s32.totalorder %s106, %s109
    %p118 = scmp.eq.s32.totalorder %s14, 1
    %p119 = por %p117, %p118
    %p120 = scmp.ne.s32.totalorder %s109, %s110
    %p121 = scmp.eq.s32.totalorder %s14, 0
    %p122 = por %p120, %p121
    %p123 = scmp.ne.s32.totalorder %s109, %s110
    %p124 = scmp.eq.s32.totalorder %s15, 1
    %p125 = por %p123, %p124
    %p127 = scmp.ne.s32.totalorder %s110, %s126
    %p128 = scmp.eq.s32.totalorder %s15, 0
    %p129 = por %p127, %p128
    %p130 = scmp.le.s32.totalorder 1, %s9
    %p131 = scmp.lt.s32.totalorder %s9, 3
    %p132 = pnand %p130, %p131
    %p133 = pneg %p132
    // Predicated region
    $region9: #{_lambda_.57} parent=5 // pred_check
      _
    $region10: #{_lambda_.57} parent=5 // pred_check_branch
      %135 = sbr.rel (%p132) target = $region12
    $region11: #{_lambda_.57} parent=5 // pred_region
      %s136 = ssub.s32 %s9, 1
      // Predicated region
      $region13: #{_lambda_.57} parent=11 // pred_check
        %p137 = pneg %p75
      $region14: #{_lambda_.57} parent=11 // pred_check_branch
        %139 = sbr.rel (%p137) target = $region16
      $region15: #{_lambda_.57} parent=11 // pred_region
        %s140 = smul.u32 16, %s19
        %p141 = scmp.lt.s32.totalorder %s140, 15
        %s142 = scalar_select %p141, %s140, 15
        %s143 = smul.addr %s142, 4
        %s144 = scalar_lea.vmem %s1, %s143
        %s145 = smul.u32 16, %s19
      $region16: #{_lambda_.57} parent=11 // pred_fallthru
        _
      // Predicated region
      $region17: #{_lambda_.57} parent=11 // pred_check
        %p146 = pneg %p96
      $region18: #{_lambda_.57} parent=11 // pred_check_branch
        %148 = sbr.rel (%p146) target = $region20
      $region19: #{_lambda_.57} parent=11 // pred_region
        _
      $region20: #{_lambda_.57} parent=11 // pred_fallthru
        _
    $region12: #{_lambda_.57} parent=5 // pred_fallthru
      _
    %p149 = scmp.lt.s32.totalorder %s9, 2
    // Predicated region
    $region21: #{_lambda_.57} parent=5 // pred_check
      %p150 = pneg %p149
    $region22: #{_lambda_.57} parent=5 // pred_check_branch
      %152 = sbr.rel (%p150) target = $region24
    $region23: #{_lambda_.57} parent=5 // pred_region
      // Predicated region
      $region25: #{_lambda_.57} parent=23 // pred_check
        %p153 = pneg %p43
      $region26: #{_lambda_.57} parent=23 // pred_check_branch
        %155 = sbr.rel (%p153) target = $region28
      $region27: #{_lambda_.57} parent=23 // pred_region
        %s156 = smul.u32 8, %s16
        %p157 = scmp.lt.s32.totalorder %s156, 15
        %s158 = scalar_select %p157, %s156, 15
        %p159 = scmp.lt.s32.totalorder %s17, 0
        %s160 = scalar_select %p159, %s17, 0
        %s161 = sadd.s32 %s160, %s158
        %s162 = smul.addr %s161, 4
        %s163 = scalar_lea.vmem %s0, %s162
        %s164 = smul.u32 8, %s16
      $region28: #{_lambda_.57} parent=23 // pred_fallthru
        _
    $region24: #{_lambda_.57} parent=5 // pred_fallthru
      _
    %p165 = scmp.le.s32.totalorder 1, %s9
    %p166 = scmp.lt.s32.totalorder %s9, 3
    %p167 = pnand %p165, %p166
    %p168 = pneg %p167
    // Predicated region
    $region29: #{_lambda_.57} parent=5 // pred_check
      _
    $region30: #{_lambda_.57} parent=5 // pred_check_branch
      %170 = sbr.rel (%p167) target = $region32
    $region31: #{_lambda_.57} parent=5 // pred_region
      %s171 = ssub.s32 %s9, 1
      %s172 = smul.u32 8, %s18
      %p173 = scmp.lt.s32.totalorder %s172, 15
      %s174 = scalar_select %p173, %s172, 15
      %p175 = scmp.lt.s32.totalorder %s19, 0
      %s176 = scalar_select %p175, %s19, 0
      %s177 = sadd.s32 %s176, %s174
      %s178 = smul.addr %s177, 4
      %s179 = scalar_lea.vmem %s0, %s178
      %p180 = pneg %p49
      %p181 = pneg %p46
      %s182 = smul.u32 16, %s19
      %p183 = scmp.lt.s32.totalorder %s182, 15
      %s184 = scalar_select %p183, %s182, 15
      %s185 = smul.addr %s184, 4
      %s186 = scalar_lea.vmem %s1, %s185
      %p187 = pneg %p75
      %p188 = pneg %p72
      %p189 = pneg %p96
      %p190 = pneg %p93
      %p191 = pneg %p122
      %p192 = pneg %p119
      %s193 = smul.u32 8, %s18
      %p194 = scmp.lt.s32.totalorder %s193, 15
      %s195 = scalar_select %p194, %s193, 15
      %s196 = smul.addr %s195, 4
      %s197 = scalar_lea.vmem %s3, %s196
      %s198 = smul.u32 8, %s18
      %p199 = scmp.lt.s32.totalorder %s198, 15
      %s200 = scalar_select %p199, %s198, 15
      %p201 = scmp.lt.s32.totalorder %s19, 0
      %s202 = scalar_select %p201, %s19, 0
      %s203 = sadd.s32 %s202, %s200
      %s204 = smul.addr %s203, 4
      %s205 = scalar_lea.vmem %s0, %s204
      %s206 = smul.u32 8, %s18
      %s207 = smul.u32 16, %s19
      %p208 = scmp.lt.s32.totalorder %s207, 15
      %s209 = scalar_select %p208, %s207, 15
      %s210 = smul.addr %s209, 4
      %s211 = scalar_lea.vmem %s1, %s210
      %s212 = smul.u32 16, %s19
      %s213 = smul.u32 8, %s18
      %p214 = scmp.lt.s32.totalorder %s213, 15
      %s215 = scalar_select %p214, %s213, 15
      %s216 = smul.addr %s215, 4
      %s217 = scalar_lea.vmem %s3, %s216
      %s218 = smul.u32 8, %s18
      %p220 = scmp.eq.s32.totalorder %s19, 0
      // Predicated region
      $region33: #{_lambda_.57} parent=31 // pred_check
        %p221 = pneg %p220
      $region34: #{_lambda_.57} parent=31 // pred_check_branch
        %223 = sbr.rel (%p221) target = $region36
      $region35: #{_lambda_.57} parent=31 // pred_region
        %224 = vst [vmem:[#allocation2] sm:$0xff] 0.0
        %225 = vst [vmem:[#allocation2 + $0x8] sm:$0xff] 0.0
        %226 = vst [vmem:[#allocation2 + $0x10] sm:$0xff] 0.0
        %227 = vst [vmem:[#allocation2 + $0x18] sm:$0xff] 0.0
        %228 = vst [vmem:[#allocation2 + $0x20] sm:$0xff] 0.0
        %229 = vst [vmem:[#allocation2 + $0x28] sm:$0xff] 0.0
        %230 = vst [vmem:[#allocation2 + $0x30] sm:$0xff] 0.0
        %231 = vst [vmem:[#allocation2 + $0x38] sm:$0xff] 0.0
      $region36: #{_lambda_.57} parent=31 // pred_fallthru
        _
      %v232 = vld [vmem:[#allocation2] sm:$0xff]
      %v233 = vld [vmem:[#allocation2 + $0x8] sm:$0xff]
      %v234 = vld [vmem:[#allocation2 + $0x10] sm:$0xff]
      %v235 = vld [vmem:[#allocation2 + $0x18] sm:$0xff]
      %v236 = vld [vmem:[#allocation2 + $0x20] sm:$0xff]
      %v237 = vld [vmem:[#allocation2 + $0x28] sm:$0xff]
      %v238 = vld [vmem:[#allocation2 + $0x30] sm:$0xff]
      %v239 = vld [vmem:[#allocation2 + $0x38] sm:$0xff]
      %v240 = vld [vmem:[%s205] sm:$0xf]
      %v241 = vld [vmem:[%s205 + $0x4] sm:$0xf]
      %v242 = vld [vmem:[%s205 + $0x8] sm:$0xf]
      %v243 = vld [vmem:[%s205 + $0xc] sm:$0xf]
      %v244 = vld [vmem:[%s205 + $0x10] sm:$0xf]
      %v245 = vld [vmem:[%s205 + $0x14] sm:$0xf]
      %v246 = vld [vmem:[%s205 + $0x18] sm:$0xf]
      %v247 = vld [vmem:[%s205 + $0x1c] sm:$0xf]
      %v248 = vld [vmem:[%s211] sm:$0xf]
      %v249 = vld [vmem:[%s211 + $0x4] sm:$0xf]
      %v250 = vld [vmem:[%s211 + $0x8] sm:$0xf]
      %v251 = vld [vmem:[%s211 + $0xc] sm:$0xf]
      %v252 = vld [vmem:[%s211 + $0x10] sm:$0xf]
      %v253 = vld [vmem:[%s211 + $0x14] sm:$0xf]
      %v254 = vld [vmem:[%s211 + $0x18] sm:$0xf]
      %v255 = vld [vmem:[%s211 + $0x1c] sm:$0xf]
      %v256 = vld [vmem:[%s211 + $0x20] sm:$0xf]
      %v257 = vld [vmem:[%s211 + $0x24] sm:$0xf]
      %v258 = vld [vmem:[%s211 + $0x28] sm:$0xf]
      %v259 = vld [vmem:[%s211 + $0x2c] sm:$0xf]
      %v260 = vld [vmem:[%s211 + $0x30] sm:$0xf]
      %v261 = vld [vmem:[%s211 + $0x34] sm:$0xf]
      %v262 = vld [vmem:[%s211 + $0x38] sm:$0xf]
      %v263 = vld [vmem:[%s211 + $0x3c] sm:$0xf]
      %v272 = vunpack.c.l.b16 %v240
      %v273 = vunpack.c.l.b16 %v241
      %v274 = vunpack.c.l.b16 %v242
      %v275 = vunpack.c.l.b16 %v243
      %v276 = vunpack.c.l.b16 %v244
      %v277 = vunpack.c.l.b16 %v245
      %v278 = vunpack.c.l.b16 %v246
      %v279 = vunpack.c.l.b16 %v247
      %v280 = vpack.c.b16 %v273, %v272
      %v281 = vpack.c.b16 %v275, %v274
      %v282 = vpack.c.b16 %v277, %v276
      %v283 = vpack.c.b16 %v279, %v278
      %v304 = vunpack.c.l.b16 %v248
      %v305 = vunpack.c.l.b16 %v249
      %v306 = vunpack.c.l.b16 %v250
      %v307 = vunpack.c.l.b16 %v251
      %v308 = vunpack.c.l.b16 %v252
      %v309 = vunpack.c.l.b16 %v253
      %v310 = vunpack.c.l.b16 %v254
      %v311 = vunpack.c.l.b16 %v255
      %v312 = vunpack.c.l.b16 %v256
      %v313 = vunpack.c.l.b16 %v257
      %v314 = vunpack.c.l.b16 %v258
      %v315 = vunpack.c.l.b16 %v259
      %v316 = vunpack.c.l.b16 %v260
      %v317 = vunpack.c.l.b16 %v261
      %v318 = vunpack.c.l.b16 %v262
      %v319 = vunpack.c.l.b16 %v263
      %v320 = vpack.c.b16 %v305, %v304
      %v321 = vpack.c.b16 %v307, %v306
      %v322 = vpack.c.b16 %v309, %v308
      %v323 = vpack.c.b16 %v311, %v310
      %v324 = vpack.c.b16 %v313, %v312
      %v325 = vpack.c.b16 %v315, %v314
      %v326 = vpack.c.b16 %v317, %v316
      %v327 = vpack.c.b16 %v319, %v318
      %336 = vmatprep.subr.bf16.mxu0 0
      %337 = vmatpush1.bf16.msra.mxu0 %v327
      %338 = vmatprep.subr.bf16.mxu0 0
      %339 = vmatpush1.bf16.msra.mxu0 %v326
      %340 = vmatprep.subr.bf16.mxu0 0
      %341 = vmatpush1.bf16.msra.mxu0 %v325
      %342 = vmatprep.subr.bf16.mxu0 0
      %343 = vmatpush1.bf16.msra.mxu0 %v324
      %344 = vmatprep.subr.bf16.mxu0 0
      %345 = vmatpush1.bf16.msra.mxu0 %v323
      %346 = vmatprep.subr.bf16.mxu0 0
      %347 = vmatpush1.bf16.msra.mxu0 %v322
      %348 = vmatprep.subr.bf16.mxu0 0
      %349 = vmatpush1.bf16.msra.mxu0 %v321
      %350 = vmatprep.subr.bf16.mxu0 0
      %351 = vmatpush1.bf16.msra.mxu0 %v320
      %352 = vmatprep.subr.bf16.mxu0 0
      %353 = vmatpush2.bf16.msra.mxu0 0
      %354 = vmatprep.subr.bf16.mxu0 0
      %355 = vmatpush2.bf16.msra.mxu0 0
      %356 = vmatprep.subr.bf16.mxu0 0
      %357 = vmatpush2.bf16.msra.mxu0 0
      %358 = vmatprep.subr.bf16.mxu0 0
      %359 = vmatpush2.bf16.msra.mxu0 0
      %360 = vmatprep.subr.bf16.mxu0 0
      %361 = vmatpush2.bf16.msra.mxu0 0
      %362 = vmatprep.subr.bf16.mxu0 0
      %363 = vmatpush2.bf16.msra.mxu0 0
      %364 = vmatprep.subr.bf16.mxu0 0
      %365 = vmatpush2.bf16.msra.mxu0 0
      %366 = vmatprep.subr.bf16.mxu0 0
      %367 = vmatpush2.bf16.msra.mxu0 0
      %368 = vmatprep.mubr.bf16.mxu0 0
      %369 = vmatmul.mubr.bf16.gmra.mxu0 %v280
      %v370 = vpop.f32.mrf.mxu0
      %v371 = vadd.f32 0.0, %v370
      %v372 = vpop.f32.mrf.mxu0
      %v373 = vpop.f32.mrf.mxu0
      %v374 = vadd.f32 0.0, %v373
      %v375 = vpop.f32.mrf.mxu0
      %376 = vmatprep.mubr.bf16.mxu0 0
      %377 = vmatmul.mubr.bf16.gmra.mxu0 %v281
      %v378 = vpop.f32.mrf.mxu0
      %v379 = vadd.f32 0.0, %v378
      %v380 = vpop.f32.mrf.mxu0
      %v381 = vpop.f32.mrf.mxu0
      %v382 = vadd.f32 0.0, %v381
      %v383 = vpop.f32.mrf.mxu0
      %384 = vmatprep.mubr.bf16.mxu0 0
      %385 = vmatmul.mubr.bf16.gmra.mxu0 %v282
      %v386 = vpop.f32.mrf.mxu0
      %v387 = vadd.f32 0.0, %v386
      %v388 = vpop.f32.mrf.mxu0
      %v389 = vpop.f32.mrf.mxu0
      %v390 = vadd.f32 0.0, %v389
      %v391 = vpop.f32.mrf.mxu0
      %392 = vmatprep.mubr.bf16.mxu0 0
      %393 = vmatmul.mubr.bf16.gmra.mxu0 %v283
      %v394 = vpop.f32.mrf.mxu0
      %v395 = vadd.f32 0.0, %v394
      %v396 = vpop.f32.mrf.mxu0
      %v397 = vpop.f32.mrf.mxu0
      %v398 = vadd.f32 0.0, %v397
      %v399 = vpop.f32.mrf.mxu0
      %400 = vdwg.mxu0
      %v401 = vadd.f32 %v232, %v371
      %v402 = vadd.f32 %v233, %v374
      %v403 = vadd.f32 %v234, %v379
      %v404 = vadd.f32 %v235, %v382
      %v405 = vadd.f32 %v236, %v387
      %v406 = vadd.f32 %v237, %v390
      %v407 = vadd.f32 %v238, %v395
      %v408 = vadd.f32 %v239, %v398
      %409 = vst [vmem:[#allocation2] sm:$0xff] %v401
      %410 = vst [vmem:[#allocation2 + $0x8] sm:$0xff] %v402
      %411 = vst [vmem:[#allocation2 + $0x10] sm:$0xff] %v403
      %412 = vst [vmem:[#allocation2 + $0x18] sm:$0xff] %v404
      %413 = vst [vmem:[#allocation2 + $0x20] sm:$0xff] %v405
      %414 = vst [vmem:[#allocation2 + $0x28] sm:$0xff] %v406
      %415 = vst [vmem:[#allocation2 + $0x30] sm:$0xff] %v407
      %416 = vst [vmem:[#allocation2 + $0x38] sm:$0xff] %v408
      // Predicated region
      $region37: #{_lambda_.57} parent=31 // pred_check
        %p417 = pneg %p220
      $region38: #{_lambda_.57} parent=31 // pred_check_branch
        %419 = sbr.rel (%p417) target = $region40
      $region39: #{_lambda_.57} parent=31 // pred_region
        %v420 = vld [vmem:[#allocation2] sm:$0xff]
        %v421 = vld [vmem:[#allocation2 + $0x8] sm:$0xff]
        %v422 = vld [vmem:[#allocation2 + $0x10] sm:$0xff]
        %v423 = vld [vmem:[#allocation2 + $0x18] sm:$0xff]
        %v424 = vld [vmem:[#allocation2 + $0x20] sm:$0xff]
        %v425 = vld [vmem:[#allocation2 + $0x28] sm:$0xff]
        %v426 = vld [vmem:[#allocation2 + $0x30] sm:$0xff]
        %v427 = vld [vmem:[#allocation2 + $0x38] sm:$0xff]
        %v428 = vld [vmem:[%s2] sm:$0x1]
        %v430 = vlaneseq
        %v431 = vshrl.u32 %v430, 7
        %v432 = vsub.s32 0, %v431
        %v433 = vrot.slane %v428, %v432
        %v435 = vadd.f32 %v420, %v433
        %v436 = vadd.f32 %v421, %v433
        %v437 = vadd.f32 %v422, %v433
        %v438 = vadd.f32 %v423, %v433
        %v439 = vadd.f32 %v424, %v433
        %v440 = vadd.f32 %v425, %v433
        %v441 = vadd.f32 %v426, %v433
        %v442 = vadd.f32 %v427, %v433
        %v443 = vmax.f32 %v435, 0.0
        %v444 = vmax.f32 %v436, 0.0
        %v445 = vmax.f32 %v437, 0.0
        %v446 = vmax.f32 %v438, 0.0
        %v447 = vmax.f32 %v439, 0.0
        %v448 = vmax.f32 %v440, 0.0
        %v449 = vmax.f32 %v441, 0.0
        %v450 = vmax.f32 %v442, 0.0
        %v451 = vpack.c.bf16 %v444, %v443
        %v452 = vpack.c.bf16 %v446, %v445
        %v453 = vpack.c.bf16 %v448, %v447
        %v454 = vpack.c.bf16 %v450, %v449
        %v459 = vunpack.c.l.b16 %v451
        %v460 = vunpack.c.h.b16 %v451
        %v461 = vunpack.c.l.b16 %v452
        %v462 = vunpack.c.h.b16 %v452
        %v463 = vunpack.c.l.b16 %v453
        %v464 = vunpack.c.h.b16 %v453
        %v465 = vunpack.c.l.b16 %v454
        %v466 = vunpack.c.h.b16 %v454
        %v467 = vpack.c.b16 %v459, %v459
        %v468 = vpack.c.b16 %v460, %v460
        %v469 = vpack.c.b16 %v461, %v461
        %v470 = vpack.c.b16 %v462, %v462
        %v471 = vpack.c.b16 %v463, %v463
        %v472 = vpack.c.b16 %v464, %v464
        %v473 = vpack.c.b16 %v465, %v465
        %v474 = vpack.c.b16 %v466, %v466
        %483 = vst [vmem:[%s217] sm:$0xf] %v467
        %484 = vst [vmem:[%s217 + $0x4] sm:$0xf] %v468
        %485 = vst [vmem:[%s217 + $0x8] sm:$0xf] %v469
        %486 = vst [vmem:[%s217 + $0xc] sm:$0xf] %v470
        %487 = vst [vmem:[%s217 + $0x10] sm:$0xf] %v471
        %488 = vst [vmem:[%s217 + $0x14] sm:$0xf] %v472
        %489 = vst [vmem:[%s217 + $0x18] sm:$0xf] %v473
        %490 = vst [vmem:[%s217 + $0x1c] sm:$0xf] %v474
      $region40: #{_lambda_.57} parent=31 // pred_fallthru
        _
      %s491 = smul.u32 8, %s18
      %p492 = scmp.lt.s32.totalorder %s491, 15
      %s493 = scalar_select %p492, %s491, 15
      %s494 = smul.addr %s493, 4
      %s495 = scalar_lea.vmem %s3, %s494
      // Predicated region
      $region41: #{_lambda_.57} parent=31 // pred_check
        %p496 = pneg %p119
      $region42: #{_lambda_.57} parent=31 // pred_check_branch
        %498 = sbr.rel (%p496) target = $region44
      $region43: #{_lambda_.57} parent=31 // pred_region
        %s499 = smul.u32 8, %s18
      $region44: #{_lambda_.57} parent=31 // pred_fallthru
        _
    $region32: #{_lambda_.57} parent=5 // pred_fallthru
      _
    %p500 = scmp.le.s32.totalorder 2, %s9
    // Predicated region
    $region45: #{_lambda_.57} parent=5 // pred_check
      %p501 = pneg %p500
    $region46: #{_lambda_.57} parent=5 // pred_check_branch
      %503 = sbr.rel (%p501) target = $region48
    $region47: #{_lambda_.57} parent=5 // pred_region
      %s504 = ssub.s32 %s9, 2
      // Predicated region
      $region49: #{_lambda_.57} parent=47 // pred_check
        %p505 = pneg %p125
      $region50: #{_lambda_.57} parent=47 // pred_check_branch
        %507 = sbr.rel (%p505) target = $region52
      $region51: #{_lambda_.57} parent=47 // pred_region
        %s508 = smul.u32 8, %s20
        %p509 = scmp.lt.s32.totalorder %s508, 15
        %s510 = scalar_select %p509, %s508, 15
        %s511 = smul.addr %s510, 4
        %s512 = scalar_lea.vmem %s3, %s511
      $region52: #{_lambda_.57} parent=47 // pred_fallthru
        _
    $region48: #{_lambda_.57} parent=5 // pred_fallthru
      _
  $region6: #{_lambda_.57} parent=0 // loop_footer
    %s13 = sadd.s32 1, %s9
  $region7: #{_lambda_.57} parent=0 // loop_footer_branch
    %8 = sbr.rel target = $region3
  $region8: #{_lambda_.57} parent=0 // loop_exit
    _

// kernel: _lambda_.55
$region0: #{_lambda_.55}
  #allocation0 [shape = 'u32[]', space=smem, size = 0x4, offset = 0x4, fixed_abs, tag = 'smem constant byte address 0x4 - core index']
  #allocation1 [shape = 'u32[144,128]{1,0:T(1,128)}', space=vmem, size = 0x12000, scoped, tag = 'internal scratch']
  #allocation2 [shape = 'f32[256,128]{1,0:T(8,128)}', space=vmem, size = 0x20000, scoped, tag = 'scratch operand']
  %s0 = inlined_call_operand.vmem [shape: bf16[512,147], index: 0, kind: input, shape index: {}]
  %s1 = inlined_call_operand.vmem [shape: bf16[147,128], index: 1, kind: input, shape index: {}]
  %s2 = inlined_call_operand.vmem [shape: f32[1,128], index: 2, kind: input, shape index: {}]
  %s3 = inlined_call_operand.vmem [shape: bf16[512,128], index: 3, kind: output, shape index: {}]
  %s4 = sld [smem:[#allocation0]]
  $region53: #{_lambda_.55} parent=0
    _
  %s6 = ssub.s32 1, %s4
  %s7 = scalar_select 0, %s6, %s4
  loop: start=0, step=1, limit=4
  $region2: #{_lambda_.55} parent=0 // loop_pre_header
    _
  $region3: #{_lambda_.55} parent=0 // loop_header
    %s9 = sphi 0, %s13
    %p10 = scmp.ge.s32.totalorder %s9, 4
    %s16 = sphi 0, %s28
    %s17 = sphi 0, %s24
    %s18 = sphi 0, %s16
    %s19 = sphi 0, %s17
    %s20 = sphi 0, %s18
    %s21 = sphi 0, %s19
    %s33 = sphi 0, %s35
    %s36 = sphi 0, %s33
    %s37 = sphi 0, %s36
    %s53 = sphi 0, %s37
    %s59 = sphi 0, %s61
    %s62 = sphi 0, %s59
    %s63 = sphi 0, %s62
    %s79 = sphi 0, %s63
    %s83 = sphi 0, %s83
    %s85 = sphi 0, %s83
    %s86 = sphi 0, %s85
    %s100 = sphi 0, %s86
    %s106 = sphi 0, %s108
    %s109 = sphi 0, %s106
    %s110 = sphi 0, %s109
    %s126 = sphi 0, %s110
  $region4: #{_lambda_.55} parent=0 // loop_header_branch
    %12 = sbr.rel (%p10) target = $region8
  $region5: #{_lambda_.55} parent=0 // loop_body
    %s14 = ssub.s32 %s9, 1
    %s15 = ssub.s32 %s9, 2
    %s22 = sadd.s32 1, %s17
    %p23 = scmp.ge.s32.totalorder %s22, 1
    %s24 = scalar_select %p23, 0, %s22
    %s25 = sadd.s32 1, %s16
    %s26 = scalar_select %p23, %s25, %s16
    %p27 = scmp.ge.s32.totalorder %s26, 2
    %s28 = scalar_select %p27, 0, %s26
    %s29 = ssub.s32 %s16, %s28
    %s30 = ssub.s32 %s17, %s24
    %s31 = sor.u32 %s29, %s30
    %p32 = scmp.eq.s32.totalorder %s31, 0
    %s34 = sadd.s32 %s33, 1
    %s35 = scalar_select %p32, %s33, %s34
    %p38 = pneg %p32
    %p39 = scmp.eq.s32.totalorder %s9, 1
    %p40 = por %p38, %p39
    %p41 = scmp.ne.s32.totalorder %s33, %s36
    %p42 = scmp.eq.s32.totalorder %s9, 0
    %p43 = por %p41, %p42
    %p44 = scmp.ne.s32.totalorder %s33, %s36
    %p45 = scmp.eq.s32.totalorder %s14, 1
    %p46 = por %p44, %p45
    %p47 = scmp.ne.s32.totalorder %s36, %s37
    %p48 = scmp.eq.s32.totalorder %s14, 0
    %p49 = por %p47, %p48
    %p50 = scmp.ne.s32.totalorder %s36, %s37
    %p51 = scmp.eq.s32.totalorder %s15, 1
    %p52 = por %p50, %p51
    %p54 = scmp.ne.s32.totalorder %s37, %s53
    %p55 = scmp.eq.s32.totalorder %s15, 0
    %p56 = por %p54, %p55
    %s57 = ssub.s32 %s17, %s24
    %p58 = scmp.eq.s32.totalorder %s57, 0
    %s60 = sadd.s32 %s59, 1
    %s61 = scalar_select %p58, %s59, %s60
    %p64 = pneg %p58
    %p65 = scmp.eq.s32.totalorder %s9, 1
    %p66 = por %p64, %p65
    %p67 = scmp.ne.s32.totalorder %s59, %s62
    %p68 = scmp.eq.s32.totalorder %s9, 0
    %p69 = por %p67, %p68
    %p70 = scmp.ne.s32.totalorder %s59, %s62
    %p71 = scmp.eq.s32.totalorder %s14, 1
    %p72 = por %p70, %p71
    %p73 = scmp.ne.s32.totalorder %s62, %s63
    %p74 = scmp.eq.s32.totalorder %s14, 0
    %p75 = por %p73, %p74
    %p76 = scmp.ne.s32.totalorder %s62, %s63
    %p77 = scmp.eq.s32.totalorder %s15, 1
    %p78 = por %p76, %p77
    %p80 = scmp.ne.s32.totalorder %s63, %s79
    %p81 = scmp.eq.s32.totalorder %s15, 0
    %p82 = por %p80, %p81
    %s84 = sadd.s32 %s83, 1
    %p87 = scmp.eq.s32.totalorder %s9, 1
    %p88 = scmp.ne.s32.totalorder %s83, %s85
    %p89 = scmp.eq.s32.totalorder %s9, 0
    %p90 = por %p88, %p89
    %p91 = scmp.ne.s32.totalorder %s83, %s85
    %p92 = scmp.eq.s32.totalorder %s14, 1
    %p93 = por %p91, %p92
    %p94 = scmp.ne.s32.totalorder %s85, %s86
    %p95 = scmp.eq.s32.totalorder %s14, 0
    %p96 = por %p94, %p95
    %p97 = scmp.ne.s32.totalorder %s85, %s86
    %p98 = scmp.eq.s32.totalorder %s15, 1
    %p99 = por %p97, %p98
    %p101 = scmp.ne.s32.totalorder %s86, %s100
    %p102 = scmp.eq.s32.totalorder %s15, 0
    %p103 = por %p101, %p102
    %s104 = ssub.s32 %s16, %s28
    %p105 = scmp.eq.s32.totalorder %s104, 0
    %s107 = sadd.s32 %s106, 1
    %s108 = scalar_select %p105, %s106, %s107
    %p111 = pneg %p105
    %p112 = scmp.eq.s32.totalorder %s9, 1
    %p113 = por %p111, %p112
    %p114 = scmp.ne.s32.totalorder %s106, %s109
    %p115 = scmp.eq.s32.totalorder %s9, 0
    %p116 = por %p114, %p115
    %p117 = scmp.ne.s32.totalorder %s106, %s109
    %p118 = scmp.eq.s32.totalorder %s14, 1
    %p119 = por %p117, %p118
    %p120 = scmp.ne.s32.totalorder %s109, %s110
    %p121 = scmp.eq.s32.totalorder %s14, 0
    %p122 = por %p120, %p121
    %p123 = scmp.ne.s32.totalorder %s109, %s110
    %p124 = scmp.eq.s32.totalorder %s15, 1
    %p125 = por %p123, %p124
    %p127 = scmp.ne.s32.totalorder %s110, %s126
    %p128 = scmp.eq.s32.totalorder %s15, 0
    %p129 = por %p127, %p128
    %p130 = scmp.le.s32.totalorder 1, %s9
    %p131 = scmp.lt.s32.totalorder %s9, 3
    %p132 = pnand %p130, %p131
    %p133 = pneg %p132
    // Predicated region
    $region9: #{_lambda_.55} parent=5 // pred_check
      _
    $region10: #{_lambda_.55} parent=5 // pred_check_branch
      %135 = sbr.rel (%p132) target = $region12
    $region11: #{_lambda_.55} parent=5 // pred_region
      %s136 = ssub.s32 %s9, 1
      // Predicated region
      $region13: #{_lambda_.55} parent=11 // pred_check
        %p137 = pneg %p75
      $region14: #{_lambda_.55} parent=11 // pred_check_branch
        %139 = sbr.rel (%p137) target = $region16
      $region15: #{_lambda_.55} parent=11 // pred_region
        %s140 = smul.u32 19, %s19
        %p141 = scmp.lt.s32.totalorder %s140, 18
        %s142 = scalar_select %p141, %s140, 18
        %s143 = smul.addr %s142, 4
        %s144 = scalar_lea.vmem %s1, %s143
        %s145 = smul.u32 19, %s19
      $region16: #{_lambda_.55} parent=11 // pred_fallthru
        _
      // Predicated region
      $region17: #{_lambda_.55} parent=11 // pred_check
        %p146 = pneg %p96
      $region18: #{_lambda_.55} parent=11 // pred_check_branch
        %148 = sbr.rel (%p146) target = $region20
      $region19: #{_lambda_.55} parent=11 // pred_region
        _
      $region20: #{_lambda_.55} parent=11 // pred_fallthru
        _
    $region12: #{_lambda_.55} parent=5 // pred_fallthru
      _
    %p149 = scmp.lt.s32.totalorder %s9, 2
    // Predicated region
    $region21: #{_lambda_.55} parent=5 // pred_check
      %p150 = pneg %p149
    $region22: #{_lambda_.55} parent=5 // pred_check_branch
      %152 = sbr.rel (%p150) target = $region24
    $region23: #{_lambda_.55} parent=5 // pred_region
      // Predicated region
      $region25: #{_lambda_.55} parent=23 // pred_check
        %p153 = pneg %p43
      $region26: #{_lambda_.55} parent=23 // pred_check_branch
        %155 = sbr.rel (%p153) target = $region28
      $region27: #{_lambda_.55} parent=23 // pred_region
        %s156 = smul.u32 32, %s16
        %s157 = smul.u32 2, %s17
        %p158 = scmp.lt.s32.totalorder %s156, 63
        %s159 = scalar_select %p158, %s156, 63
        %p160 = scmp.lt.s32.totalorder %s157, 1
        %s161 = scalar_select %p160, %s157, 1
        %s162 = smul.addr %s159, 2
        %s163 = sadd.s32 %s161, %s162
        %s164 = smul.addr %s163, 4
        %s165 = scalar_lea.vmem %s0, %s164
        %s166 = smul.u32 32, %s16
        %s167 = smul.u32 2, %s17
      $region28: #{_lambda_.55} parent=23 // pred_fallthru
        _
    $region24: #{_lambda_.55} parent=5 // pred_fallthru
      _
    %p168 = scmp.le.s32.totalorder 1, %s9
    %p169 = scmp.lt.s32.totalorder %s9, 3
    %p170 = pnand %p168, %p169
    %p171 = pneg %p170
    // Predicated region
    $region29: #{_lambda_.55} parent=5 // pred_check
      _
    $region30: #{_lambda_.55} parent=5 // pred_check_branch
      %173 = sbr.rel (%p170) target = $region32
    $region31: #{_lambda_.55} parent=5 // pred_region
      %s174 = ssub.s32 %s9, 1
      %s175 = smul.u32 32, %s18
      %s176 = smul.u32 2, %s19
      %p177 = scmp.lt.s32.totalorder %s175, 63
      %s178 = scalar_select %p177, %s175, 63
      %p179 = scmp.lt.s32.totalorder %s176, 1
      %s180 = scalar_select %p179, %s176, 1
      %s181 = smul.addr %s178, 2
      %s182 = sadd.s32 %s180, %s181
      %s183 = smul.addr %s182, 4
      %s184 = scalar_lea.vmem %s0, %s183
      %p185 = pneg %p49
      %p186 = pneg %p46
      %s187 = smul.u32 19, %s19
      %p188 = scmp.lt.s32.totalorder %s187, 18
      %s189 = scalar_select %p188, %s187, 18
      %s190 = smul.addr %s189, 4
      %s191 = scalar_lea.vmem %s1, %s190
      %p192 = pneg %p75
      %p193 = pneg %p72
      %p194 = pneg %p96
      %p195 = pneg %p93
      %p196 = pneg %p122
      %p197 = pneg %p119
      %s198 = smul.u32 32, %s18
      %p199 = scmp.lt.s32.totalorder %s198, 63
      %s200 = scalar_select %p199, %s198, 63
      %s201 = smul.addr %s200, 4
      %s202 = scalar_lea.vmem %s3, %s201
      %s203 = smul.u32 32, %s18
      %s204 = smul.u32 2, %s19
      %p205 = scmp.lt.s32.totalorder %s203, 63
      %s206 = scalar_select %p205, %s203, 63
      %p207 = scmp.lt.s32.totalorder %s204, 1
      %s208 = scalar_select %p207, %s204, 1
      %s209 = smul.addr %s206, 2
      %s210 = sadd.s32 %s208, %s209
      %s211 = smul.addr %s210, 4
      %s212 = scalar_lea.vmem %s0, %s211
      %s213 = smul.u32 32, %s18
      %s214 = smul.u32 2, %s19
      %s215 = smul.u32 19, %s19
      %p216 = scmp.lt.s32.totalorder %s215, 18
      %s217 = scalar_select %p216, %s215, 18
      %s218 = smul.addr %s217, 4
      %s219 = scalar_lea.vmem %s1, %s218
      %s220 = smul.u32 19, %s19
      %s221 = smul.u32 32, %s18
      %p222 = scmp.lt.s32.totalorder %s221, 63
      %s223 = scalar_select %p222, %s221, 63
      %s224 = smul.addr %s223, 4
      %s225 = scalar_lea.vmem %s3, %s224
      %s226 = smul.u32 32, %s18
      %p228 = scmp.eq.s32.totalorder %s19, 0
      // Predicated region
      $region33: #{_lambda_.55} parent=31 // pred_check
        %p229 = pneg %p228
      $region34: #{_lambda_.55} parent=31 // pred_check_branch
        %231 = sbr.rel (%p229) target = $region36
      $region35: #{_lambda_.55} parent=31 // pred_region
        %232 = vst [vmem:[#allocation2] sm:$0xff] 0.0
        %233 = vst [vmem:[#allocation2 + $0x8] sm:$0xff] 0.0
        %234 = vst [vmem:[#allocation2 + $0x10] sm:$0xff] 0.0
        %235 = vst [vmem:[#allocation2 + $0x18] sm:$0xff] 0.0
        %236 = vst [vmem:[#allocation2 + $0x20] sm:$0xff] 0.0
        %237 = vst [vmem:[#allocation2 + $0x28] sm:$0xff] 0.0
        %238 = vst [vmem:[#allocation2 + $0x30] sm:$0xff] 0.0
        %239 = vst [vmem:[#allocation2 + $0x38] sm:$0xff] 0.0
        %240 = vst [vmem:[#allocation2 + $0x40] sm:$0xff] 0.0
        %241 = vst [vmem:[#allocation2 + $0x48] sm:$0xff] 0.0
        %242 = vst [vmem:[#allocation2 + $0x50] sm:$0xff] 0.0
        %243 = vst [vmem:[#allocation2 + $0x58] sm:$0xff] 0.0
        %244 = vst [vmem:[#allocation2 + $0x60] sm:$0xff] 0.0
        %245 = vst [vmem:[#allocation2 + $0x68] sm:$0xff] 0.0
        %246 = vst [vmem:[#allocation2 + $0x70] sm:$0xff] 0.0
        %247 = vst [vmem:[#allocation2 + $0x78] sm:$0xff] 0.0
        %248 = vst [vmem:[#allocation2 + $0x80] sm:$0xff] 0.0
        %249 = vst [vmem:[#allocation2 + $0x88] sm:$0xff] 0.0
        %250 = vst [vmem:[#allocation2 + $0x90] sm:$0xff] 0.0
        %251 = vst [vmem:[#allocation2 + $0x98] sm:$0xff] 0.0
        %252 = vst [vmem:[#allocation2 + $0xa0] sm:$0xff] 0.0
        %253 = vst [vmem:[#allocation2 + $0xa8] sm:$0xff] 0.0
        %254 = vst [vmem:[#allocation2 + $0xb0] sm:$0xff] 0.0
        %255 = vst [vmem:[#allocation2 + $0xb8] sm:$0xff] 0.0
        %256 = vst [vmem:[#allocation2 + $0xc0] sm:$0xff] 0.0
        %257 = vst [vmem:[#allocation2 + $0xc8] sm:$0xff] 0.0
        %258 = vst [vmem:[#allocation2 + $0xd0] sm:$0xff] 0.0
        %259 = vst [vmem:[#allocation2 + $0xd8] sm:$0xff] 0.0
        %260 = vst [vmem:[#allocation2 + $0xe0] sm:$0xff] 0.0
        %261 = vst [vmem:[#allocation2 + $0xe8] sm:$0xff] 0.0
        %262 = vst [vmem:[#allocation2 + $0xf0] sm:$0xff] 0.0
        %263 = vst [vmem:[#allocation2 + $0xf8] sm:$0xff] 0.0
      $region36: #{_lambda_.55} parent=31 // pred_fallthru
        _
      %v264 = vld [vmem:[#allocation2] sm:$0xff]
      %v265 = vld [vmem:[#allocation2 + $0x8] sm:$0xff]
      %v266 = vld [vmem:[#allocation2 + $0x10] sm:$0xff]
      %v267 = vld [vmem:[#allocation2 + $0x18] sm:$0xff]
      %v268 = vld [vmem:[#allocation2 + $0x20] sm:$0xff]
      %v269 = vld [vmem:[#allocation2 + $0x28] sm:$0xff]
      %v270 = vld [vmem:[#allocation2 + $0x30] sm:$0xff]
      %v271 = vld [vmem:[#allocation2 + $0x38] sm:$0xff]
      %v272 = vld [vmem:[#allocation2 + $0x40] sm:$0xff]
      %v273 = vld [vmem:[#allocation2 + $0x48] sm:$0xff]
      %v274 = vld [vmem:[#allocation2 + $0x50] sm:$0xff]
      %v275 = vld [vmem:[#allocation2 + $0x58] sm:$0xff]
      %v276 = vld [vmem:[#allocation2 + $0x60] sm:$0xff]
      %v277 = vld [vmem:[#allocation2 + $0x68] sm:$0xff]
      %v278 = vld [vmem:[#allocation2 + $0x70] sm:$0xff]
      %v279 = vld [vmem:[#allocation2 + $0x78] sm:$0xff]
      %v280 = vld [vmem:[#allocation2 + $0x80] sm:$0xff]
      %v281 = vld [vmem:[#allocation2 + $0x88] sm:$0xff]
      %v282 = vld [vmem:[#allocation2 + $0x90] sm:$0xff]
      %v283 = vld [vmem:[#allocation2 + $0x98] sm:$0xff]
      %v284 = vld [vmem:[#allocation2 + $0xa0] sm:$0xff]
      %v285 = vld [vmem:[#allocation2 + $0xa8] sm:$0xff]
      %v286 = vld [vmem:[#allocation2 + $0xb0] sm:$0xff]
      %v287 = vld [vmem:[#allocation2 + $0xb8] sm:$0xff]
      %v288 = vld [vmem:[#allocation2 + $0xc0] sm:$0xff]
      %v289 = vld [vmem:[#allocation2 + $0xc8] sm:$0xff]
      %v290 = vld [vmem:[#allocation2 + $0xd0] sm:$0xff]
      %v291 = vld [vmem:[#allocation2 + $0xd8] sm:$0xff]
      %v292 = vld [vmem:[#allocation2 + $0xe0] sm:$0xff]
      %v293 = vld [vmem:[#allocation2 + $0xe8] sm:$0xff]
      %v294 = vld [vmem:[#allocation2 + $0xf0] sm:$0xff]
      %v295 = vld [vmem:[#allocation2 + $0xf8] sm:$0xff]
      %v296 = vld [vmem:[%s212] sm:$0xff]
      %v297 = vld [vmem:[%s212 + $0x8] sm:$0xff]
      %v298 = vld [vmem:[%s212 + $0x10] sm:$0xff]
      %v299 = vld [vmem:[%s212 + $0x18] sm:$0xff]
      %v300 = vld [vmem:[%s212 + $0x20] sm:$0xff]
      %v301 = vld [vmem:[%s212 + $0x28] sm:$0xff]
      %v302 = vld [vmem:[%s212 + $0x30] sm:$0xff]
      %v303 = vld [vmem:[%s212 + $0x38] sm:$0xff]
      %v304 = vld [vmem:[%s212 + $0x40] sm:$0xff]
      %v305 = vld [vmem:[%s212 + $0x48] sm:$0xff]
      %v306 = vld [vmem:[%s212 + $0x50] sm:$0xff]
      %v307 = vld [vmem:[%s212 + $0x58] sm:$0xff]
      %v308 = vld [vmem:[%s212 + $0x60] sm:$0xff]
      %v309 = vld [vmem:[%s212 + $0x68] sm:$0xff]
      %v310 = vld [vmem:[%s212 + $0x70] sm:$0xff]
      %v311 = vld [vmem:[%s212 + $0x78] sm:$0xff]
      %v312 = vld [vmem:[%s212 + $0x80] sm:$0xff]
      %v313 = vld [vmem:[%s212 + $0x88] sm:$0xff]
      %v314 = vld [vmem:[%s212 + $0x90] sm:$0xff]
      %v315 = vld [vmem:[%s212 + $0x98] sm:$0xff]
      %v316 = vld [vmem:[%s212 + $0xa0] sm:$0xff]
      %v317 = vld [vmem:[%s212 + $0xa8] sm:$0xff]
      %v318 = vld [vmem:[%s212 + $0xb0] sm:$0xff]
      %v319 = vld [vmem:[%s212 + $0xb8] sm:$0xff]
      %v320 = vld [vmem:[%s212 + $0xc0] sm:$0xff]
      %v321 = vld [vmem:[%s212 + $0xc8] sm:$0xff]
      %v322 = vld [vmem:[%s212 + $0xd0] sm:$0xff]
      %v323 = vld [vmem:[%s212 + $0xd8] sm:$0xff]
      %v324 = vld [vmem:[%s212 + $0xe0] sm:$0xff]
      %v325 = vld [vmem:[%s212 + $0xe8] sm:$0xff]
      %v326 = vld [vmem:[%s212 + $0xf0] sm:$0xff]
      %v327 = vld [vmem:[%s212 + $0xf8] sm:$0xff]
      %v328 = vld [vmem:[%s219] sm:$0xf]
      %v329 = vld [vmem:[%s219 + $0x4] sm:$0xf]
      %v330 = vld [vmem:[%s219 + $0x8] sm:$0xf]
      %v331 = vld [vmem:[%s219 + $0xc] sm:$0xf]
      %v332 = vld [vmem:[%s219 + $0x10] sm:$0xf]
      %v333 = vld [vmem:[%s219 + $0x14] sm:$0xf]
      %v334 = vld [vmem:[%s219 + $0x18] sm:$0xf]
      %v335 = vld [vmem:[%s219 + $0x1c] sm:$0xf]
      %v336 = vld [vmem:[%s219 + $0x20] sm:$0xf]
      %v337 = vld [vmem:[%s219 + $0x24] sm:$0xf]
      %v338 = vld [vmem:[%s219 + $0x28] sm:$0xf]
      %v339 = vld [vmem:[%s219 + $0x2c] sm:$0xf]
      %v340 = vld [vmem:[%s219 + $0x30] sm:$0xf]
      %v341 = vld [vmem:[%s219 + $0x34] sm:$0xf]
      %v342 = vld [vmem:[%s219 + $0x38] sm:$0xf]
      %v343 = vld [vmem:[%s219 + $0x3c] sm:$0xf]
      %v344 = vld [vmem:[%s219 + $0x40] sm:$0xf]
      %v345 = vld [vmem:[%s219 + $0x44] sm:$0xf]
      %v346 = vld [vmem:[%s219 + $0x48] sm:$0x3]
      %v379 = vunpack.c.l.b16 %v296
      %v380 = vunpack.c.h.b16 %v296
      %v381 = vunpack.c.l.b16 %v297
      %v382 = vunpack.c.h.b16 %v297
      %v383 = vunpack.c.l.b16 %v298
      %v384 = vunpack.c.h.b16 %v298
      %v385 = vunpack.c.l.b16 %v299
      %v386 = vunpack.c.h.b16 %v299
      %v387 = vunpack.c.l.b16 %v300
      %v388 = vunpack.c.h.b16 %v300
      %v389 = vunpack.c.l.b16 %v301
      %v390 = vunpack.c.h.b16 %v301
      %v391 = vunpack.c.l.b16 %v302
      %v392 = vunpack.c.h.b16 %v302
      %v393 = vunpack.c.l.b16 %v303
      %v394 = vunpack.c.h.b16 %v303
      %v395 = vunpack.c.l.b16 %v304
      %v396 = vunpack.c.h.b16 %v304
      %v397 = vunpack.c.l.b16 %v305
      %v398 = vunpack.c.h.b16 %v305
      %v399 = vunpack.c.l.b16 %v306
      %v400 = vunpack.c.h.b16 %v306
      %v401 = vunpack.c.l.b16 %v307
      %v402 = vunpack.c.h.b16 %v307
      %v403 = vunpack.c.l.b16 %v308
      %v404 = vunpack.c.h.b16 %v308
      %v405 = vunpack.c.l.b16 %v309
      %v406 = vunpack.c.h.b16 %v309
      %v407 = vunpack.c.l.b16 %v310
      %v408 = vunpack.c.h.b16 %v310
      %v409 = vunpack.c.l.b16 %v311
      %v410 = vunpack.c.h.b16 %v311
      %v411 = vunpack.c.l.b16 %v312
      %v412 = vunpack.c.h.b16 %v312
      %v413 = vunpack.c.l.b16 %v313
      %v414 = vunpack.c.h.b16 %v313
      %v415 = vunpack.c.l.b16 %v314
      %v416 = vunpack.c.h.b16 %v314
      %v417 = vunpack.c.l.b16 %v315
      %v418 = vunpack.c.h.b16 %v315
      %v419 = vunpack.c.l.b16 %v316
      %v420 = vunpack.c.h.b16 %v316
      %v421 = vunpack.c.l.b16 %v317
      %v422 = vunpack.c.h.b16 %v317
      %v423 = vunpack.c.l.b16 %v318
      %v424 = vunpack.c.h.b16 %v318
      %v425 = vunpack.c.l.b16 %v319
      %v426 = vunpack.c.h.b16 %v319
      %v427 = vunpack.c.l.b16 %v320
      %v428 = vunpack.c.h.b16 %v320
      %v429 = vunpack.c.l.b16 %v321
      %v430 = vunpack.c.h.b16 %v321
      %v431 = vunpack.c.l.b16 %v322
      %v432 = vunpack.c.h.b16 %v322
      %v433 = vunpack.c.l.b16 %v323
      %v434 = vunpack.c.h.b16 %v323
      %v435 = vunpack.c.l.b16 %v324
      %v436 = vunpack.c.h.b16 %v324
      %v437 = vunpack.c.l.b16 %v325
      %v438 = vunpack.c.h.b16 %v325
      %v439 = vunpack.c.l.b16 %v326
      %v440 = vunpack.c.h.b16 %v326
      %v441 = vunpack.c.l.b16 %v327
      %v442 = vunpack.c.h.b16 %v327
      %v443 = vpack.c.b16 %v381, %v379
      %v444 = vpack.c.b16 %v382, %v380
      %v445 = vpack.c.b16 %v385, %v383
      %v446 = vpack.c.b16 %v386, %v384
      %v447 = vpack.c.b16 %v389, %v387
      %v448 = vpack.c.b16 %v390, %v388
      %v449 = vpack.c.b16 %v393, %v391
      %v450 = vpack.c.b16 %v394, %v392
      %v451 = vpack.c.b16 %v397, %v395
      %v452 = vpack.c.b16 %v398, %v396
      %v453 = vpack.c.b16 %v401, %v399
      %v454 = vpack.c.b16 %v402, %v400
      %v455 = vpack.c.b16 %v405, %v403
      %v456 = vpack.c.b16 %v406, %v404
      %v457 = vpack.c.b16 %v409, %v407
      %v458 = vpack.c.b16 %v410, %v408
      %v459 = vpack.c.b16 %v413, %v411
      %v460 = vpack.c.b16 %v414, %v412
      %v461 = vpack.c.b16 %v417, %v415
      %v462 = vpack.c.b16 %v418, %v416
      %v463 = vpack.c.b16 %v421, %v419
      %v464 = vpack.c.b16 %v422, %v420
      %v465 = vpack.c.b16 %v425, %v423
      %v466 = vpack.c.b16 %v426, %v424
      %v467 = vpack.c.b16 %v429, %v427
      %v468 = vpack.c.b16 %v430, %v428
      %v469 = vpack.c.b16 %v433, %v431
      %v470 = vpack.c.b16 %v434, %v432
      %v471 = vpack.c.b16 %v437, %v435
      %v472 = vpack.c.b16 %v438, %v436
      %v473 = vpack.c.b16 %v441, %v439
      %v474 = vpack.c.b16 %v442, %v440
      %v510 = vunpack.c.l.b16 %v328
      %v511 = vunpack.c.l.b16 %v329
      %v512 = vunpack.c.l.b16 %v330
      %v513 = vunpack.c.l.b16 %v331
      %v514 = vunpack.c.l.b16 %v332
      %v515 = vunpack.c.l.b16 %v333
      %v516 = vunpack.c.l.b16 %v334
      %v517 = vunpack.c.l.b16 %v335
      %v518 = vunpack.c.l.b16 %v336
      %v519 = vunpack.c.l.b16 %v337
      %v520 = vunpack.c.l.b16 %v338
      %v521 = vunpack.c.l.b16 %v339
      %v522 = vunpack.c.l.b16 %v340
      %v523 = vunpack.c.l.b16 %v341
      %v524 = vunpack.c.l.b16 %v342
      %v525 = vunpack.c.l.b16 %v343
      %v526 = vunpack.c.l.b16 %v344
      %v527 = vunpack.c.l.b16 %v345
      %v528 = vunpack.c.l.b16 %v346
      %v529 = vpack.c.b16 %v511, %v510
      %v530 = vpack.c.b16 %v513, %v512
      %v531 = vpack.c.b16 %v515, %v514
      %v532 = vpack.c.b16 %v517, %v516
      %v533 = vpack.c.b16 %v519, %v518
      %v534 = vpack.c.b16 %v521, %v520
      %v535 = vpack.c.b16 %v523, %v522
      %v536 = vpack.c.b16 %v525, %v524
      %v537 = vpack.c.b16 %v527, %v526
      %v538 = vpack.c.b16 %v528, %v528
      %vm548 = vcmask 154624
      %v550 = vsel %vm548, %v444, 0
      %v553 = vsel %vm548, %v446, 0
      %v556 = vsel %vm548, %v448, 0
      %v559 = vsel %vm548, %v450, 0
      %v562 = vsel %vm548, %v452, 0
      %v565 = vsel %vm548, %v454, 0
      %v568 = vsel %vm548, %v456, 0
      %v571 = vsel %vm548, %v458, 0
      %v574 = vsel %vm548, %v460, 0
      %v577 = vsel %vm548, %v462, 0
      %v580 = vsel %vm548, %v464, 0
      %v583 = vsel %vm548, %v466, 0
      %v586 = vsel %vm548, %v468, 0
      %v589 = vsel %vm548, %v470, 0
      %v592 = vsel %vm548, %v472, 0
      %v595 = vsel %vm548, %v474, 0
      %vm597 = vcmask 1040384
      %vm598 = vcmask 1041408
      %v599 = vsel %vm597, 4294967295, 65535
      %v600 = vsel %vm598, %v599, 0
      %v602 = vand.u32 %v538, %v600
      %604 = vmatprep.subr.bf16.mxu0 0
      %605 = vmatpush1.bf16.msra.mxu0 %v536
      %606 = vmatprep.subr.bf16.mxu0 0
      %607 = vmatpush1.bf16.msra.mxu0 %v535
      %608 = vmatprep.subr.bf16.mxu0 0
      %609 = vmatpush1.bf16.msra.mxu0 %v534
      %610 = vmatprep.subr.bf16.mxu0 0
      %611 = vmatpush1.bf16.msra.mxu0 %v533
      %612 = vmatprep.subr.bf16.mxu0 0
      %613 = vmatpush1.bf16.msra.mxu0 %v532
      %614 = vmatprep.subr.bf16.mxu0 0
      %615 = vmatpush1.bf16.msra.mxu0 %v531
      %616 = vmatprep.subr.bf16.mxu0 0
      %617 = vmatpush1.bf16.msra.mxu0 %v530
      %618 = vmatprep.subr.bf16.mxu0 0
      %619 = vmatpush1.bf16.msra.mxu0 %v529
      %620 = vmatprep.subr.bf16.mxu0 0
      %621 = vmatpush2.bf16.msra.mxu0 0
      %622 = vmatprep.subr.bf16.mxu0 0
      %623 = vmatpush2.bf16.msra.mxu0 0
      %624 = vmatprep.subr.bf16.mxu0 0
      %625 = vmatpush2.bf16.msra.mxu0 0
      %626 = vmatprep.subr.bf16.mxu0 0
      %627 = vmatpush2.bf16.msra.mxu0 0
      %628 = vmatprep.subr.bf16.mxu0 0
      %629 = vmatpush2.bf16.msra.mxu0 0
      %630 = vmatprep.subr.bf16.mxu0 0
      %631 = vmatpush2.bf16.msra.mxu0 0
      %632 = vmatprep.subr.bf16.mxu0 0
      %633 = vmatpush2.bf16.msra.mxu0 %v602
      %634 = vmatprep.subr.bf16.mxu0 0
      %635 = vmatpush2.bf16.msra.mxu0 %v537
      %636 = vmatprep.mubr.bf16.mxu0 %v550
      %637 = vmatmul.mubr.bf16.gmra.mxu0 %v443
      %v638 = vpop.f32.mrf.mxu0
      %v639 = vadd.f32 0.0, %v638
      %v640 = vpop.f32.mrf.mxu0
      %v641 = vpop.f32.mrf.mxu0
      %v642 = vadd.f32 0.0, %v641
      %v643 = vpop.f32.mrf.mxu0
      %644 = vmatprep.mubr.bf16.mxu0 %v553
      %645 = vmatmul.mubr.bf16.gmra.mxu0 %v445
      %v646 = vpop.f32.mrf.mxu0
      %v647 = vadd.f32 0.0, %v646
      %v648 = vpop.f32.mrf.mxu0
      %v649 = vpop.f32.mrf.mxu0
      %v650 = vadd.f32 0.0, %v649
      %v651 = vpop.f32.mrf.mxu0
      %652 = vmatprep.mubr.bf16.mxu0 %v556
      %653 = vmatmul.mubr.bf16.gmra.mxu0 %v447
      %v654 = vpop.f32.mrf.mxu0
      %v655 = vadd.f32 0.0, %v654
      %v656 = vpop.f32.mrf.mxu0
      %v657 = vpop.f32.mrf.mxu0
      %v658 = vadd.f32 0.0, %v657
      %v659 = vpop.f32.mrf.mxu0
      %660 = vmatprep.mubr.bf16.mxu0 %v559
      %661 = vmatmul.mubr.bf16.gmra.mxu0 %v449
      %v662 = vpop.f32.mrf.mxu0
      %v663 = vadd.f32 0.0, %v662
      %v664 = vpop.f32.mrf.mxu0
      %v665 = vpop.f32.mrf.mxu0
      %v666 = vadd.f32 0.0, %v665
      %v667 = vpop.f32.mrf.mxu0
      %668 = vmatprep.mubr.bf16.mxu0 %v562
      %669 = vmatmul.mubr.bf16.gmra.mxu0 %v451
      %v670 = vpop.f32.mrf.mxu0
      %v671 = vadd.f32 0.0, %v670
      %v672 = vpop.f32.mrf.mxu0
      %v673 = vpop.f32.mrf.mxu0
      %v674 = vadd.f32 0.0, %v673
      %v675 = vpop.f32.mrf.mxu0
      %676 = vmatprep.mubr.bf16.mxu0 %v565
      %677 = vmatmul.mubr.bf16.gmra.mxu0 %v453
      %v678 = vpop.f32.mrf.mxu0
      %v679 = vadd.f32 0.0, %v678
      %v680 = vpop.f32.mrf.mxu0
      %v681 = vpop.f32.mrf.mxu0
      %v682 = vadd.f32 0.0, %v681
      %v683 = vpop.f32.mrf.mxu0
      %684 = vmatprep.mubr.bf16.mxu0 %v568
      %685 = vmatmul.mubr.bf16.gmra.mxu0 %v455
      %v686 = vpop.f32.mrf.mxu0
      %v687 = vadd.f32 0.0, %v686
      %v688 = vpop.f32.mrf.mxu0
      %v689 = vpop.f32.mrf.mxu0
      %v690 = vadd.f32 0.0, %v689
      %v691 = vpop.f32.mrf.mxu0
      %692 = vmatprep.mubr.bf16.mxu0 %v571
      %693 = vmatmul.mubr.bf16.gmra.mxu0 %v457
      %v694 = vpop.f32.mrf.mxu0
      %v695 = vadd.f32 0.0, %v694
      %v696 = vpop.f32.mrf.mxu0
      %v697 = vpop.f32.mrf.mxu0
      %v698 = vadd.f32 0.0, %v697
      %v699 = vpop.f32.mrf.mxu0
      %700 = vmatprep.mubr.bf16.mxu0 %v574
      %701 = vmatmul.mubr.bf16.gmra.mxu0 %v459
      %v702 = vpop.f32.mrf.mxu0
      %v703 = vadd.f32 0.0, %v702
      %v704 = vpop.f32.mrf.mxu0
      %v705 = vpop.f32.mrf.mxu0
      %v706 = vadd.f32 0.0, %v705
      %v707 = vpop.f32.mrf.mxu0
      %708 = vmatprep.mubr.bf16.mxu0 %v577
      %709 = vmatmul.mubr.bf16.gmra.mxu0 %v461
      %v710 = vpop.f32.mrf.mxu0
      %v711 = vadd.f32 0.0, %v710
      %v712 = vpop.f32.mrf.mxu0
      %v713 = vpop.f32.mrf.mxu0
      %v714 = vadd.f32 0.0, %v713
      %v715 = vpop.f32.mrf.mxu0
      %716 = vmatprep.mubr.bf16.mxu0 %v580
      %717 = vmatmul.mubr.bf16.gmra.mxu0 %v463
      %v718 = vpop.f32.mrf.mxu0
      %v719 = vadd.f32 0.0, %v718
      %v720 = vpop.f32.mrf.mxu0
      %v721 = vpop.f32.mrf.mxu0
      %v722 = vadd.f32 0.0, %v721
      %v723 = vpop.f32.mrf.mxu0
      %724 = vmatprep.mubr.bf16.mxu0 %v583
      %725 = vmatmul.mubr.bf16.gmra.mxu0 %v465
      %v726 = vpop.f32.mrf.mxu0
      %v727 = vadd.f32 0.0, %v726
      %v728 = vpop.f32.mrf.mxu0
      %v729 = vpop.f32.mrf.mxu0
      %v730 = vadd.f32 0.0, %v729
      %v731 = vpop.f32.mrf.mxu0
      %732 = vmatprep.mubr.bf16.mxu0 %v586
      %733 = vmatmul.mubr.bf16.gmra.mxu0 %v467
      %v734 = vpop.f32.mrf.mxu0
      %v735 = vadd.f32 0.0, %v734
      %v736 = vpop.f32.mrf.mxu0
      %v737 = vpop.f32.mrf.mxu0
      %v738 = vadd.f32 0.0, %v737
      %v739 = vpop.f32.mrf.mxu0
      %740 = vmatprep.mubr.bf16.mxu0 %v589
      %741 = vmatmul.mubr.bf16.gmra.mxu0 %v469
      %v742 = vpop.f32.mrf.mxu0
      %v743 = vadd.f32 0.0, %v742
      %v744 = vpop.f32.mrf.mxu0
      %v745 = vpop.f32.mrf.mxu0
      %v746 = vadd.f32 0.0, %v745
      %v747 = vpop.f32.mrf.mxu0
      %748 = vmatprep.mubr.bf16.mxu0 %v592
      %749 = vmatmul.mubr.bf16.gmra.mxu0 %v471
      %v750 = vpop.f32.mrf.mxu0
      %v751 = vadd.f32 0.0, %v750
      %v752 = vpop.f32.mrf.mxu0
      %v753 = vpop.f32.mrf.mxu0
      %v754 = vadd.f32 0.0, %v753
      %v755 = vpop.f32.mrf.mxu0
      %756 = vmatprep.mubr.bf16.mxu0 %v595
      %757 = vmatmul.mubr.bf16.gmra.mxu0 %v473
      %v758 = vpop.f32.mrf.mxu0
      %v759 = vadd.f32 0.0, %v758
      %v760 = vpop.f32.mrf.mxu0
      %v761 = vpop.f32.mrf.mxu0
      %v762 = vadd.f32 0.0, %v761
      %v763 = vpop.f32.mrf.mxu0
      %764 = vdwg.mxu0
      %v765 = vadd.f32 %v264, %v639
      %v766 = vadd.f32 %v265, %v642
      %v767 = vadd.f32 %v266, %v647
      %v768 = vadd.f32 %v267, %v650
      %v769 = vadd.f32 %v268, %v655
      %v770 = vadd.f32 %v269, %v658
      %v771 = vadd.f32 %v270, %v663
      %v772 = vadd.f32 %v271, %v666
      %v773 = vadd.f32 %v272, %v671
      %v774 = vadd.f32 %v273, %v674
      %v775 = vadd.f32 %v274, %v679
      %v776 = vadd.f32 %v275, %v682
      %v777 = vadd.f32 %v276, %v687
      %v778 = vadd.f32 %v277, %v690
      %v779 = vadd.f32 %v278, %v695
      %v780 = vadd.f32 %v279, %v698
      %v781 = vadd.f32 %v280, %v703
      %v782 = vadd.f32 %v281, %v706
      %v783 = vadd.f32 %v282, %v711
      %v784 = vadd.f32 %v283, %v714
      %v785 = vadd.f32 %v284, %v719
      %v786 = vadd.f32 %v285, %v722
      %v787 = vadd.f32 %v286, %v727
      %v788 = vadd.f32 %v287, %v730
      %v789 = vadd.f32 %v288, %v735
      %v790 = vadd.f32 %v289, %v738
      %v791 = vadd.f32 %v290, %v743
      %v792 = vadd.f32 %v291, %v746
      %v793 = vadd.f32 %v292, %v751
      %v794 = vadd.f32 %v293, %v754
      %v795 = vadd.f32 %v294, %v759
      %v796 = vadd.f32 %v295, %v762
      %797 = vst [vmem:[#allocation2] sm:$0xff] %v765
      %798 = vst [vmem:[#allocation2 + $0x8] sm:$0xff] %v766
      %799 = vst [vmem:[#allocation2 + $0x10] sm:$0xff] %v767
      %800 = vst [vmem:[#allocation2 + $0x18] sm:$0xff] %v768
      %801 = vst [vmem:[#allocation2 + $0x20] sm:$0xff] %v769
      %802 = vst [vmem:[#allocation2 + $0x28] sm:$0xff] %v770
      %803 = vst [vmem:[#allocation2 + $0x30] sm:$0xff] %v771
      %804 = vst [vmem:[#allocation2 + $0x38] sm:$0xff] %v772
      %805 = vst [vmem:[#allocation2 + $0x40] sm:$0xff] %v773
      %806 = vst [vmem:[#allocation2 + $0x48] sm:$0xff] %v774
      %807 = vst [vmem:[#allocation2 + $0x50] sm:$0xff] %v775
      %808 = vst [vmem:[#allocation2 + $0x58] sm:$0xff] %v776
      %809 = vst [vmem:[#allocation2 + $0x60] sm:$0xff] %v777
      %810 = vst [vmem:[#allocation2 + $0x68] sm:$0xff] %v778
      %811 = vst [vmem:[#allocation2 + $0x70] sm:$0xff] %v779
      %812 = vst [vmem:[#allocation2 + $0x78] sm:$0xff] %v780
      %813 = vst [vmem:[#allocation2 + $0x80] sm:$0xff] %v781
      %814 = vst [vmem:[#allocation2 + $0x88] sm:$0xff] %v782
      %815 = vst [vmem:[#allocation2 + $0x90] sm:$0xff] %v783
      %816 = vst [vmem:[#allocation2 + $0x98] sm:$0xff] %v784
      %817 = vst [vmem:[#allocation2 + $0xa0] sm:$0xff] %v785
      %818 = vst [vmem:[#allocation2 + $0xa8] sm:$0xff] %v786
      %819 = vst [vmem:[#allocation2 + $0xb0] sm:$0xff] %v787
      %820 = vst [vmem:[#allocation2 + $0xb8] sm:$0xff] %v788
      %821 = vst [vmem:[#allocation2 + $0xc0] sm:$0xff] %v789
      %822 = vst [vmem:[#allocation2 + $0xc8] sm:$0xff] %v790
      %823 = vst [vmem:[#allocation2 + $0xd0] sm:$0xff] %v791
      %824 = vst [vmem:[#allocation2 + $0xd8] sm:$0xff] %v792
      %825 = vst [vmem:[#allocation2 + $0xe0] sm:$0xff] %v793
      %826 = vst [vmem:[#allocation2 + $0xe8] sm:$0xff] %v794
      %827 = vst [vmem:[#allocation2 + $0xf0] sm:$0xff] %v795
      %828 = vst [vmem:[#allocation2 + $0xf8] sm:$0xff] %v796
      // Predicated region
      $region37: #{_lambda_.55} parent=31 // pred_check
        %p829 = pneg %p228
      $region38: #{_lambda_.55} parent=31 // pred_check_branch
        %831 = sbr.rel (%p829) target = $region40
      $region39: #{_lambda_.55} parent=31 // pred_region
        %v832 = vld [vmem:[#allocation2] sm:$0xff]
        %v833 = vld [vmem:[#allocation2 + $0x8] sm:$0xff]
        %v834 = vld [vmem:[#allocation2 + $0x10] sm:$0xff]
        %v835 = vld [vmem:[#allocation2 + $0x18] sm:$0xff]
        %v836 = vld [vmem:[#allocation2 + $0x20] sm:$0xff]
        %v837 = vld [vmem:[#allocation2 + $0x28] sm:$0xff]
        %v838 = vld [vmem:[#allocation2 + $0x30] sm:$0xff]
        %v839 = vld [vmem:[#allocation2 + $0x38] sm:$0xff]
        %v840 = vld [vmem:[#allocation2 + $0x40] sm:$0xff]
        %v841 = vld [vmem:[#allocation2 + $0x48] sm:$0xff]
        %v842 = vld [vmem:[#allocation2 + $0x50] sm:$0xff]
        %v843 = vld [vmem:[#allocation2 + $0x58] sm:$0xff]
        %v844 = vld [vmem:[#allocation2 + $0x60] sm:$0xff]
        %v845 = vld [vmem:[#allocation2 + $0x68] sm:$0xff]
        %v846 = vld [vmem:[#allocation2 + $0x70] sm:$0xff]
        %v847 = vld [vmem:[#allocation2 + $0x78] sm:$0xff]
        %v848 = vld [vmem:[#allocation2 + $0x80] sm:$0xff]
        %v849 = vld [vmem:[#allocation2 + $0x88] sm:$0xff]
        %v850 = vld [vmem:[#allocation2 + $0x90] sm:$0xff]
        %v851 = vld [vmem:[#allocation2 + $0x98] sm:$0xff]
        %v852 = vld [vmem:[#allocation2 + $0xa0] sm:$0xff]
        %v853 = vld [vmem:[#allocation2 + $0xa8] sm:$0xff]
        %v854 = vld [vmem:[#allocation2 + $0xb0] sm:$0xff]
        %v855 = vld [vmem:[#allocation2 + $0xb8] sm:$0xff]
        %v856 = vld [vmem:[#allocation2 + $0xc0] sm:$0xff]
        %v857 = vld [vmem:[#allocation2 + $0xc8] sm:$0xff]
        %v858 = vld [vmem:[#allocation2 + $0xd0] sm:$0xff]
        %v859 = vld [vmem:[#allocation2 + $0xd8] sm:$0xff]
        %v860 = vld [vmem:[#allocation2 + $0xe0] sm:$0xff]
        %v861 = vld [vmem:[#allocation2 + $0xe8] sm:$0xff]
        %v862 = vld [vmem:[#allocation2 + $0xf0] sm:$0xff]
        %v863 = vld [vmem:[#allocation2 + $0xf8] sm:$0xff]
        %v864 = vld [vmem:[%s2] sm:$0x1]
        %v866 = vlaneseq
        %v867 = vshrl.u32 %v866, 7
        %v868 = vsub.s32 0, %v867
        %v869 = vrot.slane %v864, %v868
        %v871 = vadd.f32 %v832, %v869
        %v872 = vadd.f32 %v833, %v869
        %v873 = vadd.f32 %v834, %v869
        %v874 = vadd.f32 %v835, %v869
        %v875 = vadd.f32 %v836, %v869
        %v876 = vadd.f32 %v837, %v869
        %v877 = vadd.f32 %v838, %v869
        %v878 = vadd.f32 %v839, %v869
        %v879 = vadd.f32 %v840, %v869
        %v880 = vadd.f32 %v841, %v869
        %v881 = vadd.f32 %v842, %v869
        %v882 = vadd.f32 %v843, %v869
        %v883 = vadd.f32 %v844, %v869
        %v884 = vadd.f32 %v845, %v869
        %v885 = vadd.f32 %v846, %v869
        %v886 = vadd.f32 %v847, %v869
        %v887 = vadd.f32 %v848, %v869
        %v888 = vadd.f32 %v849, %v869
        %v889 = vadd.f32 %v850, %v869
        %v890 = vadd.f32 %v851, %v869
        %v891 = vadd.f32 %v852, %v869
        %v892 = vadd.f32 %v853, %v869
        %v893 = vadd.f32 %v854, %v869
        %v894 = vadd.f32 %v855, %v869
        %v895 = vadd.f32 %v856, %v869
        %v896 = vadd.f32 %v857, %v869
        %v897 = vadd.f32 %v858, %v869
        %v898 = vadd.f32 %v859, %v869
        %v899 = vadd.f32 %v860, %v869
        %v900 = vadd.f32 %v861, %v869
        %v901 = vadd.f32 %v862, %v869
        %v902 = vadd.f32 %v863, %v869
        %v903 = vmax.f32 %v871, 0.0
        %v904 = vmax.f32 %v872, 0.0
        %v905 = vmax.f32 %v873, 0.0
        %v906 = vmax.f32 %v874, 0.0
        %v907 = vmax.f32 %v875, 0.0
        %v908 = vmax.f32 %v876, 0.0
        %v909 = vmax.f32 %v877, 0.0
        %v910 = vmax.f32 %v878, 0.0
        %v911 = vmax.f32 %v879, 0.0
        %v912 = vmax.f32 %v880, 0.0
        %v913 = vmax.f32 %v881, 0.0
        %v914 = vmax.f32 %v882, 0.0
        %v915 = vmax.f32 %v883, 0.0
        %v916 = vmax.f32 %v884, 0.0
        %v917 = vmax.f32 %v885, 0.0
        %v918 = vmax.f32 %v886, 0.0
        %v919 = vmax.f32 %v887, 0.0
        %v920 = vmax.f32 %v888, 0.0
        %v921 = vmax.f32 %v889, 0.0
        %v922 = vmax.f32 %v890, 0.0
        %v923 = vmax.f32 %v891, 0.0
        %v924 = vmax.f32 %v892, 0.0
        %v925 = vmax.f32 %v893, 0.0
        %v926 = vmax.f32 %v894, 0.0
        %v927 = vmax.f32 %v895, 0.0
        %v928 = vmax.f32 %v896, 0.0
        %v929 = vmax.f32 %v897, 0.0
        %v930 = vmax.f32 %v898, 0.0
        %v931 = vmax.f32 %v899, 0.0
        %v932 = vmax.f32 %v900, 0.0
        %v933 = vmax.f32 %v901, 0.0
        %v934 = vmax.f32 %v902, 0.0
        %v935 = vpack.c.bf16 %v904, %v903
        %v936 = vpack.c.bf16 %v906, %v905
        %v937 = vpack.c.bf16 %v908, %v907
        %v938 = vpack.c.bf16 %v910, %v909
        %v939 = vpack.c.bf16 %v912, %v911
        %v940 = vpack.c.bf16 %v914, %v913
        %v941 = vpack.c.bf16 %v916, %v915
        %v942 = vpack.c.bf16 %v918, %v917
        %v943 = vpack.c.bf16 %v920, %v919
        %v944 = vpack.c.bf16 %v922, %v921
        %v945 = vpack.c.bf16 %v924, %v923
        %v946 = vpack.c.bf16 %v926, %v925
        %v947 = vpack.c.bf16 %v928, %v927
        %v948 = vpack.c.bf16 %v930, %v929
        %v949 = vpack.c.bf16 %v932, %v931
        %v950 = vpack.c.bf16 %v934, %v933
        %v967 = vunpack.c.l.b16 %v935
        %v968 = vunpack.c.h.b16 %v935
        %v969 = vunpack.c.l.b16 %v936
        %v970 = vunpack.c.h.b16 %v936
        %v971 = vunpack.c.l.b16 %v937
        %v972 = vunpack.c.h.b16 %v937
        %v973 = vunpack.c.l.b16 %v938
        %v974 = vunpack.c.h.b16 %v938
        %v975 = vunpack.c.l.b16 %v939
        %v976 = vunpack.c.h.b16 %v939
        %v977 = vunpack.c.l.b16 %v940
        %v978 = vunpack.c.h.b16 %v940
        %v979 = vunpack.c.l.b16 %v941
        %v980 = vunpack.c.h.b16 %v941
        %v981 = vunpack.c.l.b16 %v942
        %v982 = vunpack.c.h.b16 %v942
        %v983 = vunpack.c.l.b16 %v943
        %v984 = vunpack.c.h.b16 %v943
        %v985 = vunpack.c.l.b16 %v944
        %v986 = vunpack.c.h.b16 %v944
        %v987 = vunpack.c.l.b16 %v945
        %v988 = vunpack.c.h.b16 %v945
        %v989 = vunpack.c.l.b16 %v946
        %v990 = vunpack.c.h.b16 %v946
        %v991 = vunpack.c.l.b16 %v947
        %v992 = vunpack.c.h.b16 %v947
        %v993 = vunpack.c.l.b16 %v948
        %v994 = vunpack.c.h.b16 %v948
        %v995 = vunpack.c.l.b16 %v949
        %v996 = vunpack.c.h.b16 %v949
        %v997 = vunpack.c.l.b16 %v950
        %v998 = vunpack.c.h.b16 %v950
        %v999 = vpack.c.b16 %v967, %v967
        %v1000 = vpack.c.b16 %v968, %v968
        %v1001 = vpack.c.b16 %v969, %v969
        %v1002 = vpack.c.b16 %v970, %v970
        %v1003 = vpack.c.b16 %v971, %v971
        %v1004 = vpack.c.b16 %v972, %v972
        %v1005 = vpack.c.b16 %v973, %v973
        %v1006 = vpack.c.b16 %v974, %v974
        %v1007 = vpack.c.b16 %v975, %v975
        %v1008 = vpack.c.b16 %v976, %v976
        %v1009 = vpack.c.b16 %v977, %v977
        %v1010 = vpack.c.b16 %v978, %v978
        %v1011 = vpack.c.b16 %v979, %v979
        %v1012 = vpack.c.b16 %v980, %v980
        %v1013 = vpack.c.b16 %v981, %v981
        %v1014 = vpack.c.b16 %v982, %v982
        %v1015 = vpack.c.b16 %v983, %v983
        %v1016 = vpack.c.b16 %v984, %v984
        %v1017 = vpack.c.b16 %v985, %v985
        %v1018 = vpack.c.b16 %v986, %v986
        %v1019 = vpack.c.b16 %v987, %v987
        %v1020 = vpack.c.b16 %v988, %v988
        %v1021 = vpack.c.b16 %v989, %v989
        %v1022 = vpack.c.b16 %v990, %v990
        %v1023 = vpack.c.b16 %v991, %v991
        %v1024 = vpack.c.b16 %v992, %v992
        %v1025 = vpack.c.b16 %v993, %v993
        %v1026 = vpack.c.b16 %v994, %v994
        %v1027 = vpack.c.b16 %v995, %v995
        %v1028 = vpack.c.b16 %v996, %v996
        %v1029 = vpack.c.b16 %v997, %v997
        %v1030 = vpack.c.b16 %v998, %v998
        %1063 = vst [vmem:[%s225] sm:$0xf] %v999
        %1064 = vst [vmem:[%s225 + $0x4] sm:$0xf] %v1000
        %1065 = vst [vmem:[%s225 + $0x8] sm:$0xf] %v1001
        %1066 = vst [vmem:[%s225 + $0xc] sm:$0xf] %v1002
        %1067 = vst [vmem:[%s225 + $0x10] sm:$0xf] %v1003
        %1068 = vst [vmem:[%s225 + $0x14] sm:$0xf] %v1004
        %1069 = vst [vmem:[%s225 + $0x18] sm:$0xf] %v1005
        %1070 = vst [vmem:[%s225 + $0x1c] sm:$0xf] %v1006
        %1071 = vst [vmem:[%s225 + $0x20] sm:$0xf] %v1007
        %1072 = vst [vmem:[%s225 + $0x24] sm:$0xf] %v1008
        %1073 = vst [vmem:[%s225 + $0x28] sm:$0xf] %v1009
        %1074 = vst [vmem:[%s225 + $0x2c] sm:$0xf] %v1010
        %1075 = vst [vmem:[%s225 + $0x30] sm:$0xf] %v1011
        %1076 = vst [vmem:[%s225 + $0x34] sm:$0xf] %v1012
        %1077 = vst [vmem:[%s225 + $0x38] sm:$0xf] %v1013
        %1078 = vst [vmem:[%s225 + $0x3c] sm:$0xf] %v1014
        %1079 = vst [vmem:[%s225 + $0x40] sm:$0xf] %v1015
        %1080 = vst [vmem:[%s225 + $0x44] sm:$0xf] %v1016
        %1081 = vst [vmem:[%s225 + $0x48] sm:$0xf] %v1017
        %1082 = vst [vmem:[%s225 + $0x4c] sm:$0xf] %v1018
        %1083 = vst [vmem:[%s225 + $0x50] sm:$0xf] %v1019
        %1084 = vst [vmem:[%s225 + $0x54] sm:$0xf] %v1020
        %1085 = vst [vmem:[%s225 + $0x58] sm:$0xf] %v1021
        %1086 = vst [vmem:[%s225 + $0x5c] sm:$0xf] %v1022
        %1087 = vst [vmem:[%s225 + $0x60] sm:$0xf] %v1023
        %1088 = vst [vmem:[%s225 + $0x64] sm:$0xf] %v1024
        %1089 = vst [vmem:[%s225 + $0x68] sm:$0xf] %v1025
        %1090 = vst [vmem:[%s225 + $0x6c] sm:$0xf] %v1026
        %1091 = vst [vmem:[%s225 + $0x70] sm:$0xf] %v1027
        %1092 = vst [vmem:[%s225 + $0x74] sm:$0xf] %v1028
        %1093 = vst [vmem:[%s225 + $0x78] sm:$0xf] %v1029
        %1094 = vst [vmem:[%s225 + $0x7c] sm:$0xf] %v1030
      $region40: #{_lambda_.55} parent=31 // pred_fallthru
        _
      %s1095 = smul.u32 32, %s18
      %p1096 = scmp.lt.s32.totalorder %s1095, 63
      %s1097 = scalar_select %p1096, %s1095, 63
      %s1098 = smul.addr %s1097, 4
      %s1099 = scalar_lea.vmem %s3, %s1098
      // Predicated region
      $region41: #{_lambda_.55} parent=31 // pred_check
        %p1100 = pneg %p119
      $region42: #{_lambda_.55} parent=31 // pred_check_branch
        %1102 = sbr.rel (%p1100) target = $region44
      $region43: #{_lambda_.55} parent=31 // pred_region
        %s1103 = smul.u32 32, %s18
      $region44: #{_lambda_.55} parent=31 // pred_fallthru
        _
    $region32: #{_lambda_.55} parent=5 // pred_fallthru
      _
    %p1104 = scmp.le.s32.totalorder 2, %s9
    // Predicated region
    $region45: #{_lambda_.55} parent=5 // pred_check
      %p1105 = pneg %p1104
    $region46: #{_lambda_.55} parent=5 // pred_check_branch
      %1107 = sbr.rel (%p1105) target = $region48
    $region47: #{_lambda_.55} parent=5 // pred_region
      %s1108 = ssub.s32 %s9, 2
      // Predicated region
      $region49: #{_lambda_.55} parent=47 // pred_check
        %p1109 = pneg %p125
      $region50: #{_lambda_.55} parent=47 // pred_check_branch
        %1111 = sbr.rel (%p1109) target = $region52
      $region51: #{_lambda_.55} parent=47 // pred_region
        %s1112 = smul.u32 32, %s20
        %p1113 = scmp.lt.s32.totalorder %s1112, 63
        %s1114 = scalar_select %p1113, %s1112, 63
        %s1115 = smul.addr %s1114, 4
        %s1116 = scalar_lea.vmem %s3, %s1115
      $region52: #{_lambda_.55} parent=47 // pred_fallthru
        _
    $region48: #{_lambda_.55} parent=5 // pred_fallthru
      _
  $region6: #{_lambda_.55} parent=0 // loop_footer
    %s13 = sadd.s32 1, %s9
  $region7: #{_lambda_.55} parent=0 // loop_footer_branch
    %8 = sbr.rel target = $region3
  $region8: #{_lambda_.55} parent=0 // loop_exit
    _

// kernel: _lambda_.58
$region0: #{_lambda_.58}
  #allocation0 [shape = 'u32[]', space=smem, size = 0x4, offset = 0x4, fixed_abs, tag = 'smem constant byte address 0x4 - core index']
  #allocation1 [shape = 'u32[144,128]{1,0:T(1,128)}', space=vmem, size = 0x12000, scoped, tag = 'internal scratch']
  #allocation2 [shape = 'f32[64,128]{1,0:T(8,128)}', space=vmem, size = 0x8000, scoped, tag = 'scratch operand']
  %s0 = inlined_call_operand.vmem [shape: bf16[128,1152], index: 0, kind: input, shape index: {}]
  %s1 = inlined_call_operand.vmem [shape: bf16[1152,128], index: 1, kind: input, shape index: {}]
  %s2 = inlined_call_operand.vmem [shape: f32[1,128], index: 2, kind: input, shape index: {}]
  %s3 = inlined_call_operand.vmem [shape: bf16[128,128], index: 3, kind: output, shape index: {}]
  %s4 = sld [smem:[#allocation0]]
  $region79: #{_lambda_.58} parent=0
    _
  %s6 = ssub.s32 1, %s4
  %s7 = scalar_select 0, %s6, %s4
  $region1: #{_lambda_.58} parent=0
    #allocation3 [shape = 'u8[98304]{0}', space=vmem, size = 0x18000, scoped, tag = 'input window, operand 0']
    loop: start=0, step=1, limit=8
    $region2: #{_lambda_.58} parent=1 // loop_pre_header
      _
    $region3: #{_lambda_.58} parent=1 // loop_header
      %s9 = sphi 0, %s13
      %p10 = scmp.ge.s32.totalorder %s9, 8
      %s16 = sphi 0, %s28
      %s17 = sphi 0, %s24
      %s18 = sphi 0, %s16
      %s19 = sphi 0, %s17
      %s20 = sphi 0, %s18
      %s21 = sphi 0, %s19
      %s33 = sphi 0, %s35
      %s36 = sphi 0, %s33
      %s37 = sphi 0, %s36
      %s53 = sphi 0, %s37
      %s59 = sphi 0, %s61
      %s62 = sphi 0, %s59
      %s63 = sphi 0, %s62
      %s79 = sphi 0, %s63
      %s83 = sphi 0, %s83
      %s85 = sphi 0, %s83
      %s86 = sphi 0, %s85
      %s100 = sphi 0, %s86
      %s106 = sphi 0, %s108
      %s109 = sphi 0, %s106
      %s110 = sphi 0, %s109
      %s126 = sphi 0, %s110
    $region4: #{_lambda_.58} parent=1 // loop_header_branch
      %12 = sbr.rel (%p10) target = $region8
    $region5: #{_lambda_.58} parent=1 // loop_body
      %s14 = ssub.s32 %s9, 1
      %s15 = ssub.s32 %s9, 2
      %s22 = sadd.s32 1, %s17
      %p23 = scmp.ge.s32.totalorder %s22, 3
      %s24 = scalar_select %p23, 0, %s22
      %s25 = sadd.s32 1, %s16
      %s26 = scalar_select %p23, %s25, %s16
      %p27 = scmp.ge.s32.totalorder %s26, 2
      %s28 = scalar_select %p27, 0, %s26
      %s29 = ssub.s32 %s16, %s28
      %s30 = ssub.s32 %s17, %s24
      %s31 = sor.u32 %s29, %s30
      %p32 = scmp.eq.s32.totalorder %s31, 0
      %s34 = sadd.s32 %s33, 1
      %s35 = scalar_select %p32, %s33, %s34
      %p38 = pneg %p32
      %p39 = scmp.eq.s32.totalorder %s9, 5
      %p40 = por %p38, %p39
      %p41 = scmp.ne.s32.totalorder %s33, %s36
      %p42 = scmp.eq.s32.totalorder %s9, 0
      %p43 = por %p41, %p42
      %p44 = scmp.ne.s32.totalorder %s33, %s36
      %p45 = scmp.eq.s32.totalorder %s14, 5
      %p46 = por %p44, %p45
      %p47 = scmp.ne.s32.totalorder %s36, %s37
      %p48 = scmp.eq.s32.totalorder %s14, 0
      %p49 = por %p47, %p48
      %p50 = scmp.ne.s32.totalorder %s36, %s37
      %p51 = scmp.eq.s32.totalorder %s15, 5
      %p52 = por %p50, %p51
      %p54 = scmp.ne.s32.totalorder %s37, %s53
      %p55 = scmp.eq.s32.totalorder %s15, 0
      %p56 = por %p54, %p55
      %s57 = ssub.s32 %s17, %s24
      %p58 = scmp.eq.s32.totalorder %s57, 0
      %s60 = sadd.s32 %s59, 1
      %s61 = scalar_select %p58, %s59, %s60
      %p64 = pneg %p58
      %p65 = scmp.eq.s32.totalorder %s9, 5
      %p66 = por %p64, %p65
      %p67 = scmp.ne.s32.totalorder %s59, %s62
      %p68 = scmp.eq.s32.totalorder %s9, 0
      %p69 = por %p67, %p68
      %p70 = scmp.ne.s32.totalorder %s59, %s62
      %p71 = scmp.eq.s32.totalorder %s14, 5
      %p72 = por %p70, %p71
      %p73 = scmp.ne.s32.totalorder %s62, %s63
      %p74 = scmp.eq.s32.totalorder %s14, 0
      %p75 = por %p73, %p74
      %p76 = scmp.ne.s32.totalorder %s62, %s63
      %p77 = scmp.eq.s32.totalorder %s15, 5
      %p78 = por %p76, %p77
      %p80 = scmp.ne.s32.totalorder %s63, %s79
      %p81 = scmp.eq.s32.totalorder %s15, 0
      %p82 = por %p80, %p81
      %s84 = sadd.s32 %s83, 1
      %p87 = scmp.eq.s32.totalorder %s9, 5
      %p88 = scmp.ne.s32.totalorder %s83, %s85
      %p89 = scmp.eq.s32.totalorder %s9, 0
      %p90 = por %p88, %p89
      %p91 = scmp.ne.s32.totalorder %s83, %s85
      %p92 = scmp.eq.s32.totalorder %s14, 5
      %p93 = por %p91, %p92
      %p94 = scmp.ne.s32.totalorder %s85, %s86
      %p95 = scmp.eq.s32.totalorder %s14, 0
      %p96 = por %p94, %p95
      %p97 = scmp.ne.s32.totalorder %s85, %s86
      %p98 = scmp.eq.s32.totalorder %s15, 5
      %p99 = por %p97, %p98
      %p101 = scmp.ne.s32.totalorder %s86, %s100
      %p102 = scmp.eq.s32.totalorder %s15, 0
      %p103 = por %p101, %p102
      %s104 = ssub.s32 %s16, %s28
      %p105 = scmp.eq.s32.totalorder %s104, 0
      %s107 = sadd.s32 %s106, 1
      %s108 = scalar_select %p105, %s106, %s107
      %p111 = pneg %p105
      %p112 = scmp.eq.s32.totalorder %s9, 5
      %p113 = por %p111, %p112
      %p114 = scmp.ne.s32.totalorder %s106, %s109
      %p115 = scmp.eq.s32.totalorder %s9, 0
      %p116 = por %p114, %p115
      %p117 = scmp.ne.s32.totalorder %s106, %s109
      %p118 = scmp.eq.s32.totalorder %s14, 5
      %p119 = por %p117, %p118
      %p120 = scmp.ne.s32.totalorder %s109, %s110
      %p121 = scmp.eq.s32.totalorder %s14, 0
      %p122 = por %p120, %p121
      %p123 = scmp.ne.s32.totalorder %s109, %s110
      %p124 = scmp.eq.s32.totalorder %s15, 5
      %p125 = por %p123, %p124
      %p127 = scmp.ne.s32.totalorder %s110, %s126
      %p128 = scmp.eq.s32.totalorder %s15, 0
      %p129 = por %p127, %p128
      %p130 = scmp.le.s32.totalorder 1, %s9
      %p131 = scmp.lt.s32.totalorder %s9, 7
      %p132 = pnand %p130, %p131
      %p133 = pneg %p132
      // Predicated region
      $region9: #{_lambda_.58} parent=5 // pred_check
        _
      $region10: #{_lambda_.58} parent=5 // pred_check_branch
        %135 = sbr.rel (%p132) target = $region12
      $region11: #{_lambda_.58} parent=5 // pred_region
        %s136 = ssub.s32 %s9, 1
        // Predicated region
        $region13: #{_lambda_.58} parent=11 // pred_check
          %p137 = pneg %p96
        $region14: #{_lambda_.58} parent=11 // pred_check_branch
          %139 = sbr.rel (%p137) target = $region16
        $region15: #{_lambda_.58} parent=11 // pred_region
          _
        $region16: #{_lambda_.58} parent=11 // pred_fallthru
          _
      $region12: #{_lambda_.58} parent=5 // pred_fallthru
        _
      %p140 = scmp.lt.s32.totalorder %s9, 6
      // Predicated region
      $region17: #{_lambda_.58} parent=5 // pred_check
        %p141 = pneg %p140
      $region18: #{_lambda_.58} parent=5 // pred_check_branch
        %143 = sbr.rel (%p141) target = $region20
      $region19: #{_lambda_.58} parent=5 // pred_region
        // Predicated region
        $region21: #{_lambda_.58} parent=19 // pred_check
          %p144 = pneg %p43
        $region22: #{_lambda_.58} parent=19 // pred_check_branch
          %146 = sbr.rel (%p144) target = $region24
        $region23: #{_lambda_.58} parent=19 // pred_region
          %s147 = sand.u32 %s33, 1
          %s148 = sand.u32 %s33, 1
          %s149 = smul.addr %s148, 96
          %s150 = scalar_lea.vmem [#allocation3], %s149
          %s151 = smul.u32 8, %s16
          %s152 = smul.u32 3, %s17
          %s153 = smul.addr %s151, 9
          %s154 = sadd.s32 %s152, %s153
          %s155 = smul.addr %s154, 4
          %s156 = scalar_lea.vmem %s0, %s155
          // Predicated region
          $region25: #{_lambda_.58} parent=23 // pred_check
            _
          $region26: #{_lambda_.58} parent=23 // pred_check_branch
            %158 = sbr.rel (0) target = $region28
          $region27: #{_lambda_.58} parent=23 // pred_region
            // Predicated region
            $region29: #{_lambda_.58} parent=27 // pred_check
              _
            $region30: #{_lambda_.58} parent=27 // pred_check_branch
              %160 = sbr.rel (0) target = $region32
            $region31: #{_lambda_.58} parent=27 // pred_region
              %s161 = scalar_lea.vmem %s156, 8
              %s162 = scalar_lea.vmem %s150, 8 [#allocation3]
              loop: start=0, step=1, limit=1
              $region33: #{_lambda_.58} parent=31 // loop_pre_header
                _
              $region34: #{_lambda_.58} parent=31 // loop_header
                %s164 = sphi 0, %s168
                %p165 = scmp.ge.s32.totalorder %s164, 1
                %s169 = sphi %s156, %s156
                %s170 = sphi %s150, %s150
              $region35: #{_lambda_.58} parent=31 // loop_header_branch
                %167 = sbr.rel (%p165) target = $region39
              $region36: #{_lambda_.58} parent=31 // loop_body
                %v171 = vld [vmem:[%s169] sm:$0xff]
                %172 = vst [vmem:[%s170] sm:$0xff] %v171
                %v173 = vld [vmem:[%s169 + $0x24] sm:$0xff]
                %174 = vst [vmem:[%s170 + $0xc] sm:$0xff] %v173
                %v175 = vld [vmem:[%s169 + $0x48] sm:$0xff]
                %176 = vst [vmem:[%s170 + $0x18] sm:$0xff] %v175
                %v177 = vld [vmem:[%s169 + $0x6c] sm:$0xff]
                %178 = vst [vmem:[%s170 + $0x24] sm:$0xff] %v177
                %v179 = vld [vmem:[%s169 + $0x90] sm:$0xff]
                %180 = vst [vmem:[%s170 + $0x30] sm:$0xff] %v179
                %v181 = vld [vmem:[%s169 + $0xb4] sm:$0xff]
                %182 = vst [vmem:[%s170 + $0x3c] sm:$0xff] %v181
                %v183 = vld [vmem:[%s169 + $0xd8] sm:$0xff]
                %184 = vst [vmem:[%s170 + $0x48] sm:$0xff] %v183
                %v185 = vld [vmem:[%s169 + $0xfc] sm:$0xff]
                %186 = vst [vmem:[%s170 + $0x54] sm:$0xff] %v185
              $region37: #{_lambda_.58} parent=31 // loop_footer
                %s168 = sadd.s32 1, %s164
              $region38: #{_lambda_.58} parent=31 // loop_footer_branch
                %163 = sbr.rel target = $region34
              $region39: #{_lambda_.58} parent=31 // loop_exit
                _
              %s188 = ssub.s32 16, 1
              loop: start=0, step=1, limit=1
              $region40: #{_lambda_.58} parent=31 // loop_pre_header
                _
              $region41: #{_lambda_.58} parent=31 // loop_header
                %s190 = sphi 0, %s194
                %p191 = scmp.ge.s32.totalorder %s190, 1
                %s195 = sphi %s161, %s161
                %s196 = sphi %s162, %s162
              $region42: #{_lambda_.58} parent=31 // loop_header_branch
                %193 = sbr.rel (%p191) target = $region46
              $region43: #{_lambda_.58} parent=31 // loop_body
                %v197 = vld [vmem:[%s195] sm:%s188]
                %198 = vst [vmem:[%s196] sm:%s188] %v197
                %v199 = vld [vmem:[%s195 + $0x24] sm:%s188]
                %200 = vst [vmem:[%s196 + $0xc] sm:%s188] %v199
                %v201 = vld [vmem:[%s195 + $0x48] sm:%s188]
                %202 = vst [vmem:[%s196 + $0x18] sm:%s188] %v201
                %v203 = vld [vmem:[%s195 + $0x6c] sm:%s188]
                %204 = vst [vmem:[%s196 + $0x24] sm:%s188] %v203
                %v205 = vld [vmem:[%s195 + $0x90] sm:%s188]
                %206 = vst [vmem:[%s196 + $0x30] sm:%s188] %v205
                %v207 = vld [vmem:[%s195 + $0xb4] sm:%s188]
                %208 = vst [vmem:[%s196 + $0x3c] sm:%s188] %v207
                %v209 = vld [vmem:[%s195 + $0xd8] sm:%s188]
                %210 = vst [vmem:[%s196 + $0x48] sm:%s188] %v209
                %v211 = vld [vmem:[%s195 + $0xfc] sm:%s188]
                %212 = vst [vmem:[%s196 + $0x54] sm:%s188] %v211
              $region44: #{_lambda_.58} parent=31 // loop_footer
                %s194 = sadd.s32 1, %s190
              $region45: #{_lambda_.58} parent=31 // loop_footer_branch
                %189 = sbr.rel target = $region41
              $region46: #{_lambda_.58} parent=31 // loop_exit
                _
            $region32: #{_lambda_.58} parent=27 // pred_fallthru
              _
          $region28: #{_lambda_.58} parent=23 // pred_fallthru
            _
          %213 = vnop
        $region24: #{_lambda_.58} parent=19 // pred_fallthru
          _
        // Predicated region
        $region47: #{_lambda_.58} parent=19 // pred_check
          %p214 = pneg %p69
        $region48: #{_lambda_.58} parent=19 // pred_check_branch
          %216 = sbr.rel (%p214) target = $region50
        $region49: #{_lambda_.58} parent=19 // pred_region
          %s217 = smul.u32 48, %s17
          %p218 = scmp.lt.s32.totalorder %s217, 143
          %s219 = scalar_select %p218, %s217, 143
          %s220 = smul.addr %s219, 4
          %s221 = scalar_lea.vmem %s1, %s220
          %s222 = smul.u32 48, %s17
        $region50: #{_lambda_.58} parent=19 // pred_fallthru
          _
      $region20: #{_lambda_.58} parent=5 // pred_fallthru
        _
      %p223 = scmp.le.s32.totalorder 1, %s9
      %p224 = scmp.lt.s32.totalorder %s9, 7
      %p225 = pnand %p223, %p224
      %p226 = pneg %p225
      // Predicated region
      $region51: #{_lambda_.58} parent=5 // pred_check
        _
      $region52: #{_lambda_.58} parent=5 // pred_check_branch
        %228 = sbr.rel (%p225) target = $region54
      $region53: #{_lambda_.58} parent=5 // pred_region
        %s229 = ssub.s32 %s9, 1
        %s230 = sand.u32 %s36, 1
        %s231 = sand.u32 %s36, 1
        %s232 = smul.addr %s231, 96
        %s233 = scalar_lea.vmem [#allocation3], %s232
        // Predicated region
        $region55: #{_lambda_.58} parent=53 // pred_check
          %p234 = pneg %p49
        $region56: #{_lambda_.58} parent=53 // pred_check_branch
          %236 = sbr.rel (%p234) target = $region58
        $region57: #{_lambda_.58} parent=53 // pred_region
          _
        $region58: #{_lambda_.58} parent=53 // pred_fallthru
          _
        %s237 = sand.u32 %s36, 1
        %s238 = sand.u32 %s36, 1
        %s239 = smul.addr %s238, 96
        %s240 = scalar_lea.vmem [#allocation3], %s239
        %p241 = pneg %p49
        %p242 = pneg %p46
        %s243 = smul.u32 48, %s19
        %p244 = scmp.lt.s32.totalorder %s243, 143
        %s245 = scalar_select %p244, %s243, 143
        %s246 = smul.addr %s245, 4
        %s247 = scalar_lea.vmem %s1, %s246
        %p248 = pneg %p75
        %p249 = pneg %p72
        %p250 = pneg %p96
        %p251 = pneg %p93
        %p252 = pneg %p122
        %p253 = pneg %p119
        %s254 = smul.u32 8, %s18
        %p255 = scmp.lt.s32.totalorder %s254, 15
        %s256 = scalar_select %p255, %s254, 15
        %s257 = smul.addr %s256, 4
        %s258 = scalar_lea.vmem %s3, %s257
        %s259 = smul.u32 8, %s18
        %s260 = smul.u32 3, %s19
        %s261 = smul.u32 48, %s19
        %p262 = scmp.lt.s32.totalorder %s261, 143
        %s263 = scalar_select %p262, %s261, 143
        %s264 = smul.addr %s263, 4
        %s265 = scalar_lea.vmem %s1, %s264
        %s266 = smul.u32 48, %s19
        %s267 = smul.u32 8, %s18
        %p268 = scmp.lt.s32.totalorder %s267, 15
        %s269 = scalar_select %p268, %s267, 15
        %s270 = smul.addr %s269, 4
        %s271 = scalar_lea.vmem %s3, %s270
        %s272 = smul.u32 8, %s18
        %p274 = scmp.eq.s32.totalorder %s19, 0
        // Predicated region
        $region59: #{_lambda_.58} parent=53 // pred_check
          %p275 = pneg %p274
        $region60: #{_lambda_.58} parent=53 // pred_check_branch
          %277 = sbr.rel (%p275) target = $region62
        $region61: #{_lambda_.58} parent=53 // pred_region
          %278 = vst [vmem:[#allocation2] sm:$0xff] 0.0
          %279 = vst [vmem:[#allocation2 + $0x8] sm:$0xff] 0.0
          %280 = vst [vmem:[#allocation2 + $0x10] sm:$0xff] 0.0
          %281 = vst [vmem:[#allocation2 + $0x18] sm:$0xff] 0.0
          %282 = vst [vmem:[#allocation2 + $0x20] sm:$0xff] 0.0
          %283 = vst [vmem:[#allocation2 + $0x28] sm:$0xff] 0.0
          %284 = vst [vmem:[#allocation2 + $0x30] sm:$0xff] 0.0
          %285 = vst [vmem:[#allocation2 + $0x38] sm:$0xff] 0.0
        $region62: #{_lambda_.58} parent=53 // pred_fallthru
          _
        %v286 = vld [vmem:[#allocation2] sm:$0xff]
        %v287 = vld [vmem:[#allocation2 + $0x8] sm:$0xff]
        %v288 = vld [vmem:[#allocation2 + $0x10] sm:$0xff]
        %v289 = vld [vmem:[#allocation2 + $0x18] sm:$0xff]
        %v290 = vld [vmem:[#allocation2 + $0x20] sm:$0xff]
        %v291 = vld [vmem:[#allocation2 + $0x28] sm:$0xff]
        %v292 = vld [vmem:[#allocation2 + $0x30] sm:$0xff]
        %v293 = vld [vmem:[#allocation2 + $0x38] sm:$0xff]
        %v294 = vld [vmem:[%s233] sm:$0xff]
        %v295 = vld [vmem:[%s233 + $0x8] sm:$0xf]
        %v296 = vld [vmem:[%s233 + $0xc] sm:$0xff]
        %v297 = vld [vmem:[%s233 + $0x14] sm:$0xf]
        %v298 = vld [vmem:[%s233 + $0x18] sm:$0xff]
        %v299 = vld [vmem:[%s233 + $0x20] sm:$0xf]
        %v300 = vld [vmem:[%s233 + $0x24] sm:$0xff]
        %v301 = vld [vmem:[%s233 + $0x2c] sm:$0xf]
        %v302 = vld [vmem:[%s233 + $0x30] sm:$0xff]
        %v303 = vld [vmem:[%s233 + $0x38] sm:$0xf]
        %v304 = vld [vmem:[%s233 + $0x3c] sm:$0xff]
        %v305 = vld [vmem:[%s233 + $0x44] sm:$0xf]
        %v306 = vld [vmem:[%s233 + $0x48] sm:$0xff]
        %v307 = vld [vmem:[%s233 + $0x50] sm:$0xf]
        %v308 = vld [vmem:[%s233 + $0x54] sm:$0xff]
        %v309 = vld [vmem:[%s233 + $0x5c] sm:$0xf]
        %v310 = vld [vmem:[%s265] sm:$0xf]
        %v311 = vld [vmem:[%s265 + $0x4] sm:$0xf]
        %v312 = vld [vmem:[%s265 + $0x8] sm:$0xf]
        %v313 = vld [vmem:[%s265 + $0xc] sm:$0xf]
        %v314 = vld [vmem:[%s265 + $0x10] sm:$0xf]
        %v315 = vld [vmem:[%s265 + $0x14] sm:$0xf]
        %v316 = vld [vmem:[%s265 + $0x18] sm:$0xf]
        %v317 = vld [vmem:[%s265 + $0x1c] sm:$0xf]
        %v318 = vld [vmem:[%s265 + $0x20] sm:$0xf]
        %v319 = vld [vmem:[%s265 + $0x24] sm:$0xf]
        %v320 = vld [vmem:[%s265 + $0x28] sm:$0xf]
        %v321 = vld [vmem:[%s265 + $0x2c] sm:$0xf]
        %v322 = vld [vmem:[%s265 + $0x30] sm:$0xf]
        %v323 = vld [vmem:[%s265 + $0x34] sm:$0xf]
        %v324 = vld [vmem:[%s265 + $0x38] sm:$0xf]
        %v325 = vld [vmem:[%s265 + $0x3c] sm:$0xf]
        %v326 = vld [vmem:[%s265 + $0x40] sm:$0xf]
        %v327 = vld [vmem:[%s265 + $0x44] sm:$0xf]
        %v328 = vld [vmem:[%s265 + $0x48] sm:$0xf]
        %v329 = vld [vmem:[%s265 + $0x4c] sm:$0xf]
        %v330 = vld [vmem:[%s265 + $0x50] sm:$0xf]
        %v331 = vld [vmem:[%s265 + $0x54] sm:$0xf]
        %v332 = vld [vmem:[%s265 + $0x58] sm:$0xf]
        %v333 = vld [vmem:[%s265 + $0x5c] sm:$0xf]
        %v334 = vld [vmem:[%s265 + $0x60] sm:$0xf]
        %v335 = vld [vmem:[%s265 + $0x64] sm:$0xf]
        %v336 = vld [vmem:[%s265 + $0x68] sm:$0xf]
        %v337 = vld [vmem:[%s265 + $0x6c] sm:$0xf]
        %v338 = vld [vmem:[%s265 + $0x70] sm:$0xf]
        %v339 = vld [vmem:[%s265 + $0x74] sm:$0xf]
        %v340 = vld [vmem:[%s265 + $0x78] sm:$0xf]
        %v341 = vld [vmem:[%s265 + $0x7c] sm:$0xf]
        %v342 = vld [vmem:[%s265 + $0x80] sm:$0xf]
        %v343 = vld [vmem:[%s265 + $0x84] sm:$0xf]
        %v344 = vld [vmem:[%s265 + $0x88] sm:$0xf]
        %v345 = vld [vmem:[%s265 + $0x8c] sm:$0xf]
        %v346 = vld [vmem:[%s265 + $0x90] sm:$0xf]
        %v347 = vld [vmem:[%s265 + $0x94] sm:$0xf]
        %v348 = vld [vmem:[%s265 + $0x98] sm:$0xf]
        %v349 = vld [vmem:[%s265 + $0x9c] sm:$0xf]
        %v350 = vld [vmem:[%s265 + $0xa0] sm:$0xf]
        %v351 = vld [vmem:[%s265 + $0xa4] sm:$0xf]
        %v352 = vld [vmem:[%s265 + $0xa8] sm:$0xf]
        %v353 = vld [vmem:[%s265 + $0xac] sm:$0xf]
        %v354 = vld [vmem:[%s265 + $0xb0] sm:$0xf]
        %v355 = vld [vmem:[%s265 + $0xb4] sm:$0xf]
        %v356 = vld [vmem:[%s265 + $0xb8] sm:$0xf]
        %v357 = vld [vmem:[%s265 + $0xbc] sm:$0xf]
        %v374 = vunpack.c.l.b16 %v294
        %v375 = vunpack.c.h.b16 %v294
        %v376 = vunpack.c.l.b16 %v295
        %v377 = vunpack.c.l.b16 %v296
        %v378 = vunpack.c.h.b16 %v296
        %v379 = vunpack.c.l.b16 %v297
        %v380 = vunpack.c.l.b16 %v298
        %v381 = vunpack.c.h.b16 %v298
        %v382 = vunpack.c.l.b16 %v299
        %v383 = vunpack.c.l.b16 %v300
        %v384 = vunpack.c.h.b16 %v300
        %v385 = vunpack.c.l.b16 %v301
        %v386 = vunpack.c.l.b16 %v302
        %v387 = vunpack.c.h.b16 %v302
        %v388 = vunpack.c.l.b16 %v303
        %v389 = vunpack.c.l.b16 %v304
        %v390 = vunpack.c.h.b16 %v304
        %v391 = vunpack.c.l.b16 %v305
        %v392 = vunpack.c.l.b16 %v306
        %v393 = vunpack.c.h.b16 %v306
        %v394 = vunpack.c.l.b16 %v307
        %v395 = vunpack.c.l.b16 %v308
        %v396 = vunpack.c.h.b16 %v308
        %v397 = vunpack.c.l.b16 %v309
        %v398 = vpack.c.b16 %v377, %v374
        %v399 = vpack.c.b16 %v378, %v375
        %v400 = vpack.c.b16 %v379, %v376
        %v401 = vpack.c.b16 %v383, %v380
        %v402 = vpack.c.b16 %v384, %v381
        %v403 = vpack.c.b16 %v385, %v382
        %v404 = vpack.c.b16 %v389, %v386
        %v405 = vpack.c.b16 %v390, %v387
        %v406 = vpack.c.b16 %v391, %v388
        %v407 = vpack.c.b16 %v395, %v392
        %v408 = vpack.c.b16 %v396, %v393
        %v409 = vpack.c.b16 %v397, %v394
        %v470 = vunpack.c.l.b16 %v310
        %v471 = vunpack.c.l.b16 %v311
        %v472 = vunpack.c.l.b16 %v312
        %v473 = vunpack.c.l.b16 %v313
        %v474 = vunpack.c.l.b16 %v314
        %v475 = vunpack.c.l.b16 %v315
        %v476 = vunpack.c.l.b16 %v316
        %v477 = vunpack.c.l.b16 %v317
        %v478 = vunpack.c.l.b16 %v318
        %v479 = vunpack.c.l.b16 %v319
        %v480 = vunpack.c.l.b16 %v320
        %v481 = vunpack.c.l.b16 %v321
        %v482 = vunpack.c.l.b16 %v322
        %v483 = vunpack.c.l.b16 %v323
        %v484 = vunpack.c.l.b16 %v324
        %v485 = vunpack.c.l.b16 %v325
        %v486 = vunpack.c.l.b16 %v326
        %v487 = vunpack.c.l.b16 %v327
        %v488 = vunpack.c.l.b16 %v328
        %v489 = vunpack.c.l.b16 %v329
        %v490 = vunpack.c.l.b16 %v330
        %v491 = vunpack.c.l.b16 %v331
        %v492 = vunpack.c.l.b16 %v332
        %v493 = vunpack.c.l.b16 %v333
        %v494 = vunpack.c.l.b16 %v334
        %v495 = vunpack.c.l.b16 %v335
        %v496 = vunpack.c.l.b16 %v336
        %v497 = vunpack.c.l.b16 %v337
        %v498 = vunpack.c.l.b16 %v338
        %v499 = vunpack.c.l.b16 %v339
        %v500 = vunpack.c.l.b16 %v340
        %v501 = vunpack.c.l.b16 %v341
        %v502 = vunpack.c.l.b16 %v342
        %v503 = vunpack.c.l.b16 %v343
        %v504 = vunpack.c.l.b16 %v344
        %v505 = vunpack.c.l.b16 %v345
        %v506 = vunpack.c.l.b16 %v346
        %v507 = vunpack.c.l.b16 %v347
        %v508 = vunpack.c.l.b16 %v348
        %v509 = vunpack.c.l.b16 %v349
        %v510 = vunpack.c.l.b16 %v350
        %v511 = vunpack.c.l.b16 %v351
        %v512 = vunpack.c.l.b16 %v352
        %v513 = vunpack.c.l.b16 %v353
        %v514 = vunpack.c.l.b16 %v354
        %v515 = vunpack.c.l.b16 %v355
        %v516 = vunpack.c.l.b16 %v356
        %v517 = vunpack.c.l.b16 %v357
        %v518 = vpack.c.b16 %v471, %v470
        %v519 = vpack.c.b16 %v473, %v472
        %v520 = vpack.c.b16 %v475, %v474
        %v521 = vpack.c.b16 %v477, %v476
        %v522 = vpack.c.b16 %v479, %v478
        %v523 = vpack.c.b16 %v481, %v480
        %v524 = vpack.c.b16 %v483, %v482
        %v525 = vpack.c.b16 %v485, %v484
        %v526 = vpack.c.b16 %v487, %v486
        %v527 = vpack.c.b16 %v489, %v488
        %v528 = vpack.c.b16 %v491, %v490
        %v529 = vpack.c.b16 %v493, %v492
        %v530 = vpack.c.b16 %v495, %v494
        %v531 = vpack.c.b16 %v497, %v496
        %v532 = vpack.c.b16 %v499, %v498
        %v533 = vpack.c.b16 %v501, %v500
        %v534 = vpack.c.b16 %v503, %v502
        %v535 = vpack.c.b16 %v505, %v504
        %v536 = vpack.c.b16 %v507, %v506
        %v537 = vpack.c.b16 %v509, %v508
        %v538 = vpack.c.b16 %v511, %v510
        %v539 = vpack.c.b16 %v513, %v512
        %v540 = vpack.c.b16 %v515, %v514
        %v541 = vpack.c.b16 %v517, %v516
        %566 = vmatprep.subr.bf16.mxu0 0
        %567 = vmatpush1.bf16.msra.mxu0 %v525
        %568 = vmatprep.subr.bf16.mxu0 0
        %569 = vmatpush1.bf16.msra.mxu0 %v524
        %570 = vmatprep.subr.bf16.mxu0 0
        %571 = vmatpush1.bf16.msra.mxu0 %v523
        %572 = vmatprep.subr.bf16.mxu0 0
        %573 = vmatpush1.bf16.msra.mxu0 %v522
        %574 = vmatprep.subr.bf16.mxu0 0
        %575 = vmatpush1.bf16.msra.mxu0 %v521
        %576 = vmatprep.subr.bf16.mxu0 0
        %577 = vmatpush1.bf16.msra.mxu0 %v520
        %578 = vmatprep.subr.bf16.mxu0 0
        %579 = vmatpush1.bf16.msra.mxu0 %v519
        %580 = vmatprep.subr.bf16.mxu0 0
        %581 = vmatpush1.bf16.msra.mxu0 %v518
        %582 = vmatprep.subr.bf16.mxu0 0
        %583 = vmatpush2.bf16.msra.mxu0 %v533
        %584 = vmatprep.subr.bf16.mxu0 0
        %585 = vmatpush2.bf16.msra.mxu0 %v532
        %586 = vmatprep.subr.bf16.mxu0 0
        %587 = vmatpush2.bf16.msra.mxu0 %v531
        %588 = vmatprep.subr.bf16.mxu0 0
        %589 = vmatpush2.bf16.msra.mxu0 %v530
        %590 = vmatprep.subr.bf16.mxu0 0
        %591 = vmatpush2.bf16.msra.mxu0 %v529
        %592 = vmatprep.subr.bf16.mxu0 0
        %593 = vmatpush2.bf16.msra.mxu0 %v528
        %594 = vmatprep.subr.bf16.mxu0 0
        %595 = vmatpush2.bf16.msra.mxu0 %v527
        %596 = vmatprep.subr.bf16.mxu0 0
        %597 = vmatpush2.bf16.msra.mxu0 %v526
        %598 = vmatprep.mubr.bf16.mxu0 %v399
        %599 = vmatmul.mubr.bf16.gmra.mxu0 %v398
        %v600 = vpop.f32.mrf.mxu0
        %v601 = vadd.f32 0.0, %v600
        %v602 = vpop.f32.mrf.mxu0
        %v603 = vpop.f32.mrf.mxu0
        %v604 = vadd.f32 0.0, %v603
        %v605 = vpop.f32.mrf.mxu0
        %606 = vmatprep.mubr.bf16.mxu0 %v402
        %607 = vmatmul.mubr.bf16.gmra.mxu0 %v401
        %v608 = vpop.f32.mrf.mxu0
        %v609 = vadd.f32 0.0, %v608
        %v610 = vpop.f32.mrf.mxu0
        %v611 = vpop.f32.mrf.mxu0
        %v612 = vadd.f32 0.0, %v611
        %v613 = vpop.f32.mrf.mxu0
        %614 = vmatprep.mubr.bf16.mxu0 %v405
        %615 = vmatmul.mubr.bf16.gmra.mxu0 %v404
        %v616 = vpop.f32.mrf.mxu0
        %v617 = vadd.f32 0.0, %v616
        %v618 = vpop.f32.mrf.mxu0
        %v619 = vpop.f32.mrf.mxu0
        %v620 = vadd.f32 0.0, %v619
        %v621 = vpop.f32.mrf.mxu0
        %622 = vmatprep.mubr.bf16.mxu0 %v408
        %623 = vmatmul.mubr.bf16.gmra.mxu0 %v407
        %v624 = vpop.f32.mrf.mxu0
        %v625 = vadd.f32 0.0, %v624
        %v626 = vpop.f32.mrf.mxu0
        %v627 = vpop.f32.mrf.mxu0
        %v628 = vadd.f32 0.0, %v627
        %v629 = vpop.f32.mrf.mxu0
        %630 = vdwg.mxu0
        %631 = vmatprep.subr.bf16.mxu0 0
        %632 = vmatpush1.bf16.msra.mxu0 %v541
        %633 = vmatprep.subr.bf16.mxu0 0
        %634 = vmatpush1.bf16.msra.mxu0 %v540
        %635 = vmatprep.subr.bf16.mxu0 0
        %636 = vmatpush1.bf16.msra.mxu0 %v539
        %637 = vmatprep.subr.bf16.mxu0 0
        %638 = vmatpush1.bf16.msra.mxu0 %v538
        %639 = vmatprep.subr.bf16.mxu0 0
        %640 = vmatpush1.bf16.msra.mxu0 %v537
        %641 = vmatprep.subr.bf16.mxu0 0
        %642 = vmatpush1.bf16.msra.mxu0 %v536
        %643 = vmatprep.subr.bf16.mxu0 0
        %644 = vmatpush1.bf16.msra.mxu0 %v535
        %645 = vmatprep.subr.bf16.mxu0 0
        %646 = vmatpush1.bf16.msra.mxu0 %v534
        %647 = vmatprep.subr.bf16.mxu0 0
        %648 = vmatpush2.bf16.msra.mxu0 0
        %649 = vmatprep.subr.bf16.mxu0 0
        %650 = vmatpush2.bf16.msra.mxu0 0
        %651 = vmatprep.subr.bf16.mxu0 0
        %652 = vmatpush2.bf16.msra.mxu0 0
        %653 = vmatprep.subr.bf16.mxu0 0
        %654 = vmatpush2.bf16.msra.mxu0 0
        %655 = vmatprep.subr.bf16.mxu0 0
        %656 = vmatpush2.bf16.msra.mxu0 0
        %657 = vmatprep.subr.bf16.mxu0 0
        %658 = vmatpush2.bf16.msra.mxu0 0
        %659 = vmatprep.subr.bf16.mxu0 0
        %660 = vmatpush2.bf16.msra.mxu0 0
        %661 = vmatprep.subr.bf16.mxu0 0
        %662 = vmatpush2.bf16.msra.mxu0 0
        %663 = vmatprep.mubr.bf16.mxu0 0
        %664 = vmatmul.mubr.bf16.gmra.mxu0 %v400
        %v665 = vpop.f32.mrf.mxu0
        %v666 = vadd.f32 %v601, %v665
        %v667 = vpop.f32.mrf.mxu0
        %v668 = vpop.f32.mrf.mxu0
        %v669 = vadd.f32 %v604, %v668
        %v670 = vpop.f32.mrf.mxu0
        %671 = vmatprep.mubr.bf16.mxu0 0
        %672 = vmatmul.mubr.bf16.gmra.mxu0 %v403
        %v673 = vpop.f32.mrf.mxu0
        %v674 = vadd.f32 %v609, %v673
        %v675 = vpop.f32.mrf.mxu0
        %v676 = vpop.f32.mrf.mxu0
        %v677 = vadd.f32 %v612, %v676
        %v678 = vpop.f32.mrf.mxu0
        %679 = vmatprep.mubr.bf16.mxu0 0
        %680 = vmatmul.mubr.bf16.gmra.mxu0 %v406
        %v681 = vpop.f32.mrf.mxu0
        %v682 = vadd.f32 %v617, %v681
        %v683 = vpop.f32.mrf.mxu0
        %v684 = vpop.f32.mrf.mxu0
        %v685 = vadd.f32 %v620, %v684
        %v686 = vpop.f32.mrf.mxu0
        %687 = vmatprep.mubr.bf16.mxu0 0
        %688 = vmatmul.mubr.bf16.gmra.mxu0 %v409
        %v689 = vpop.f32.mrf.mxu0
        %v690 = vadd.f32 %v625, %v689
        %v691 = vpop.f32.mrf.mxu0
        %v692 = vpop.f32.mrf.mxu0
        %v693 = vadd.f32 %v628, %v692
        %v694 = vpop.f32.mrf.mxu0
        %695 = vdwg.mxu0
        %v696 = vadd.f32 %v286, %v666
        %v697 = vadd.f32 %v287, %v669
        %v698 = vadd.f32 %v288, %v674
        %v699 = vadd.f32 %v289, %v677
        %v700 = vadd.f32 %v290, %v682
        %v701 = vadd.f32 %v291, %v685
        %v702 = vadd.f32 %v292, %v690
        %v703 = vadd.f32 %v293, %v693
        %704 = vst [vmem:[#allocation2] sm:$0xff] %v696
        %705 = vst [vmem:[#allocation2 + $0x8] sm:$0xff] %v697
        %706 = vst [vmem:[#allocation2 + $0x10] sm:$0xff] %v698
        %707 = vst [vmem:[#allocation2 + $0x18] sm:$0xff] %v699
        %708 = vst [vmem:[#allocation2 + $0x20] sm:$0xff] %v700
        %709 = vst [vmem:[#allocation2 + $0x28] sm:$0xff] %v701
        %710 = vst [vmem:[#allocation2 + $0x30] sm:$0xff] %v702
        %711 = vst [vmem:[#allocation2 + $0x38] sm:$0xff] %v703
        %p712 = scmp.eq.s32.totalorder %s19, 2
        // Predicated region
        $region63: #{_lambda_.58} parent=53 // pred_check
          %p713 = pneg %p712
        $region64: #{_lambda_.58} parent=53 // pred_check_branch
          %715 = sbr.rel (%p713) target = $region66
        $region65: #{_lambda_.58} parent=53 // pred_region
          %v716 = vld [vmem:[#allocation2] sm:$0xff]
          %v717 = vld [vmem:[#allocation2 + $0x8] sm:$0xff]
          %v718 = vld [vmem:[#allocation2 + $0x10] sm:$0xff]
          %v719 = vld [vmem:[#allocation2 + $0x18] sm:$0xff]
          %v720 = vld [vmem:[#allocation2 + $0x20] sm:$0xff]
          %v721 = vld [vmem:[#allocation2 + $0x28] sm:$0xff]
          %v722 = vld [vmem:[#allocation2 + $0x30] sm:$0xff]
          %v723 = vld [vmem:[#allocation2 + $0x38] sm:$0xff]
          %v724 = vld [vmem:[%s2] sm:$0x1]
          %v726 = vlaneseq
          %v727 = vshrl.u32 %v726, 7
          %v728 = vsub.s32 0, %v727
          %v729 = vrot.slane %v724, %v728
          %v731 = vadd.f32 %v716, %v729
          %v732 = vadd.f32 %v717, %v729
          %v733 = vadd.f32 %v718, %v729
          %v734 = vadd.f32 %v719, %v729
          %v735 = vadd.f32 %v720, %v729
          %v736 = vadd.f32 %v721, %v729
          %v737 = vadd.f32 %v722, %v729
          %v738 = vadd.f32 %v723, %v729
          %v739 = vmax.f32 %v731, 0.0
          %v740 = vmax.f32 %v732, 0.0
          %v741 = vmax.f32 %v733, 0.0
          %v742 = vmax.f32 %v734, 0.0
          %v743 = vmax.f32 %v735, 0.0
          %v744 = vmax.f32 %v736, 0.0
          %v745 = vmax.f32 %v737, 0.0
          %v746 = vmax.f32 %v738, 0.0
          %v747 = vpack.c.bf16 %v740, %v739
          %v748 = vpack.c.bf16 %v742, %v741
          %v749 = vpack.c.bf16 %v744, %v743
          %v750 = vpack.c.bf16 %v746, %v745
          %v755 = vunpack.c.l.b16 %v747
          %v756 = vunpack.c.h.b16 %v747
          %v757 = vunpack.c.l.b16 %v748
          %v758 = vunpack.c.h.b16 %v748
          %v759 = vunpack.c.l.b16 %v749
          %v760 = vunpack.c.h.b16 %v749
          %v761 = vunpack.c.l.b16 %v750
          %v762 = vunpack.c.h.b16 %v750
          %v763 = vpack.c.b16 %v755, %v755
          %v764 = vpack.c.b16 %v756, %v756
          %v765 = vpack.c.b16 %v757, %v757
          %v766 = vpack.c.b16 %v758, %v758
          %v767 = vpack.c.b16 %v759, %v759
          %v768 = vpack.c.b16 %v760, %v760
          %v769 = vpack.c.b16 %v761, %v761
          %v770 = vpack.c.b16 %v762, %v762
          %779 = vst [vmem:[%s271] sm:$0xf] %v763
          %780 = vst [vmem:[%s271 + $0x4] sm:$0xf] %v764
          %781 = vst [vmem:[%s271 + $0x8] sm:$0xf] %v765
          %782 = vst [vmem:[%s271 + $0xc] sm:$0xf] %v766
          %783 = vst [vmem:[%s271 + $0x10] sm:$0xf] %v767
          %784 = vst [vmem:[%s271 + $0x14] sm:$0xf] %v768
          %785 = vst [vmem:[%s271 + $0x18] sm:$0xf] %v769
          %786 = vst [vmem:[%s271 + $0x1c] sm:$0xf] %v770
        $region66: #{_lambda_.58} parent=53 // pred_fallthru
          _
        %s787 = smul.u32 8, %s18
        %p788 = scmp.lt.s32.totalorder %s787, 15
        %s789 = scalar_select %p788, %s787, 15
        %s790 = smul.addr %s789, 4
        %s791 = scalar_lea.vmem %s3, %s790
        // Predicated region
        $region67: #{_lambda_.58} parent=53 // pred_check
          %p792 = pneg %p119
        $region68: #{_lambda_.58} parent=53 // pred_check_branch
          %794 = sbr.rel (%p792) target = $region70
        $region69: #{_lambda_.58} parent=53 // pred_region
          %s795 = smul.u32 8, %s18
        $region70: #{_lambda_.58} parent=53 // pred_fallthru
          _
      $region54: #{_lambda_.58} parent=5 // pred_fallthru
        _
      %p796 = scmp.le.s32.totalorder 2, %s9
      // Predicated region
      $region71: #{_lambda_.58} parent=5 // pred_check
        %p797 = pneg %p796
      $region72: #{_lambda_.58} parent=5 // pred_check_branch
        %799 = sbr.rel (%p797) target = $region74
      $region73: #{_lambda_.58} parent=5 // pred_region
        %s800 = ssub.s32 %s9, 2
        // Predicated region
        $region75: #{_lambda_.58} parent=73 // pred_check
          %p801 = pneg %p125
        $region76: #{_lambda_.58} parent=73 // pred_check_branch
          %803 = sbr.rel (%p801) target = $region78
        $region77: #{_lambda_.58} parent=73 // pred_region
          %s804 = smul.u32 8, %s20
          %p805 = scmp.lt.s32.totalorder %s804, 15
          %s806 = scalar_select %p805, %s804, 15
          %s807 = smul.addr %s806, 4
          %s808 = scalar_lea.vmem %s3, %s807
        $region78: #{_lambda_.58} parent=73 // pred_fallthru
          _
      $region74: #{_lambda_.58} parent=5 // pred_fallthru
        _
    $region6: #{_lambda_.58} parent=1 // loop_footer
      %s13 = sadd.s32 1, %s9
    $region7: #{_lambda_.58} parent=1 // loop_footer_branch
      %8 = sbr.rel target = $region3
    $region8: #{_lambda_.58} parent=1 // loop_exit
      _

// kernel: _lambda_.60
$region0: #{_lambda_.60}
  #allocation0 [shape = 'u32[]', space=smem, size = 0x4, offset = 0x4, fixed_abs, tag = 'smem constant byte address 0x4 - core index']
  #allocation1 [shape = 'u32[144,128]{1,0:T(1,128)}', space=vmem, size = 0x12000, scoped, tag = 'internal scratch']
  #allocation2 [shape = 'f32[64,128]{1,0:T(8,128)}', space=vmem, size = 0x8000, scoped, tag = 'scratch operand']
  %s0 = inlined_call_operand.vmem [shape: bf16[128,128], index: 0, kind: input, shape index: {}]
  %s1 = inlined_call_operand.vmem [shape: bf16[128,128], index: 1, kind: input, shape index: {}]
  %s2 = inlined_call_operand.vmem [shape: f32[1,128], index: 2, kind: input, shape index: {}]
  %s3 = inlined_call_operand.vmem [shape: bf16[128,128], index: 3, kind: input, shape index: {}]
  %s4 = inlined_call_operand.vmem [shape: bf16[128,128], index: 4, kind: output, shape index: {}]
  %s5 = sld [smem:[#allocation0]]
  $region57: #{_lambda_.60} parent=0
    _
  %s7 = ssub.s32 1, %s5
  %s8 = scalar_select 0, %s7, %s5
  loop: start=0, step=1, limit=4
  $region2: #{_lambda_.60} parent=0 // loop_pre_header
    _
  $region3: #{_lambda_.60} parent=0 // loop_header
    %s10 = sphi 0, %s14
    %p11 = scmp.ge.s32.totalorder %s10, 4
    %s17 = sphi 0, %s29
    %s18 = sphi 0, %s25
    %s19 = sphi 0, %s17
    %s20 = sphi 0, %s18
    %s21 = sphi 0, %s19
    %s22 = sphi 0, %s20
    %s34 = sphi 0, %s36
    %s37 = sphi 0, %s34
    %s38 = sphi 0, %s37
    %s54 = sphi 0, %s38
    %s60 = sphi 0, %s62
    %s63 = sphi 0, %s60
    %s64 = sphi 0, %s63
    %s80 = sphi 0, %s64
    %s84 = sphi 0, %s84
    %s86 = sphi 0, %s84
    %s87 = sphi 0, %s86
    %s101 = sphi 0, %s87
    %s107 = sphi 0, %s109
    %s110 = sphi 0, %s107
    %s111 = sphi 0, %s110
    %s127 = sphi 0, %s111
    %s133 = sphi 0, %s135
    %s136 = sphi 0, %s133
    %s137 = sphi 0, %s136
    %s153 = sphi 0, %s137
  $region4: #{_lambda_.60} parent=0 // loop_header_branch
    %13 = sbr.rel (%p11) target = $region8
  $region5: #{_lambda_.60} parent=0 // loop_body
    %s15 = ssub.s32 %s10, 1
    %s16 = ssub.s32 %s10, 2
    %s23 = sadd.s32 1, %s18
    %p24 = scmp.ge.s32.totalorder %s23, 1
    %s25 = scalar_select %p24, 0, %s23
    %s26 = sadd.s32 1, %s17
    %s27 = scalar_select %p24, %s26, %s17
    %p28 = scmp.ge.s32.totalorder %s27, 2
    %s29 = scalar_select %p28, 0, %s27
    %s30 = ssub.s32 %s17, %s29
    %s31 = ssub.s32 %s18, %s25
    %s32 = sor.u32 %s30, %s31
    %p33 = scmp.eq.s32.totalorder %s32, 0
    %s35 = sadd.s32 %s34, 1
    %s36 = scalar_select %p33, %s34, %s35
    %p39 = pneg %p33
    %p40 = scmp.eq.s32.totalorder %s10, 1
    %p41 = por %p39, %p40
    %p42 = scmp.ne.s32.totalorder %s34, %s37
    %p43 = scmp.eq.s32.totalorder %s10, 0
    %p44 = por %p42, %p43
    %p45 = scmp.ne.s32.totalorder %s34, %s37
    %p46 = scmp.eq.s32.totalorder %s15, 1
    %p47 = por %p45, %p46
    %p48 = scmp.ne.s32.totalorder %s37, %s38
    %p49 = scmp.eq.s32.totalorder %s15, 0
    %p50 = por %p48, %p49
    %p51 = scmp.ne.s32.totalorder %s37, %s38
    %p52 = scmp.eq.s32.totalorder %s16, 1
    %p53 = por %p51, %p52
    %p55 = scmp.ne.s32.totalorder %s38, %s54
    %p56 = scmp.eq.s32.totalorder %s16, 0
    %p57 = por %p55, %p56
    %s58 = ssub.s32 %s18, %s25
    %p59 = scmp.eq.s32.totalorder %s58, 0
    %s61 = sadd.s32 %s60, 1
    %s62 = scalar_select %p59, %s60, %s61
    %p65 = pneg %p59
    %p66 = scmp.eq.s32.totalorder %s10, 1
    %p67 = por %p65, %p66
    %p68 = scmp.ne.s32.totalorder %s60, %s63
    %p69 = scmp.eq.s32.totalorder %s10, 0
    %p70 = por %p68, %p69
    %p71 = scmp.ne.s32.totalorder %s60, %s63
    %p72 = scmp.eq.s32.totalorder %s15, 1
    %p73 = por %p71, %p72
    %p74 = scmp.ne.s32.totalorder %s63, %s64
    %p75 = scmp.eq.s32.totalorder %s15, 0
    %p76 = por %p74, %p75
    %p77 = scmp.ne.s32.totalorder %s63, %s64
    %p78 = scmp.eq.s32.totalorder %s16, 1
    %p79 = por %p77, %p78
    %p81 = scmp.ne.s32.totalorder %s64, %s80
    %p82 = scmp.eq.s32.totalorder %s16, 0
    %p83 = por %p81, %p82
    %s85 = sadd.s32 %s84, 1
    %p88 = scmp.eq.s32.totalorder %s10, 1
    %p89 = scmp.ne.s32.totalorder %s84, %s86
    %p90 = scmp.eq.s32.totalorder %s10, 0
    %p91 = por %p89, %p90
    %p92 = scmp.ne.s32.totalorder %s84, %s86
    %p93 = scmp.eq.s32.totalorder %s15, 1
    %p94 = por %p92, %p93
    %p95 = scmp.ne.s32.totalorder %s86, %s87
    %p96 = scmp.eq.s32.totalorder %s15, 0
    %p97 = por %p95, %p96
    %p98 = scmp.ne.s32.totalorder %s86, %s87
    %p99 = scmp.eq.s32.totalorder %s16, 1
    %p100 = por %p98, %p99
    %p102 = scmp.ne.s32.totalorder %s87, %s101
    %p103 = scmp.eq.s32.totalorder %s16, 0
    %p104 = por %p102, %p103
    %s105 = ssub.s32 %s17, %s29
    %p106 = scmp.eq.s32.totalorder %s105, 0
    %s108 = sadd.s32 %s107, 1
    %s109 = scalar_select %p106, %s107, %s108
    %p112 = pneg %p106
    %p113 = scmp.eq.s32.totalorder %s10, 1
    %p114 = por %p112, %p113
    %p115 = scmp.ne.s32.totalorder %s107, %s110
    %p116 = scmp.eq.s32.totalorder %s10, 0
    %p117 = por %p115, %p116
    %p118 = scmp.ne.s32.totalorder %s107, %s110
    %p119 = scmp.eq.s32.totalorder %s15, 1
    %p120 = por %p118, %p119
    %p121 = scmp.ne.s32.totalorder %s110, %s111
    %p122 = scmp.eq.s32.totalorder %s15, 0
    %p123 = por %p121, %p122
    %p124 = scmp.ne.s32.totalorder %s110, %s111
    %p125 = scmp.eq.s32.totalorder %s16, 1
    %p126 = por %p124, %p125
    %p128 = scmp.ne.s32.totalorder %s111, %s127
    %p129 = scmp.eq.s32.totalorder %s16, 0
    %p130 = por %p128, %p129
    %s131 = ssub.s32 %s17, %s29
    %p132 = scmp.eq.s32.totalorder %s131, 0
    %s134 = sadd.s32 %s133, 1
    %s135 = scalar_select %p132, %s133, %s134
    %p138 = pneg %p132
    %p139 = scmp.eq.s32.totalorder %s10, 1
    %p140 = por %p138, %p139
    %p141 = scmp.ne.s32.totalorder %s133, %s136
    %p142 = scmp.eq.s32.totalorder %s10, 0
    %p143 = por %p141, %p142
    %p144 = scmp.ne.s32.totalorder %s133, %s136
    %p145 = scmp.eq.s32.totalorder %s15, 1
    %p146 = por %p144, %p145
    %p147 = scmp.ne.s32.totalorder %s136, %s137
    %p148 = scmp.eq.s32.totalorder %s15, 0
    %p149 = por %p147, %p148
    %p150 = scmp.ne.s32.totalorder %s136, %s137
    %p151 = scmp.eq.s32.totalorder %s16, 1
    %p152 = por %p150, %p151
    %p154 = scmp.ne.s32.totalorder %s137, %s153
    %p155 = scmp.eq.s32.totalorder %s16, 0
    %p156 = por %p154, %p155
    %p157 = scmp.le.s32.totalorder 1, %s10
    %p158 = scmp.lt.s32.totalorder %s10, 3
    %p159 = pnand %p157, %p158
    %p160 = pneg %p159
    // Predicated region
    $region9: #{_lambda_.60} parent=5 // pred_check
      _
    $region10: #{_lambda_.60} parent=5 // pred_check_branch
      %162 = sbr.rel (%p159) target = $region12
    $region11: #{_lambda_.60} parent=5 // pred_region
      %s163 = ssub.s32 %s10, 1
      // Predicated region
      $region13: #{_lambda_.60} parent=11 // pred_check
        %p164 = pneg %p76
      $region14: #{_lambda_.60} parent=11 // pred_check_branch
        %166 = sbr.rel (%p164) target = $region16
      $region15: #{_lambda_.60} parent=11 // pred_region
        %s167 = smul.u32 16, %s20
        %p168 = scmp.lt.s32.totalorder %s167, 15
        %s169 = scalar_select %p168, %s167, 15
        %s170 = smul.addr %s169, 4
        %s171 = scalar_lea.vmem %s1, %s170
        %s172 = smul.u32 16, %s20
      $region16: #{_lambda_.60} parent=11 // pred_fallthru
        _
      // Predicated region
      $region17: #{_lambda_.60} parent=11 // pred_check
        %p173 = pneg %p97
      $region18: #{_lambda_.60} parent=11 // pred_check_branch
        %175 = sbr.rel (%p173) target = $region20
      $region19: #{_lambda_.60} parent=11 // pred_region
        _
      $region20: #{_lambda_.60} parent=11 // pred_fallthru
        _
    $region12: #{_lambda_.60} parent=5 // pred_fallthru
      _
    %p176 = scmp.lt.s32.totalorder %s10, 2
    // Predicated region
    $region21: #{_lambda_.60} parent=5 // pred_check
      %p177 = pneg %p176
    $region22: #{_lambda_.60} parent=5 // pred_check_branch
      %179 = sbr.rel (%p177) target = $region24
    $region23: #{_lambda_.60} parent=5 // pred_region
      // Predicated region
      $region25: #{_lambda_.60} parent=23 // pred_check
        %p180 = pneg %p44
      $region26: #{_lambda_.60} parent=23 // pred_check_branch
        %182 = sbr.rel (%p180) target = $region28
      $region27: #{_lambda_.60} parent=23 // pred_region
        %s183 = smul.u32 8, %s17
        %p184 = scmp.lt.s32.totalorder %s183, 15
        %s185 = scalar_select %p184, %s183, 15
        %p186 = scmp.lt.s32.totalorder %s18, 0
        %s187 = scalar_select %p186, %s18, 0
        %s188 = sadd.s32 %s187, %s185
        %s189 = smul.addr %s188, 4
        %s190 = scalar_lea.vmem %s0, %s189
        %s191 = smul.u32 8, %s17
      $region28: #{_lambda_.60} parent=23 // pred_fallthru
        _
      // Predicated region
      $region29: #{_lambda_.60} parent=23 // pred_check
        %p192 = pneg %p117
      $region30: #{_lambda_.60} parent=23 // pred_check_branch
        %194 = sbr.rel (%p192) target = $region32
      $region31: #{_lambda_.60} parent=23 // pred_region
        %s195 = smul.u32 8, %s17
        %p196 = scmp.lt.s32.totalorder %s195, 15
        %s197 = scalar_select %p196, %s195, 15
        %s198 = smul.addr %s197, 4
        %s199 = scalar_lea.vmem %s3, %s198
        %s200 = smul.u32 8, %s17
      $region32: #{_lambda_.60} parent=23 // pred_fallthru
        _
    $region24: #{_lambda_.60} parent=5 // pred_fallthru
      _
    %p201 = scmp.le.s32.totalorder 1, %s10
    %p202 = scmp.lt.s32.totalorder %s10, 3
    %p203 = pnand %p201, %p202
    %p204 = pneg %p203
    // Predicated region
    $region33: #{_lambda_.60} parent=5 // pred_check
      _
    $region34: #{_lambda_.60} parent=5 // pred_check_branch
      %206 = sbr.rel (%p203) target = $region36
    $region35: #{_lambda_.60} parent=5 // pred_region
      %s207 = ssub.s32 %s10, 1
      %s208 = smul.u32 8, %s19
      %p209 = scmp.lt.s32.totalorder %s208, 15
      %s210 = scalar_select %p209, %s208, 15
      %p211 = scmp.lt.s32.totalorder %s20, 0
      %s212 = scalar_select %p211, %s20, 0
      %s213 = sadd.s32 %s212, %s210
      %s214 = smul.addr %s213, 4
      %s215 = scalar_lea.vmem %s0, %s214
      %p216 = pneg %p50
      %p217 = pneg %p47
      %s218 = smul.u32 16, %s20
      %p219 = scmp.lt.s32.totalorder %s218, 15
      %s220 = scalar_select %p219, %s218, 15
      %s221 = smul.addr %s220, 4
      %s222 = scalar_lea.vmem %s1, %s221
      %p223 = pneg %p76
      %p224 = pneg %p73
      %p225 = pneg %p97
      %p226 = pneg %p94
      %s227 = smul.u32 8, %s19
      %p228 = scmp.lt.s32.totalorder %s227, 15
      %s229 = scalar_select %p228, %s227, 15
      %s230 = smul.addr %s229, 4
      %s231 = scalar_lea.vmem %s3, %s230
      %p232 = pneg %p123
      %p233 = pneg %p120
      %p234 = pneg %p149
      %p235 = pneg %p146
      %s236 = smul.u32 8, %s19
      %p237 = scmp.lt.s32.totalorder %s236, 15
      %s238 = scalar_select %p237, %s236, 15
      %s239 = smul.addr %s238, 4
      %s240 = scalar_lea.vmem %s4, %s239
      %s241 = smul.u32 8, %s19
      %p242 = scmp.lt.s32.totalorder %s241, 15
      %s243 = scalar_select %p242, %s241, 15
      %p244 = scmp.lt.s32.totalorder %s20, 0
      %s245 = scalar_select %p244, %s20, 0
      %s246 = sadd.s32 %s245, %s243
      %s247 = smul.addr %s246, 4
      %s248 = scalar_lea.vmem %s0, %s247
      %s249 = smul.u32 8, %s19
      %s250 = smul.u32 16, %s20
      %p251 = scmp.lt.s32.totalorder %s250, 15
      %s252 = scalar_select %p251, %s250, 15
      %s253 = smul.addr %s252, 4
      %s254 = scalar_lea.vmem %s1, %s253
      %s255 = smul.u32 16, %s20
      %s256 = smul.u32 8, %s19
      %p257 = scmp.lt.s32.totalorder %s256, 15
      %s258 = scalar_select %p257, %s256, 15
      %s259 = smul.addr %s258, 4
      %s260 = scalar_lea.vmem %s3, %s259
      %s261 = smul.u32 8, %s19
      %s262 = smul.u32 8, %s19
      %p263 = scmp.lt.s32.totalorder %s262, 15
      %s264 = scalar_select %p263, %s262, 15
      %s265 = smul.addr %s264, 4
      %s266 = scalar_lea.vmem %s4, %s265
      %s267 = smul.u32 8, %s19
      %p269 = scmp.eq.s32.totalorder %s20, 0
      // Predicated region
      $region37: #{_lambda_.60} parent=35 // pred_check
        %p270 = pneg %p269
      $region38: #{_lambda_.60} parent=35 // pred_check_branch
        %272 = sbr.rel (%p270) target = $region40
      $region39: #{_lambda_.60} parent=35 // pred_region
        %273 = vst [vmem:[#allocation2] sm:$0xff] 0.0
        %274 = vst [vmem:[#allocation2 + $0x8] sm:$0xff] 0.0
        %275 = vst [vmem:[#allocation2 + $0x10] sm:$0xff] 0.0
        %276 = vst [vmem:[#allocation2 + $0x18] sm:$0xff] 0.0
        %277 = vst [vmem:[#allocation2 + $0x20] sm:$0xff] 0.0
        %278 = vst [vmem:[#allocation2 + $0x28] sm:$0xff] 0.0
        %279 = vst [vmem:[#allocation2 + $0x30] sm:$0xff] 0.0
        %280 = vst [vmem:[#allocation2 + $0x38] sm:$0xff] 0.0
      $region40: #{_lambda_.60} parent=35 // pred_fallthru
        _
      %v281 = vld [vmem:[#allocation2] sm:$0xff]
      %v282 = vld [vmem:[#allocation2 + $0x8] sm:$0xff]
      %v283 = vld [vmem:[#allocation2 + $0x10] sm:$0xff]
      %v284 = vld [vmem:[#allocation2 + $0x18] sm:$0xff]
      %v285 = vld [vmem:[#allocation2 + $0x20] sm:$0xff]
      %v286 = vld [vmem:[#allocation2 + $0x28] sm:$0xff]
      %v287 = vld [vmem:[#allocation2 + $0x30] sm:$0xff]
      %v288 = vld [vmem:[#allocation2 + $0x38] sm:$0xff]
      %v289 = vld [vmem:[%s248] sm:$0xf]
      %v290 = vld [vmem:[%s248 + $0x4] sm:$0xf]
      %v291 = vld [vmem:[%s248 + $0x8] sm:$0xf]
      %v292 = vld [vmem:[%s248 + $0xc] sm:$0xf]
      %v293 = vld [vmem:[%s248 + $0x10] sm:$0xf]
      %v294 = vld [vmem:[%s248 + $0x14] sm:$0xf]
      %v295 = vld [vmem:[%s248 + $0x18] sm:$0xf]
      %v296 = vld [vmem:[%s248 + $0x1c] sm:$0xf]
      %v297 = vld [vmem:[%s254] sm:$0xf]
      %v298 = vld [vmem:[%s254 + $0x4] sm:$0xf]
      %v299 = vld [vmem:[%s254 + $0x8] sm:$0xf]
      %v300 = vld [vmem:[%s254 + $0xc] sm:$0xf]
      %v301 = vld [vmem:[%s254 + $0x10] sm:$0xf]
      %v302 = vld [vmem:[%s254 + $0x14] sm:$0xf]
      %v303 = vld [vmem:[%s254 + $0x18] sm:$0xf]
      %v304 = vld [vmem:[%s254 + $0x1c] sm:$0xf]
      %v305 = vld [vmem:[%s254 + $0x20] sm:$0xf]
      %v306 = vld [vmem:[%s254 + $0x24] sm:$0xf]
      %v307 = vld [vmem:[%s254 + $0x28] sm:$0xf]
      %v308 = vld [vmem:[%s254 + $0x2c] sm:$0xf]
      %v309 = vld [vmem:[%s254 + $0x30] sm:$0xf]
      %v310 = vld [vmem:[%s254 + $0x34] sm:$0xf]
      %v311 = vld [vmem:[%s254 + $0x38] sm:$0xf]
      %v312 = vld [vmem:[%s254 + $0x3c] sm:$0xf]
      %v321 = vunpack.c.l.b16 %v289
      %v322 = vunpack.c.l.b16 %v290
      %v323 = vunpack.c.l.b16 %v291
      %v324 = vunpack.c.l.b16 %v292
      %v325 = vunpack.c.l.b16 %v293
      %v326 = vunpack.c.l.b16 %v294
      %v327 = vunpack.c.l.b16 %v295
      %v328 = vunpack.c.l.b16 %v296
      %v329 = vpack.c.b16 %v322, %v321
      %v330 = vpack.c.b16 %v324, %v323
      %v331 = vpack.c.b16 %v326, %v325
      %v332 = vpack.c.b16 %v328, %v327
      %v353 = vunpack.c.l.b16 %v297
      %v354 = vunpack.c.l.b16 %v298
      %v355 = vunpack.c.l.b16 %v299
      %v356 = vunpack.c.l.b16 %v300
      %v357 = vunpack.c.l.b16 %v301
      %v358 = vunpack.c.l.b16 %v302
      %v359 = vunpack.c.l.b16 %v303
      %v360 = vunpack.c.l.b16 %v304
      %v361 = vunpack.c.l.b16 %v305
      %v362 = vunpack.c.l.b16 %v306
      %v363 = vunpack.c.l.b16 %v307
      %v364 = vunpack.c.l.b16 %v308
      %v365 = vunpack.c.l.b16 %v309
      %v366 = vunpack.c.l.b16 %v310
      %v367 = vunpack.c.l.b16 %v311
      %v368 = vunpack.c.l.b16 %v312
      %v369 = vpack.c.b16 %v354, %v353
      %v370 = vpack.c.b16 %v356, %v355
      %v371 = vpack.c.b16 %v358, %v357
      %v372 = vpack.c.b16 %v360, %v359
      %v373 = vpack.c.b16 %v362, %v361
      %v374 = vpack.c.b16 %v364, %v363
      %v375 = vpack.c.b16 %v366, %v365
      %v376 = vpack.c.b16 %v368, %v367
      %385 = vmatprep.subr.bf16.mxu0 0
      %386 = vmatpush1.bf16.msra.mxu0 %v376
      %387 = vmatprep.subr.bf16.mxu0 0
      %388 = vmatpush1.bf16.msra.mxu0 %v375
      %389 = vmatprep.subr.bf16.mxu0 0
      %390 = vmatpush1.bf16.msra.mxu0 %v374
      %391 = vmatprep.subr.bf16.mxu0 0
      %392 = vmatpush1.bf16.msra.mxu0 %v373
      %393 = vmatprep.subr.bf16.mxu0 0
      %394 = vmatpush1.bf16.msra.mxu0 %v372
      %395 = vmatprep.subr.bf16.mxu0 0
      %396 = vmatpush1.bf16.msra.mxu0 %v371
      %397 = vmatprep.subr.bf16.mxu0 0
      %398 = vmatpush1.bf16.msra.mxu0 %v370
      %399 = vmatprep.subr.bf16.mxu0 0
      %400 = vmatpush1.bf16.msra.mxu0 %v369
      %401 = vmatprep.subr.bf16.mxu0 0
      %402 = vmatpush2.bf16.msra.mxu0 0
      %403 = vmatprep.subr.bf16.mxu0 0
      %404 = vmatpush2.bf16.msra.mxu0 0
      %405 = vmatprep.subr.bf16.mxu0 0
      %406 = vmatpush2.bf16.msra.mxu0 0
      %407 = vmatprep.subr.bf16.mxu0 0
      %408 = vmatpush2.bf16.msra.mxu0 0
      %409 = vmatprep.subr.bf16.mxu0 0
      %410 = vmatpush2.bf16.msra.mxu0 0
      %411 = vmatprep.subr.bf16.mxu0 0
      %412 = vmatpush2.bf16.msra.mxu0 0
      %413 = vmatprep.subr.bf16.mxu0 0
      %414 = vmatpush2.bf16.msra.mxu0 0
      %415 = vmatprep.subr.bf16.mxu0 0
      %416 = vmatpush2.bf16.msra.mxu0 0
      %417 = vmatprep.mubr.bf16.mxu0 0
      %418 = vmatmul.mubr.bf16.gmra.mxu0 %v329
      %v419 = vpop.f32.mrf.mxu0
      %v420 = vadd.f32 0.0, %v419
      %v421 = vpop.f32.mrf.mxu0
      %v422 = vpop.f32.mrf.mxu0
      %v423 = vadd.f32 0.0, %v422
      %v424 = vpop.f32.mrf.mxu0
      %425 = vmatprep.mubr.bf16.mxu0 0
      %426 = vmatmul.mubr.bf16.gmra.mxu0 %v330
      %v427 = vpop.f32.mrf.mxu0
      %v428 = vadd.f32 0.0, %v427
      %v429 = vpop.f32.mrf.mxu0
      %v430 = vpop.f32.mrf.mxu0
      %v431 = vadd.f32 0.0, %v430
      %v432 = vpop.f32.mrf.mxu0
      %433 = vmatprep.mubr.bf16.mxu0 0
      %434 = vmatmul.mubr.bf16.gmra.mxu0 %v331
      %v435 = vpop.f32.mrf.mxu0
      %v436 = vadd.f32 0.0, %v435
      %v437 = vpop.f32.mrf.mxu0
      %v438 = vpop.f32.mrf.mxu0
      %v439 = vadd.f32 0.0, %v438
      %v440 = vpop.f32.mrf.mxu0
      %441 = vmatprep.mubr.bf16.mxu0 0
      %442 = vmatmul.mubr.bf16.gmra.mxu0 %v332
      %v443 = vpop.f32.mrf.mxu0
      %v444 = vadd.f32 0.0, %v443
      %v445 = vpop.f32.mrf.mxu0
      %v446 = vpop.f32.mrf.mxu0
      %v447 = vadd.f32 0.0, %v446
      %v448 = vpop.f32.mrf.mxu0
      %449 = vdwg.mxu0
      %v450 = vadd.f32 %v281, %v420
      %v451 = vadd.f32 %v282, %v423
      %v452 = vadd.f32 %v283, %v428
      %v453 = vadd.f32 %v284, %v431
      %v454 = vadd.f32 %v285, %v436
      %v455 = vadd.f32 %v286, %v439
      %v456 = vadd.f32 %v287, %v444
      %v457 = vadd.f32 %v288, %v447
      %458 = vst [vmem:[#allocation2] sm:$0xff] %v450
      %459 = vst [vmem:[#allocation2 + $0x8] sm:$0xff] %v451
      %460 = vst [vmem:[#allocation2 + $0x10] sm:$0xff] %v452
      %461 = vst [vmem:[#allocation2 + $0x18] sm:$0xff] %v453
      %462 = vst [vmem:[#allocation2 + $0x20] sm:$0xff] %v454
      %463 = vst [vmem:[#allocation2 + $0x28] sm:$0xff] %v455
      %464 = vst [vmem:[#allocation2 + $0x30] sm:$0xff] %v456
      %465 = vst [vmem:[#allocation2 + $0x38] sm:$0xff] %v457
      // Predicated region
      $region41: #{_lambda_.60} parent=35 // pred_check
        %p466 = pneg %p269
      $region42: #{_lambda_.60} parent=35 // pred_check_branch
        %468 = sbr.rel (%p466) target = $region44
      $region43: #{_lambda_.60} parent=35 // pred_region
        %v469 = vld [vmem:[#allocation2] sm:$0xff]
        %v470 = vld [vmem:[#allocation2 + $0x8] sm:$0xff]
        %v471 = vld [vmem:[#allocation2 + $0x10] sm:$0xff]
        %v472 = vld [vmem:[#allocation2 + $0x18] sm:$0xff]
        %v473 = vld [vmem:[#allocation2 + $0x20] sm:$0xff]
        %v474 = vld [vmem:[#allocation2 + $0x28] sm:$0xff]
        %v475 = vld [vmem:[#allocation2 + $0x30] sm:$0xff]
        %v476 = vld [vmem:[#allocation2 + $0x38] sm:$0xff]
        %v477 = vld [vmem:[%s2] sm:$0x1]
        %v479 = vlaneseq
        %v480 = vshrl.u32 %v479, 7
        %v481 = vsub.s32 0, %v480
        %v482 = vrot.slane %v477, %v481
        %v484 = vadd.f32 %v469, %v482
        %v485 = vadd.f32 %v470, %v482
        %v486 = vadd.f32 %v471, %v482
        %v487 = vadd.f32 %v472, %v482
        %v488 = vadd.f32 %v473, %v482
        %v489 = vadd.f32 %v474, %v482
        %v490 = vadd.f32 %v475, %v482
        %v491 = vadd.f32 %v476, %v482
        %v492 = vld [vmem:[%s260] sm:$0xf]
        %v493 = vld [vmem:[%s260 + $0x4] sm:$0xf]
        %v494 = vld [vmem:[%s260 + $0x8] sm:$0xf]
        %v495 = vld [vmem:[%s260 + $0xc] sm:$0xf]
        %v496 = vld [vmem:[%s260 + $0x10] sm:$0xf]
        %v497 = vld [vmem:[%s260 + $0x14] sm:$0xf]
        %v498 = vld [vmem:[%s260 + $0x18] sm:$0xf]
        %v499 = vld [vmem:[%s260 + $0x1c] sm:$0xf]
        %v500 = vunpack.c.l.bf16 %v492
        %v501 = vunpack.c.l.bf16 %v493
        %v502 = vunpack.c.l.bf16 %v494
        %v503 = vunpack.c.l.bf16 %v495
        %v504 = vunpack.c.l.bf16 %v496
        %v505 = vunpack.c.l.bf16 %v497
        %v506 = vunpack.c.l.bf16 %v498
        %v507 = vunpack.c.l.bf16 %v499
        %v508 = vadd.f32 %v484, %v500
        %v509 = vadd.f32 %v485, %v501
        %v510 = vadd.f32 %v486, %v502
        %v511 = vadd.f32 %v487, %v503
        %v512 = vadd.f32 %v488, %v504
        %v513 = vadd.f32 %v489, %v505
        %v514 = vadd.f32 %v490, %v506
        %v515 = vadd.f32 %v491, %v507
        %v516 = vmax.f32 %v508, 0.0
        %v517 = vmax.f32 %v509, 0.0
        %v518 = vmax.f32 %v510, 0.0
        %v519 = vmax.f32 %v511, 0.0
        %v520 = vmax.f32 %v512, 0.0
        %v521 = vmax.f32 %v513, 0.0
        %v522 = vmax.f32 %v514, 0.0
        %v523 = vmax.f32 %v515, 0.0
        %v524 = vpack.c.bf16 %v517, %v516
        %v525 = vpack.c.bf16 %v519, %v518
        %v526 = vpack.c.bf16 %v521, %v520
        %v527 = vpack.c.bf16 %v523, %v522
        %v532 = vunpack.c.l.b16 %v524
        %v533 = vunpack.c.h.b16 %v524
        %v534 = vunpack.c.l.b16 %v525
        %v535 = vunpack.c.h.b16 %v525
        %v536 = vunpack.c.l.b16 %v526
        %v537 = vunpack.c.h.b16 %v526
        %v538 = vunpack.c.l.b16 %v527
        %v539 = vunpack.c.h.b16 %v527
        %v540 = vpack.c.b16 %v532, %v532
        %v541 = vpack.c.b16 %v533, %v533
        %v542 = vpack.c.b16 %v534, %v534
        %v543 = vpack.c.b16 %v535, %v535
        %v544 = vpack.c.b16 %v536, %v536
        %v545 = vpack.c.b16 %v537, %v537
        %v546 = vpack.c.b16 %v538, %v538
        %v547 = vpack.c.b16 %v539, %v539
        %556 = vst [vmem:[%s266] sm:$0xf] %v540
        %557 = vst [vmem:[%s266 + $0x4] sm:$0xf] %v541
        %558 = vst [vmem:[%s266 + $0x8] sm:$0xf] %v542
        %559 = vst [vmem:[%s266 + $0xc] sm:$0xf] %v543
        %560 = vst [vmem:[%s266 + $0x10] sm:$0xf] %v544
        %561 = vst [vmem:[%s266 + $0x14] sm:$0xf] %v545
        %562 = vst [vmem:[%s266 + $0x18] sm:$0xf] %v546
        %563 = vst [vmem:[%s266 + $0x1c] sm:$0xf] %v547
      $region44: #{_lambda_.60} parent=35 // pred_fallthru
        _
      %s564 = smul.u32 8, %s19
      %p565 = scmp.lt.s32.totalorder %s564, 15
      %s566 = scalar_select %p565, %s564, 15
      %s567 = smul.addr %s566, 4
      %s568 = scalar_lea.vmem %s4, %s567
      // Predicated region
      $region45: #{_lambda_.60} parent=35 // pred_check
        %p569 = pneg %p146
      $region46: #{_lambda_.60} parent=35 // pred_check_branch
        %571 = sbr.rel (%p569) target = $region48
      $region47: #{_lambda_.60} parent=35 // pred_region
        %s572 = smul.u32 8, %s19
      $region48: #{_lambda_.60} parent=35 // pred_fallthru
        _
    $region36: #{_lambda_.60} parent=5 // pred_fallthru
      _
    %p573 = scmp.le.s32.totalorder 2, %s10
    // Predicated region
    $region49: #{_lambda_.60} parent=5 // pred_check
      %p574 = pneg %p573
    $region50: #{_lambda_.60} parent=5 // pred_check_branch
      %576 = sbr.rel (%p574) target = $region52
    $region51: #{_lambda_.60} parent=5 // pred_region
      %s577 = ssub.s32 %s10, 2
      // Predicated region
      $region53: #{_lambda_.60} parent=51 // pred_check
        %p578 = pneg %p152
      $region54: #{_lambda_.60} parent=51 // pred_check_branch
        %580 = sbr.rel (%p578) target = $region56
      $region55: #{_lambda_.60} parent=51 // pred_region
        %s581 = smul.u32 8, %s21
        %p582 = scmp.lt.s32.totalorder %s581, 15
        %s583 = scalar_select %p582, %s581, 15
        %s584 = smul.addr %s583, 4
        %s585 = scalar_lea.vmem %s4, %s584
      $region56: #{_lambda_.60} parent=51 // pred_fallthru
        _
    $region52: #{_lambda_.60} parent=5 // pred_fallthru
      _
  $region6: #{_lambda_.60} parent=0 // loop_footer
    %s14 = sadd.s32 1, %s10
  $region7: #{_lambda_.60} parent=0 // loop_footer_branch
    %9 = sbr.rel target = $region3
  $region8: #{_lambda_.60} parent=0 // loop_exit
    _

// kernel: _lambda_.59
$region0: #{_lambda_.59}
  #allocation0 [shape = 'u32[]', space=smem, size = 0x4, offset = 0x4, fixed_abs, tag = 'smem constant byte address 0x4 - core index']
  #allocation1 [shape = 'u32[144,128]{1,0:T(1,128)}', space=vmem, size = 0x12000, scoped, tag = 'internal scratch']
  #allocation2 [shape = 'f32[64,128]{1,0:T(8,128)}', space=vmem, size = 0x8000, scoped, tag = 'scratch operand']
  %s0 = inlined_call_operand.vmem [shape: bf16[128,128], index: 0, kind: input, shape index: {}]
  %s1 = inlined_call_operand.vmem [shape: bf16[128,128], index: 1, kind: input, shape index: {}]
  %s2 = inlined_call_operand.vmem [shape: f32[1,128], index: 2, kind: input, shape index: {}]
  %s3 = inlined_call_operand.vmem [shape: bf16[128,128], index: 3, kind: output, shape index: {}]
  %s4 = sld [smem:[#allocation0]]
  $region53: #{_lambda_.59} parent=0
    _
  %s6 = ssub.s32 1, %s4
  %s7 = scalar_select 0, %s6, %s4
  loop: start=0, step=1, limit=4
  $region2: #{_lambda_.59} parent=0 // loop_pre_header
    _
  $region3: #{_lambda_.59} parent=0 // loop_header
    %s9 = sphi 0, %s13
    %p10 = scmp.ge.s32.totalorder %s9, 4
    %s16 = sphi 0, %s28
    %s17 = sphi 0, %s24
    %s18 = sphi 0, %s16
    %s19 = sphi 0, %s17
    %s20 = sphi 0, %s18
    %s21 = sphi 0, %s19
    %s33 = sphi 0, %s35
    %s36 = sphi 0, %s33
    %s37 = sphi 0, %s36
    %s53 = sphi 0, %s37
    %s59 = sphi 0, %s61
    %s62 = sphi 0, %s59
    %s63 = sphi 0, %s62
    %s79 = sphi 0, %s63
    %s83 = sphi 0, %s83
    %s85 = sphi 0, %s83
    %s86 = sphi 0, %s85
    %s100 = sphi 0, %s86
    %s106 = sphi 0, %s108
    %s109 = sphi 0, %s106
    %s110 = sphi 0, %s109
    %s126 = sphi 0, %s110
  $region4: #{_lambda_.59} parent=0 // loop_header_branch
    %12 = sbr.rel (%p10) target = $region8
  $region5: #{_lambda_.59} parent=0 // loop_body
    %s14 = ssub.s32 %s9, 1
    %s15 = ssub.s32 %s9, 2
    %s22 = sadd.s32 1, %s17
    %p23 = scmp.ge.s32.totalorder %s22, 1
    %s24 = scalar_select %p23, 0, %s22
    %s25 = sadd.s32 1, %s16
    %s26 = scalar_select %p23, %s25, %s16
    %p27 = scmp.ge.s32.totalorder %s26, 2
    %s28 = scalar_select %p27, 0, %s26
    %s29 = ssub.s32 %s16, %s28
    %s30 = ssub.s32 %s17, %s24
    %s31 = sor.u32 %s29, %s30
    %p32 = scmp.eq.s32.totalorder %s31, 0
    %s34 = sadd.s32 %s33, 1
    %s35 = scalar_select %p32, %s33, %s34
    %p38 = pneg %p32
    %p39 = scmp.eq.s32.totalorder %s9, 1
    %p40 = por %p38, %p39
    %p41 = scmp.ne.s32.totalorder %s33, %s36
    %p42 = scmp.eq.s32.totalorder %s9, 0
    %p43 = por %p41, %p42
    %p44 = scmp.ne.s32.totalorder %s33, %s36
    %p45 = scmp.eq.s32.totalorder %s14, 1
    %p46 = por %p44, %p45
    %p47 = scmp.ne.s32.totalorder %s36, %s37
    %p48 = scmp.eq.s32.totalorder %s14, 0
    %p49 = por %p47, %p48
    %p50 = scmp.ne.s32.totalorder %s36, %s37
    %p51 = scmp.eq.s32.totalorder %s15, 1
    %p52 = por %p50, %p51
    %p54 = scmp.ne.s32.totalorder %s37, %s53
    %p55 = scmp.eq.s32.totalorder %s15, 0
    %p56 = por %p54, %p55
    %s57 = ssub.s32 %s17, %s24
    %p58 = scmp.eq.s32.totalorder %s57, 0
    %s60 = sadd.s32 %s59, 1
    %s61 = scalar_select %p58, %s59, %s60
    %p64 = pneg %p58
    %p65 = scmp.eq.s32.totalorder %s9, 1
    %p66 = por %p64, %p65
    %p67 = scmp.ne.s32.totalorder %s59, %s62
    %p68 = scmp.eq.s32.totalorder %s9, 0
    %p69 = por %p67, %p68
    %p70 = scmp.ne.s32.totalorder %s59, %s62
    %p71 = scmp.eq.s32.totalorder %s14, 1
    %p72 = por %p70, %p71
    %p73 = scmp.ne.s32.totalorder %s62, %s63
    %p74 = scmp.eq.s32.totalorder %s14, 0
    %p75 = por %p73, %p74
    %p76 = scmp.ne.s32.totalorder %s62, %s63
    %p77 = scmp.eq.s32.totalorder %s15, 1
    %p78 = por %p76, %p77
    %p80 = scmp.ne.s32.totalorder %s63, %s79
    %p81 = scmp.eq.s32.totalorder %s15, 0
    %p82 = por %p80, %p81
    %s84 = sadd.s32 %s83, 1
    %p87 = scmp.eq.s32.totalorder %s9, 1
    %p88 = scmp.ne.s32.totalorder %s83, %s85
    %p89 = scmp.eq.s32.totalorder %s9, 0
    %p90 = por %p88, %p89
    %p91 = scmp.ne.s32.totalorder %s83, %s85
    %p92 = scmp.eq.s32.totalorder %s14, 1
    %p93 = por %p91, %p92
    %p94 = scmp.ne.s32.totalorder %s85, %s86
    %p95 = scmp.eq.s32.totalorder %s14, 0
    %p96 = por %p94, %p95
    %p97 = scmp.ne.s32.totalorder %s85, %s86
    %p98 = scmp.eq.s32.totalorder %s15, 1
    %p99 = por %p97, %p98
    %p101 = scmp.ne.s32.totalorder %s86, %s100
    %p102 = scmp.eq.s32.totalorder %s15, 0
    %p103 = por %p101, %p102
    %s104 = ssub.s32 %s16, %s28
    %p105 = scmp.eq.s32.totalorder %s104, 0
    %s107 = sadd.s32 %s106, 1
    %s108 = scalar_select %p105, %s106, %s107
    %p111 = pneg %p105
    %p112 = scmp.eq.s32.totalorder %s9, 1
    %p113 = por %p111, %p112
    %p114 = scmp.ne.s32.totalorder %s106, %s109
    %p115 = scmp.eq.s32.totalorder %s9, 0
    %p116 = por %p114, %p115
    %p117 = scmp.ne.s32.totalorder %s106, %s109
    %p118 = scmp.eq.s32.totalorder %s14, 1
    %p119 = por %p117, %p118
    %p120 = scmp.ne.s32.totalorder %s109, %s110
    %p121 = scmp.eq.s32.totalorder %s14, 0
    %p122 = por %p120, %p121
    %p123 = scmp.ne.s32.totalorder %s109, %s110
    %p124 = scmp.eq.s32.totalorder %s15, 1
    %p125 = por %p123, %p124
    %p127 = scmp.ne.s32.totalorder %s110, %s126
    %p128 = scmp.eq.s32.totalorder %s15, 0
    %p129 = por %p127, %p128
    %p130 = scmp.le.s32.totalorder 1, %s9
    %p131 = scmp.lt.s32.totalorder %s9, 3
    %p132 = pnand %p130, %p131
    %p133 = pneg %p132
    // Predicated region
    $region9: #{_lambda_.59} parent=5 // pred_check
      _
    $region10: #{_lambda_.59} parent=5 // pred_check_branch
      %135 = sbr.rel (%p132) target = $region12
    $region11: #{_lambda_.59} parent=5 // pred_region
      %s136 = ssub.s32 %s9, 1
      // Predicated region
      $region13: #{_lambda_.59} parent=11 // pred_check
        %p137 = pneg %p75
      $region14: #{_lambda_.59} parent=11 // pred_check_branch
        %139 = sbr.rel (%p137) target = $region16
      $region15: #{_lambda_.59} parent=11 // pred_region
        %s140 = smul.u32 16, %s19
        %p141 = scmp.lt.s32.totalorder %s140, 15
        %s142 = scalar_select %p141, %s140, 15
        %s143 = smul.addr %s142, 4
        %s144 = scalar_lea.vmem %s1, %s143
        %s145 = smul.u32 16, %s19
      $region16: #{_lambda_.59} parent=11 // pred_fallthru
        _
      // Predicated region
      $region17: #{_lambda_.59} parent=11 // pred_check
        %p146 = pneg %p96
      $region18: #{_lambda_.59} parent=11 // pred_check_branch
        %148 = sbr.rel (%p146) target = $region20
      $region19: #{_lambda_.59} parent=11 // pred_region
        _
      $region20: #{_lambda_.59} parent=11 // pred_fallthru
        _
    $region12: #{_lambda_.59} parent=5 // pred_fallthru
      _
    %p149 = scmp.lt.s32.totalorder %s9, 2
    // Predicated region
    $region21: #{_lambda_.59} parent=5 // pred_check
      %p150 = pneg %p149
    $region22: #{_lambda_.59} parent=5 // pred_check_branch
      %152 = sbr.rel (%p150) target = $region24
    $region23: #{_lambda_.59} parent=5 // pred_region
      // Predicated region
      $region25: #{_lambda_.59} parent=23 // pred_check
        %p153 = pneg %p43
      $region26: #{_lambda_.59} parent=23 // pred_check_branch
        %155 = sbr.rel (%p153) target = $region28
      $region27: #{_lambda_.59} parent=23 // pred_region
        %s156 = smul.u32 8, %s16
        %p157 = scmp.lt.s32.totalorder %s156, 15
        %s158 = scalar_select %p157, %s156, 15
        %p159 = scmp.lt.s32.totalorder %s17, 0
        %s160 = scalar_select %p159, %s17, 0
        %s161 = sadd.s32 %s160, %s158
        %s162 = smul.addr %s161, 4
        %s163 = scalar_lea.vmem %s0, %s162
        %s164 = smul.u32 8, %s16
      $region28: #{_lambda_.59} parent=23 // pred_fallthru
        _
    $region24: #{_lambda_.59} parent=5 // pred_fallthru
      _
    %p165 = scmp.le.s32.totalorder 1, %s9
    %p166 = scmp.lt.s32.totalorder %s9, 3
    %p167 = pnand %p165, %p166
    %p168 = pneg %p167
    // Predicated region
    $region29: #{_lambda_.59} parent=5 // pred_check
      _
    $region30: #{_lambda_.59} parent=5 // pred_check_branch
      %170 = sbr.rel (%p167) target = $region32
    $region31: #{_lambda_.59} parent=5 // pred_region
      %s171 = ssub.s32 %s9, 1
      %s172 = smul.u32 8, %s18
      %p173 = scmp.lt.s32.totalorder %s172, 15
      %s174 = scalar_select %p173, %s172, 15
      %p175 = scmp.lt.s32.totalorder %s19, 0
      %s176 = scalar_select %p175, %s19, 0
      %s177 = sadd.s32 %s176, %s174
      %s178 = smul.addr %s177, 4
      %s179 = scalar_lea.vmem %s0, %s178
      %p180 = pneg %p49
      %p181 = pneg %p46
      %s182 = smul.u32 16, %s19
      %p183 = scmp.lt.s32.totalorder %s182, 15
      %s184 = scalar_select %p183, %s182, 15
      %s185 = smul.addr %s184, 4
      %s186 = scalar_lea.vmem %s1, %s185
      %p187 = pneg %p75
      %p188 = pneg %p72
      %p189 = pneg %p96
      %p190 = pneg %p93
      %p191 = pneg %p122
      %p192 = pneg %p119
      %s193 = smul.u32 8, %s18
      %p194 = scmp.lt.s32.totalorder %s193, 15
      %s195 = scalar_select %p194, %s193, 15
      %s196 = smul.addr %s195, 4
      %s197 = scalar_lea.vmem %s3, %s196
      %s198 = smul.u32 8, %s18
      %p199 = scmp.lt.s32.totalorder %s198, 15
      %s200 = scalar_select %p199, %s198, 15
      %p201 = scmp.lt.s32.totalorder %s19, 0
      %s202 = scalar_select %p201, %s19, 0
      %s203 = sadd.s32 %s202, %s200
      %s204 = smul.addr %s203, 4
      %s205 = scalar_lea.vmem %s0, %s204
      %s206 = smul.u32 8, %s18
      %s207 = smul.u32 16, %s19
      %p208 = scmp.lt.s32.totalorder %s207, 15
      %s209 = scalar_select %p208, %s207, 15
      %s210 = smul.addr %s209, 4
      %s211 = scalar_lea.vmem %s1, %s210
      %s212 = smul.u32 16, %s19
      %s213 = smul.u32 8, %s18
      %p214 = scmp.lt.s32.totalorder %s213, 15
      %s215 = scalar_select %p214, %s213, 15
      %s216 = smul.addr %s215, 4
      %s217 = scalar_lea.vmem %s3, %s216
      %s218 = smul.u32 8, %s18
      %p220 = scmp.eq.s32.totalorder %s19, 0
      // Predicated region
      $region33: #{_lambda_.59} parent=31 // pred_check
        %p221 = pneg %p220
      $region34: #{_lambda_.59} parent=31 // pred_check_branch
        %223 = sbr.rel (%p221) target = $region36
      $region35: #{_lambda_.59} parent=31 // pred_region
        %224 = vst [vmem:[#allocation2] sm:$0xff] 0.0
        %225 = vst [vmem:[#allocation2 + $0x8] sm:$0xff] 0.0
        %226 = vst [vmem:[#allocation2 + $0x10] sm:$0xff] 0.0
        %227 = vst [vmem:[#allocation2 + $0x18] sm:$0xff] 0.0
        %228 = vst [vmem:[#allocation2 + $0x20] sm:$0xff] 0.0
        %229 = vst [vmem:[#allocation2 + $0x28] sm:$0xff] 0.0
        %230 = vst [vmem:[#allocation2 + $0x30] sm:$0xff] 0.0
        %231 = vst [vmem:[#allocation2 + $0x38] sm:$0xff] 0.0
      $region36: #{_lambda_.59} parent=31 // pred_fallthru
        _
      %v232 = vld [vmem:[#allocation2] sm:$0xff]
      %v233 = vld [vmem:[#allocation2 + $0x8] sm:$0xff]
      %v234 = vld [vmem:[#allocation2 + $0x10] sm:$0xff]
      %v235 = vld [vmem:[#allocation2 + $0x18] sm:$0xff]
      %v236 = vld [vmem:[#allocation2 + $0x20] sm:$0xff]
      %v237 = vld [vmem:[#allocation2 + $0x28] sm:$0xff]
      %v238 = vld [vmem:[#allocation2 + $0x30] sm:$0xff]
      %v239 = vld [vmem:[#allocation2 + $0x38] sm:$0xff]
      %v240 = vld [vmem:[%s205] sm:$0xf]
      %v241 = vld [vmem:[%s205 + $0x4] sm:$0xf]
      %v242 = vld [vmem:[%s205 + $0x8] sm:$0xf]
      %v243 = vld [vmem:[%s205 + $0xc] sm:$0xf]
      %v244 = vld [vmem:[%s205 + $0x10] sm:$0xf]
      %v245 = vld [vmem:[%s205 + $0x14] sm:$0xf]
      %v246 = vld [vmem:[%s205 + $0x18] sm:$0xf]
      %v247 = vld [vmem:[%s205 + $0x1c] sm:$0xf]
      %v248 = vld [vmem:[%s211] sm:$0xf]
      %v249 = vld [vmem:[%s211 + $0x4] sm:$0xf]
      %v250 = vld [vmem:[%s211 + $0x8] sm:$0xf]
      %v251 = vld [vmem:[%s211 + $0xc] sm:$0xf]
      %v252 = vld [vmem:[%s211 + $0x10] sm:$0xf]
      %v253 = vld [vmem:[%s211 + $0x14] sm:$0xf]
      %v254 = vld [vmem:[%s211 + $0x18] sm:$0xf]
      %v255 = vld [vmem:[%s211 + $0x1c] sm:$0xf]
      %v256 = vld [vmem:[%s211 + $0x20] sm:$0xf]
      %v257 = vld [vmem:[%s211 + $0x24] sm:$0xf]
      %v258 = vld [vmem:[%s211 + $0x28] sm:$0xf]
      %v259 = vld [vmem:[%s211 + $0x2c] sm:$0xf]
      %v260 = vld [vmem:[%s211 + $0x30] sm:$0xf]
      %v261 = vld [vmem:[%s211 + $0x34] sm:$0xf]
      %v262 = vld [vmem:[%s211 + $0x38] sm:$0xf]
      %v263 = vld [vmem:[%s211 + $0x3c] sm:$0xf]
      %v272 = vunpack.c.l.b16 %v240
      %v273 = vunpack.c.l.b16 %v241
      %v274 = vunpack.c.l.b16 %v242
      %v275 = vunpack.c.l.b16 %v243
      %v276 = vunpack.c.l.b16 %v244
      %v277 = vunpack.c.l.b16 %v245
      %v278 = vunpack.c.l.b16 %v246
      %v279 = vunpack.c.l.b16 %v247
      %v280 = vpack.c.b16 %v273, %v272
      %v281 = vpack.c.b16 %v275, %v274
      %v282 = vpack.c.b16 %v277, %v276
      %v283 = vpack.c.b16 %v279, %v278
      %v304 = vunpack.c.l.b16 %v248
      %v305 = vunpack.c.l.b16 %v249
      %v306 = vunpack.c.l.b16 %v250
      %v307 = vunpack.c.l.b16 %v251
      %v308 = vunpack.c.l.b16 %v252
      %v309 = vunpack.c.l.b16 %v253
      %v310 = vunpack.c.l.b16 %v254
      %v311 = vunpack.c.l.b16 %v255
      %v312 = vunpack.c.l.b16 %v256
      %v313 = vunpack.c.l.b16 %v257
      %v314 = vunpack.c.l.b16 %v258
      %v315 = vunpack.c.l.b16 %v259
      %v316 = vunpack.c.l.b16 %v260
      %v317 = vunpack.c.l.b16 %v261
      %v318 = vunpack.c.l.b16 %v262
      %v319 = vunpack.c.l.b16 %v263
      %v320 = vpack.c.b16 %v305, %v304
      %v321 = vpack.c.b16 %v307, %v306
      %v322 = vpack.c.b16 %v309, %v308
      %v323 = vpack.c.b16 %v311, %v310
      %v324 = vpack.c.b16 %v313, %v312
      %v325 = vpack.c.b16 %v315, %v314
      %v326 = vpack.c.b16 %v317, %v316
      %v327 = vpack.c.b16 %v319, %v318
      %336 = vmatprep.subr.bf16.mxu0 0
      %337 = vmatpush1.bf16.msra.mxu0 %v327
      %338 = vmatprep.subr.bf16.mxu0 0
      %339 = vmatpush1.bf16.msra.mxu0 %v326
      %340 = vmatprep.subr.bf16.mxu0 0
      %341 = vmatpush1.bf16.msra.mxu0 %v325
      %342 = vmatprep.subr.bf16.mxu0 0
      %343 = vmatpush1.bf16.msra.mxu0 %v324
      %344 = vmatprep.subr.bf16.mxu0 0
      %345 = vmatpush1.bf16.msra.mxu0 %v323
      %346 = vmatprep.subr.bf16.mxu0 0
      %347 = vmatpush1.bf16.msra.mxu0 %v322
      %348 = vmatprep.subr.bf16.mxu0 0
      %349 = vmatpush1.bf16.msra.mxu0 %v321
      %350 = vmatprep.subr.bf16.mxu0 0
      %351 = vmatpush1.bf16.msra.mxu0 %v320
      %352 = vmatprep.subr.bf16.mxu0 0
      %353 = vmatpush2.bf16.msra.mxu0 0
      %354 = vmatprep.subr.bf16.mxu0 0
      %355 = vmatpush2.bf16.msra.mxu0 0
      %356 = vmatprep.subr.bf16.mxu0 0
      %357 = vmatpush2.bf16.msra.mxu0 0
      %358 = vmatprep.subr.bf16.mxu0 0
      %359 = vmatpush2.bf16.msra.mxu0 0
      %360 = vmatprep.subr.bf16.mxu0 0
      %361 = vmatpush2.bf16.msra.mxu0 0
      %362 = vmatprep.subr.bf16.mxu0 0
      %363 = vmatpush2.bf16.msra.mxu0 0
      %364 = vmatprep.subr.bf16.mxu0 0
      %365 = vmatpush2.bf16.msra.mxu0 0
      %366 = vmatprep.subr.bf16.mxu0 0
      %367 = vmatpush2.bf16.msra.mxu0 0
      %368 = vmatprep.mubr.bf16.mxu0 0
      %369 = vmatmul.mubr.bf16.gmra.mxu0 %v280
      %v370 = vpop.f32.mrf.mxu0
      %v371 = vadd.f32 0.0, %v370
      %v372 = vpop.f32.mrf.mxu0
      %v373 = vpop.f32.mrf.mxu0
      %v374 = vadd.f32 0.0, %v373
      %v375 = vpop.f32.mrf.mxu0
      %376 = vmatprep.mubr.bf16.mxu0 0
      %377 = vmatmul.mubr.bf16.gmra.mxu0 %v281
      %v378 = vpop.f32.mrf.mxu0
      %v379 = vadd.f32 0.0, %v378
      %v380 = vpop.f32.mrf.mxu0
      %v381 = vpop.f32.mrf.mxu0
      %v382 = vadd.f32 0.0, %v381
      %v383 = vpop.f32.mrf.mxu0
      %384 = vmatprep.mubr.bf16.mxu0 0
      %385 = vmatmul.mubr.bf16.gmra.mxu0 %v282
      %v386 = vpop.f32.mrf.mxu0
      %v387 = vadd.f32 0.0, %v386
      %v388 = vpop.f32.mrf.mxu0
      %v389 = vpop.f32.mrf.mxu0
      %v390 = vadd.f32 0.0, %v389
      %v391 = vpop.f32.mrf.mxu0
      %392 = vmatprep.mubr.bf16.mxu0 0
      %393 = vmatmul.mubr.bf16.gmra.mxu0 %v283
      %v394 = vpop.f32.mrf.mxu0
      %v395 = vadd.f32 0.0, %v394
      %v396 = vpop.f32.mrf.mxu0
      %v397 = vpop.f32.mrf.mxu0
      %v398 = vadd.f32 0.0, %v397
      %v399 = vpop.f32.mrf.mxu0
      %400 = vdwg.mxu0
      %v401 = vadd.f32 %v232, %v371
      %v402 = vadd.f32 %v233, %v374
      %v403 = vadd.f32 %v234, %v379
      %v404 = vadd.f32 %v235, %v382
      %v405 = vadd.f32 %v236, %v387
      %v406 = vadd.f32 %v237, %v390
      %v407 = vadd.f32 %v238, %v395
      %v408 = vadd.f32 %v239, %v398
      %409 = vst [vmem:[#allocation2] sm:$0xff] %v401
      %410 = vst [vmem:[#allocation2 + $0x8] sm:$0xff] %v402
      %411 = vst [vmem:[#allocation2 + $0x10] sm:$0xff] %v403
      %412 = vst [vmem:[#allocation2 + $0x18] sm:$0xff] %v404
      %413 = vst [vmem:[#allocation2 + $0x20] sm:$0xff] %v405
      %414 = vst [vmem:[#allocation2 + $0x28] sm:$0xff] %v406
      %415 = vst [vmem:[#allocation2 + $0x30] sm:$0xff] %v407
      %416 = vst [vmem:[#allocation2 + $0x38] sm:$0xff] %v408
      // Predicated region
      $region37: #{_lambda_.59} parent=31 // pred_check
        %p417 = pneg %p220
      $region38: #{_lambda_.59} parent=31 // pred_check_branch
        %419 = sbr.rel (%p417) target = $region40
      $region39: #{_lambda_.59} parent=31 // pred_region
        %v420 = vld [vmem:[#allocation2] sm:$0xff]
        %v421 = vld [vmem:[#allocation2 + $0x8] sm:$0xff]
        %v422 = vld [vmem:[#allocation2 + $0x10] sm:$0xff]
        %v423 = vld [vmem:[#allocation2 + $0x18] sm:$0xff]
        %v424 = vld [vmem:[#allocation2 + $0x20] sm:$0xff]
        %v425 = vld [vmem:[#allocation2 + $0x28] sm:$0xff]
        %v426 = vld [vmem:[#allocation2 + $0x30] sm:$0xff]
        %v427 = vld [vmem:[#allocation2 + $0x38] sm:$0xff]
        %v428 = vld [vmem:[%s2] sm:$0x1]
        %v430 = vlaneseq
        %v431 = vshrl.u32 %v430, 7
        %v432 = vsub.s32 0, %v431
        %v433 = vrot.slane %v428, %v432
        %v435 = vadd.f32 %v420, %v433
        %v436 = vadd.f32 %v421, %v433
        %v437 = vadd.f32 %v422, %v433
        %v438 = vadd.f32 %v423, %v433
        %v439 = vadd.f32 %v424, %v433
        %v440 = vadd.f32 %v425, %v433
        %v441 = vadd.f32 %v426, %v433
        %v442 = vadd.f32 %v427, %v433
        %v443 = vpack.c.bf16 %v436, %v435
        %v444 = vpack.c.bf16 %v438, %v437
        %v445 = vpack.c.bf16 %v440, %v439
        %v446 = vpack.c.bf16 %v442, %v441
        %v451 = vunpack.c.l.b16 %v443
        %v452 = vunpack.c.h.b16 %v443
        %v453 = vunpack.c.l.b16 %v444
        %v454 = vunpack.c.h.b16 %v444
        %v455 = vunpack.c.l.b16 %v445
        %v456 = vunpack.c.h.b16 %v445
        %v457 = vunpack.c.l.b16 %v446
        %v458 = vunpack.c.h.b16 %v446
        %v459 = vpack.c.b16 %v451, %v451
        %v460 = vpack.c.b16 %v452, %v452
        %v461 = vpack.c.b16 %v453, %v453
        %v462 = vpack.c.b16 %v454, %v454
        %v463 = vpack.c.b16 %v455, %v455
        %v464 = vpack.c.b16 %v456, %v456
        %v465 = vpack.c.b16 %v457, %v457
        %v466 = vpack.c.b16 %v458, %v458
        %475 = vst [vmem:[%s217] sm:$0xf] %v459
        %476 = vst [vmem:[%s217 + $0x4] sm:$0xf] %v460
        %477 = vst [vmem:[%s217 + $0x8] sm:$0xf] %v461
        %478 = vst [vmem:[%s217 + $0xc] sm:$0xf] %v462
        %479 = vst [vmem:[%s217 + $0x10] sm:$0xf] %v463
        %480 = vst [vmem:[%s217 + $0x14] sm:$0xf] %v464
        %481 = vst [vmem:[%s217 + $0x18] sm:$0xf] %v465
        %482 = vst [vmem:[%s217 + $0x1c] sm:$0xf] %v466
      $region40: #{_lambda_.59} parent=31 // pred_fallthru
        _
      %s483 = smul.u32 8, %s18
      %p484 = scmp.lt.s32.totalorder %s483, 15
      %s485 = scalar_select %p484, %s483, 15
      %s486 = smul.addr %s485, 4
      %s487 = scalar_lea.vmem %s3, %s486
      // Predicated region
      $region41: #{_lambda_.59} parent=31 // pred_check
        %p488 = pneg %p119
      $region42: #{_lambda_.59} parent=31 // pred_check_branch
        %490 = sbr.rel (%p488) target = $region44
      $region43: #{_lambda_.59} parent=31 // pred_region
        %s491 = smul.u32 8, %s18
      $region44: #{_lambda_.59} parent=31 // pred_fallthru
        _
    $region32: #{_lambda_.59} parent=5 // pred_fallthru
      _
    %p492 = scmp.le.s32.totalorder 2, %s9
    // Predicated region
    $region45: #{_lambda_.59} parent=5 // pred_check
      %p493 = pneg %p492
    $region46: #{_lambda_.59} parent=5 // pred_check_branch
      %495 = sbr.rel (%p493) target = $region48
    $region47: #{_lambda_.59} parent=5 // pred_region
      %s496 = ssub.s32 %s9, 2
      // Predicated region
      $region49: #{_lambda_.59} parent=47 // pred_check
        %p497 = pneg %p125
      $region50: #{_lambda_.59} parent=47 // pred_check_branch
        %499 = sbr.rel (%p497) target = $region52
      $region51: #{_lambda_.59} parent=47 // pred_region
        %s500 = smul.u32 8, %s20
        %p501 = scmp.lt.s32.totalorder %s500, 15
        %s502 = scalar_select %p501, %s500, 15
        %s503 = smul.addr %s502, 4
        %s504 = scalar_lea.vmem %s3, %s503
      $region52: #{_lambda_.59} parent=47 // pred_fallthru
        _
    $region48: #{_lambda_.59} parent=5 // pred_fallthru
      _
  $region6: #{_lambda_.59} parent=0 // loop_footer
    %s13 = sadd.s32 1, %s9
  $region7: #{_lambda_.59} parent=0 // loop_footer_branch
    %8 = sbr.rel target = $region3
  $region8: #{_lambda_.59} parent=0 // loop_exit
    _

// kernel: _lambda_.68
$region0: #{_lambda_.68}
  #allocation0 [shape = 'u32[]', space=smem, size = 0x4, offset = 0x4, fixed_abs, tag = 'smem constant byte address 0x4 - core index']
  #allocation1 [shape = 'u32[144,128]{1,0:T(1,128)}', space=vmem, size = 0x12000, scoped, tag = 'internal scratch']
  #allocation2 [shape = 'f32[16,128]{1,0:T(8,128)}', space=vmem, size = 0x2000, scoped, tag = 'scratch operand']
  %s0 = inlined_call_operand.vmem [shape: bf16[32,1152], index: 0, kind: input, shape index: {}]
  %s1 = inlined_call_operand.vmem [shape: bf16[1152,128], index: 1, kind: input, shape index: {}]
  %s2 = inlined_call_operand.vmem [shape: f32[1,128], index: 2, kind: input, shape index: {}]
  %s3 = inlined_call_operand.vmem [shape: bf16[32,128], index: 3, kind: output, shape index: {}]
  %s4 = sld [smem:[#allocation0]]
  $region79: #{_lambda_.68} parent=0
    _
  %s6 = ssub.s32 1, %s4
  %s7 = scalar_select 0, %s6, %s4
  $region1: #{_lambda_.68} parent=0
    #allocation3 [shape = 'u8[24576]{0}', space=vmem, size = 0x6000, scoped, tag = 'input window, operand 0']
    loop: start=0, step=1, limit=8
    $region2: #{_lambda_.68} parent=1 // loop_pre_header
      _
    $region3: #{_lambda_.68} parent=1 // loop_header
      %s9 = sphi 0, %s13
      %p10 = scmp.ge.s32.totalorder %s9, 8
      %s16 = sphi 0, %s28
      %s17 = sphi 0, %s24
      %s18 = sphi 0, %s16
      %s19 = sphi 0, %s17
      %s20 = sphi 0, %s18
      %s21 = sphi 0, %s19
      %s33 = sphi 0, %s35
      %s36 = sphi 0, %s33
      %s37 = sphi 0, %s36
      %s53 = sphi 0, %s37
      %s59 = sphi 0, %s61
      %s62 = sphi 0, %s59
      %s63 = sphi 0, %s62
      %s79 = sphi 0, %s63
      %s83 = sphi 0, %s83
      %s85 = sphi 0, %s83
      %s86 = sphi 0, %s85
      %s100 = sphi 0, %s86
      %s106 = sphi 0, %s108
      %s109 = sphi 0, %s106
      %s110 = sphi 0, %s109
      %s126 = sphi 0, %s110
    $region4: #{_lambda_.68} parent=1 // loop_header_branch
      %12 = sbr.rel (%p10) target = $region8
    $region5: #{_lambda_.68} parent=1 // loop_body
      %s14 = ssub.s32 %s9, 1
      %s15 = ssub.s32 %s9, 2
      %s22 = sadd.s32 1, %s17
      %p23 = scmp.ge.s32.totalorder %s22, 3
      %s24 = scalar_select %p23, 0, %s22
      %s25 = sadd.s32 1, %s16
      %s26 = scalar_select %p23, %s25, %s16
      %p27 = scmp.ge.s32.totalorder %s26, 2
      %s28 = scalar_select %p27, 0, %s26
      %s29 = ssub.s32 %s16, %s28
      %s30 = ssub.s32 %s17, %s24
      %s31 = sor.u32 %s29, %s30
      %p32 = scmp.eq.s32.totalorder %s31, 0
      %s34 = sadd.s32 %s33, 1
      %s35 = scalar_select %p32, %s33, %s34
      %p38 = pneg %p32
      %p39 = scmp.eq.s32.totalorder %s9, 5
      %p40 = por %p38, %p39
      %p41 = scmp.ne.s32.totalorder %s33, %s36
      %p42 = scmp.eq.s32.totalorder %s9, 0
      %p43 = por %p41, %p42
      %p44 = scmp.ne.s32.totalorder %s33, %s36
      %p45 = scmp.eq.s32.totalorder %s14, 5
      %p46 = por %p44, %p45
      %p47 = scmp.ne.s32.totalorder %s36, %s37
      %p48 = scmp.eq.s32.totalorder %s14, 0
      %p49 = por %p47, %p48
      %p50 = scmp.ne.s32.totalorder %s36, %s37
      %p51 = scmp.eq.s32.totalorder %s15, 5
      %p52 = por %p50, %p51
      %p54 = scmp.ne.s32.totalorder %s37, %s53
      %p55 = scmp.eq.s32.totalorder %s15, 0
      %p56 = por %p54, %p55
      %s57 = ssub.s32 %s17, %s24
      %p58 = scmp.eq.s32.totalorder %s57, 0
      %s60 = sadd.s32 %s59, 1
      %s61 = scalar_select %p58, %s59, %s60
      %p64 = pneg %p58
      %p65 = scmp.eq.s32.totalorder %s9, 5
      %p66 = por %p64, %p65
      %p67 = scmp.ne.s32.totalorder %s59, %s62
      %p68 = scmp.eq.s32.totalorder %s9, 0
      %p69 = por %p67, %p68
      %p70 = scmp.ne.s32.totalorder %s59, %s62
      %p71 = scmp.eq.s32.totalorder %s14, 5
      %p72 = por %p70, %p71
      %p73 = scmp.ne.s32.totalorder %s62, %s63
      %p74 = scmp.eq.s32.totalorder %s14, 0
      %p75 = por %p73, %p74
      %p76 = scmp.ne.s32.totalorder %s62, %s63
      %p77 = scmp.eq.s32.totalorder %s15, 5
      %p78 = por %p76, %p77
      %p80 = scmp.ne.s32.totalorder %s63, %s79
      %p81 = scmp.eq.s32.totalorder %s15, 0
      %p82 = por %p80, %p81
      %s84 = sadd.s32 %s83, 1
      %p87 = scmp.eq.s32.totalorder %s9, 5
      %p88 = scmp.ne.s32.totalorder %s83, %s85
      %p89 = scmp.eq.s32.totalorder %s9, 0
      %p90 = por %p88, %p89
      %p91 = scmp.ne.s32.totalorder %s83, %s85
      %p92 = scmp.eq.s32.totalorder %s14, 5
      %p93 = por %p91, %p92
      %p94 = scmp.ne.s32.totalorder %s85, %s86
      %p95 = scmp.eq.s32.totalorder %s14, 0
      %p96 = por %p94, %p95
      %p97 = scmp.ne.s32.totalorder %s85, %s86
      %p98 = scmp.eq.s32.totalorder %s15, 5
      %p99 = por %p97, %p98
      %p101 = scmp.ne.s32.totalorder %s86, %s100
      %p102 = scmp.eq.s32.totalorder %s15, 0
      %p103 = por %p101, %p102
      %s104 = ssub.s32 %s16, %s28
      %p105 = scmp.eq.s32.totalorder %s104, 0
      %s107 = sadd.s32 %s106, 1
      %s108 = scalar_select %p105, %s106, %s107
      %p111 = pneg %p105
      %p112 = scmp.eq.s32.totalorder %s9, 5
      %p113 = por %p111, %p112
      %p114 = scmp.ne.s32.totalorder %s106, %s109
      %p115 = scmp.eq.s32.totalorder %s9, 0
      %p116 = por %p114, %p115
      %p117 = scmp.ne.s32.totalorder %s106, %s109
      %p118 = scmp.eq.s32.totalorder %s14, 5
      %p119 = por %p117, %p118
      %p120 = scmp.ne.s32.totalorder %s109, %s110
      %p121 = scmp.eq.s32.totalorder %s14, 0
      %p122 = por %p120, %p121
      %p123 = scmp.ne.s32.totalorder %s109, %s110
      %p124 = scmp.eq.s32.totalorder %s15, 5
      %p125 = por %p123, %p124
      %p127 = scmp.ne.s32.totalorder %s110, %s126
      %p128 = scmp.eq.s32.totalorder %s15, 0
      %p129 = por %p127, %p128
      %p130 = scmp.le.s32.totalorder 1, %s9
      %p131 = scmp.lt.s32.totalorder %s9, 7
      %p132 = pnand %p130, %p131
      %p133 = pneg %p132
      // Predicated region
      $region9: #{_lambda_.68} parent=5 // pred_check
        _
      $region10: #{_lambda_.68} parent=5 // pred_check_branch
        %135 = sbr.rel (%p132) target = $region12
      $region11: #{_lambda_.68} parent=5 // pred_region
        %s136 = ssub.s32 %s9, 1
        // Predicated region
        $region13: #{_lambda_.68} parent=11 // pred_check
          %p137 = pneg %p96
        $region14: #{_lambda_.68} parent=11 // pred_check_branch
          %139 = sbr.rel (%p137) target = $region16
        $region15: #{_lambda_.68} parent=11 // pred_region
          _
        $region16: #{_lambda_.68} parent=11 // pred_fallthru
          _
      $region12: #{_lambda_.68} parent=5 // pred_fallthru
        _
      %p140 = scmp.lt.s32.totalorder %s9, 6
      // Predicated region
      $region17: #{_lambda_.68} parent=5 // pred_check
        %p141 = pneg %p140
      $region18: #{_lambda_.68} parent=5 // pred_check_branch
        %143 = sbr.rel (%p141) target = $region20
      $region19: #{_lambda_.68} parent=5 // pred_region
        // Predicated region
        $region21: #{_lambda_.68} parent=19 // pred_check
          %p144 = pneg %p43
        $region22: #{_lambda_.68} parent=19 // pred_check_branch
          %146 = sbr.rel (%p144) target = $region24
        $region23: #{_lambda_.68} parent=19 // pred_region
          %s147 = sand.u32 %s33, 1
          %s148 = sand.u32 %s33, 1
          %s149 = smul.addr %s148, 24
          %s150 = scalar_lea.vmem [#allocation3], %s149
          %s151 = smul.u32 2, %s16
          %s152 = smul.u32 3, %s17
          %s153 = smul.addr %s151, 9
          %s154 = sadd.s32 %s152, %s153
          %s155 = smul.addr %s154, 4
          %s156 = scalar_lea.vmem %s0, %s155
          // Predicated region
          $region25: #{_lambda_.68} parent=23 // pred_check
            _
          $region26: #{_lambda_.68} parent=23 // pred_check_branch
            %158 = sbr.rel (0) target = $region28
          $region27: #{_lambda_.68} parent=23 // pred_region
            // Predicated region
            $region29: #{_lambda_.68} parent=27 // pred_check
              _
            $region30: #{_lambda_.68} parent=27 // pred_check_branch
              %160 = sbr.rel (0) target = $region32
            $region31: #{_lambda_.68} parent=27 // pred_region
              %s161 = scalar_lea.vmem %s156, 8
              %s162 = scalar_lea.vmem %s150, 8 [#allocation3]
              loop: start=0, step=1, limit=1
              $region33: #{_lambda_.68} parent=31 // loop_pre_header
                _
              $region34: #{_lambda_.68} parent=31 // loop_header
                %s164 = sphi 0, %s168
                %p165 = scmp.ge.s32.totalorder %s164, 1
                %s169 = sphi %s156, %s156
                %s170 = sphi %s150, %s150
              $region35: #{_lambda_.68} parent=31 // loop_header_branch
                %167 = sbr.rel (%p165) target = $region39
              $region36: #{_lambda_.68} parent=31 // loop_body
                %v171 = vld [vmem:[%s169] sm:$0xff]
                %172 = vst [vmem:[%s170] sm:$0xff] %v171
                %v173 = vld [vmem:[%s169 + $0x24] sm:$0xff]
                %174 = vst [vmem:[%s170 + $0xc] sm:$0xff] %v173
              $region37: #{_lambda_.68} parent=31 // loop_footer
                %s168 = sadd.s32 1, %s164
              $region38: #{_lambda_.68} parent=31 // loop_footer_branch
                %163 = sbr.rel target = $region34
              $region39: #{_lambda_.68} parent=31 // loop_exit
                _
              %s176 = ssub.s32 16, 1
              loop: start=0, step=1, limit=1
              $region40: #{_lambda_.68} parent=31 // loop_pre_header
                _
              $region41: #{_lambda_.68} parent=31 // loop_header
                %s178 = sphi 0, %s182
                %p179 = scmp.ge.s32.totalorder %s178, 1
                %s183 = sphi %s161, %s161
                %s184 = sphi %s162, %s162
              $region42: #{_lambda_.68} parent=31 // loop_header_branch
                %181 = sbr.rel (%p179) target = $region46
              $region43: #{_lambda_.68} parent=31 // loop_body
                %v185 = vld [vmem:[%s183] sm:%s176]
                %186 = vst [vmem:[%s184] sm:%s176] %v185
                %v187 = vld [vmem:[%s183 + $0x24] sm:%s176]
                %188 = vst [vmem:[%s184 + $0xc] sm:%s176] %v187
              $region44: #{_lambda_.68} parent=31 // loop_footer
                %s182 = sadd.s32 1, %s178
              $region45: #{_lambda_.68} parent=31 // loop_footer_branch
                %177 = sbr.rel target = $region41
              $region46: #{_lambda_.68} parent=31 // loop_exit
                _
            $region32: #{_lambda_.68} parent=27 // pred_fallthru
              _
          $region28: #{_lambda_.68} parent=23 // pred_fallthru
            _
          %189 = vnop
        $region24: #{_lambda_.68} parent=19 // pred_fallthru
          _
        // Predicated region
        $region47: #{_lambda_.68} parent=19 // pred_check
          %p190 = pneg %p69
        $region48: #{_lambda_.68} parent=19 // pred_check_branch
          %192 = sbr.rel (%p190) target = $region50
        $region49: #{_lambda_.68} parent=19 // pred_region
          %s193 = smul.u32 48, %s17
          %p194 = scmp.lt.s32.totalorder %s193, 143
          %s195 = scalar_select %p194, %s193, 143
          %s196 = smul.addr %s195, 4
          %s197 = scalar_lea.vmem %s1, %s196
          %s198 = smul.u32 48, %s17
        $region50: #{_lambda_.68} parent=19 // pred_fallthru
          _
      $region20: #{_lambda_.68} parent=5 // pred_fallthru
        _
      %p199 = scmp.le.s32.totalorder 1, %s9
      %p200 = scmp.lt.s32.totalorder %s9, 7
      %p201 = pnand %p199, %p200
      %p202 = pneg %p201
      // Predicated region
      $region51: #{_lambda_.68} parent=5 // pred_check
        _
      $region52: #{_lambda_.68} parent=5 // pred_check_branch
        %204 = sbr.rel (%p201) target = $region54
      $region53: #{_lambda_.68} parent=5 // pred_region
        %s205 = ssub.s32 %s9, 1
        %s206 = sand.u32 %s36, 1
        %s207 = sand.u32 %s36, 1
        %s208 = smul.addr %s207, 24
        %s209 = scalar_lea.vmem [#allocation3], %s208
        // Predicated region
        $region55: #{_lambda_.68} parent=53 // pred_check
          %p210 = pneg %p49
        $region56: #{_lambda_.68} parent=53 // pred_check_branch
          %212 = sbr.rel (%p210) target = $region58
        $region57: #{_lambda_.68} parent=53 // pred_region
          _
        $region58: #{_lambda_.68} parent=53 // pred_fallthru
          _
        %s213 = sand.u32 %s36, 1
        %s214 = sand.u32 %s36, 1
        %s215 = smul.addr %s214, 24
        %s216 = scalar_lea.vmem [#allocation3], %s215
        %p217 = pneg %p49
        %p218 = pneg %p46
        %s219 = smul.u32 48, %s19
        %p220 = scmp.lt.s32.totalorder %s219, 143
        %s221 = scalar_select %p220, %s219, 143
        %s222 = smul.addr %s221, 4
        %s223 = scalar_lea.vmem %s1, %s222
        %p224 = pneg %p75
        %p225 = pneg %p72
        %p226 = pneg %p96
        %p227 = pneg %p93
        %p228 = pneg %p122
        %p229 = pneg %p119
        %s230 = smul.u32 2, %s18
        %p231 = scmp.lt.s32.totalorder %s230, 3
        %s232 = scalar_select %p231, %s230, 3
        %s233 = smul.addr %s232, 4
        %s234 = scalar_lea.vmem %s3, %s233
        %s235 = smul.u32 2, %s18
        %s236 = smul.u32 3, %s19
        %s237 = smul.u32 48, %s19
        %p238 = scmp.lt.s32.totalorder %s237, 143
        %s239 = scalar_select %p238, %s237, 143
        %s240 = smul.addr %s239, 4
        %s241 = scalar_lea.vmem %s1, %s240
        %s242 = smul.u32 48, %s19
        %s243 = smul.u32 2, %s18
        %p244 = scmp.lt.s32.totalorder %s243, 3
        %s245 = scalar_select %p244, %s243, 3
        %s246 = smul.addr %s245, 4
        %s247 = scalar_lea.vmem %s3, %s246
        %s248 = smul.u32 2, %s18
        %p250 = scmp.eq.s32.totalorder %s19, 0
        // Predicated region
        $region59: #{_lambda_.68} parent=53 // pred_check
          %p251 = pneg %p250
        $region60: #{_lambda_.68} parent=53 // pred_check_branch
          %253 = sbr.rel (%p251) target = $region62
        $region61: #{_lambda_.68} parent=53 // pred_region
          %254 = vst [vmem:[#allocation2] sm:$0xff] 0.0
          %255 = vst [vmem:[#allocation2 + $0x8] sm:$0xff] 0.0
        $region62: #{_lambda_.68} parent=53 // pred_fallthru
          _
        %v256 = vld [vmem:[#allocation2] sm:$0xff]
        %v257 = vld [vmem:[#allocation2 + $0x8] sm:$0xff]
        %v258 = vld [vmem:[%s209] sm:$0xff]
        %v259 = vld [vmem:[%s209 + $0x8] sm:$0xf]
        %v260 = vld [vmem:[%s209 + $0xc] sm:$0xff]
        %v261 = vld [vmem:[%s209 + $0x14] sm:$0xf]
        %v262 = vld [vmem:[%s241] sm:$0xf]
        %v263 = vld [vmem:[%s241 + $0x4] sm:$0xf]
        %v264 = vld [vmem:[%s241 + $0x8] sm:$0xf]
        %v265 = vld [vmem:[%s241 + $0xc] sm:$0xf]
        %v266 = vld [vmem:[%s241 + $0x10] sm:$0xf]
        %v267 = vld [vmem:[%s241 + $0x14] sm:$0xf]
        %v268 = vld [vmem:[%s241 + $0x18] sm:$0xf]
        %v269 = vld [vmem:[%s241 + $0x1c] sm:$0xf]
        %v270 = vld [vmem:[%s241 + $0x20] sm:$0xf]
        %v271 = vld [vmem:[%s241 + $0x24] sm:$0xf]
        %v272 = vld [vmem:[%s241 + $0x28] sm:$0xf]
        %v273 = vld [vmem:[%s241 + $0x2c] sm:$0xf]
        %v274 = vld [vmem:[%s241 + $0x30] sm:$0xf]
        %v275 = vld [vmem:[%s241 + $0x34] sm:$0xf]
        %v276 = vld [vmem:[%s241 + $0x38] sm:$0xf]
        %v277 = vld [vmem:[%s241 + $0x3c] sm:$0xf]
        %v278 = vld [vmem:[%s241 + $0x40] sm:$0xf]
        %v279 = vld [vmem:[%s241 + $0x44] sm:$0xf]
        %v280 = vld [vmem:[%s241 + $0x48] sm:$0xf]
        %v281 = vld [vmem:[%s241 + $0x4c] sm:$0xf]
        %v282 = vld [vmem:[%s241 + $0x50] sm:$0xf]
        %v283 = vld [vmem:[%s241 + $0x54] sm:$0xf]
        %v284 = vld [vmem:[%s241 + $0x58] sm:$0xf]
        %v285 = vld [vmem:[%s241 + $0x5c] sm:$0xf]
        %v286 = vld [vmem:[%s241 + $0x60] sm:$0xf]
        %v287 = vld [vmem:[%s241 + $0x64] sm:$0xf]
        %v288 = vld [vmem:[%s241 + $0x68] sm:$0xf]
        %v289 = vld [vmem:[%s241 + $0x6c] sm:$0xf]
        %v290 = vld [vmem:[%s241 + $0x70] sm:$0xf]
        %v291 = vld [vmem:[%s241 + $0x74] sm:$0xf]
        %v292 = vld [vmem:[%s241 + $0x78] sm:$0xf]
        %v293 = vld [vmem:[%s241 + $0x7c] sm:$0xf]
        %v294 = vld [vmem:[%s241 + $0x80] sm:$0xf]
        %v295 = vld [vmem:[%s241 + $0x84] sm:$0xf]
        %v296 = vld [vmem:[%s241 + $0x88] sm:$0xf]
        %v297 = vld [vmem:[%s241 + $0x8c] sm:$0xf]
        %v298 = vld [vmem:[%s241 + $0x90] sm:$0xf]
        %v299 = vld [vmem:[%s241 + $0x94] sm:$0xf]
        %v300 = vld [vmem:[%s241 + $0x98] sm:$0xf]
        %v301 = vld [vmem:[%s241 + $0x9c] sm:$0xf]
        %v302 = vld [vmem:[%s241 + $0xa0] sm:$0xf]
        %v303 = vld [vmem:[%s241 + $0xa4] sm:$0xf]
        %v304 = vld [vmem:[%s241 + $0xa8] sm:$0xf]
        %v305 = vld [vmem:[%s241 + $0xac] sm:$0xf]
        %v306 = vld [vmem:[%s241 + $0xb0] sm:$0xf]
        %v307 = vld [vmem:[%s241 + $0xb4] sm:$0xf]
        %v308 = vld [vmem:[%s241 + $0xb8] sm:$0xf]
        %v309 = vld [vmem:[%s241 + $0xbc] sm:$0xf]
        %v314 = vunpack.c.l.b16 %v258
        %v315 = vunpack.c.h.b16 %v258
        %v316 = vunpack.c.l.b16 %v259
        %v317 = vunpack.c.l.b16 %v260
        %v318 = vunpack.c.h.b16 %v260
        %v319 = vunpack.c.l.b16 %v261
        %v320 = vpack.c.b16 %v317, %v314
        %v321 = vpack.c.b16 %v318, %v315
        %v322 = vpack.c.b16 %v319, %v316
        %v374 = vunpack.c.l.b16 %v262
        %v375 = vunpack.c.l.b16 %v263
        %v376 = vunpack.c.l.b16 %v264
        %v377 = vunpack.c.l.b16 %v265
        %v378 = vunpack.c.l.b16 %v266
        %v379 = vunpack.c.l.b16 %v267
        %v380 = vunpack.c.l.b16 %v268
        %v381 = vunpack.c.l.b16 %v269
        %v382 = vunpack.c.l.b16 %v270
        %v383 = vunpack.c.l.b16 %v271
        %v384 = vunpack.c.l.b16 %v272
        %v385 = vunpack.c.l.b16 %v273
        %v386 = vunpack.c.l.b16 %v274
        %v387 = vunpack.c.l.b16 %v275
        %v388 = vunpack.c.l.b16 %v276
        %v389 = vunpack.c.l.b16 %v277
        %v390 = vunpack.c.l.b16 %v278
        %v391 = vunpack.c.l.b16 %v279
        %v392 = vunpack.c.l.b16 %v280
        %v393 = vunpack.c.l.b16 %v281
        %v394 = vunpack.c.l.b16 %v282
        %v395 = vunpack.c.l.b16 %v283
        %v396 = vunpack.c.l.b16 %v284
        %v397 = vunpack.c.l.b16 %v285
        %v398 = vunpack.c.l.b16 %v286
        %v399 = vunpack.c.l.b16 %v287
        %v400 = vunpack.c.l.b16 %v288
        %v401 = vunpack.c.l.b16 %v289
        %v402 = vunpack.c.l.b16 %v290
        %v403 = vunpack.c.l.b16 %v291
        %v404 = vunpack.c.l.b16 %v292
        %v405 = vunpack.c.l.b16 %v293
        %v406 = vunpack.c.l.b16 %v294
        %v407 = vunpack.c.l.b16 %v295
        %v408 = vunpack.c.l.b16 %v296
        %v409 = vunpack.c.l.b16 %v297
        %v410 = vunpack.c.l.b16 %v298
        %v411 = vunpack.c.l.b16 %v299
        %v412 = vunpack.c.l.b16 %v300
        %v413 = vunpack.c.l.b16 %v301
        %v414 = vunpack.c.l.b16 %v302
        %v415 = vunpack.c.l.b16 %v303
        %v416 = vunpack.c.l.b16 %v304
        %v417 = vunpack.c.l.b16 %v305
        %v418 = vunpack.c.l.b16 %v306
        %v419 = vunpack.c.l.b16 %v307
        %v420 = vunpack.c.l.b16 %v308
        %v421 = vunpack.c.l.b16 %v309
        %v422 = vpack.c.b16 %v375, %v374
        %v423 = vpack.c.b16 %v377, %v376
        %v424 = vpack.c.b16 %v379, %v378
        %v425 = vpack.c.b16 %v381, %v380
        %v426 = vpack.c.b16 %v383, %v382
        %v427 = vpack.c.b16 %v385, %v384
        %v428 = vpack.c.b16 %v387, %v386
        %v429 = vpack.c.b16 %v389, %v388
        %v430 = vpack.c.b16 %v391, %v390
        %v431 = vpack.c.b16 %v393, %v392
        %v432 = vpack.c.b16 %v395, %v394
        %v433 = vpack.c.b16 %v397, %v396
        %v434 = vpack.c.b16 %v399, %v398
        %v435 = vpack.c.b16 %v401, %v400
        %v436 = vpack.c.b16 %v403, %v402
        %v437 = vpack.c.b16 %v405, %v404
        %v438 = vpack.c.b16 %v407, %v406
        %v439 = vpack.c.b16 %v409, %v408
        %v440 = vpack.c.b16 %v411, %v410
        %v441 = vpack.c.b16 %v413, %v412
        %v442 = vpack.c.b16 %v415, %v414
        %v443 = vpack.c.b16 %v417, %v416
        %v444 = vpack.c.b16 %v419, %v418
        %v445 = vpack.c.b16 %v421, %v420
        %470 = vmatprep.subr.bf16.mxu0 0
        %471 = vmatpush1.bf16.msra.mxu0 %v429
        %472 = vmatprep.subr.bf16.mxu0 0
        %473 = vmatpush1.bf16.msra.mxu0 %v428
        %474 = vmatprep.subr.bf16.mxu0 0
        %475 = vmatpush1.bf16.msra.mxu0 %v427
        %476 = vmatprep.subr.bf16.mxu0 0
        %477 = vmatpush1.bf16.msra.mxu0 %v426
        %478 = vmatprep.subr.bf16.mxu0 0
        %479 = vmatpush1.bf16.msra.mxu0 %v425
        %480 = vmatprep.subr.bf16.mxu0 0
        %481 = vmatpush1.bf16.msra.mxu0 %v424
        %482 = vmatprep.subr.bf16.mxu0 0
        %483 = vmatpush1.bf16.msra.mxu0 %v423
        %484 = vmatprep.subr.bf16.mxu0 0
        %485 = vmatpush1.bf16.msra.mxu0 %v422
        %486 = vmatprep.subr.bf16.mxu0 0
        %487 = vmatpush2.bf16.msra.mxu0 %v437
        %488 = vmatprep.subr.bf16.mxu0 0
        %489 = vmatpush2.bf16.msra.mxu0 %v436
        %490 = vmatprep.subr.bf16.mxu0 0
        %491 = vmatpush2.bf16.msra.mxu0 %v435
        %492 = vmatprep.subr.bf16.mxu0 0
        %493 = vmatpush2.bf16.msra.mxu0 %v434
        %494 = vmatprep.subr.bf16.mxu0 0
        %495 = vmatpush2.bf16.msra.mxu0 %v433
        %496 = vmatprep.subr.bf16.mxu0 0
        %497 = vmatpush2.bf16.msra.mxu0 %v432
        %498 = vmatprep.subr.bf16.mxu0 0
        %499 = vmatpush2.bf16.msra.mxu0 %v431
        %500 = vmatprep.subr.bf16.mxu0 0
        %501 = vmatpush2.bf16.msra.mxu0 %v430
        %502 = vmatprep.mubr.bf16.mxu0 %v321
        %503 = vmatmul.mubr.bf16.gmra.mxu0 %v320
        %v504 = vpop.f32.mrf.mxu0
        %v505 = vadd.f32 0.0, %v504
        %v506 = vpop.f32.mrf.mxu0
        %v507 = vpop.f32.mrf.mxu0
        %v508 = vadd.f32 0.0, %v507
        %v509 = vpop.f32.mrf.mxu0
        %510 = vdwg.mxu0
        %511 = vmatprep.subr.bf16.mxu0 0
        %512 = vmatpush1.bf16.msra.mxu0 %v445
        %513 = vmatprep.subr.bf16.mxu0 0
        %514 = vmatpush1.bf16.msra.mxu0 %v444
        %515 = vmatprep.subr.bf16.mxu0 0
        %516 = vmatpush1.bf16.msra.mxu0 %v443
        %517 = vmatprep.subr.bf16.mxu0 0
        %518 = vmatpush1.bf16.msra.mxu0 %v442
        %519 = vmatprep.subr.bf16.mxu0 0
        %520 = vmatpush1.bf16.msra.mxu0 %v441
        %521 = vmatprep.subr.bf16.mxu0 0
        %522 = vmatpush1.bf16.msra.mxu0 %v440
        %523 = vmatprep.subr.bf16.mxu0 0
        %524 = vmatpush1.bf16.msra.mxu0 %v439
        %525 = vmatprep.subr.bf16.mxu0 0
        %526 = vmatpush1.bf16.msra.mxu0 %v438
        %527 = vmatprep.subr.bf16.mxu0 0
        %528 = vmatpush2.bf16.msra.mxu0 0
        %529 = vmatprep.subr.bf16.mxu0 0
        %530 = vmatpush2.bf16.msra.mxu0 0
        %531 = vmatprep.subr.bf16.mxu0 0
        %532 = vmatpush2.bf16.msra.mxu0 0
        %533 = vmatprep.subr.bf16.mxu0 0
        %534 = vmatpush2.bf16.msra.mxu0 0
        %535 = vmatprep.subr.bf16.mxu0 0
        %536 = vmatpush2.bf16.msra.mxu0 0
        %537 = vmatprep.subr.bf16.mxu0 0
        %538 = vmatpush2.bf16.msra.mxu0 0
        %539 = vmatprep.subr.bf16.mxu0 0
        %540 = vmatpush2.bf16.msra.mxu0 0
        %541 = vmatprep.subr.bf16.mxu0 0
        %542 = vmatpush2.bf16.msra.mxu0 0
        %543 = vmatprep.mubr.bf16.mxu0 0
        %544 = vmatmul.mubr.bf16.gmra.mxu0 %v322
        %v545 = vpop.f32.mrf.mxu0
        %v546 = vadd.f32 %v505, %v545
        %v547 = vpop.f32.mrf.mxu0
        %v548 = vpop.f32.mrf.mxu0
        %v549 = vadd.f32 %v508, %v548
        %v550 = vpop.f32.mrf.mxu0
        %551 = vdwg.mxu0
        %v552 = vadd.f32 %v256, %v546
        %v553 = vadd.f32 %v257, %v549
        %554 = vst [vmem:[#allocation2] sm:$0xff] %v552
        %555 = vst [vmem:[#allocation2 + $0x8] sm:$0xff] %v553
        %p556 = scmp.eq.s32.totalorder %s19, 2
        // Predicated region
        $region63: #{_lambda_.68} parent=53 // pred_check
          %p557 = pneg %p556
        $region64: #{_lambda_.68} parent=53 // pred_check_branch
          %559 = sbr.rel (%p557) target = $region66
        $region65: #{_lambda_.68} parent=53 // pred_region
          %v560 = vld [vmem:[#allocation2] sm:$0xff]
          %v561 = vld [vmem:[#allocation2 + $0x8] sm:$0xff]
          %v562 = vld [vmem:[%s2] sm:$0x1]
          %v564 = vlaneseq
          %v565 = vshrl.u32 %v564, 7
          %v566 = vsub.s32 0, %v565
          %v567 = vrot.slane %v562, %v566
          %v569 = vadd.f32 %v560, %v567
          %v570 = vadd.f32 %v561, %v567
          %v571 = vmax.f32 %v569, 0.0
          %v572 = vmax.f32 %v570, 0.0
          %v573 = vpack.c.bf16 %v572, %v571
          %v575 = vunpack.c.l.b16 %v573
          %v576 = vunpack.c.h.b16 %v573
          %v577 = vpack.c.b16 %v575, %v575
          %v578 = vpack.c.b16 %v576, %v576
          %581 = vst [vmem:[%s247] sm:$0xf] %v577
          %582 = vst [vmem:[%s247 + $0x4] sm:$0xf] %v578
        $region66: #{_lambda_.68} parent=53 // pred_fallthru
          _
        %s583 = smul.u32 2, %s18
        %p584 = scmp.lt.s32.totalorder %s583, 3
        %s585 = scalar_select %p584, %s583, 3
        %s586 = smul.addr %s585, 4
        %s587 = scalar_lea.vmem %s3, %s586
        // Predicated region
        $region67: #{_lambda_.68} parent=53 // pred_check
          %p588 = pneg %p119
        $region68: #{_lambda_.68} parent=53 // pred_check_branch
          %590 = sbr.rel (%p588) target = $region70
        $region69: #{_lambda_.68} parent=53 // pred_region
          %s591 = smul.u32 2, %s18
        $region70: #{_lambda_.68} parent=53 // pred_fallthru
          _
      $region54: #{_lambda_.68} parent=5 // pred_fallthru
        _
      %p592 = scmp.le.s32.totalorder 2, %s9
      // Predicated region
      $region71: #{_lambda_.68} parent=5 // pred_check
        %p593 = pneg %p592
      $region72: #{_lambda_.68} parent=5 // pred_check_branch
        %595 = sbr.rel (%p593) target = $region74
      $region73: #{_lambda_.68} parent=5 // pred_region
        %s596 = ssub.s32 %s9, 2
        // Predicated region
        $region75: #{_lambda_.68} parent=73 // pred_check
          %p597 = pneg %p125
        $region76: #{_lambda_.68} parent=73 // pred_check_branch
          %599 = sbr.rel (%p597) target = $region78
        $region77: #{_lambda_.68} parent=73 // pred_region
          %s600 = smul.u32 2, %s20
          %p601 = scmp.lt.s32.totalorder %s600, 3
          %s602 = scalar_select %p601, %s600, 3
          %s603 = smul.addr %s602, 4
          %s604 = scalar_lea.vmem %s3, %s603
        $region78: #{_lambda_.68} parent=73 // pred_fallthru
          _
      $region74: #{_lambda_.68} parent=5 // pred_fallthru
        _
    $region6: #{_lambda_.68} parent=1 // loop_footer
      %s13 = sadd.s32 1, %s9
    $region7: #{_lambda_.68} parent=1 // loop_footer_branch
      %8 = sbr.rel target = $region3
    $region8: #{_lambda_.68} parent=1 // loop_exit
      _

// kernel: _lambda_.71
$region0: #{_lambda_.71}
  #allocation0 [shape = 'u32[]', space=smem, size = 0x4, offset = 0x4, fixed_abs, tag = 'smem constant byte address 0x4 - core index']
  #allocation1 [shape = 'u32[144,128]{1,0:T(1,128)}', space=vmem, size = 0x12000, scoped, tag = 'internal scratch']
  #allocation2 [shape = 'f32[16,128]{1,0:T(8,128)}', space=vmem, size = 0x2000, scoped, tag = 'scratch operand']
  %s0 = inlined_call_operand.vmem [shape: bf16[32,128], index: 0, kind: input, shape index: {}]
  %s1 = inlined_call_operand.vmem [shape: bf16[128,128], index: 1, kind: input, shape index: {}]
  %s2 = inlined_call_operand.vmem [shape: f32[1,128], index: 2, kind: input, shape index: {}]
  %s3 = inlined_call_operand.vmem [shape: bf16[32,128], index: 3, kind: output, shape index: {}]
  %s4 = sld [smem:[#allocation0]]
  $region53: #{_lambda_.71} parent=0
    _
  %s6 = ssub.s32 1, %s4
  %s7 = scalar_select 0, %s6, %s4
  loop: start=0, step=1, limit=4
  $region2: #{_lambda_.71} parent=0 // loop_pre_header
    _
  $region3: #{_lambda_.71} parent=0 // loop_header
    %s9 = sphi 0, %s13
    %p10 = scmp.ge.s32.totalorder %s9, 4
    %s16 = sphi 0, %s28
    %s17 = sphi 0, %s24
    %s18 = sphi 0, %s16
    %s19 = sphi 0, %s17
    %s20 = sphi 0, %s18
    %s21 = sphi 0, %s19
    %s33 = sphi 0, %s35
    %s36 = sphi 0, %s33
    %s37 = sphi 0, %s36
    %s53 = sphi 0, %s37
    %s59 = sphi 0, %s61
    %s62 = sphi 0, %s59
    %s63 = sphi 0, %s62
    %s79 = sphi 0, %s63
    %s83 = sphi 0, %s83
    %s85 = sphi 0, %s83
    %s86 = sphi 0, %s85
    %s100 = sphi 0, %s86
    %s106 = sphi 0, %s108
    %s109 = sphi 0, %s106
    %s110 = sphi 0, %s109
    %s126 = sphi 0, %s110
  $region4: #{_lambda_.71} parent=0 // loop_header_branch
    %12 = sbr.rel (%p10) target = $region8
  $region5: #{_lambda_.71} parent=0 // loop_body
    %s14 = ssub.s32 %s9, 1
    %s15 = ssub.s32 %s9, 2
    %s22 = sadd.s32 1, %s17
    %p23 = scmp.ge.s32.totalorder %s22, 1
    %s24 = scalar_select %p23, 0, %s22
    %s25 = sadd.s32 1, %s16
    %s26 = scalar_select %p23, %s25, %s16
    %p27 = scmp.ge.s32.totalorder %s26, 2
    %s28 = scalar_select %p27, 0, %s26
    %s29 = ssub.s32 %s16, %s28
    %s30 = ssub.s32 %s17, %s24
    %s31 = sor.u32 %s29, %s30
    %p32 = scmp.eq.s32.totalorder %s31, 0
    %s34 = sadd.s32 %s33, 1
    %s35 = scalar_select %p32, %s33, %s34
    %p38 = pneg %p32
    %p39 = scmp.eq.s32.totalorder %s9, 1
    %p40 = por %p38, %p39
    %p41 = scmp.ne.s32.totalorder %s33, %s36
    %p42 = scmp.eq.s32.totalorder %s9, 0
    %p43 = por %p41, %p42
    %p44 = scmp.ne.s32.totalorder %s33, %s36
    %p45 = scmp.eq.s32.totalorder %s14, 1
    %p46 = por %p44, %p45
    %p47 = scmp.ne.s32.totalorder %s36, %s37
    %p48 = scmp.eq.s32.totalorder %s14, 0
    %p49 = por %p47, %p48
    %p50 = scmp.ne.s32.totalorder %s36, %s37
    %p51 = scmp.eq.s32.totalorder %s15, 1
    %p52 = por %p50, %p51
    %p54 = scmp.ne.s32.totalorder %s37, %s53
    %p55 = scmp.eq.s32.totalorder %s15, 0
    %p56 = por %p54, %p55
    %s57 = ssub.s32 %s17, %s24
    %p58 = scmp.eq.s32.totalorder %s57, 0
    %s60 = sadd.s32 %s59, 1
    %s61 = scalar_select %p58, %s59, %s60
    %p64 = pneg %p58
    %p65 = scmp.eq.s32.totalorder %s9, 1
    %p66 = por %p64, %p65
    %p67 = scmp.ne.s32.totalorder %s59, %s62
    %p68 = scmp.eq.s32.totalorder %s9, 0
    %p69 = por %p67, %p68
    %p70 = scmp.ne.s32.totalorder %s59, %s62
    %p71 = scmp.eq.s32.totalorder %s14, 1
    %p72 = por %p70, %p71
    %p73 = scmp.ne.s32.totalorder %s62, %s63
    %p74 = scmp.eq.s32.totalorder %s14, 0
    %p75 = por %p73, %p74
    %p76 = scmp.ne.s32.totalorder %s62, %s63
    %p77 = scmp.eq.s32.totalorder %s15, 1
    %p78 = por %p76, %p77
    %p80 = scmp.ne.s32.totalorder %s63, %s79
    %p81 = scmp.eq.s32.totalorder %s15, 0
    %p82 = por %p80, %p81
    %s84 = sadd.s32 %s83, 1
    %p87 = scmp.eq.s32.totalorder %s9, 1
    %p88 = scmp.ne.s32.totalorder %s83, %s85
    %p89 = scmp.eq.s32.totalorder %s9, 0
    %p90 = por %p88, %p89
    %p91 = scmp.ne.s32.totalorder %s83, %s85
    %p92 = scmp.eq.s32.totalorder %s14, 1
    %p93 = por %p91, %p92
    %p94 = scmp.ne.s32.totalorder %s85, %s86
    %p95 = scmp.eq.s32.totalorder %s14, 0
    %p96 = por %p94, %p95
    %p97 = scmp.ne.s32.totalorder %s85, %s86
    %p98 = scmp.eq.s32.totalorder %s15, 1
    %p99 = por %p97, %p98
    %p101 = scmp.ne.s32.totalorder %s86, %s100
    %p102 = scmp.eq.s32.totalorder %s15, 0
    %p103 = por %p101, %p102
    %s104 = ssub.s32 %s16, %s28
    %p105 = scmp.eq.s32.totalorder %s104, 0
    %s107 = sadd.s32 %s106, 1
    %s108 = scalar_select %p105, %s106, %s107
    %p111 = pneg %p105
    %p112 = scmp.eq.s32.totalorder %s9, 1
    %p113 = por %p111, %p112
    %p114 = scmp.ne.s32.totalorder %s106, %s109
    %p115 = scmp.eq.s32.totalorder %s9, 0
    %p116 = por %p114, %p115
    %p117 = scmp.ne.s32.totalorder %s106, %s109
    %p118 = scmp.eq.s32.totalorder %s14, 1
    %p119 = por %p117, %p118
    %p120 = scmp.ne.s32.totalorder %s109, %s110
    %p121 = scmp.eq.s32.totalorder %s14, 0
    %p122 = por %p120, %p121
    %p123 = scmp.ne.s32.totalorder %s109, %s110
    %p124 = scmp.eq.s32.totalorder %s15, 1
    %p125 = por %p123, %p124
    %p127 = scmp.ne.s32.totalorder %s110, %s126
    %p128 = scmp.eq.s32.totalorder %s15, 0
    %p129 = por %p127, %p128
    %p130 = scmp.le.s32.totalorder 1, %s9
    %p131 = scmp.lt.s32.totalorder %s9, 3
    %p132 = pnand %p130, %p131
    %p133 = pneg %p132
    // Predicated region
    $region9: #{_lambda_.71} parent=5 // pred_check
      _
    $region10: #{_lambda_.71} parent=5 // pred_check_branch
      %135 = sbr.rel (%p132) target = $region12
    $region11: #{_lambda_.71} parent=5 // pred_region
      %s136 = ssub.s32 %s9, 1
      // Predicated region
      $region13: #{_lambda_.71} parent=11 // pred_check
        %p137 = pneg %p75
      $region14: #{_lambda_.71} parent=11 // pred_check_branch
        %139 = sbr.rel (%p137) target = $region16
      $region15: #{_lambda_.71} parent=11 // pred_region
        %s140 = smul.u32 16, %s19
        %p141 = scmp.lt.s32.totalorder %s140, 15
        %s142 = scalar_select %p141, %s140, 15
        %s143 = smul.addr %s142, 4
        %s144 = scalar_lea.vmem %s1, %s143
        %s145 = smul.u32 16, %s19
      $region16: #{_lambda_.71} parent=11 // pred_fallthru
        _
      // Predicated region
      $region17: #{_lambda_.71} parent=11 // pred_check
        %p146 = pneg %p96
      $region18: #{_lambda_.71} parent=11 // pred_check_branch
        %148 = sbr.rel (%p146) target = $region20
      $region19: #{_lambda_.71} parent=11 // pred_region
        _
      $region20: #{_lambda_.71} parent=11 // pred_fallthru
        _
    $region12: #{_lambda_.71} parent=5 // pred_fallthru
      _
    %p149 = scmp.lt.s32.totalorder %s9, 2
    // Predicated region
    $region21: #{_lambda_.71} parent=5 // pred_check
      %p150 = pneg %p149
    $region22: #{_lambda_.71} parent=5 // pred_check_branch
      %152 = sbr.rel (%p150) target = $region24
    $region23: #{_lambda_.71} parent=5 // pred_region
      // Predicated region
      $region25: #{_lambda_.71} parent=23 // pred_check
        %p153 = pneg %p43
      $region26: #{_lambda_.71} parent=23 // pred_check_branch
        %155 = sbr.rel (%p153) target = $region28
      $region27: #{_lambda_.71} parent=23 // pred_region
        %s156 = smul.u32 2, %s16
        %p157 = scmp.lt.s32.totalorder %s156, 3
        %s158 = scalar_select %p157, %s156, 3
        %p159 = scmp.lt.s32.totalorder %s17, 0
        %s160 = scalar_select %p159, %s17, 0
        %s161 = sadd.s32 %s160, %s158
        %s162 = smul.addr %s161, 4
        %s163 = scalar_lea.vmem %s0, %s162
        %s164 = smul.u32 2, %s16
      $region28: #{_lambda_.71} parent=23 // pred_fallthru
        _
    $region24: #{_lambda_.71} parent=5 // pred_fallthru
      _
    %p165 = scmp.le.s32.totalorder 1, %s9
    %p166 = scmp.lt.s32.totalorder %s9, 3
    %p167 = pnand %p165, %p166
    %p168 = pneg %p167
    // Predicated region
    $region29: #{_lambda_.71} parent=5 // pred_check
      _
    $region30: #{_lambda_.71} parent=5 // pred_check_branch
      %170 = sbr.rel (%p167) target = $region32
    $region31: #{_lambda_.71} parent=5 // pred_region
      %s171 = ssub.s32 %s9, 1
      %s172 = smul.u32 2, %s18
      %p173 = scmp.lt.s32.totalorder %s172, 3
      %s174 = scalar_select %p173, %s172, 3
      %p175 = scmp.lt.s32.totalorder %s19, 0
      %s176 = scalar_select %p175, %s19, 0
      %s177 = sadd.s32 %s176, %s174
      %s178 = smul.addr %s177, 4
      %s179 = scalar_lea.vmem %s0, %s178
      %p180 = pneg %p49
      %p181 = pneg %p46
      %s182 = smul.u32 16, %s19
      %p183 = scmp.lt.s32.totalorder %s182, 15
      %s184 = scalar_select %p183, %s182, 15
      %s185 = smul.addr %s184, 4
      %s186 = scalar_lea.vmem %s1, %s185
      %p187 = pneg %p75
      %p188 = pneg %p72
      %p189 = pneg %p96
      %p190 = pneg %p93
      %p191 = pneg %p122
      %p192 = pneg %p119
      %s193 = smul.u32 2, %s18
      %p194 = scmp.lt.s32.totalorder %s193, 3
      %s195 = scalar_select %p194, %s193, 3
      %s196 = smul.addr %s195, 4
      %s197 = scalar_lea.vmem %s3, %s196
      %s198 = smul.u32 2, %s18
      %p199 = scmp.lt.s32.totalorder %s198, 3
      %s200 = scalar_select %p199, %s198, 3
      %p201 = scmp.lt.s32.totalorder %s19, 0
      %s202 = scalar_select %p201, %s19, 0
      %s203 = sadd.s32 %s202, %s200
      %s204 = smul.addr %s203, 4
      %s205 = scalar_lea.vmem %s0, %s204
      %s206 = smul.u32 2, %s18
      %s207 = smul.u32 16, %s19
      %p208 = scmp.lt.s32.totalorder %s207, 15
      %s209 = scalar_select %p208, %s207, 15
      %s210 = smul.addr %s209, 4
      %s211 = scalar_lea.vmem %s1, %s210
      %s212 = smul.u32 16, %s19
      %s213 = smul.u32 2, %s18
      %p214 = scmp.lt.s32.totalorder %s213, 3
      %s215 = scalar_select %p214, %s213, 3
      %s216 = smul.addr %s215, 4
      %s217 = scalar_lea.vmem %s3, %s216
      %s218 = smul.u32 2, %s18
      %p220 = scmp.eq.s32.totalorder %s19, 0
      // Predicated region
      $region33: #{_lambda_.71} parent=31 // pred_check
        %p221 = pneg %p220
      $region34: #{_lambda_.71} parent=31 // pred_check_branch
        %223 = sbr.rel (%p221) target = $region36
      $region35: #{_lambda_.71} parent=31 // pred_region
        %224 = vst [vmem:[#allocation2] sm:$0xff] 0.0
        %225 = vst [vmem:[#allocation2 + $0x8] sm:$0xff] 0.0
      $region36: #{_lambda_.71} parent=31 // pred_fallthru
        _
      %v226 = vld [vmem:[#allocation2] sm:$0xff]
      %v227 = vld [vmem:[#allocation2 + $0x8] sm:$0xff]
      %v228 = vld [vmem:[%s205] sm:$0xf]
      %v229 = vld [vmem:[%s205 + $0x4] sm:$0xf]
      %v230 = vld [vmem:[%s211] sm:$0xf]
      %v231 = vld [vmem:[%s211 + $0x4] sm:$0xf]
      %v232 = vld [vmem:[%s211 + $0x8] sm:$0xf]
      %v233 = vld [vmem:[%s211 + $0xc] sm:$0xf]
      %v234 = vld [vmem:[%s211 + $0x10] sm:$0xf]
      %v235 = vld [vmem:[%s211 + $0x14] sm:$0xf]
      %v236 = vld [vmem:[%s211 + $0x18] sm:$0xf]
      %v237 = vld [vmem:[%s211 + $0x1c] sm:$0xf]
      %v238 = vld [vmem:[%s211 + $0x20] sm:$0xf]
      %v239 = vld [vmem:[%s211 + $0x24] sm:$0xf]
      %v240 = vld [vmem:[%s211 + $0x28] sm:$0xf]
      %v241 = vld [vmem:[%s211 + $0x2c] sm:$0xf]
      %v242 = vld [vmem:[%s211 + $0x30] sm:$0xf]
      %v243 = vld [vmem:[%s211 + $0x34] sm:$0xf]
      %v244 = vld [vmem:[%s211 + $0x38] sm:$0xf]
      %v245 = vld [vmem:[%s211 + $0x3c] sm:$0xf]
      %v248 = vunpack.c.l.b16 %v228
      %v249 = vunpack.c.l.b16 %v229
      %v250 = vpack.c.b16 %v249, %v248
      %v268 = vunpack.c.l.b16 %v230
      %v269 = vunpack.c.l.b16 %v231
      %v270 = vunpack.c.l.b16 %v232
      %v271 = vunpack.c.l.b16 %v233
      %v272 = vunpack.c.l.b16 %v234
      %v273 = vunpack.c.l.b16 %v235
      %v274 = vunpack.c.l.b16 %v236
      %v275 = vunpack.c.l.b16 %v237
      %v276 = vunpack.c.l.b16 %v238
      %v277 = vunpack.c.l.b16 %v239
      %v278 = vunpack.c.l.b16 %v240
      %v279 = vunpack.c.l.b16 %v241
      %v280 = vunpack.c.l.b16 %v242
      %v281 = vunpack.c.l.b16 %v243
      %v282 = vunpack.c.l.b16 %v244
      %v283 = vunpack.c.l.b16 %v245
      %v284 = vpack.c.b16 %v269, %v268
      %v285 = vpack.c.b16 %v271, %v270
      %v286 = vpack.c.b16 %v273, %v272
      %v287 = vpack.c.b16 %v275, %v274
      %v288 = vpack.c.b16 %v277, %v276
      %v289 = vpack.c.b16 %v279, %v278
      %v290 = vpack.c.b16 %v281, %v280
      %v291 = vpack.c.b16 %v283, %v282
      %300 = vmatprep.subr.bf16.mxu0 0
      %301 = vmatpush1.bf16.msra.mxu0 %v291
      %302 = vmatprep.subr.bf16.mxu0 0
      %303 = vmatpush1.bf16.msra.mxu0 %v290
      %304 = vmatprep.subr.bf16.mxu0 0
      %305 = vmatpush1.bf16.msra.mxu0 %v289
      %306 = vmatprep.subr.bf16.mxu0 0
      %307 = vmatpush1.bf16.msra.mxu0 %v288
      %308 = vmatprep.subr.bf16.mxu0 0
      %309 = vmatpush1.bf16.msra.mxu0 %v287
      %310 = vmatprep.subr.bf16.mxu0 0
      %311 = vmatpush1.bf16.msra.mxu0 %v286
      %312 = vmatprep.subr.bf16.mxu0 0
      %313 = vmatpush1.bf16.msra.mxu0 %v285
      %314 = vmatprep.subr.bf16.mxu0 0
      %315 = vmatpush1.bf16.msra.mxu0 %v284
      %316 = vmatprep.subr.bf16.mxu0 0
      %317 = vmatpush2.bf16.msra.mxu0 0
      %318 = vmatprep.subr.bf16.mxu0 0
      %319 = vmatpush2.bf16.msra.mxu0 0
      %320 = vmatprep.subr.bf16.mxu0 0
      %321 = vmatpush2.bf16.msra.mxu0 0
      %322 = vmatprep.subr.bf16.mxu0 0
      %323 = vmatpush2.bf16.msra.mxu0 0
      %324 = vmatprep.subr.bf16.mxu0 0
      %325 = vmatpush2.bf16.msra.mxu0 0
      %326 = vmatprep.subr.bf16.mxu0 0
      %327 = vmatpush2.bf16.msra.mxu0 0
      %328 = vmatprep.subr.bf16.mxu0 0
      %329 = vmatpush2.bf16.msra.mxu0 0
      %330 = vmatprep.subr.bf16.mxu0 0
      %331 = vmatpush2.bf16.msra.mxu0 0
      %332 = vmatprep.mubr.bf16.mxu0 0
      %333 = vmatmul.mubr.bf16.gmra.mxu0 %v250
      %v334 = vpop.f32.mrf.mxu0
      %v335 = vadd.f32 0.0, %v334
      %v336 = vpop.f32.mrf.mxu0
      %v337 = vpop.f32.mrf.mxu0
      %v338 = vadd.f32 0.0, %v337
      %v339 = vpop.f32.mrf.mxu0
      %340 = vdwg.mxu0
      %v341 = vadd.f32 %v226, %v335
      %v342 = vadd.f32 %v227, %v338
      %343 = vst [vmem:[#allocation2] sm:$0xff] %v341
      %344 = vst [vmem:[#allocation2 + $0x8] sm:$0xff] %v342
      // Predicated region
      $region37: #{_lambda_.71} parent=31 // pred_check
        %p345 = pneg %p220
      $region38: #{_lambda_.71} parent=31 // pred_check_branch
        %347 = sbr.rel (%p345) target = $region40
      $region39: #{_lambda_.71} parent=31 // pred_region
        %v348 = vld [vmem:[#allocation2] sm:$0xff]
        %v349 = vld [vmem:[#allocation2 + $0x8] sm:$0xff]
        %v350 = vld [vmem:[%s2] sm:$0x1]
        %v352 = vlaneseq
        %v353 = vshrl.u32 %v352, 7
        %v354 = vsub.s32 0, %v353
        %v355 = vrot.slane %v350, %v354
        %v357 = vadd.f32 %v348, %v355
        %v358 = vadd.f32 %v349, %v355
        %v359 = vmax.f32 %v357, 0.0
        %v360 = vmax.f32 %v358, 0.0
        %v361 = vpack.c.bf16 %v360, %v359
        %v363 = vunpack.c.l.b16 %v361
        %v364 = vunpack.c.h.b16 %v361
        %v365 = vpack.c.b16 %v363, %v363
        %v366 = vpack.c.b16 %v364, %v364
        %369 = vst [vmem:[%s217] sm:$0xf] %v365
        %370 = vst [vmem:[%s217 + $0x4] sm:$0xf] %v366
      $region40: #{_lambda_.71} parent=31 // pred_fallthru
        _
      %s371 = smul.u32 2, %s18
      %p372 = scmp.lt.s32.totalorder %s371, 3
      %s373 = scalar_select %p372, %s371, 3
      %s374 = smul.addr %s373, 4
      %s375 = scalar_lea.vmem %s3, %s374
      // Predicated region
      $region41: #{_lambda_.71} parent=31 // pred_check
        %p376 = pneg %p119
      $region42: #{_lambda_.71} parent=31 // pred_check_branch
        %378 = sbr.rel (%p376) target = $region44
      $region43: #{_lambda_.71} parent=31 // pred_region
        %s379 = smul.u32 2, %s18
      $region44: #{_lambda_.71} parent=31 // pred_fallthru
        _
    $region32: #{_lambda_.71} parent=5 // pred_fallthru
      _
    %p380 = scmp.le.s32.totalorder 2, %s9
    // Predicated region
    $region45: #{_lambda_.71} parent=5 // pred_check
      %p381 = pneg %p380
    $region46: #{_lambda_.71} parent=5 // pred_check_branch
      %383 = sbr.rel (%p381) target = $region48
    $region47: #{_lambda_.71} parent=5 // pred_region
      %s384 = ssub.s32 %s9, 2
      // Predicated region
      $region49: #{_lambda_.71} parent=47 // pred_check
        %p385 = pneg %p125
      $region50: #{_lambda_.71} parent=47 // pred_check_branch
        %387 = sbr.rel (%p385) target = $region52
      $region51: #{_lambda_.71} parent=47 // pred_region
        %s388 = smul.u32 2, %s20
        %p389 = scmp.lt.s32.totalorder %s388, 3
        %s390 = scalar_select %p389, %s388, 3
        %s391 = smul.addr %s390, 4
        %s392 = scalar_lea.vmem %s3, %s391
      $region52: #{_lambda_.71} parent=47 // pred_fallthru
        _
    $region48: #{_lambda_.71} parent=5 // pred_fallthru
      _
  $region6: #{_lambda_.71} parent=0 // loop_footer
    %s13 = sadd.s32 1, %s9
  $region7: #{_lambda_.71} parent=0 // loop_footer_branch
    %8 = sbr.rel target = $region3
  $region8: #{_lambda_.71} parent=0 // loop_exit
    _

// kernel: _lambda_.69
$region0: #{_lambda_.69}
  #allocation0 [shape = 'u32[]', space=smem, size = 0x4, offset = 0x4, fixed_abs, tag = 'smem constant byte address 0x4 - core index']
  #allocation1 [shape = 'u32[144,128]{1,0:T(1,128)}', space=vmem, size = 0x12000, scoped, tag = 'internal scratch']
  #allocation2 [shape = 'f32[16,128]{1,0:T(8,128)}', space=vmem, size = 0x2000, scoped, tag = 'scratch operand']
  %s0 = inlined_call_operand.vmem [shape: bf16[32,128], index: 0, kind: input, shape index: {}]
  %s1 = inlined_call_operand.vmem [shape: bf16[128,128], index: 1, kind: input, shape index: {}]
  %s2 = inlined_call_operand.vmem [shape: f32[1,128], index: 2, kind: input, shape index: {}]
  %s3 = inlined_call_operand.vmem [shape: bf16[32,128], index: 3, kind: output, shape index: {}]
  %s4 = sld [smem:[#allocation0]]
  $region53: #{_lambda_.69} parent=0
    _
  %s6 = ssub.s32 1, %s4
  %s7 = scalar_select 0, %s6, %s4
  loop: start=0, step=1, limit=4
  $region2: #{_lambda_.69} parent=0 // loop_pre_header
    _
  $region3: #{_lambda_.69} parent=0 // loop_header
    %s9 = sphi 0, %s13
    %p10 = scmp.ge.s32.totalorder %s9, 4
    %s16 = sphi 0, %s28
    %s17 = sphi 0, %s24
    %s18 = sphi 0, %s16
    %s19 = sphi 0, %s17
    %s20 = sphi 0, %s18
    %s21 = sphi 0, %s19
    %s33 = sphi 0, %s35
    %s36 = sphi 0, %s33
    %s37 = sphi 0, %s36
    %s53 = sphi 0, %s37
    %s59 = sphi 0, %s61
    %s62 = sphi 0, %s59
    %s63 = sphi 0, %s62
    %s79 = sphi 0, %s63
    %s83 = sphi 0, %s83
    %s85 = sphi 0, %s83
    %s86 = sphi 0, %s85
    %s100 = sphi 0, %s86
    %s106 = sphi 0, %s108
    %s109 = sphi 0, %s106
    %s110 = sphi 0, %s109
    %s126 = sphi 0, %s110
  $region4: #{_lambda_.69} parent=0 // loop_header_branch
    %12 = sbr.rel (%p10) target = $region8
  $region5: #{_lambda_.69} parent=0 // loop_body
    %s14 = ssub.s32 %s9, 1
    %s15 = ssub.s32 %s9, 2
    %s22 = sadd.s32 1, %s17
    %p23 = scmp.ge.s32.totalorder %s22, 1
    %s24 = scalar_select %p23, 0, %s22
    %s25 = sadd.s32 1, %s16
    %s26 = scalar_select %p23, %s25, %s16
    %p27 = scmp.ge.s32.totalorder %s26, 2
    %s28 = scalar_select %p27, 0, %s26
    %s29 = ssub.s32 %s16, %s28
    %s30 = ssub.s32 %s17, %s24
    %s31 = sor.u32 %s29, %s30
    %p32 = scmp.eq.s32.totalorder %s31, 0
    %s34 = sadd.s32 %s33, 1
    %s35 = scalar_select %p32, %s33, %s34
    %p38 = pneg %p32
    %p39 = scmp.eq.s32.totalorder %s9, 1
    %p40 = por %p38, %p39
    %p41 = scmp.ne.s32.totalorder %s33, %s36
    %p42 = scmp.eq.s32.totalorder %s9, 0
    %p43 = por %p41, %p42
    %p44 = scmp.ne.s32.totalorder %s33, %s36
    %p45 = scmp.eq.s32.totalorder %s14, 1
    %p46 = por %p44, %p45
    %p47 = scmp.ne.s32.totalorder %s36, %s37
    %p48 = scmp.eq.s32.totalorder %s14, 0
    %p49 = por %p47, %p48
    %p50 = scmp.ne.s32.totalorder %s36, %s37
    %p51 = scmp.eq.s32.totalorder %s15, 1
    %p52 = por %p50, %p51
    %p54 = scmp.ne.s32.totalorder %s37, %s53
    %p55 = scmp.eq.s32.totalorder %s15, 0
    %p56 = por %p54, %p55
    %s57 = ssub.s32 %s17, %s24
    %p58 = scmp.eq.s32.totalorder %s57, 0
    %s60 = sadd.s32 %s59, 1
    %s61 = scalar_select %p58, %s59, %s60
    %p64 = pneg %p58
    %p65 = scmp.eq.s32.totalorder %s9, 1
    %p66 = por %p64, %p65
    %p67 = scmp.ne.s32.totalorder %s59, %s62
    %p68 = scmp.eq.s32.totalorder %s9, 0
    %p69 = por %p67, %p68
    %p70 = scmp.ne.s32.totalorder %s59, %s62
    %p71 = scmp.eq.s32.totalorder %s14, 1
    %p72 = por %p70, %p71
    %p73 = scmp.ne.s32.totalorder %s62, %s63
    %p74 = scmp.eq.s32.totalorder %s14, 0
    %p75 = por %p73, %p74
    %p76 = scmp.ne.s32.totalorder %s62, %s63
    %p77 = scmp.eq.s32.totalorder %s15, 1
    %p78 = por %p76, %p77
    %p80 = scmp.ne.s32.totalorder %s63, %s79
    %p81 = scmp.eq.s32.totalorder %s15, 0
    %p82 = por %p80, %p81
    %s84 = sadd.s32 %s83, 1
    %p87 = scmp.eq.s32.totalorder %s9, 1
    %p88 = scmp.ne.s32.totalorder %s83, %s85
    %p89 = scmp.eq.s32.totalorder %s9, 0
    %p90 = por %p88, %p89
    %p91 = scmp.ne.s32.totalorder %s83, %s85
    %p92 = scmp.eq.s32.totalorder %s14, 1
    %p93 = por %p91, %p92
    %p94 = scmp.ne.s32.totalorder %s85, %s86
    %p95 = scmp.eq.s32.totalorder %s14, 0
    %p96 = por %p94, %p95
    %p97 = scmp.ne.s32.totalorder %s85, %s86
    %p98 = scmp.eq.s32.totalorder %s15, 1
    %p99 = por %p97, %p98
    %p101 = scmp.ne.s32.totalorder %s86, %s100
    %p102 = scmp.eq.s32.totalorder %s15, 0
    %p103 = por %p101, %p102
    %s104 = ssub.s32 %s16, %s28
    %p105 = scmp.eq.s32.totalorder %s104, 0
    %s107 = sadd.s32 %s106, 1
    %s108 = scalar_select %p105, %s106, %s107
    %p111 = pneg %p105
    %p112 = scmp.eq.s32.totalorder %s9, 1
    %p113 = por %p111, %p112
    %p114 = scmp.ne.s32.totalorder %s106, %s109
    %p115 = scmp.eq.s32.totalorder %s9, 0
    %p116 = por %p114, %p115
    %p117 = scmp.ne.s32.totalorder %s106, %s109
    %p118 = scmp.eq.s32.totalorder %s14, 1
    %p119 = por %p117, %p118
    %p120 = scmp.ne.s32.totalorder %s109, %s110
    %p121 = scmp.eq.s32.totalorder %s14, 0
    %p122 = por %p120, %p121
    %p123 = scmp.ne.s32.totalorder %s109, %s110
    %p124 = scmp.eq.s32.totalorder %s15, 1
    %p125 = por %p123, %p124
    %p127 = scmp.ne.s32.totalorder %s110, %s126
    %p128 = scmp.eq.s32.totalorder %s15, 0
    %p129 = por %p127, %p128
    %p130 = scmp.le.s32.totalorder 1, %s9
    %p131 = scmp.lt.s32.totalorder %s9, 3
    %p132 = pnand %p130, %p131
    %p133 = pneg %p132
    // Predicated region
    $region9: #{_lambda_.69} parent=5 // pred_check
      _
    $region10: #{_lambda_.69} parent=5 // pred_check_branch
      %135 = sbr.rel (%p132) target = $region12
    $region11: #{_lambda_.69} parent=5 // pred_region
      %s136 = ssub.s32 %s9, 1
      // Predicated region
      $region13: #{_lambda_.69} parent=11 // pred_check
        %p137 = pneg %p75
      $region14: #{_lambda_.69} parent=11 // pred_check_branch
        %139 = sbr.rel (%p137) target = $region16
      $region15: #{_lambda_.69} parent=11 // pred_region
        %s140 = smul.u32 16, %s19
        %p141 = scmp.lt.s32.totalorder %s140, 15
        %s142 = scalar_select %p141, %s140, 15
        %s143 = smul.addr %s142, 4
        %s144 = scalar_lea.vmem %s1, %s143
        %s145 = smul.u32 16, %s19
      $region16: #{_lambda_.69} parent=11 // pred_fallthru
        _
      // Predicated region
      $region17: #{_lambda_.69} parent=11 // pred_check
        %p146 = pneg %p96
      $region18: #{_lambda_.69} parent=11 // pred_check_branch
        %148 = sbr.rel (%p146) target = $region20
      $region19: #{_lambda_.69} parent=11 // pred_region
        _
      $region20: #{_lambda_.69} parent=11 // pred_fallthru
        _
    $region12: #{_lambda_.69} parent=5 // pred_fallthru
      _
    %p149 = scmp.lt.s32.totalorder %s9, 2
    // Predicated region
    $region21: #{_lambda_.69} parent=5 // pred_check
      %p150 = pneg %p149
    $region22: #{_lambda_.69} parent=5 // pred_check_branch
      %152 = sbr.rel (%p150) target = $region24
    $region23: #{_lambda_.69} parent=5 // pred_region
      // Predicated region
      $region25: #{_lambda_.69} parent=23 // pred_check
        %p153 = pneg %p43
      $region26: #{_lambda_.69} parent=23 // pred_check_branch
        %155 = sbr.rel (%p153) target = $region28
      $region27: #{_lambda_.69} parent=23 // pred_region
        %s156 = smul.u32 2, %s16
        %p157 = scmp.lt.s32.totalorder %s156, 3
        %s158 = scalar_select %p157, %s156, 3
        %p159 = scmp.lt.s32.totalorder %s17, 0
        %s160 = scalar_select %p159, %s17, 0
        %s161 = sadd.s32 %s160, %s158
        %s162 = smul.addr %s161, 4
        %s163 = scalar_lea.vmem %s0, %s162
        %s164 = smul.u32 2, %s16
      $region28: #{_lambda_.69} parent=23 // pred_fallthru
        _
    $region24: #{_lambda_.69} parent=5 // pred_fallthru
      _
    %p165 = scmp.le.s32.totalorder 1, %s9
    %p166 = scmp.lt.s32.totalorder %s9, 3
    %p167 = pnand %p165, %p166
    %p168 = pneg %p167
    // Predicated region
    $region29: #{_lambda_.69} parent=5 // pred_check
      _
    $region30: #{_lambda_.69} parent=5 // pred_check_branch
      %170 = sbr.rel (%p167) target = $region32
    $region31: #{_lambda_.69} parent=5 // pred_region
      %s171 = ssub.s32 %s9, 1
      %s172 = smul.u32 2, %s18
      %p173 = scmp.lt.s32.totalorder %s172, 3
      %s174 = scalar_select %p173, %s172, 3
      %p175 = scmp.lt.s32.totalorder %s19, 0
      %s176 = scalar_select %p175, %s19, 0
      %s177 = sadd.s32 %s176, %s174
      %s178 = smul.addr %s177, 4
      %s179 = scalar_lea.vmem %s0, %s178
      %p180 = pneg %p49
      %p181 = pneg %p46
      %s182 = smul.u32 16, %s19
      %p183 = scmp.lt.s32.totalorder %s182, 15
      %s184 = scalar_select %p183, %s182, 15
      %s185 = smul.addr %s184, 4
      %s186 = scalar_lea.vmem %s1, %s185
      %p187 = pneg %p75
      %p188 = pneg %p72
      %p189 = pneg %p96
      %p190 = pneg %p93
      %p191 = pneg %p122
      %p192 = pneg %p119
      %s193 = smul.u32 2, %s18
      %p194 = scmp.lt.s32.totalorder %s193, 3
      %s195 = scalar_select %p194, %s193, 3
      %s196 = smul.addr %s195, 4
      %s197 = scalar_lea.vmem %s3, %s196
      %s198 = smul.u32 2, %s18
      %p199 = scmp.lt.s32.totalorder %s198, 3
      %s200 = scalar_select %p199, %s198, 3
      %p201 = scmp.lt.s32.totalorder %s19, 0
      %s202 = scalar_select %p201, %s19, 0
      %s203 = sadd.s32 %s202, %s200
      %s204 = smul.addr %s203, 4
      %s205 = scalar_lea.vmem %s0, %s204
      %s206 = smul.u32 2, %s18
      %s207 = smul.u32 16, %s19
      %p208 = scmp.lt.s32.totalorder %s207, 15
      %s209 = scalar_select %p208, %s207, 15
      %s210 = smul.addr %s209, 4
      %s211 = scalar_lea.vmem %s1, %s210
      %s212 = smul.u32 16, %s19
      %s213 = smul.u32 2, %s18
      %p214 = scmp.lt.s32.totalorder %s213, 3
      %s215 = scalar_select %p214, %s213, 3
      %s216 = smul.addr %s215, 4
      %s217 = scalar_lea.vmem %s3, %s216
      %s218 = smul.u32 2, %s18
      %p220 = scmp.eq.s32.totalorder %s19, 0
      // Predicated region
      $region33: #{_lambda_.69} parent=31 // pred_check
        %p221 = pneg %p220
      $region34: #{_lambda_.69} parent=31 // pred_check_branch
        %223 = sbr.rel (%p221) target = $region36
      $region35: #{_lambda_.69} parent=31 // pred_region
        %224 = vst [vmem:[#allocation2] sm:$0xff] 0.0
        %225 = vst [vmem:[#allocation2 + $0x8] sm:$0xff] 0.0
      $region36: #{_lambda_.69} parent=31 // pred_fallthru
        _
      %v226 = vld [vmem:[#allocation2] sm:$0xff]
      %v227 = vld [vmem:[#allocation2 + $0x8] sm:$0xff]
      %v228 = vld [vmem:[%s205] sm:$0xf]
      %v229 = vld [vmem:[%s205 + $0x4] sm:$0xf]
      %v230 = vld [vmem:[%s211] sm:$0xf]
      %v231 = vld [vmem:[%s211 + $0x4] sm:$0xf]
      %v232 = vld [vmem:[%s211 + $0x8] sm:$0xf]
      %v233 = vld [vmem:[%s211 + $0xc] sm:$0xf]
      %v234 = vld [vmem:[%s211 + $0x10] sm:$0xf]
      %v235 = vld [vmem:[%s211 + $0x14] sm:$0xf]
      %v236 = vld [vmem:[%s211 + $0x18] sm:$0xf]
      %v237 = vld [vmem:[%s211 + $0x1c] sm:$0xf]
      %v238 = vld [vmem:[%s211 + $0x20] sm:$0xf]
      %v239 = vld [vmem:[%s211 + $0x24] sm:$0xf]
      %v240 = vld [vmem:[%s211 + $0x28] sm:$0xf]
      %v241 = vld [vmem:[%s211 + $0x2c] sm:$0xf]
      %v242 = vld [vmem:[%s211 + $0x30] sm:$0xf]
      %v243 = vld [vmem:[%s211 + $0x34] sm:$0xf]
      %v244 = vld [vmem:[%s211 + $0x38] sm:$0xf]
      %v245 = vld [vmem:[%s211 + $0x3c] sm:$0xf]
      %v248 = vunpack.c.l.b16 %v228
      %v249 = vunpack.c.l.b16 %v229
      %v250 = vpack.c.b16 %v249, %v248
      %v268 = vunpack.c.l.b16 %v230
      %v269 = vunpack.c.l.b16 %v231
      %v270 = vunpack.c.l.b16 %v232
      %v271 = vunpack.c.l.b16 %v233
      %v272 = vunpack.c.l.b16 %v234
      %v273 = vunpack.c.l.b16 %v235
      %v274 = vunpack.c.l.b16 %v236
      %v275 = vunpack.c.l.b16 %v237
      %v276 = vunpack.c.l.b16 %v238
      %v277 = vunpack.c.l.b16 %v239
      %v278 = vunpack.c.l.b16 %v240
      %v279 = vunpack.c.l.b16 %v241
      %v280 = vunpack.c.l.b16 %v242
      %v281 = vunpack.c.l.b16 %v243
      %v282 = vunpack.c.l.b16 %v244
      %v283 = vunpack.c.l.b16 %v245
      %v284 = vpack.c.b16 %v269, %v268
      %v285 = vpack.c.b16 %v271, %v270
      %v286 = vpack.c.b16 %v273, %v272
      %v287 = vpack.c.b16 %v275, %v274
      %v288 = vpack.c.b16 %v277, %v276
      %v289 = vpack.c.b16 %v279, %v278
      %v290 = vpack.c.b16 %v281, %v280
      %v291 = vpack.c.b16 %v283, %v282
      %300 = vmatprep.subr.bf16.mxu0 0
      %301 = vmatpush1.bf16.msra.mxu0 %v291
      %302 = vmatprep.subr.bf16.mxu0 0
      %303 = vmatpush1.bf16.msra.mxu0 %v290
      %304 = vmatprep.subr.bf16.mxu0 0
      %305 = vmatpush1.bf16.msra.mxu0 %v289
      %306 = vmatprep.subr.bf16.mxu0 0
      %307 = vmatpush1.bf16.msra.mxu0 %v288
      %308 = vmatprep.subr.bf16.mxu0 0
      %309 = vmatpush1.bf16.msra.mxu0 %v287
      %310 = vmatprep.subr.bf16.mxu0 0
      %311 = vmatpush1.bf16.msra.mxu0 %v286
      %312 = vmatprep.subr.bf16.mxu0 0
      %313 = vmatpush1.bf16.msra.mxu0 %v285
      %314 = vmatprep.subr.bf16.mxu0 0
      %315 = vmatpush1.bf16.msra.mxu0 %v284
      %316 = vmatprep.subr.bf16.mxu0 0
      %317 = vmatpush2.bf16.msra.mxu0 0
      %318 = vmatprep.subr.bf16.mxu0 0
      %319 = vmatpush2.bf16.msra.mxu0 0
      %320 = vmatprep.subr.bf16.mxu0 0
      %321 = vmatpush2.bf16.msra.mxu0 0
      %322 = vmatprep.subr.bf16.mxu0 0
      %323 = vmatpush2.bf16.msra.mxu0 0
      %324 = vmatprep.subr.bf16.mxu0 0
      %325 = vmatpush2.bf16.msra.mxu0 0
      %326 = vmatprep.subr.bf16.mxu0 0
      %327 = vmatpush2.bf16.msra.mxu0 0
      %328 = vmatprep.subr.bf16.mxu0 0
      %329 = vmatpush2.bf16.msra.mxu0 0
      %330 = vmatprep.subr.bf16.mxu0 0
      %331 = vmatpush2.bf16.msra.mxu0 0
      %332 = vmatprep.mubr.bf16.mxu0 0
      %333 = vmatmul.mubr.bf16.gmra.mxu0 %v250
      %v334 = vpop.f32.mrf.mxu0
      %v335 = vadd.f32 0.0, %v334
      %v336 = vpop.f32.mrf.mxu0
      %v337 = vpop.f32.mrf.mxu0
      %v338 = vadd.f32 0.0, %v337
      %v339 = vpop.f32.mrf.mxu0
      %340 = vdwg.mxu0
      %v341 = vadd.f32 %v226, %v335
      %v342 = vadd.f32 %v227, %v338
      %343 = vst [vmem:[#allocation2] sm:$0xff] %v341
      %344 = vst [vmem:[#allocation2 + $0x8] sm:$0xff] %v342
      // Predicated region
      $region37: #{_lambda_.69} parent=31 // pred_check
        %p345 = pneg %p220
      $region38: #{_lambda_.69} parent=31 // pred_check_branch
        %347 = sbr.rel (%p345) target = $region40
      $region39: #{_lambda_.69} parent=31 // pred_region
        %v348 = vld [vmem:[#allocation2] sm:$0xff]
        %v349 = vld [vmem:[#allocation2 + $0x8] sm:$0xff]
        %v350 = vld [vmem:[%s2] sm:$0x1]
        %v352 = vlaneseq
        %v353 = vshrl.u32 %v352, 7
        %v354 = vsub.s32 0, %v353
        %v355 = vrot.slane %v350, %v354
        %v357 = vadd.f32 %v348, %v355
        %v358 = vadd.f32 %v349, %v355
        %v359 = vpack.c.bf16 %v358, %v357
        %v361 = vunpack.c.l.b16 %v359
        %v362 = vunpack.c.h.b16 %v359
        %v363 = vpack.c.b16 %v361, %v361
        %v364 = vpack.c.b16 %v362, %v362
        %367 = vst [vmem:[%s217] sm:$0xf] %v363
        %368 = vst [vmem:[%s217 + $0x4] sm:$0xf] %v364
      $region40: #{_lambda_.69} parent=31 // pred_fallthru
        _
      %s369 = smul.u32 2, %s18
      %p370 = scmp.lt.s32.totalorder %s369, 3
      %s371 = scalar_select %p370, %s369, 3
      %s372 = smul.addr %s371, 4
      %s373 = scalar_lea.vmem %s3, %s372
      // Predicated region
      $region41: #{_lambda_.69} parent=31 // pred_check
        %p374 = pneg %p119
      $region42: #{_lambda_.69} parent=31 // pred_check_branch
        %376 = sbr.rel (%p374) target = $region44
      $region43: #{_lambda_.69} parent=31 // pred_region
        %s377 = smul.u32 2, %s18
      $region44: #{_lambda_.69} parent=31 // pred_fallthru
        _
    $region32: #{_lambda_.69} parent=5 // pred_fallthru
      _
    %p378 = scmp.le.s32.totalorder 2, %s9
    // Predicated region
    $region45: #{_lambda_.69} parent=5 // pred_check
      %p379 = pneg %p378
    $region46: #{_lambda_.69} parent=5 // pred_check_branch
      %381 = sbr.rel (%p379) target = $region48
    $region47: #{_lambda_.69} parent=5 // pred_region
      %s382 = ssub.s32 %s9, 2
      // Predicated region
      $region49: #{_lambda_.69} parent=47 // pred_check
        %p383 = pneg %p125
      $region50: #{_lambda_.69} parent=47 // pred_check_branch
        %385 = sbr.rel (%p383) target = $region52
      $region51: #{_lambda_.69} parent=47 // pred_region
        %s386 = smul.u32 2, %s20
        %p387 = scmp.lt.s32.totalorder %s386, 3
        %s388 = scalar_select %p387, %s386, 3
        %s389 = smul.addr %s388, 4
        %s390 = scalar_lea.vmem %s3, %s389
      $region52: #{_lambda_.69} parent=47 // pred_fallthru
        _
    $region48: #{_lambda_.69} parent=5 // pred_fallthru
      _
  $region6: #{_lambda_.69} parent=0 // loop_footer
    %s13 = sadd.s32 1, %s9
  $region7: #{_lambda_.69} parent=0 // loop_footer_branch
    %8 = sbr.rel target = $region3
  $region8: #{_lambda_.69} parent=0 // loop_exit
    _

// kernel: _lambda_.70
$region0: #{_lambda_.70}
  #allocation0 [shape = 'u32[]', space=smem, size = 0x4, offset = 0x4, fixed_abs, tag = 'smem constant byte address 0x4 - core index']
  #allocation1 [shape = 'u32[144,128]{1,0:T(1,128)}', space=vmem, size = 0x12000, scoped, tag = 'internal scratch']
  #allocation2 [shape = 'f32[16,128]{1,0:T(8,128)}', space=vmem, size = 0x2000, scoped, tag = 'scratch operand']
  %s0 = inlined_call_operand.vmem [shape: bf16[32,128], index: 0, kind: input, shape index: {}]
  %s1 = inlined_call_operand.vmem [shape: bf16[128,128], index: 1, kind: input, shape index: {}]
  %s2 = inlined_call_operand.vmem [shape: f32[1,128], index: 2, kind: input, shape index: {}]
  %s3 = inlined_call_operand.vmem [shape: bf16[32,128], index: 3, kind: input, shape index: {}]
  %s4 = inlined_call_operand.vmem [shape: bf16[32,128], index: 4, kind: output, shape index: {}]
  %s5 = sld [smem:[#allocation0]]
  $region57: #{_lambda_.70} parent=0
    _
  %s7 = ssub.s32 1, %s5
  %s8 = scalar_select 0, %s7, %s5
  loop: start=0, step=1, limit=4
  $region2: #{_lambda_.70} parent=0 // loop_pre_header
    _
  $region3: #{_lambda_.70} parent=0 // loop_header
    %s10 = sphi 0, %s14
    %p11 = scmp.ge.s32.totalorder %s10, 4
    %s17 = sphi 0, %s29
    %s18 = sphi 0, %s25
    %s19 = sphi 0, %s17
    %s20 = sphi 0, %s18
    %s21 = sphi 0, %s19
    %s22 = sphi 0, %s20
    %s34 = sphi 0, %s36
    %s37 = sphi 0, %s34
    %s38 = sphi 0, %s37
    %s54 = sphi 0, %s38
    %s60 = sphi 0, %s62
    %s63 = sphi 0, %s60
    %s64 = sphi 0, %s63
    %s80 = sphi 0, %s64
    %s84 = sphi 0, %s84
    %s86 = sphi 0, %s84
    %s87 = sphi 0, %s86
    %s101 = sphi 0, %s87
    %s107 = sphi 0, %s109
    %s110 = sphi 0, %s107
    %s111 = sphi 0, %s110
    %s127 = sphi 0, %s111
    %s133 = sphi 0, %s135
    %s136 = sphi 0, %s133
    %s137 = sphi 0, %s136
    %s153 = sphi 0, %s137
  $region4: #{_lambda_.70} parent=0 // loop_header_branch
    %13 = sbr.rel (%p11) target = $region8
  $region5: #{_lambda_.70} parent=0 // loop_body
    %s15 = ssub.s32 %s10, 1
    %s16 = ssub.s32 %s10, 2
    %s23 = sadd.s32 1, %s18
    %p24 = scmp.ge.s32.totalorder %s23, 1
    %s25 = scalar_select %p24, 0, %s23
    %s26 = sadd.s32 1, %s17
    %s27 = scalar_select %p24, %s26, %s17
    %p28 = scmp.ge.s32.totalorder %s27, 2
    %s29 = scalar_select %p28, 0, %s27
    %s30 = ssub.s32 %s17, %s29
    %s31 = ssub.s32 %s18, %s25
    %s32 = sor.u32 %s30, %s31
    %p33 = scmp.eq.s32.totalorder %s32, 0
    %s35 = sadd.s32 %s34, 1
    %s36 = scalar_select %p33, %s34, %s35
    %p39 = pneg %p33
    %p40 = scmp.eq.s32.totalorder %s10, 1
    %p41 = por %p39, %p40
    %p42 = scmp.ne.s32.totalorder %s34, %s37
    %p43 = scmp.eq.s32.totalorder %s10, 0
    %p44 = por %p42, %p43
    %p45 = scmp.ne.s32.totalorder %s34, %s37
    %p46 = scmp.eq.s32.totalorder %s15, 1
    %p47 = por %p45, %p46
    %p48 = scmp.ne.s32.totalorder %s37, %s38
    %p49 = scmp.eq.s32.totalorder %s15, 0
    %p50 = por %p48, %p49
    %p51 = scmp.ne.s32.totalorder %s37, %s38
    %p52 = scmp.eq.s32.totalorder %s16, 1
    %p53 = por %p51, %p52
    %p55 = scmp.ne.s32.totalorder %s38, %s54
    %p56 = scmp.eq.s32.totalorder %s16, 0
    %p57 = por %p55, %p56
    %s58 = ssub.s32 %s18, %s25
    %p59 = scmp.eq.s32.totalorder %s58, 0
    %s61 = sadd.s32 %s60, 1
    %s62 = scalar_select %p59, %s60, %s61
    %p65 = pneg %p59
    %p66 = scmp.eq.s32.totalorder %s10, 1
    %p67 = por %p65, %p66
    %p68 = scmp.ne.s32.totalorder %s60, %s63
    %p69 = scmp.eq.s32.totalorder %s10, 0
    %p70 = por %p68, %p69
    %p71 = scmp.ne.s32.totalorder %s60, %s63
    %p72 = scmp.eq.s32.totalorder %s15, 1
    %p73 = por %p71, %p72
    %p74 = scmp.ne.s32.totalorder %s63, %s64
    %p75 = scmp.eq.s32.totalorder %s15, 0
    %p76 = por %p74, %p75
    %p77 = scmp.ne.s32.totalorder %s63, %s64
    %p78 = scmp.eq.s32.totalorder %s16, 1
    %p79 = por %p77, %p78
    %p81 = scmp.ne.s32.totalorder %s64, %s80
    %p82 = scmp.eq.s32.totalorder %s16, 0
    %p83 = por %p81, %p82
    %s85 = sadd.s32 %s84, 1
    %p88 = scmp.eq.s32.totalorder %s10, 1
    %p89 = scmp.ne.s32.totalorder %s84, %s86
    %p90 = scmp.eq.s32.totalorder %s10, 0
    %p91 = por %p89, %p90
    %p92 = scmp.ne.s32.totalorder %s84, %s86
    %p93 = scmp.eq.s32.totalorder %s15, 1
    %p94 = por %p92, %p93
    %p95 = scmp.ne.s32.totalorder %s86, %s87
    %p96 = scmp.eq.s32.totalorder %s15, 0
    %p97 = por %p95, %p96
    %p98 = scmp.ne.s32.totalorder %s86, %s87
    %p99 = scmp.eq.s32.totalorder %s16, 1
    %p100 = por %p98, %p99
    %p102 = scmp.ne.s32.totalorder %s87, %s101
    %p103 = scmp.eq.s32.totalorder %s16, 0
    %p104 = por %p102, %p103
    %s105 = ssub.s32 %s17, %s29
    %p106 = scmp.eq.s32.totalorder %s105, 0
    %s108 = sadd.s32 %s107, 1
    %s109 = scalar_select %p106, %s107, %s108
    %p112 = pneg %p106
    %p113 = scmp.eq.s32.totalorder %s10, 1
    %p114 = por %p112, %p113
    %p115 = scmp.ne.s32.totalorder %s107, %s110
    %p116 = scmp.eq.s32.totalorder %s10, 0
    %p117 = por %p115, %p116
    %p118 = scmp.ne.s32.totalorder %s107, %s110
    %p119 = scmp.eq.s32.totalorder %s15, 1
    %p120 = por %p118, %p119
    %p121 = scmp.ne.s32.totalorder %s110, %s111
    %p122 = scmp.eq.s32.totalorder %s15, 0
    %p123 = por %p121, %p122
    %p124 = scmp.ne.s32.totalorder %s110, %s111
    %p125 = scmp.eq.s32.totalorder %s16, 1
    %p126 = por %p124, %p125
    %p128 = scmp.ne.s32.totalorder %s111, %s127
    %p129 = scmp.eq.s32.totalorder %s16, 0
    %p130 = por %p128, %p129
    %s131 = ssub.s32 %s17, %s29
    %p132 = scmp.eq.s32.totalorder %s131, 0
    %s134 = sadd.s32 %s133, 1
    %s135 = scalar_select %p132, %s133, %s134
    %p138 = pneg %p132
    %p139 = scmp.eq.s32.totalorder %s10, 1
    %p140 = por %p138, %p139
    %p141 = scmp.ne.s32.totalorder %s133, %s136
    %p142 = scmp.eq.s32.totalorder %s10, 0
    %p143 = por %p141, %p142
    %p144 = scmp.ne.s32.totalorder %s133, %s136
    %p145 = scmp.eq.s32.totalorder %s15, 1
    %p146 = por %p144, %p145
    %p147 = scmp.ne.s32.totalorder %s136, %s137
    %p148 = scmp.eq.s32.totalorder %s15, 0
    %p149 = por %p147, %p148
    %p150 = scmp.ne.s32.totalorder %s136, %s137
    %p151 = scmp.eq.s32.totalorder %s16, 1
    %p152 = por %p150, %p151
    %p154 = scmp.ne.s32.totalorder %s137, %s153
    %p155 = scmp.eq.s32.totalorder %s16, 0
    %p156 = por %p154, %p155
    %p157 = scmp.le.s32.totalorder 1, %s10
    %p158 = scmp.lt.s32.totalorder %s10, 3
    %p159 = pnand %p157, %p158
    %p160 = pneg %p159
    // Predicated region
    $region9: #{_lambda_.70} parent=5 // pred_check
      _
    $region10: #{_lambda_.70} parent=5 // pred_check_branch
      %162 = sbr.rel (%p159) target = $region12
    $region11: #{_lambda_.70} parent=5 // pred_region
      %s163 = ssub.s32 %s10, 1
      // Predicated region
      $region13: #{_lambda_.70} parent=11 // pred_check
        %p164 = pneg %p76
      $region14: #{_lambda_.70} parent=11 // pred_check_branch
        %166 = sbr.rel (%p164) target = $region16
      $region15: #{_lambda_.70} parent=11 // pred_region
        %s167 = smul.u32 16, %s20
        %p168 = scmp.lt.s32.totalorder %s167, 15
        %s169 = scalar_select %p168, %s167, 15
        %s170 = smul.addr %s169, 4
        %s171 = scalar_lea.vmem %s1, %s170
        %s172 = smul.u32 16, %s20
      $region16: #{_lambda_.70} parent=11 // pred_fallthru
        _
      // Predicated region
      $region17: #{_lambda_.70} parent=11 // pred_check
        %p173 = pneg %p97
      $region18: #{_lambda_.70} parent=11 // pred_check_branch
        %175 = sbr.rel (%p173) target = $region20
      $region19: #{_lambda_.70} parent=11 // pred_region
        _
      $region20: #{_lambda_.70} parent=11 // pred_fallthru
        _
    $region12: #{_lambda_.70} parent=5 // pred_fallthru
      _
    %p176 = scmp.lt.s32.totalorder %s10, 2
    // Predicated region
    $region21: #{_lambda_.70} parent=5 // pred_check
      %p177 = pneg %p176
    $region22: #{_lambda_.70} parent=5 // pred_check_branch
      %179 = sbr.rel (%p177) target = $region24
    $region23: #{_lambda_.70} parent=5 // pred_region
      // Predicated region
      $region25: #{_lambda_.70} parent=23 // pred_check
        %p180 = pneg %p44
      $region26: #{_lambda_.70} parent=23 // pred_check_branch
        %182 = sbr.rel (%p180) target = $region28
      $region27: #{_lambda_.70} parent=23 // pred_region
        %s183 = smul.u32 2, %s17
        %p184 = scmp.lt.s32.totalorder %s183, 3
        %s185 = scalar_select %p184, %s183, 3
        %p186 = scmp.lt.s32.totalorder %s18, 0
        %s187 = scalar_select %p186, %s18, 0
        %s188 = sadd.s32 %s187, %s185
        %s189 = smul.addr %s188, 4
        %s190 = scalar_lea.vmem %s0, %s189
        %s191 = smul.u32 2, %s17
      $region28: #{_lambda_.70} parent=23 // pred_fallthru
        _
      // Predicated region
      $region29: #{_lambda_.70} parent=23 // pred_check
        %p192 = pneg %p117
      $region30: #{_lambda_.70} parent=23 // pred_check_branch
        %194 = sbr.rel (%p192) target = $region32
      $region31: #{_lambda_.70} parent=23 // pred_region
        %s195 = smul.u32 2, %s17
        %p196 = scmp.lt.s32.totalorder %s195, 3
        %s197 = scalar_select %p196, %s195, 3
        %s198 = smul.addr %s197, 4
        %s199 = scalar_lea.vmem %s3, %s198
        %s200 = smul.u32 2, %s17
      $region32: #{_lambda_.70} parent=23 // pred_fallthru
        _
    $region24: #{_lambda_.70} parent=5 // pred_fallthru
      _
    %p201 = scmp.le.s32.totalorder 1, %s10
    %p202 = scmp.lt.s32.totalorder %s10, 3
    %p203 = pnand %p201, %p202
    %p204 = pneg %p203
    // Predicated region
    $region33: #{_lambda_.70} parent=5 // pred_check
      _
    $region34: #{_lambda_.70} parent=5 // pred_check_branch
      %206 = sbr.rel (%p203) target = $region36
    $region35: #{_lambda_.70} parent=5 // pred_region
      %s207 = ssub.s32 %s10, 1
      %s208 = smul.u32 2, %s19
      %p209 = scmp.lt.s32.totalorder %s208, 3
      %s210 = scalar_select %p209, %s208, 3
      %p211 = scmp.lt.s32.totalorder %s20, 0
      %s212 = scalar_select %p211, %s20, 0
      %s213 = sadd.s32 %s212, %s210
      %s214 = smul.addr %s213, 4
      %s215 = scalar_lea.vmem %s0, %s214
      %p216 = pneg %p50
      %p217 = pneg %p47
      %s218 = smul.u32 16, %s20
      %p219 = scmp.lt.s32.totalorder %s218, 15
      %s220 = scalar_select %p219, %s218, 15
      %s221 = smul.addr %s220, 4
      %s222 = scalar_lea.vmem %s1, %s221
      %p223 = pneg %p76
      %p224 = pneg %p73
      %p225 = pneg %p97
      %p226 = pneg %p94
      %s227 = smul.u32 2, %s19
      %p228 = scmp.lt.s32.totalorder %s227, 3
      %s229 = scalar_select %p228, %s227, 3
      %s230 = smul.addr %s229, 4
      %s231 = scalar_lea.vmem %s3, %s230
      %p232 = pneg %p123
      %p233 = pneg %p120
      %p234 = pneg %p149
      %p235 = pneg %p146
      %s236 = smul.u32 2, %s19
      %p237 = scmp.lt.s32.totalorder %s236, 3
      %s238 = scalar_select %p237, %s236, 3
      %s239 = smul.addr %s238, 4
      %s240 = scalar_lea.vmem %s4, %s239
      %s241 = smul.u32 2, %s19
      %p242 = scmp.lt.s32.totalorder %s241, 3
      %s243 = scalar_select %p242, %s241, 3
      %p244 = scmp.lt.s32.totalorder %s20, 0
      %s245 = scalar_select %p244, %s20, 0
      %s246 = sadd.s32 %s245, %s243
      %s247 = smul.addr %s246, 4
      %s248 = scalar_lea.vmem %s0, %s247
      %s249 = smul.u32 2, %s19
      %s250 = smul.u32 16, %s20
      %p251 = scmp.lt.s32.totalorder %s250, 15
      %s252 = scalar_select %p251, %s250, 15
      %s253 = smul.addr %s252, 4
      %s254 = scalar_lea.vmem %s1, %s253
      %s255 = smul.u32 16, %s20
      %s256 = smul.u32 2, %s19
      %p257 = scmp.lt.s32.totalorder %s256, 3
      %s258 = scalar_select %p257, %s256, 3
      %s259 = smul.addr %s258, 4
      %s260 = scalar_lea.vmem %s3, %s259
      %s261 = smul.u32 2, %s19
      %s262 = smul.u32 2, %s19
      %p263 = scmp.lt.s32.totalorder %s262, 3
      %s264 = scalar_select %p263, %s262, 3
      %s265 = smul.addr %s264, 4
      %s266 = scalar_lea.vmem %s4, %s265
      %s267 = smul.u32 2, %s19
      %p269 = scmp.eq.s32.totalorder %s20, 0
      // Predicated region
      $region37: #{_lambda_.70} parent=35 // pred_check
        %p270 = pneg %p269
      $region38: #{_lambda_.70} parent=35 // pred_check_branch
        %272 = sbr.rel (%p270) target = $region40
      $region39: #{_lambda_.70} parent=35 // pred_region
        %273 = vst [vmem:[#allocation2] sm:$0xff] 0.0
        %274 = vst [vmem:[#allocation2 + $0x8] sm:$0xff] 0.0
      $region40: #{_lambda_.70} parent=35 // pred_fallthru
        _
      %v275 = vld [vmem:[#allocation2] sm:$0xff]
      %v276 = vld [vmem:[#allocation2 + $0x8] sm:$0xff]
      %v277 = vld [vmem:[%s248] sm:$0xf]
      %v278 = vld [vmem:[%s248 + $0x4] sm:$0xf]
      %v279 = vld [vmem:[%s254] sm:$0xf]
      %v280 = vld [vmem:[%s254 + $0x4] sm:$0xf]
      %v281 = vld [vmem:[%s254 + $0x8] sm:$0xf]
      %v282 = vld [vmem:[%s254 + $0xc] sm:$0xf]
      %v283 = vld [vmem:[%s254 + $0x10] sm:$0xf]
      %v284 = vld [vmem:[%s254 + $0x14] sm:$0xf]
      %v285 = vld [vmem:[%s254 + $0x18] sm:$0xf]
      %v286 = vld [vmem:[%s254 + $0x1c] sm:$0xf]
      %v287 = vld [vmem:[%s254 + $0x20] sm:$0xf]
      %v288 = vld [vmem:[%s254 + $0x24] sm:$0xf]
      %v289 = vld [vmem:[%s254 + $0x28] sm:$0xf]
      %v290 = vld [vmem:[%s254 + $0x2c] sm:$0xf]
      %v291 = vld [vmem:[%s254 + $0x30] sm:$0xf]
      %v292 = vld [vmem:[%s254 + $0x34] sm:$0xf]
      %v293 = vld [vmem:[%s254 + $0x38] sm:$0xf]
      %v294 = vld [vmem:[%s254 + $0x3c] sm:$0xf]
      %v297 = vunpack.c.l.b16 %v277
      %v298 = vunpack.c.l.b16 %v278
      %v299 = vpack.c.b16 %v298, %v297
      %v317 = vunpack.c.l.b16 %v279
      %v318 = vunpack.c.l.b16 %v280
      %v319 = vunpack.c.l.b16 %v281
      %v320 = vunpack.c.l.b16 %v282
      %v321 = vunpack.c.l.b16 %v283
      %v322 = vunpack.c.l.b16 %v284
      %v323 = vunpack.c.l.b16 %v285
      %v324 = vunpack.c.l.b16 %v286
      %v325 = vunpack.c.l.b16 %v287
      %v326 = vunpack.c.l.b16 %v288
      %v327 = vunpack.c.l.b16 %v289
      %v328 = vunpack.c.l.b16 %v290
      %v329 = vunpack.c.l.b16 %v291
      %v330 = vunpack.c.l.b16 %v292
      %v331 = vunpack.c.l.b16 %v293
      %v332 = vunpack.c.l.b16 %v294
      %v333 = vpack.c.b16 %v318, %v317
      %v334 = vpack.c.b16 %v320, %v319
      %v335 = vpack.c.b16 %v322, %v321
      %v336 = vpack.c.b16 %v324, %v323
      %v337 = vpack.c.b16 %v326, %v325
      %v338 = vpack.c.b16 %v328, %v327
      %v339 = vpack.c.b16 %v330, %v329
      %v340 = vpack.c.b16 %v332, %v331
      %349 = vmatprep.subr.bf16.mxu0 0
      %350 = vmatpush1.bf16.msra.mxu0 %v340
      %351 = vmatprep.subr.bf16.mxu0 0
      %352 = vmatpush1.bf16.msra.mxu0 %v339
      %353 = vmatprep.subr.bf16.mxu0 0
      %354 = vmatpush1.bf16.msra.mxu0 %v338
      %355 = vmatprep.subr.bf16.mxu0 0
      %356 = vmatpush1.bf16.msra.mxu0 %v337
      %357 = vmatprep.subr.bf16.mxu0 0
      %358 = vmatpush1.bf16.msra.mxu0 %v336
      %359 = vmatprep.subr.bf16.mxu0 0
      %360 = vmatpush1.bf16.msra.mxu0 %v335
      %361 = vmatprep.subr.bf16.mxu0 0
      %362 = vmatpush1.bf16.msra.mxu0 %v334
      %363 = vmatprep.subr.bf16.mxu0 0
      %364 = vmatpush1.bf16.msra.mxu0 %v333
      %365 = vmatprep.subr.bf16.mxu0 0
      %366 = vmatpush2.bf16.msra.mxu0 0
      %367 = vmatprep.subr.bf16.mxu0 0
      %368 = vmatpush2.bf16.msra.mxu0 0
      %369 = vmatprep.subr.bf16.mxu0 0
      %370 = vmatpush2.bf16.msra.mxu0 0
      %371 = vmatprep.subr.bf16.mxu0 0
      %372 = vmatpush2.bf16.msra.mxu0 0
      %373 = vmatprep.subr.bf16.mxu0 0
      %374 = vmatpush2.bf16.msra.mxu0 0
      %375 = vmatprep.subr.bf16.mxu0 0
      %376 = vmatpush2.bf16.msra.mxu0 0
      %377 = vmatprep.subr.bf16.mxu0 0
      %378 = vmatpush2.bf16.msra.mxu0 0
      %379 = vmatprep.subr.bf16.mxu0 0
      %380 = vmatpush2.bf16.msra.mxu0 0
      %381 = vmatprep.mubr.bf16.mxu0 0
      %382 = vmatmul.mubr.bf16.gmra.mxu0 %v299
      %v383 = vpop.f32.mrf.mxu0
      %v384 = vadd.f32 0.0, %v383
      %v385 = vpop.f32.mrf.mxu0
      %v386 = vpop.f32.mrf.mxu0
      %v387 = vadd.f32 0.0, %v386
      %v388 = vpop.f32.mrf.mxu0
      %389 = vdwg.mxu0
      %v390 = vadd.f32 %v275, %v384
      %v391 = vadd.f32 %v276, %v387
      %392 = vst [vmem:[#allocation2] sm:$0xff] %v390
      %393 = vst [vmem:[#allocation2 + $0x8] sm:$0xff] %v391
      // Predicated region
      $region41: #{_lambda_.70} parent=35 // pred_check
        %p394 = pneg %p269
      $region42: #{_lambda_.70} parent=35 // pred_check_branch
        %396 = sbr.rel (%p394) target = $region44
      $region43: #{_lambda_.70} parent=35 // pred_region
        %v397 = vld [vmem:[#allocation2] sm:$0xff]
        %v398 = vld [vmem:[#allocation2 + $0x8] sm:$0xff]
        %v399 = vld [vmem:[%s2] sm:$0x1]
        %v401 = vlaneseq
        %v402 = vshrl.u32 %v401, 7
        %v403 = vsub.s32 0, %v402
        %v404 = vrot.slane %v399, %v403
        %v406 = vadd.f32 %v397, %v404
        %v407 = vadd.f32 %v398, %v404
        %v408 = vld [vmem:[%s260] sm:$0xf]
        %v409 = vld [vmem:[%s260 + $0x4] sm:$0xf]
        %v410 = vunpack.c.l.bf16 %v408
        %v411 = vunpack.c.l.bf16 %v409
        %v412 = vadd.f32 %v406, %v410
        %v413 = vadd.f32 %v407, %v411
        %v414 = vmax.f32 %v412, 0.0
        %v415 = vmax.f32 %v413, 0.0
        %v416 = vpack.c.bf16 %v415, %v414
        %v418 = vunpack.c.l.b16 %v416
        %v419 = vunpack.c.h.b16 %v416
        %v420 = vpack.c.b16 %v418, %v418
        %v421 = vpack.c.b16 %v419, %v419
        %424 = vst [vmem:[%s266] sm:$0xf] %v420
        %425 = vst [vmem:[%s266 + $0x4] sm:$0xf] %v421
      $region44: #{_lambda_.70} parent=35 // pred_fallthru
        _
      %s426 = smul.u32 2, %s19
      %p427 = scmp.lt.s32.totalorder %s426, 3
      %s428 = scalar_select %p427, %s426, 3
      %s429 = smul.addr %s428, 4
      %s430 = scalar_lea.vmem %s4, %s429
      // Predicated region
      $region45: #{_lambda_.70} parent=35 // pred_check
        %p431 = pneg %p146
      $region46: #{_lambda_.70} parent=35 // pred_check_branch
        %433 = sbr.rel (%p431) target = $region48
      $region47: #{_lambda_.70} parent=35 // pred_region
        %s434 = smul.u32 2, %s19
      $region48: #{_lambda_.70} parent=35 // pred_fallthru
        _
    $region36: #{_lambda_.70} parent=5 // pred_fallthru
      _
    %p435 = scmp.le.s32.totalorder 2, %s10
    // Predicated region
    $region49: #{_lambda_.70} parent=5 // pred_check
      %p436 = pneg %p435
    $region50: #{_lambda_.70} parent=5 // pred_check_branch
      %438 = sbr.rel (%p436) target = $region52
    $region51: #{_lambda_.70} parent=5 // pred_region
      %s439 = ssub.s32 %s10, 2
      // Predicated region
      $region53: #{_lambda_.70} parent=51 // pred_check
        %p440 = pneg %p152
      $region54: #{_lambda_.70} parent=51 // pred_check_branch
        %442 = sbr.rel (%p440) target = $region56
      $region55: #{_lambda_.70} parent=51 // pred_region
        %s443 = smul.u32 2, %s21
        %p444 = scmp.lt.s32.totalorder %s443, 3
        %s445 = scalar_select %p444, %s443, 3
        %s446 = smul.addr %s445, 4
        %s447 = scalar_lea.vmem %s4, %s446
      $region56: #{_lambda_.70} parent=51 // pred_fallthru
        _
    $region52: #{_lambda_.70} parent=5 // pred_fallthru
      _
  $region6: #{_lambda_.70} parent=0 // loop_footer
    %s14 = sadd.s32 1, %s10
  $region7: #{_lambda_.70} parent=0 // loop_footer_branch
    %9 = sbr.rel target = $region3
  $region8: #{_lambda_.70} parent=0 // loop_exit
    _

// kernel: _lambda_.82
$region0: #{_lambda_.82}
  #allocation0 [shape = 'u32[]', space=smem, size = 0x4, offset = 0x4, fixed_abs, tag = 'smem constant byte address 0x4 - core index']
  #allocation1 [shape = 'u32[144,128]{1,0:T(1,128)}', space=vmem, size = 0x12000, scoped, tag = 'internal scratch']
  #allocation2 [shape = 'f32[8,128]{1,0:T(8,128)}', space=vmem, size = 0x1000, scoped, tag = 'scratch operand']
  %s0 = inlined_call_operand.vmem [shape: bf16[8,128], index: 0, kind: input, shape index: {}]
  %s1 = inlined_call_operand.vmem [shape: bf16[128,128], index: 1, kind: input, shape index: {}]
  %s2 = inlined_call_operand.vmem [shape: f32[1,128], index: 2, kind: input, shape index: {}]
  %s3 = inlined_call_operand.vmem [shape: bf16[8,128], index: 3, kind: output, shape index: {}]
  %s4 = sld [smem:[#allocation0]]
  $region30: #{_lambda_.82} parent=0
    _
  %s6 = ssub.s32 1, %s4
  %s7 = scalar_select 0, %s6, %s4
  // Predicated region
  $region2: #{_lambda_.82} parent=0 // pred_check
    _
  $region3: #{_lambda_.82} parent=0 // pred_check_branch
    %9 = sbr.rel (0) target = $region5
  $region4: #{_lambda_.82} parent=0 // pred_region
    _
  $region5: #{_lambda_.82} parent=0 // pred_fallthru
    _
  // Predicated region
  $region6: #{_lambda_.82} parent=0 // pred_check
    _
  $region7: #{_lambda_.82} parent=0 // pred_check_branch
    %11 = sbr.rel (0) target = $region9
  $region8: #{_lambda_.82} parent=0 // pred_region
    _
  $region9: #{_lambda_.82} parent=0 // pred_fallthru
    _
  // Predicated region
  $region10: #{_lambda_.82} parent=0 // pred_check
    _
  $region11: #{_lambda_.82} parent=0 // pred_check_branch
    %13 = sbr.rel (0) target = $region13
  $region12: #{_lambda_.82} parent=0 // pred_region
    _
  $region13: #{_lambda_.82} parent=0 // pred_fallthru
    _
  %p15 = scmp.eq.s32.totalorder 0, 0
  // Predicated region
  $region14: #{_lambda_.82} parent=0 // pred_check
    %p16 = pneg %p15
  $region15: #{_lambda_.82} parent=0 // pred_check_branch
    %18 = sbr.rel (%p16) target = $region17
  $region16: #{_lambda_.82} parent=0 // pred_region
    %19 = vst [vmem:[#allocation2] sm:$0xff] 0.0
  $region17: #{_lambda_.82} parent=0 // pred_fallthru
    _
  %v20 = vld [vmem:[#allocation2] sm:$0xff]
  %v21 = vld [vmem:[%s0] sm:$0xf]
  %v22 = vld [vmem:[%s1] sm:$0xf]
  %v23 = vld [vmem:[%s1 + $0x4] sm:$0xf]
  %v24 = vld [vmem:[%s1 + $0x8] sm:$0xf]
  %v25 = vld [vmem:[%s1 + $0xc] sm:$0xf]
  %v26 = vld [vmem:[%s1 + $0x10] sm:$0xf]
  %v27 = vld [vmem:[%s1 + $0x14] sm:$0xf]
  %v28 = vld [vmem:[%s1 + $0x18] sm:$0xf]
  %v29 = vld [vmem:[%s1 + $0x1c] sm:$0xf]
  %v30 = vld [vmem:[%s1 + $0x20] sm:$0xf]
  %v31 = vld [vmem:[%s1 + $0x24] sm:$0xf]
  %v32 = vld [vmem:[%s1 + $0x28] sm:$0xf]
  %v33 = vld [vmem:[%s1 + $0x2c] sm:$0xf]
  %v34 = vld [vmem:[%s1 + $0x30] sm:$0xf]
  %v35 = vld [vmem:[%s1 + $0x34] sm:$0xf]
  %v36 = vld [vmem:[%s1 + $0x38] sm:$0xf]
  %v37 = vld [vmem:[%s1 + $0x3c] sm:$0xf]
  %v54 = vunpack.c.l.b16 %v22
  %v55 = vunpack.c.l.b16 %v23
  %v56 = vunpack.c.l.b16 %v24
  %v57 = vunpack.c.l.b16 %v25
  %v58 = vunpack.c.l.b16 %v26
  %v59 = vunpack.c.l.b16 %v27
  %v60 = vunpack.c.l.b16 %v28
  %v61 = vunpack.c.l.b16 %v29
  %v62 = vunpack.c.l.b16 %v30
  %v63 = vunpack.c.l.b16 %v31
  %v64 = vunpack.c.l.b16 %v32
  %v65 = vunpack.c.l.b16 %v33
  %v66 = vunpack.c.l.b16 %v34
  %v67 = vunpack.c.l.b16 %v35
  %v68 = vunpack.c.l.b16 %v36
  %v69 = vunpack.c.l.b16 %v37
  %v70 = vpack.c.b16 %v55, %v54
  %v71 = vpack.c.b16 %v57, %v56
  %v72 = vpack.c.b16 %v59, %v58
  %v73 = vpack.c.b16 %v61, %v60
  %v74 = vpack.c.b16 %v63, %v62
  %v75 = vpack.c.b16 %v65, %v64
  %v76 = vpack.c.b16 %v67, %v66
  %v77 = vpack.c.b16 %v69, %v68
  %86 = vmatprep.subr.bf16.mxu0 0
  %87 = vmatpush1.bf16.msra.mxu0 %v77
  %88 = vmatprep.subr.bf16.mxu0 0
  %89 = vmatpush1.bf16.msra.mxu0 %v76
  %90 = vmatprep.subr.bf16.mxu0 0
  %91 = vmatpush1.bf16.msra.mxu0 %v75
  %92 = vmatprep.subr.bf16.mxu0 0
  %93 = vmatpush1.bf16.msra.mxu0 %v74
  %94 = vmatprep.subr.bf16.mxu0 0
  %95 = vmatpush1.bf16.msra.mxu0 %v73
  %96 = vmatprep.subr.bf16.mxu0 0
  %97 = vmatpush1.bf16.msra.mxu0 %v72
  %98 = vmatprep.subr.bf16.mxu0 0
  %99 = vmatpush1.bf16.msra.mxu0 %v71
  %100 = vmatprep.subr.bf16.mxu0 0
  %101 = vmatpush1.bf16.msra.mxu0 %v70
  %102 = vmatprep.subr.bf16.mxu0 0
  %103 = vmatpush2.bf16.msra.mxu0 0
  %104 = vmatprep.subr.bf16.mxu0 0
  %105 = vmatpush2.bf16.msra.mxu0 0
  %106 = vmatprep.subr.bf16.mxu0 0
  %107 = vmatpush2.bf16.msra.mxu0 0
  %108 = vmatprep.subr.bf16.mxu0 0
  %109 = vmatpush2.bf16.msra.mxu0 0
  %110 = vmatprep.subr.bf16.mxu0 0
  %111 = vmatpush2.bf16.msra.mxu0 0
  %112 = vmatprep.subr.bf16.mxu0 0
  %113 = vmatpush2.bf16.msra.mxu0 0
  %114 = vmatprep.subr.bf16.mxu0 0
  %115 = vmatpush2.bf16.msra.mxu0 0
  %116 = vmatprep.subr.bf16.mxu0 0
  %117 = vmatpush2.bf16.msra.mxu0 0
  %118 = vmatprep.mubr.bf16.mxu0 0
  %119 = vmatmul.mubr.bf16.gmra.mxu0 %v21
  %v120 = vpop.f32.mrf.mxu0
  %v121 = vadd.f32 0.0, %v120
  %v122 = vpop.f32.mrf.mxu0
  %v123 = vpop.f32.mrf.mxu0
  %v124 = vpop.f32.mrf.mxu0
  %125 = vdwg.mxu0
  %v126 = vadd.f32 %v20, %v121
  %127 = vst [vmem:[#allocation2] sm:$0xff] %v126
  // Predicated region
  $region18: #{_lambda_.82} parent=0 // pred_check
    %p128 = pneg %p15
  $region19: #{_lambda_.82} parent=0 // pred_check_branch
    %130 = sbr.rel (%p128) target = $region21
  $region20: #{_lambda_.82} parent=0 // pred_region
    %v131 = vld [vmem:[#allocation2] sm:$0xff]
    %v132 = vld [vmem:[%s2] sm:$0x1]
    %v134 = vlaneseq
    %v135 = vshrl.u32 %v134, 7
    %v136 = vsub.s32 0, %v135
    %v137 = vrot.slane %v132, %v136
    %v139 = vadd.f32 %v131, %v137
    %v140 = vpack.c.bf16 %v139, %v139
    %141 = vst [vmem:[%s3] sm:$0xf] %v140
  $region21: #{_lambda_.82} parent=0 // pred_fallthru
    _
  // Predicated region
  $region22: #{_lambda_.82} parent=0 // pred_check
    _
  $region23: #{_lambda_.82} parent=0 // pred_check_branch
    %143 = sbr.rel (0) target = $region25
  $region24: #{_lambda_.82} parent=0 // pred_region
    _
  $region25: #{_lambda_.82} parent=0 // pred_fallthru
    _
  // Predicated region
  $region26: #{_lambda_.82} parent=0 // pred_check
    _
  $region27: #{_lambda_.82} parent=0 // pred_check_branch
    %145 = sbr.rel (0) target = $region29
  $region28: #{_lambda_.82} parent=0 // pred_region
    _
  $region29: #{_lambda_.82} parent=0 // pred_fallthru
    _

// kernel: _lambda_.84
$region0: #{_lambda_.84}
  #allocation0 [shape = 'u32[]', space=smem, size = 0x4, offset = 0x4, fixed_abs, tag = 'smem constant byte address 0x4 - core index']
  #allocation1 [shape = 'u32[144,128]{1,0:T(1,128)}', space=vmem, size = 0x12000, scoped, tag = 'internal scratch']
  #allocation2 [shape = 'f32[8,128]{1,0:T(8,128)}', space=vmem, size = 0x1000, scoped, tag = 'scratch operand']
  %s0 = inlined_call_operand.vmem [shape: bf16[8,128], index: 0, kind: input, shape index: {}]
  %s1 = inlined_call_operand.vmem [shape: bf16[128,128], index: 1, kind: input, shape index: {}]
  %s2 = inlined_call_operand.vmem [shape: f32[1,128], index: 2, kind: input, shape index: {}]
  %s3 = inlined_call_operand.vmem [shape: bf16[8,128], index: 3, kind: output, shape index: {}]
  %s4 = sld [smem:[#allocation0]]
  $region30: #{_lambda_.84} parent=0
    _
  %s6 = ssub.s32 1, %s4
  %s7 = scalar_select 0, %s6, %s4
  // Predicated region
  $region2: #{_lambda_.84} parent=0 // pred_check
    _
  $region3: #{_lambda_.84} parent=0 // pred_check_branch
    %9 = sbr.rel (0) target = $region5
  $region4: #{_lambda_.84} parent=0 // pred_region
    _
  $region5: #{_lambda_.84} parent=0 // pred_fallthru
    _
  // Predicated region
  $region6: #{_lambda_.84} parent=0 // pred_check
    _
  $region7: #{_lambda_.84} parent=0 // pred_check_branch
    %11 = sbr.rel (0) target = $region9
  $region8: #{_lambda_.84} parent=0 // pred_region
    _
  $region9: #{_lambda_.84} parent=0 // pred_fallthru
    _
  // Predicated region
  $region10: #{_lambda_.84} parent=0 // pred_check
    _
  $region11: #{_lambda_.84} parent=0 // pred_check_branch
    %13 = sbr.rel (0) target = $region13
  $region12: #{_lambda_.84} parent=0 // pred_region
    _
  $region13: #{_lambda_.84} parent=0 // pred_fallthru
    _
  %p15 = scmp.eq.s32.totalorder 0, 0
  // Predicated region
  $region14: #{_lambda_.84} parent=0 // pred_check
    %p16 = pneg %p15
  $region15: #{_lambda_.84} parent=0 // pred_check_branch
    %18 = sbr.rel (%p16) target = $region17
  $region16: #{_lambda_.84} parent=0 // pred_region
    %19 = vst [vmem:[#allocation2] sm:$0xff] 0.0
  $region17: #{_lambda_.84} parent=0 // pred_fallthru
    _
  %v20 = vld [vmem:[#allocation2] sm:$0xff]
  %v21 = vld [vmem:[%s0] sm:$0xf]
  %v22 = vld [vmem:[%s1] sm:$0xf]
  %v23 = vld [vmem:[%s1 + $0x4] sm:$0xf]
  %v24 = vld [vmem:[%s1 + $0x8] sm:$0xf]
  %v25 = vld [vmem:[%s1 + $0xc] sm:$0xf]
  %v26 = vld [vmem:[%s1 + $0x10] sm:$0xf]
  %v27 = vld [vmem:[%s1 + $0x14] sm:$0xf]
  %v28 = vld [vmem:[%s1 + $0x18] sm:$0xf]
  %v29 = vld [vmem:[%s1 + $0x1c] sm:$0xf]
  %v30 = vld [vmem:[%s1 + $0x20] sm:$0xf]
  %v31 = vld [vmem:[%s1 + $0x24] sm:$0xf]
  %v32 = vld [vmem:[%s1 + $0x28] sm:$0xf]
  %v33 = vld [vmem:[%s1 + $0x2c] sm:$0xf]
  %v34 = vld [vmem:[%s1 + $0x30] sm:$0xf]
  %v35 = vld [vmem:[%s1 + $0x34] sm:$0xf]
  %v36 = vld [vmem:[%s1 + $0x38] sm:$0xf]
  %v37 = vld [vmem:[%s1 + $0x3c] sm:$0xf]
  %v54 = vunpack.c.l.b16 %v22
  %v55 = vunpack.c.l.b16 %v23
  %v56 = vunpack.c.l.b16 %v24
  %v57 = vunpack.c.l.b16 %v25
  %v58 = vunpack.c.l.b16 %v26
  %v59 = vunpack.c.l.b16 %v27
  %v60 = vunpack.c.l.b16 %v28
  %v61 = vunpack.c.l.b16 %v29
  %v62 = vunpack.c.l.b16 %v30
  %v63 = vunpack.c.l.b16 %v31
  %v64 = vunpack.c.l.b16 %v32
  %v65 = vunpack.c.l.b16 %v33
  %v66 = vunpack.c.l.b16 %v34
  %v67 = vunpack.c.l.b16 %v35
  %v68 = vunpack.c.l.b16 %v36
  %v69 = vunpack.c.l.b16 %v37
  %v70 = vpack.c.b16 %v55, %v54
  %v71 = vpack.c.b16 %v57, %v56
  %v72 = vpack.c.b16 %v59, %v58
  %v73 = vpack.c.b16 %v61, %v60
  %v74 = vpack.c.b16 %v63, %v62
  %v75 = vpack.c.b16 %v65, %v64
  %v76 = vpack.c.b16 %v67, %v66
  %v77 = vpack.c.b16 %v69, %v68
  %86 = vmatprep.subr.bf16.mxu0 0
  %87 = vmatpush1.bf16.msra.mxu0 %v77
  %88 = vmatprep.subr.bf16.mxu0 0
  %89 = vmatpush1.bf16.msra.mxu0 %v76
  %90 = vmatprep.subr.bf16.mxu0 0
  %91 = vmatpush1.bf16.msra.mxu0 %v75
  %92 = vmatprep.subr.bf16.mxu0 0
  %93 = vmatpush1.bf16.msra.mxu0 %v74
  %94 = vmatprep.subr.bf16.mxu0 0
  %95 = vmatpush1.bf16.msra.mxu0 %v73
  %96 = vmatprep.subr.bf16.mxu0 0
  %97 = vmatpush1.bf16.msra.mxu0 %v72
  %98 = vmatprep.subr.bf16.mxu0 0
  %99 = vmatpush1.bf16.msra.mxu0 %v71
  %100 = vmatprep.subr.bf16.mxu0 0
  %101 = vmatpush1.bf16.msra.mxu0 %v70
  %102 = vmatprep.subr.bf16.mxu0 0
  %103 = vmatpush2.bf16.msra.mxu0 0
  %104 = vmatprep.subr.bf16.mxu0 0
  %105 = vmatpush2.bf16.msra.mxu0 0
  %106 = vmatprep.subr.bf16.mxu0 0
  %107 = vmatpush2.bf16.msra.mxu0 0
  %108 = vmatprep.subr.bf16.mxu0 0
  %109 = vmatpush2.bf16.msra.mxu0 0
  %110 = vmatprep.subr.bf16.mxu0 0
  %111 = vmatpush2.bf16.msra.mxu0 0
  %112 = vmatprep.subr.bf16.mxu0 0
  %113 = vmatpush2.bf16.msra.mxu0 0
  %114 = vmatprep.subr.bf16.mxu0 0
  %115 = vmatpush2.bf16.msra.mxu0 0
  %116 = vmatprep.subr.bf16.mxu0 0
  %117 = vmatpush2.bf16.msra.mxu0 0
  %118 = vmatprep.mubr.bf16.mxu0 0
  %119 = vmatmul.mubr.bf16.gmra.mxu0 %v21
  %v120 = vpop.f32.mrf.mxu0
  %v121 = vadd.f32 0.0, %v120
  %v122 = vpop.f32.mrf.mxu0
  %v123 = vpop.f32.mrf.mxu0
  %v124 = vpop.f32.mrf.mxu0
  %125 = vdwg.mxu0
  %v126 = vadd.f32 %v20, %v121
  %127 = vst [vmem:[#allocation2] sm:$0xff] %v126
  // Predicated region
  $region18: #{_lambda_.84} parent=0 // pred_check
    %p128 = pneg %p15
  $region19: #{_lambda_.84} parent=0 // pred_check_branch
    %130 = sbr.rel (%p128) target = $region21
  $region20: #{_lambda_.84} parent=0 // pred_region
    %v131 = vld [vmem:[#allocation2] sm:$0xff]
    %v132 = vld [vmem:[%s2] sm:$0x1]
    %v134 = vlaneseq
    %v135 = vshrl.u32 %v134, 7
    %v136 = vsub.s32 0, %v135
    %v137 = vrot.slane %v132, %v136
    %v139 = vadd.f32 %v131, %v137
    %v140 = vmax.f32 %v139, 0.0
    %v141 = vpack.c.bf16 %v140, %v140
    %142 = vst [vmem:[%s3] sm:$0xf] %v141
  $region21: #{_lambda_.84} parent=0 // pred_fallthru
    _
  // Predicated region
  $region22: #{_lambda_.84} parent=0 // pred_check
    _
  $region23: #{_lambda_.84} parent=0 // pred_check_branch
    %144 = sbr.rel (0) target = $region25
  $region24: #{_lambda_.84} parent=0 // pred_region
    _
  $region25: #{_lambda_.84} parent=0 // pred_fallthru
    _
  // Predicated region
  $region26: #{_lambda_.84} parent=0 // pred_check
    _
  $region27: #{_lambda_.84} parent=0 // pred_check_branch
    %146 = sbr.rel (0) target = $region29
  $region28: #{_lambda_.84} parent=0 // pred_region
    _
  $region29: #{_lambda_.84} parent=0 // pred_fallthru
    _

// kernel: _lambda_.83
$region0: #{_lambda_.83}
  #allocation0 [shape = 'u32[]', space=smem, size = 0x4, offset = 0x4, fixed_abs, tag = 'smem constant byte address 0x4 - core index']
  #allocation1 [shape = 'u32[144,128]{1,0:T(1,128)}', space=vmem, size = 0x12000, scoped, tag = 'internal scratch']
  #allocation2 [shape = 'f32[8,128]{1,0:T(8,128)}', space=vmem, size = 0x1000, scoped, tag = 'scratch operand']
  %s0 = inlined_call_operand.vmem [shape: bf16[8,128], index: 0, kind: input, shape index: {}]
  %s1 = inlined_call_operand.vmem [shape: bf16[128,128], index: 1, kind: input, shape index: {}]
  %s2 = inlined_call_operand.vmem [shape: f32[1,128], index: 2, kind: input, shape index: {}]
  %s3 = inlined_call_operand.vmem [shape: bf16[8,128], index: 3, kind: input, shape index: {}]
  %s4 = inlined_call_operand.vmem [shape: bf16[8,128], index: 4, kind: output, shape index: {}]
  %s5 = sld [smem:[#allocation0]]
  $region34: #{_lambda_.83} parent=0
    _
  %s7 = ssub.s32 1, %s5
  %s8 = scalar_select 0, %s7, %s5
  // Predicated region
  $region2: #{_lambda_.83} parent=0 // pred_check
    _
  $region3: #{_lambda_.83} parent=0 // pred_check_branch
    %10 = sbr.rel (0) target = $region5
  $region4: #{_lambda_.83} parent=0 // pred_region
    _
  $region5: #{_lambda_.83} parent=0 // pred_fallthru
    _
  // Predicated region
  $region6: #{_lambda_.83} parent=0 // pred_check
    _
  $region7: #{_lambda_.83} parent=0 // pred_check_branch
    %12 = sbr.rel (0) target = $region9
  $region8: #{_lambda_.83} parent=0 // pred_region
    _
  $region9: #{_lambda_.83} parent=0 // pred_fallthru
    _
  // Predicated region
  $region10: #{_lambda_.83} parent=0 // pred_check
    _
  $region11: #{_lambda_.83} parent=0 // pred_check_branch
    %14 = sbr.rel (0) target = $region13
  $region12: #{_lambda_.83} parent=0 // pred_region
    _
  $region13: #{_lambda_.83} parent=0 // pred_fallthru
    _
  // Predicated region
  $region14: #{_lambda_.83} parent=0 // pred_check
    _
  $region15: #{_lambda_.83} parent=0 // pred_check_branch
    %16 = sbr.rel (0) target = $region17
  $region16: #{_lambda_.83} parent=0 // pred_region
    _
  $region17: #{_lambda_.83} parent=0 // pred_fallthru
    _
  %p18 = scmp.eq.s32.totalorder 0, 0
  // Predicated region
  $region18: #{_lambda_.83} parent=0 // pred_check
    %p19 = pneg %p18
  $region19: #{_lambda_.83} parent=0 // pred_check_branch
    %21 = sbr.rel (%p19) target = $region21
  $region20: #{_lambda_.83} parent=0 // pred_region
    %22 = vst [vmem:[#allocation2] sm:$0xff] 0.0
  $region21: #{_lambda_.83} parent=0 // pred_fallthru
    _
  %v23 = vld [vmem:[#allocation2] sm:$0xff]
  %v24 = vld [vmem:[%s0] sm:$0xf]
  %v25 = vld [vmem:[%s1] sm:$0xf]
  %v26 = vld [vmem:[%s1 + $0x4] sm:$0xf]
  %v27 = vld [vmem:[%s1 + $0x8] sm:$0xf]
  %v28 = vld [vmem:[%s1 + $0xc] sm:$0xf]
  %v29 = vld [vmem:[%s1 + $0x10] sm:$0xf]
  %v30 = vld [vmem:[%s1 + $0x14] sm:$0xf]
  %v31 = vld [vmem:[%s1 + $0x18] sm:$0xf]
  %v32 = vld [vmem:[%s1 + $0x1c] sm:$0xf]
  %v33 = vld [vmem:[%s1 + $0x20] sm:$0xf]
  %v34 = vld [vmem:[%s1 + $0x24] sm:$0xf]
  %v35 = vld [vmem:[%s1 + $0x28] sm:$0xf]
  %v36 = vld [vmem:[%s1 + $0x2c] sm:$0xf]
  %v37 = vld [vmem:[%s1 + $0x30] sm:$0xf]
  %v38 = vld [vmem:[%s1 + $0x34] sm:$0xf]
  %v39 = vld [vmem:[%s1 + $0x38] sm:$0xf]
  %v40 = vld [vmem:[%s1 + $0x3c] sm:$0xf]
  %v57 = vunpack.c.l.b16 %v25
  %v58 = vunpack.c.l.b16 %v26
  %v59 = vunpack.c.l.b16 %v27
  %v60 = vunpack.c.l.b16 %v28
  %v61 = vunpack.c.l.b16 %v29
  %v62 = vunpack.c.l.b16 %v30
  %v63 = vunpack.c.l.b16 %v31
  %v64 = vunpack.c.l.b16 %v32
  %v65 = vunpack.c.l.b16 %v33
  %v66 = vunpack.c.l.b16 %v34
  %v67 = vunpack.c.l.b16 %v35
  %v68 = vunpack.c.l.b16 %v36
  %v69 = vunpack.c.l.b16 %v37
  %v70 = vunpack.c.l.b16 %v38
  %v71 = vunpack.c.l.b16 %v39
  %v72 = vunpack.c.l.b16 %v40
  %v73 = vpack.c.b16 %v58, %v57
  %v74 = vpack.c.b16 %v60, %v59
  %v75 = vpack.c.b16 %v62, %v61
  %v76 = vpack.c.b16 %v64, %v63
  %v77 = vpack.c.b16 %v66, %v65
  %v78 = vpack.c.b16 %v68, %v67
  %v79 = vpack.c.b16 %v70, %v69
  %v80 = vpack.c.b16 %v72, %v71
  %89 = vmatprep.subr.bf16.mxu0 0
  %90 = vmatpush1.bf16.msra.mxu0 %v80
  %91 = vmatprep.subr.bf16.mxu0 0
  %92 = vmatpush1.bf16.msra.mxu0 %v79
  %93 = vmatprep.subr.bf16.mxu0 0
  %94 = vmatpush1.bf16.msra.mxu0 %v78
  %95 = vmatprep.subr.bf16.mxu0 0
  %96 = vmatpush1.bf16.msra.mxu0 %v77
  %97 = vmatprep.subr.bf16.mxu0 0
  %98 = vmatpush1.bf16.msra.mxu0 %v76
  %99 = vmatprep.subr.bf16.mxu0 0
  %100 = vmatpush1.bf16.msra.mxu0 %v75
  %101 = vmatprep.subr.bf16.mxu0 0
  %102 = vmatpush1.bf16.msra.mxu0 %v74
  %103 = vmatprep.subr.bf16.mxu0 0
  %104 = vmatpush1.bf16.msra.mxu0 %v73
  %105 = vmatprep.subr.bf16.mxu0 0
  %106 = vmatpush2.bf16.msra.mxu0 0
  %107 = vmatprep.subr.bf16.mxu0 0
  %108 = vmatpush2.bf16.msra.mxu0 0
  %109 = vmatprep.subr.bf16.mxu0 0
  %110 = vmatpush2.bf16.msra.mxu0 0
  %111 = vmatprep.subr.bf16.mxu0 0
  %112 = vmatpush2.bf16.msra.mxu0 0
  %113 = vmatprep.subr.bf16.mxu0 0
  %114 = vmatpush2.bf16.msra.mxu0 0
  %115 = vmatprep.subr.bf16.mxu0 0
  %116 = vmatpush2.bf16.msra.mxu0 0
  %117 = vmatprep.subr.bf16.mxu0 0
  %118 = vmatpush2.bf16.msra.mxu0 0
  %119 = vmatprep.subr.bf16.mxu0 0
  %120 = vmatpush2.bf16.msra.mxu0 0
  %121 = vmatprep.mubr.bf16.mxu0 0
  %122 = vmatmul.mubr.bf16.gmra.mxu0 %v24
  %v123 = vpop.f32.mrf.mxu0
  %v124 = vadd.f32 0.0, %v123
  %v125 = vpop.f32.mrf.mxu0
  %v126 = vpop.f32.mrf.mxu0
  %v127 = vpop.f32.mrf.mxu0
  %128 = vdwg.mxu0
  %v129 = vadd.f32 %v23, %v124
  %130 = vst [vmem:[#allocation2] sm:$0xff] %v129
  // Predicated region
  $region22: #{_lambda_.83} parent=0 // pred_check
    %p131 = pneg %p18
  $region23: #{_lambda_.83} parent=0 // pred_check_branch
    %133 = sbr.rel (%p131) target = $region25
  $region24: #{_lambda_.83} parent=0 // pred_region
    %v134 = vld [vmem:[#allocation2] sm:$0xff]
    %v135 = vld [vmem:[%s2] sm:$0x1]
    %v137 = vlaneseq
    %v138 = vshrl.u32 %v137, 7
    %v139 = vsub.s32 0, %v138
    %v140 = vrot.slane %v135, %v139
    %v142 = vadd.f32 %v134, %v140
    %v143 = vld [vmem:[%s3] sm:$0xf]
    %v144 = vunpack.c.l.bf16 %v143
    %v145 = vadd.f32 %v142, %v144
    %v146 = vmax.f32 %v145, 0.0
    %v147 = vpack.c.bf16 %v146, %v146
    %148 = vst [vmem:[%s4] sm:$0xf] %v147
  $region25: #{_lambda_.83} parent=0 // pred_fallthru
    _
  // Predicated region
  $region26: #{_lambda_.83} parent=0 // pred_check
    _
  $region27: #{_lambda_.83} parent=0 // pred_check_branch
    %150 = sbr.rel (0) target = $region29
  $region28: #{_lambda_.83} parent=0 // pred_region
    _
  $region29: #{_lambda_.83} parent=0 // pred_fallthru
    _
  // Predicated region
  $region30: #{_lambda_.83} parent=0 // pred_check
    _
  $region31: #{_lambda_.83} parent=0 // pred_check_branch
    %152 = sbr.rel (0) target = $region33
  $region32: #{_lambda_.83} parent=0 // pred_region
    _
  $region33: #{_lambda_.83} parent=0 // pred_fallthru
    _

// kernel: _lambda_.81
$region0: #{_lambda_.81}
  #allocation0 [shape = 'u32[]', space=smem, size = 0x4, offset = 0x4, fixed_abs, tag = 'smem constant byte address 0x4 - core index']
  #allocation1 [shape = 'u32[144,128]{1,0:T(1,128)}', space=vmem, size = 0x12000, scoped, tag = 'internal scratch']
  #allocation2 [shape = 'f32[8,128]{1,0:T(8,128)}', space=vmem, size = 0x1000, scoped, tag = 'scratch operand']
  %s0 = inlined_call_operand.vmem [shape: bf16[8,1152], index: 0, kind: input, shape index: {}]
  %s1 = inlined_call_operand.vmem [shape: bf16[1152,128], index: 1, kind: input, shape index: {}]
  %s2 = inlined_call_operand.vmem [shape: f32[1,128], index: 2, kind: input, shape index: {}]
  %s3 = inlined_call_operand.vmem [shape: bf16[8,128], index: 3, kind: output, shape index: {}]
  %s4 = sld [smem:[#allocation0]]
  $region53: #{_lambda_.81} parent=0
    _
  %s6 = ssub.s32 1, %s4
  %s7 = scalar_select 0, %s6, %s4
  loop: start=0, step=1, limit=5
  $region2: #{_lambda_.81} parent=0 // loop_pre_header
    _
  $region3: #{_lambda_.81} parent=0 // loop_header
    %s9 = sphi 0, %s13
    %p10 = scmp.ge.s32.totalorder %s9, 5
    %s16 = sphi 0, %s28
    %s17 = sphi 0, %s24
    %s18 = sphi 0, %s16
    %s19 = sphi 0, %s17
    %s20 = sphi 0, %s18
    %s21 = sphi 0, %s19
    %s33 = sphi 0, %s35
    %s36 = sphi 0, %s33
    %s37 = sphi 0, %s36
    %s53 = sphi 0, %s37
    %s59 = sphi 0, %s61
    %s62 = sphi 0, %s59
    %s63 = sphi 0, %s62
    %s79 = sphi 0, %s63
    %s83 = sphi 0, %s83
    %s85 = sphi 0, %s83
    %s86 = sphi 0, %s85
    %s100 = sphi 0, %s86
    %s106 = sphi 0, %s108
    %s109 = sphi 0, %s106
    %s110 = sphi 0, %s109
    %s126 = sphi 0, %s110
  $region4: #{_lambda_.81} parent=0 // loop_header_branch
    %12 = sbr.rel (%p10) target = $region8
  $region5: #{_lambda_.81} parent=0 // loop_body
    %s14 = ssub.s32 %s9, 1
    %s15 = ssub.s32 %s9, 2
    %s22 = sadd.s32 1, %s17
    %p23 = scmp.ge.s32.totalorder %s22, 3
    %s24 = scalar_select %p23, 0, %s22
    %s25 = sadd.s32 1, %s16
    %s26 = scalar_select %p23, %s25, %s16
    %p27 = scmp.ge.s32.totalorder %s26, 1
    %s28 = scalar_select %p27, 0, %s26
    %s29 = ssub.s32 %s16, %s28
    %s30 = ssub.s32 %s17, %s24
    %s31 = sor.u32 %s29, %s30
    %p32 = scmp.eq.s32.totalorder %s31, 0
    %s34 = sadd.s32 %s33, 1
    %s35 = scalar_select %p32, %s33, %s34
    %p38 = pneg %p32
    %p39 = scmp.eq.s32.totalorder %s9, 2
    %p40 = por %p38, %p39
    %p41 = scmp.ne.s32.totalorder %s33, %s36
    %p42 = scmp.eq.s32.totalorder %s9, 0
    %p43 = por %p41, %p42
    %p44 = scmp.ne.s32.totalorder %s33, %s36
    %p45 = scmp.eq.s32.totalorder %s14, 2
    %p46 = por %p44, %p45
    %p47 = scmp.ne.s32.totalorder %s36, %s37
    %p48 = scmp.eq.s32.totalorder %s14, 0
    %p49 = por %p47, %p48
    %p50 = scmp.ne.s32.totalorder %s36, %s37
    %p51 = scmp.eq.s32.totalorder %s15, 2
    %p52 = por %p50, %p51
    %p54 = scmp.ne.s32.totalorder %s37, %s53
    %p55 = scmp.eq.s32.totalorder %s15, 0
    %p56 = por %p54, %p55
    %s57 = ssub.s32 %s17, %s24
    %p58 = scmp.eq.s32.totalorder %s57, 0
    %s60 = sadd.s32 %s59, 1
    %s61 = scalar_select %p58, %s59, %s60
    %p64 = pneg %p58
    %p65 = scmp.eq.s32.totalorder %s9, 2
    %p66 = por %p64, %p65
    %p67 = scmp.ne.s32.totalorder %s59, %s62
    %p68 = scmp.eq.s32.totalorder %s9, 0
    %p69 = por %p67, %p68
    %p70 = scmp.ne.s32.totalorder %s59, %s62
    %p71 = scmp.eq.s32.totalorder %s14, 2
    %p72 = por %p70, %p71
    %p73 = scmp.ne.s32.totalorder %s62, %s63
    %p74 = scmp.eq.s32.totalorder %s14, 0
    %p75 = por %p73, %p74
    %p76 = scmp.ne.s32.totalorder %s62, %s63
    %p77 = scmp.eq.s32.totalorder %s15, 2
    %p78 = por %p76, %p77
    %p80 = scmp.ne.s32.totalorder %s63, %s79
    %p81 = scmp.eq.s32.totalorder %s15, 0
    %p82 = por %p80, %p81
    %s84 = sadd.s32 %s83, 1
    %p87 = scmp.eq.s32.totalorder %s9, 2
    %p88 = scmp.ne.s32.totalorder %s83, %s85
    %p89 = scmp.eq.s32.totalorder %s9, 0
    %p90 = por %p88, %p89
    %p91 = scmp.ne.s32.totalorder %s83, %s85
    %p92 = scmp.eq.s32.totalorder %s14, 2
    %p93 = por %p91, %p92
    %p94 = scmp.ne.s32.totalorder %s85, %s86
    %p95 = scmp.eq.s32.totalorder %s14, 0
    %p96 = por %p94, %p95
    %p97 = scmp.ne.s32.totalorder %s85, %s86
    %p98 = scmp.eq.s32.totalorder %s15, 2
    %p99 = por %p97, %p98
    %p101 = scmp.ne.s32.totalorder %s86, %s100
    %p102 = scmp.eq.s32.totalorder %s15, 0
    %p103 = por %p101, %p102
    %s104 = ssub.s32 %s16, %s28
    %p105 = scmp.eq.s32.totalorder %s104, 0
    %s107 = sadd.s32 %s106, 1
    %s108 = scalar_select %p105, %s106, %s107
    %p111 = pneg %p105
    %p112 = scmp.eq.s32.totalorder %s9, 2
    %p113 = por %p111, %p112
    %p114 = scmp.ne.s32.totalorder %s106, %s109
    %p115 = scmp.eq.s32.totalorder %s9, 0
    %p116 = por %p114, %p115
    %p117 = scmp.ne.s32.totalorder %s106, %s109
    %p118 = scmp.eq.s32.totalorder %s14, 2
    %p119 = por %p117, %p118
    %p120 = scmp.ne.s32.totalorder %s109, %s110
    %p121 = scmp.eq.s32.totalorder %s14, 0
    %p122 = por %p120, %p121
    %p123 = scmp.ne.s32.totalorder %s109, %s110
    %p124 = scmp.eq.s32.totalorder %s15, 2
    %p125 = por %p123, %p124
    %p127 = scmp.ne.s32.totalorder %s110, %s126
    %p128 = scmp.eq.s32.totalorder %s15, 0
    %p129 = por %p127, %p128
    %p130 = scmp.le.s32.totalorder 1, %s9
    %p131 = scmp.lt.s32.totalorder %s9, 4
    %p132 = pnand %p130, %p131
    %p133 = pneg %p132
    // Predicated region
    $region9: #{_lambda_.81} parent=5 // pred_check
      _
    $region10: #{_lambda_.81} parent=5 // pred_check_branch
      %135 = sbr.rel (%p132) target = $region12
    $region11: #{_lambda_.81} parent=5 // pred_region
      %s136 = ssub.s32 %s9, 1
      // Predicated region
      $region13: #{_lambda_.81} parent=11 // pred_check
        %p137 = pneg %p96
      $region14: #{_lambda_.81} parent=11 // pred_check_branch
        %139 = sbr.rel (%p137) target = $region16
      $region15: #{_lambda_.81} parent=11 // pred_region
        _
      $region16: #{_lambda_.81} parent=11 // pred_fallthru
        _
    $region12: #{_lambda_.81} parent=5 // pred_fallthru
      _
    %p140 = scmp.lt.s32.totalorder %s9, 3
    // Predicated region
    $region17: #{_lambda_.81} parent=5 // pred_check
      %p141 = pneg %p140
    $region18: #{_lambda_.81} parent=5 // pred_check_branch
      %143 = sbr.rel (%p141) target = $region20
    $region19: #{_lambda_.81} parent=5 // pred_region
      // Predicated region
      $region21: #{_lambda_.81} parent=19 // pred_check
        %p144 = pneg %p43
      $region22: #{_lambda_.81} parent=19 // pred_check_branch
        %146 = sbr.rel (%p144) target = $region24
      $region23: #{_lambda_.81} parent=19 // pred_region
        %s147 = smul.u32 3, %s17
        %p148 = scmp.lt.s32.totalorder %s16, 0
        %s149 = scalar_select %p148, %s16, 0
        %p150 = scmp.lt.s32.totalorder %s147, 8
        %s151 = scalar_select %p150, %s147, 8
        %s152 = smul.addr %s149, 9
        %s153 = sadd.s32 %s151, %s152
        %s154 = smul.addr %s153, 4
        %s155 = scalar_lea.vmem %s0, %s154
        %s156 = smul.u32 3, %s17
      $region24: #{_lambda_.81} parent=19 // pred_fallthru
        _
      // Predicated region
      $region25: #{_lambda_.81} parent=19 // pred_check
        %p157 = pneg %p69
      $region26: #{_lambda_.81} parent=19 // pred_check_branch
        %159 = sbr.rel (%p157) target = $region28
      $region27: #{_lambda_.81} parent=19 // pred_region
        %s160 = smul.u32 48, %s17
        %p161 = scmp.lt.s32.totalorder %s160, 143
        %s162 = scalar_select %p161, %s160, 143
        %s163 = smul.addr %s162, 4
        %s164 = scalar_lea.vmem %s1, %s163
        %s165 = smul.u32 48, %s17
      $region28: #{_lambda_.81} parent=19 // pred_fallthru
        _
    $region20: #{_lambda_.81} parent=5 // pred_fallthru
      _
    %p166 = scmp.le.s32.totalorder 1, %s9
    %p167 = scmp.lt.s32.totalorder %s9, 4
    %p168 = pnand %p166, %p167
    %p169 = pneg %p168
    // Predicated region
    $region29: #{_lambda_.81} parent=5 // pred_check
      _
    $region30: #{_lambda_.81} parent=5 // pred_check_branch
      %171 = sbr.rel (%p168) target = $region32
    $region31: #{_lambda_.81} parent=5 // pred_region
      %s172 = ssub.s32 %s9, 1
      %s173 = smul.u32 3, %s19
      %p174 = scmp.lt.s32.totalorder %s18, 0
      %s175 = scalar_select %p174, %s18, 0
      %p176 = scmp.lt.s32.totalorder %s173, 8
      %s177 = scalar_select %p176, %s173, 8
      %s178 = smul.addr %s175, 9
      %s179 = sadd.s32 %s177, %s178
      %s180 = smul.addr %s179, 4
      %s181 = scalar_lea.vmem %s0, %s180
      %p182 = pneg %p49
      %p183 = pneg %p46
      %s184 = smul.u32 48, %s19
      %p185 = scmp.lt.s32.totalorder %s184, 143
      %s186 = scalar_select %p185, %s184, 143
      %s187 = smul.addr %s186, 4
      %s188 = scalar_lea.vmem %s1, %s187
      %p189 = pneg %p75
      %p190 = pneg %p72
      %p191 = pneg %p96
      %p192 = pneg %p93
      %p193 = pneg %p122
      %p194 = pneg %p119
      %p195 = scmp.lt.s32.totalorder %s18, 0
      %s196 = scalar_select %p195, %s18, 0
      %s197 = smul.addr %s196, 4
      %s198 = scalar_lea.vmem %s3, %s197
      %s199 = smul.u32 3, %s19
      %p200 = scmp.lt.s32.totalorder %s18, 0
      %s201 = scalar_select %p200, %s18, 0
      %p202 = scmp.lt.s32.totalorder %s199, 8
      %s203 = scalar_select %p202, %s199, 8
      %s204 = smul.addr %s201, 9
      %s205 = sadd.s32 %s203, %s204
      %s206 = smul.addr %s205, 4
      %s207 = scalar_lea.vmem %s0, %s206
      %s208 = smul.u32 3, %s19
      %s209 = smul.u32 48, %s19
      %p210 = scmp.lt.s32.totalorder %s209, 143
      %s211 = scalar_select %p210, %s209, 143
      %s212 = smul.addr %s211, 4
      %s213 = scalar_lea.vmem %s1, %s212
      %s214 = smul.u32 48, %s19
      %p215 = scmp.lt.s32.totalorder %s18, 0
      %s216 = scalar_select %p215, %s18, 0
      %s217 = smul.addr %s216, 4
      %s218 = scalar_lea.vmem %s3, %s217
      %p220 = scmp.eq.s32.totalorder %s19, 0
      // Predicated region
      $region33: #{_lambda_.81} parent=31 // pred_check
        %p221 = pneg %p220
      $region34: #{_lambda_.81} parent=31 // pred_check_branch
        %223 = sbr.rel (%p221) target = $region36
      $region35: #{_lambda_.81} parent=31 // pred_region
        %224 = vst [vmem:[#allocation2] sm:$0xff] 0.0
      $region36: #{_lambda_.81} parent=31 // pred_fallthru
        _
      %v225 = vld [vmem:[#allocation2] sm:$0xff]
      %v226 = vld [vmem:[%s207] sm:$0xff]
      %v227 = vld [vmem:[%s207 + $0x8] sm:$0xf]
      %v228 = vld [vmem:[%s213] sm:$0xf]
      %v229 = vld [vmem:[%s213 + $0x4] sm:$0xf]
      %v230 = vld [vmem:[%s213 + $0x8] sm:$0xf]
      %v231 = vld [vmem:[%s213 + $0xc] sm:$0xf]
      %v232 = vld [vmem:[%s213 + $0x10] sm:$0xf]
      %v233 = vld [vmem:[%s213 + $0x14] sm:$0xf]
      %v234 = vld [vmem:[%s213 + $0x18] sm:$0xf]
      %v235 = vld [vmem:[%s213 + $0x1c] sm:$0xf]
      %v236 = vld [vmem:[%s213 + $0x20] sm:$0xf]
      %v237 = vld [vmem:[%s213 + $0x24] sm:$0xf]
      %v238 = vld [vmem:[%s213 + $0x28] sm:$0xf]
      %v239 = vld [vmem:[%s213 + $0x2c] sm:$0xf]
      %v240 = vld [vmem:[%s213 + $0x30] sm:$0xf]
      %v241 = vld [vmem:[%s213 + $0x34] sm:$0xf]
      %v242 = vld [vmem:[%s213 + $0x38] sm:$0xf]
      %v243 = vld [vmem:[%s213 + $0x3c] sm:$0xf]
      %v244 = vld [vmem:[%s213 + $0x40] sm:$0xf]
      %v245 = vld [vmem:[%s213 + $0x44] sm:$0xf]
      %v246 = vld [vmem:[%s213 + $0x48] sm:$0xf]
      %v247 = vld [vmem:[%s213 + $0x4c] sm:$0xf]
      %v248 = vld [vmem:[%s213 + $0x50] sm:$0xf]
      %v249 = vld [vmem:[%s213 + $0x54] sm:$0xf]
      %v250 = vld [vmem:[%s213 + $0x58] sm:$0xf]
      %v251 = vld [vmem:[%s213 + $0x5c] sm:$0xf]
      %v252 = vld [vmem:[%s213 + $0x60] sm:$0xf]
      %v253 = vld [vmem:[%s213 + $0x64] sm:$0xf]
      %v254 = vld [vmem:[%s213 + $0x68] sm:$0xf]
      %v255 = vld [vmem:[%s213 + $0x6c] sm:$0xf]
      %v256 = vld [vmem:[%s213 + $0x70] sm:$0xf]
      %v257 = vld [vmem:[%s213 + $0x74] sm:$0xf]
      %v258 = vld [vmem:[%s213 + $0x78] sm:$0xf]
      %v259 = vld [vmem:[%s213 + $0x7c] sm:$0xf]
      %v260 = vld [vmem:[%s213 + $0x80] sm:$0xf]
      %v261 = vld [vmem:[%s213 + $0x84] sm:$0xf]
      %v262 = vld [vmem:[%s213 + $0x88] sm:$0xf]
      %v263 = vld [vmem:[%s213 + $0x8c] sm:$0xf]
      %v264 = vld [vmem:[%s213 + $0x90] sm:$0xf]
      %v265 = vld [vmem:[%s213 + $0x94] sm:$0xf]
      %v266 = vld [vmem:[%s213 + $0x98] sm:$0xf]
      %v267 = vld [vmem:[%s213 + $0x9c] sm:$0xf]
      %v268 = vld [vmem:[%s213 + $0xa0] sm:$0xf]
      %v269 = vld [vmem:[%s213 + $0xa4] sm:$0xf]
      %v270 = vld [vmem:[%s213 + $0xa8] sm:$0xf]
      %v271 = vld [vmem:[%s213 + $0xac] sm:$0xf]
      %v272 = vld [vmem:[%s213 + $0xb0] sm:$0xf]
      %v273 = vld [vmem:[%s213 + $0xb4] sm:$0xf]
      %v274 = vld [vmem:[%s213 + $0xb8] sm:$0xf]
      %v275 = vld [vmem:[%s213 + $0xbc] sm:$0xf]
      %v278 = vunpack.c.l.b16 %v226
      %v279 = vunpack.c.h.b16 %v226
      %v280 = vunpack.c.l.b16 %v227
      %v281 = vpack.c.b16 %v278, %v278
      %v282 = vpack.c.b16 %v279, %v279
      %v283 = vpack.c.b16 %v280, %v280
      %v335 = vunpack.c.l.b16 %v228
      %v336 = vunpack.c.l.b16 %v229
      %v337 = vunpack.c.l.b16 %v230
      %v338 = vunpack.c.l.b16 %v231
      %v339 = vunpack.c.l.b16 %v232
      %v340 = vunpack.c.l.b16 %v233
      %v341 = vunpack.c.l.b16 %v234
      %v342 = vunpack.c.l.b16 %v235
      %v343 = vunpack.c.l.b16 %v236
      %v344 = vunpack.c.l.b16 %v237
      %v345 = vunpack.c.l.b16 %v238
      %v346 = vunpack.c.l.b16 %v239
      %v347 = vunpack.c.l.b16 %v240
      %v348 = vunpack.c.l.b16 %v241
      %v349 = vunpack.c.l.b16 %v242
      %v350 = vunpack.c.l.b16 %v243
      %v351 = vunpack.c.l.b16 %v244
      %v352 = vunpack.c.l.b16 %v245
      %v353 = vunpack.c.l.b16 %v246
      %v354 = vunpack.c.l.b16 %v247
      %v355 = vunpack.c.l.b16 %v248
      %v356 = vunpack.c.l.b16 %v249
      %v357 = vunpack.c.l.b16 %v250
      %v358 = vunpack.c.l.b16 %v251
      %v359 = vunpack.c.l.b16 %v252
      %v360 = vunpack.c.l.b16 %v253
      %v361 = vunpack.c.l.b16 %v254
      %v362 = vunpack.c.l.b16 %v255
      %v363 = vunpack.c.l.b16 %v256
      %v364 = vunpack.c.l.b16 %v257
      %v365 = vunpack.c.l.b16 %v258
      %v366 = vunpack.c.l.b16 %v259
      %v367 = vunpack.c.l.b16 %v260
      %v368 = vunpack.c.l.b16 %v261
      %v369 = vunpack.c.l.b16 %v262
      %v370 = vunpack.c.l.b16 %v263
      %v371 = vunpack.c.l.b16 %v264
      %v372 = vunpack.c.l.b16 %v265
      %v373 = vunpack.c.l.b16 %v266
      %v374 = vunpack.c.l.b16 %v267
      %v375 = vunpack.c.l.b16 %v268
      %v376 = vunpack.c.l.b16 %v269
      %v377 = vunpack.c.l.b16 %v270
      %v378 = vunpack.c.l.b16 %v271
      %v379 = vunpack.c.l.b16 %v272
      %v380 = vunpack.c.l.b16 %v273
      %v381 = vunpack.c.l.b16 %v274
      %v382 = vunpack.c.l.b16 %v275
      %v383 = vpack.c.b16 %v336, %v335
      %v384 = vpack.c.b16 %v338, %v337
      %v385 = vpack.c.b16 %v340, %v339
      %v386 = vpack.c.b16 %v342, %v341
      %v387 = vpack.c.b16 %v344, %v343
      %v388 = vpack.c.b16 %v346, %v345
      %v389 = vpack.c.b16 %v348, %v347
      %v390 = vpack.c.b16 %v350, %v349
      %v391 = vpack.c.b16 %v352, %v351
      %v392 = vpack.c.b16 %v354, %v353
      %v393 = vpack.c.b16 %v356, %v355
      %v394 = vpack.c.b16 %v358, %v357
      %v395 = vpack.c.b16 %v360, %v359
      %v396 = vpack.c.b16 %v362, %v361
      %v397 = vpack.c.b16 %v364, %v363
      %v398 = vpack.c.b16 %v366, %v365
      %v399 = vpack.c.b16 %v368, %v367
      %v400 = vpack.c.b16 %v370, %v369
      %v401 = vpack.c.b16 %v372, %v371
      %v402 = vpack.c.b16 %v374, %v373
      %v403 = vpack.c.b16 %v376, %v375
      %v404 = vpack.c.b16 %v378, %v377
      %v405 = vpack.c.b16 %v380, %v379
      %v406 = vpack.c.b16 %v382, %v381
      %431 = vmatprep.subr.bf16.mxu0 0
      %432 = vmatpush1.bf16.msra.mxu0 %v390
      %433 = vmatprep.subr.bf16.mxu0 0
      %434 = vmatpush1.bf16.msra.mxu0 %v389
      %435 = vmatprep.subr.bf16.mxu0 0
      %436 = vmatpush1.bf16.msra.mxu0 %v388
      %437 = vmatprep.subr.bf16.mxu0 0
      %438 = vmatpush1.bf16.msra.mxu0 %v387
      %439 = vmatprep.subr.bf16.mxu0 0
      %440 = vmatpush1.bf16.msra.mxu0 %v386
      %441 = vmatprep.subr.bf16.mxu0 0
      %442 = vmatpush1.bf16.msra.mxu0 %v385
      %443 = vmatprep.subr.bf16.mxu0 0
      %444 = vmatpush1.bf16.msra.mxu0 %v384
      %445 = vmatprep.subr.bf16.mxu0 0
      %446 = vmatpush1.bf16.msra.mxu0 %v383
      %447 = vmatprep.subr.bf16.mxu0 0
      %448 = vmatpush2.bf16.msra.mxu0 %v398
      %449 = vmatprep.subr.bf16.mxu0 0
      %450 = vmatpush2.bf16.msra.mxu0 %v397
      %451 = vmatprep.subr.bf16.mxu0 0
      %452 = vmatpush2.bf16.msra.mxu0 %v396
      %453 = vmatprep.subr.bf16.mxu0 0
      %454 = vmatpush2.bf16.msra.mxu0 %v395
      %455 = vmatprep.subr.bf16.mxu0 0
      %456 = vmatpush2.bf16.msra.mxu0 %v394
      %457 = vmatprep.subr.bf16.mxu0 0
      %458 = vmatpush2.bf16.msra.mxu0 %v393
      %459 = vmatprep.subr.bf16.mxu0 0
      %460 = vmatpush2.bf16.msra.mxu0 %v392
      %461 = vmatprep.subr.bf16.mxu0 0
      %462 = vmatpush2.bf16.msra.mxu0 %v391
      %463 = vmatprep.mubr.bf16.mxu0 %v282
      %464 = vmatmul.mubr.bf16.gmra.mxu0 %v281
      %v465 = vpop.f32.mrf.mxu0
      %v466 = vadd.f32 0.0, %v465
      %v467 = vpop.f32.mrf.mxu0
      %v468 = vpop.f32.mrf.mxu0
      %v469 = vpop.f32.mrf.mxu0
      %470 = vdwg.mxu0
      %471 = vmatprep.subr.bf16.mxu0 0
      %472 = vmatpush1.bf16.msra.mxu0 %v406
      %473 = vmatprep.subr.bf16.mxu0 0
      %474 = vmatpush1.bf16.msra.mxu0 %v405
      %475 = vmatprep.subr.bf16.mxu0 0
      %476 = vmatpush1.bf16.msra.mxu0 %v404
      %477 = vmatprep.subr.bf16.mxu0 0
      %478 = vmatpush1.bf16.msra.mxu0 %v403
      %479 = vmatprep.subr.bf16.mxu0 0
      %480 = vmatpush1.bf16.msra.mxu0 %v402
      %481 = vmatprep.subr.bf16.mxu0 0
      %482 = vmatpush1.bf16.msra.mxu0 %v401
      %483 = vmatprep.subr.bf16.mxu0 0
      %484 = vmatpush1.bf16.msra.mxu0 %v400
      %485 = vmatprep.subr.bf16.mxu0 0
      %486 = vmatpush1.bf16.msra.mxu0 %v399
      %487 = vmatprep.subr.bf16.mxu0 0
      %488 = vmatpush2.bf16.msra.mxu0 0
      %489 = vmatprep.subr.bf16.mxu0 0
      %490 = vmatpush2.bf16.msra.mxu0 0
      %491 = vmatprep.subr.bf16.mxu0 0
      %492 = vmatpush2.bf16.msra.mxu0 0
      %493 = vmatprep.subr.bf16.mxu0 0
      %494 = vmatpush2.bf16.msra.mxu0 0
      %495 = vmatprep.subr.bf16.mxu0 0
      %496 = vmatpush2.bf16.msra.mxu0 0
      %497 = vmatprep.subr.bf16.mxu0 0
      %498 = vmatpush2.bf16.msra.mxu0 0
      %499 = vmatprep.subr.bf16.mxu0 0
      %500 = vmatpush2.bf16.msra.mxu0 0
      %501 = vmatprep.subr.bf16.mxu0 0
      %502 = vmatpush2.bf16.msra.mxu0 0
      %503 = vmatprep.mubr.bf16.mxu0 0
      %504 = vmatmul.mubr.bf16.gmra.mxu0 %v283
      %v505 = vpop.f32.mrf.mxu0
      %v506 = vadd.f32 %v466, %v505
      %v507 = vpop.f32.mrf.mxu0
      %v508 = vpop.f32.mrf.mxu0
      %v509 = vpop.f32.mrf.mxu0
      %510 = vdwg.mxu0
      %v511 = vadd.f32 %v225, %v506
      %512 = vst [vmem:[#allocation2] sm:$0xff] %v511
      %p513 = scmp.eq.s32.totalorder %s19, 2
      // Predicated region
      $region37: #{_lambda_.81} parent=31 // pred_check
        %p514 = pneg %p513
      $region38: #{_lambda_.81} parent=31 // pred_check_branch
        %516 = sbr.rel (%p514) target = $region40
      $region39: #{_lambda_.81} parent=31 // pred_region
        %v517 = vld [vmem:[#allocation2] sm:$0xff]
        %v518 = vld [vmem:[%s2] sm:$0x1]
        %v520 = vlaneseq
        %v521 = vshrl.u32 %v520, 7
        %v522 = vsub.s32 0, %v521
        %v523 = vrot.slane %v518, %v522
        %v525 = vadd.f32 %v517, %v523
        %v526 = vmax.f32 %v525, 0.0
        %v527 = vpack.c.bf16 %v526, %v526
        %528 = vst [vmem:[%s218] sm:$0xf] %v527
      $region40: #{_lambda_.81} parent=31 // pred_fallthru
        _
      %p529 = scmp.lt.s32.totalorder %s18, 0
      %s530 = scalar_select %p529, %s18, 0
      %s531 = smul.addr %s530, 4
      %s532 = scalar_lea.vmem %s3, %s531
      // Predicated region
      $region41: #{_lambda_.81} parent=31 // pred_check
        %p533 = pneg %p119
      $region42: #{_lambda_.81} parent=31 // pred_check_branch
        %535 = sbr.rel (%p533) target = $region44
      $region43: #{_lambda_.81} parent=31 // pred_region
        _
      $region44: #{_lambda_.81} parent=31 // pred_fallthru
        _
      // Predicated region
      $region45: #{_lambda_.81} parent=31 // pred_check
        %p536 = pneg %p119
      $region46: #{_lambda_.81} parent=31 // pred_check_branch
        %538 = sbr.rel (%p536) target = $region48
      $region47: #{_lambda_.81} parent=31 // pred_region
        %p539 = scmp.lt.s32.totalorder %s18, 0
        %s540 = scalar_select %p539, %s18, 0
        %s541 = smul.addr %s540, 4
        %s542 = scalar_lea.vmem %s3, %s541
      $region48: #{_lambda_.81} parent=31 // pred_fallthru
        _
    $region32: #{_lambda_.81} parent=5 // pred_fallthru
      _
    %p543 = scmp.le.s32.totalorder 2, %s9
    // Predicated region
    $region49: #{_lambda_.81} parent=5 // pred_check
      %p544 = pneg %p543
    $region50: #{_lambda_.81} parent=5 // pred_check_branch
      %546 = sbr.rel (%p544) target = $region52
    $region51: #{_lambda_.81} parent=5 // pred_region
      %s547 = ssub.s32 %s9, 2
    $region52: #{_lambda_.81} parent=5 // pred_fallthru
      _
  $region6: #{_lambda_.81} parent=0 // loop_footer
    %s13 = sadd.s32 1, %s9
  $region7: #{_lambda_.81} parent=0 // loop_footer_branch
    %8 = sbr.rel target = $region3
  $region8: #{_lambda_.81} parent=0 // loop_exit
    _

// kernel: _lambda_.101
$region0: #{_lambda_.101}
  #allocation0 [shape = 'u32[]', space=smem, size = 0x4, offset = 0x4, fixed_abs, tag = 'smem constant byte address 0x4 - core index']
  #allocation1 [shape = 'u32[144,128]{1,0:T(1,128)}', space=vmem, size = 0x12000, scoped, tag = 'internal scratch']
  #allocation2 [shape = 'f32[8,256]{1,0:T(8,128)}', space=vmem, size = 0x2000, scoped, tag = 'scratch operand']
  %s0 = inlined_call_operand.vmem [shape: bf16[8,128], index: 0, kind: input, shape index: {}]
  %s1 = inlined_call_operand.vmem [shape: bf16[128,256], index: 1, kind: input, shape index: {}]
  %s2 = inlined_call_operand.vmem [shape: f32[1,256], index: 2, kind: input, shape index: {}]
  %s3 = inlined_call_operand.vmem [shape: bf16[8,256], index: 3, kind: output, shape index: {}]
  %s4 = sld [smem:[#allocation0]]
  $region30: #{_lambda_.101} parent=0
    _
  %s6 = ssub.s32 1, %s4
  %s7 = scalar_select 0, %s6, %s4
  // Predicated region
  $region2: #{_lambda_.101} parent=0 // pred_check
    _
  $region3: #{_lambda_.101} parent=0 // pred_check_branch
    %9 = sbr.rel (0) target = $region5
  $region4: #{_lambda_.101} parent=0 // pred_region
    _
  $region5: #{_lambda_.101} parent=0 // pred_fallthru
    _
  // Predicated region
  $region6: #{_lambda_.101} parent=0 // pred_check
    _
  $region7: #{_lambda_.101} parent=0 // pred_check_branch
    %11 = sbr.rel (0) target = $region9
  $region8: #{_lambda_.101} parent=0 // pred_region
    _
  $region9: #{_lambda_.101} parent=0 // pred_fallthru
    _
  // Predicated region
  $region10: #{_lambda_.101} parent=0 // pred_check
    _
  $region11: #{_lambda_.101} parent=0 // pred_check_branch
    %13 = sbr.rel (0) target = $region13
  $region12: #{_lambda_.101} parent=0 // pred_region
    _
  $region13: #{_lambda_.101} parent=0 // pred_fallthru
    _
  %p15 = scmp.eq.s32.totalorder 0, 0
  // Predicated region
  $region14: #{_lambda_.101} parent=0 // pred_check
    %p16 = pneg %p15
  $region15: #{_lambda_.101} parent=0 // pred_check_branch
    %18 = sbr.rel (%p16) target = $region17
  $region16: #{_lambda_.101} parent=0 // pred_region
    %19 = vst [vmem:[#allocation2] sm:$0xff] 0.0
    %20 = vst [vmem:[#allocation2 + $0x8] sm:$0xff] 0.0
  $region17: #{_lambda_.101} parent=0 // pred_fallthru
    _
  %v21 = vld [vmem:[#allocation2] sm:$0xff]
  %v22 = vld [vmem:[#allocation2 + $0x8] sm:$0xff]
  %v23 = vld [vmem:[%s0] sm:$0xf]
  %v24 = vld [vmem:[%s1] sm:$0xff]
  %v25 = vld [vmem:[%s1 + $0x8] sm:$0xff]
  %v26 = vld [vmem:[%s1 + $0x10] sm:$0xff]
  %v27 = vld [vmem:[%s1 + $0x18] sm:$0xff]
  %v28 = vld [vmem:[%s1 + $0x20] sm:$0xff]
  %v29 = vld [vmem:[%s1 + $0x28] sm:$0xff]
  %v30 = vld [vmem:[%s1 + $0x30] sm:$0xff]
  %v31 = vld [vmem:[%s1 + $0x38] sm:$0xff]
  %v32 = vld [vmem:[%s1 + $0x40] sm:$0xff]
  %v33 = vld [vmem:[%s1 + $0x48] sm:$0xff]
  %v34 = vld [vmem:[%s1 + $0x50] sm:$0xff]
  %v35 = vld [vmem:[%s1 + $0x58] sm:$0xff]
  %v36 = vld [vmem:[%s1 + $0x60] sm:$0xff]
  %v37 = vld [vmem:[%s1 + $0x68] sm:$0xff]
  %v38 = vld [vmem:[%s1 + $0x70] sm:$0xff]
  %v39 = vld [vmem:[%s1 + $0x78] sm:$0xff]
  %v56 = vunpack.c.l.b16 %v24
  %v57 = vunpack.c.h.b16 %v24
  %v58 = vunpack.c.l.b16 %v25
  %v59 = vunpack.c.h.b16 %v25
  %v60 = vunpack.c.l.b16 %v26
  %v61 = vunpack.c.h.b16 %v26
  %v62 = vunpack.c.l.b16 %v27
  %v63 = vunpack.c.h.b16 %v27
  %v64 = vunpack.c.l.b16 %v28
  %v65 = vunpack.c.h.b16 %v28
  %v66 = vunpack.c.l.b16 %v29
  %v67 = vunpack.c.h.b16 %v29
  %v68 = vunpack.c.l.b16 %v30
  %v69 = vunpack.c.h.b16 %v30
  %v70 = vunpack.c.l.b16 %v31
  %v71 = vunpack.c.h.b16 %v31
  %v72 = vunpack.c.l.b16 %v32
  %v73 = vunpack.c.h.b16 %v32
  %v74 = vunpack.c.l.b16 %v33
  %v75 = vunpack.c.h.b16 %v33
  %v76 = vunpack.c.l.b16 %v34
  %v77 = vunpack.c.h.b16 %v34
  %v78 = vunpack.c.l.b16 %v35
  %v79 = vunpack.c.h.b16 %v35
  %v80 = vunpack.c.l.b16 %v36
  %v81 = vunpack.c.h.b16 %v36
  %v82 = vunpack.c.l.b16 %v37
  %v83 = vunpack.c.h.b16 %v37
  %v84 = vunpack.c.l.b16 %v38
  %v85 = vunpack.c.h.b16 %v38
  %v86 = vunpack.c.l.b16 %v39
  %v87 = vunpack.c.h.b16 %v39
  %v88 = vpack.c.b16 %v58, %v56
  %v89 = vpack.c.b16 %v59, %v57
  %v90 = vpack.c.b16 %v62, %v60
  %v91 = vpack.c.b16 %v63, %v61
  %v92 = vpack.c.b16 %v66, %v64
  %v93 = vpack.c.b16 %v67, %v65
  %v94 = vpack.c.b16 %v70, %v68
  %v95 = vpack.c.b16 %v71, %v69
  %v96 = vpack.c.b16 %v74, %v72
  %v97 = vpack.c.b16 %v75, %v73
  %v98 = vpack.c.b16 %v78, %v76
  %v99 = vpack.c.b16 %v79, %v77
  %v100 = vpack.c.b16 %v82, %v80
  %v101 = vpack.c.b16 %v83, %v81
  %v102 = vpack.c.b16 %v86, %v84
  %v103 = vpack.c.b16 %v87, %v85
  %120 = vmatprep.subr.bf16.mxu0 %v103
  %121 = vmatpush1.bf16.msra.mxu0 %v102
  %122 = vmatprep.subr.bf16.mxu0 %v101
  %123 = vmatpush1.bf16.msra.mxu0 %v100
  %124 = vmatprep.subr.bf16.mxu0 %v99
  %125 = vmatpush1.bf16.msra.mxu0 %v98
  %126 = vmatprep.subr.bf16.mxu0 %v97
  %127 = vmatpush1.bf16.msra.mxu0 %v96
  %128 = vmatprep.subr.bf16.mxu0 %v95
  %129 = vmatpush1.bf16.msra.mxu0 %v94
  %130 = vmatprep.subr.bf16.mxu0 %v93
  %131 = vmatpush1.bf16.msra.mxu0 %v92
  %132 = vmatprep.subr.bf16.mxu0 %v91
  %133 = vmatpush1.bf16.msra.mxu0 %v90
  %134 = vmatprep.subr.bf16.mxu0 %v89
  %135 = vmatpush1.bf16.msra.mxu0 %v88
  %136 = vmatprep.subr.bf16.mxu0 0
  %137 = vmatpush2.bf16.msra.mxu0 0
  %138 = vmatprep.subr.bf16.mxu0 0
  %139 = vmatpush2.bf16.msra.mxu0 0
  %140 = vmatprep.subr.bf16.mxu0 0
  %141 = vmatpush2.bf16.msra.mxu0 0
  %142 = vmatprep.subr.bf16.mxu0 0
  %143 = vmatpush2.bf16.msra.mxu0 0
  %144 = vmatprep.subr.bf16.mxu0 0
  %145 = vmatpush2.bf16.msra.mxu0 0
  %146 = vmatprep.subr.bf16.mxu0 0
  %147 = vmatpush2.bf16.msra.mxu0 0
  %148 = vmatprep.subr.bf16.mxu0 0
  %149 = vmatpush2.bf16.msra.mxu0 0
  %150 = vmatprep.subr.bf16.mxu0 0
  %151 = vmatpush2.bf16.msra.mxu0 0
  %152 = vmatprep.mubr.bf16.mxu0 0
  %153 = vmatmul.mubr.bf16.gmra.mxu0 %v23
  %v154 = vpop.f32.mrf.mxu0
  %v155 = vadd.f32 0.0, %v154
  %v156 = vpop.f32.mrf.mxu0
  %v157 = vadd.f32 0.0, %v156
  %v158 = vpop.f32.mrf.mxu0
  %v159 = vpop.f32.mrf.mxu0
  %160 = vdwg.mxu0
  %v161 = vadd.f32 %v21, %v155
  %v162 = vadd.f32 %v22, %v157
  %163 = vst [vmem:[#allocation2] sm:$0xff] %v161
  %164 = vst [vmem:[#allocation2 + $0x8] sm:$0xff] %v162
  // Predicated region
  $region18: #{_lambda_.101} parent=0 // pred_check
    %p165 = pneg %p15
  $region19: #{_lambda_.101} parent=0 // pred_check_branch
    %167 = sbr.rel (%p165) target = $region21
  $region20: #{_lambda_.101} parent=0 // pred_region
    %v168 = vld [vmem:[#allocation2] sm:$0xff]
    %v169 = vld [vmem:[#allocation2 + $0x8] sm:$0xff]
    %v170 = vld [vmem:[%s2] sm:$0x3]
    %v172 = vlaneseq
    %v173 = vshrl.u32 %v172, 7
    %v174 = vsub.s32 0, %v173
    %v175 = vrot.slane %v170, %v174
    %v176 = vlaneseq
    %v177 = vshrl.u32 %v176, 7
    %v178 = vsub.s32 1, %v177
    %v179 = vrot.slane %v170, %v178
    %v182 = vadd.f32 %v168, %v175
    %v183 = vadd.f32 %v169, %v179
    %v184 = vpack.c.bf16 %v182, %v182
    %v185 = vpack.c.bf16 %v183, %v183
    %v188 = vunpack.c.l.b16 %v184
    %v189 = vunpack.c.l.b16 %v185
    %v190 = vpack.c.b16 %v189, %v188
    %192 = vst [vmem:[%s3] sm:$0xff] %v190
  $region21: #{_lambda_.101} parent=0 // pred_fallthru
    _
  // Predicated region
  $region22: #{_lambda_.101} parent=0 // pred_check
    _
  $region23: #{_lambda_.101} parent=0 // pred_check_branch
    %194 = sbr.rel (0) target = $region25
  $region24: #{_lambda_.101} parent=0 // pred_region
    _
  $region25: #{_lambda_.101} parent=0 // pred_fallthru
    _
  // Predicated region
  $region26: #{_lambda_.101} parent=0 // pred_check
    _
  $region27: #{_lambda_.101} parent=0 // pred_check_branch
    %196 = sbr.rel (0) target = $region29
  $region28: #{_lambda_.101} parent=0 // pred_region
    _
  $region29: #{_lambda_.101} parent=0 // pred_fallthru
    _

// kernel: _lambda_.102
$region0: #{_lambda_.102}
  #allocation0 [shape = 'u32[]', space=smem, size = 0x4, offset = 0x4, fixed_abs, tag = 'smem constant byte address 0x4 - core index']
  #allocation1 [shape = 'u32[144,128]{1,0:T(1,128)}', space=vmem, size = 0x12000, scoped, tag = 'internal scratch']
  #allocation2 [shape = 'f32[8,256]{1,0:T(8,128)}', space=vmem, size = 0x2000, scoped, tag = 'scratch operand']
  %s0 = inlined_call_operand.vmem [shape: bf16[8,128], index: 0, kind: input, shape index: {}]
  %s1 = inlined_call_operand.vmem [shape: bf16[128,256], index: 1, kind: input, shape index: {}]
  %s2 = inlined_call_operand.vmem [shape: f32[1,256], index: 2, kind: input, shape index: {}]
  %s3 = inlined_call_operand.vmem [shape: bf16[8,256], index: 3, kind: input, shape index: {}]
  %s4 = inlined_call_operand.vmem [shape: bf16[8,256], index: 4, kind: output, shape index: {}]
  %s5 = sld [smem:[#allocation0]]
  $region34: #{_lambda_.102} parent=0
    _
  %s7 = ssub.s32 1, %s5
  %s8 = scalar_select 0, %s7, %s5
  // Predicated region
  $region2: #{_lambda_.102} parent=0 // pred_check
    _
  $region3: #{_lambda_.102} parent=0 // pred_check_branch
    %10 = sbr.rel (0) target = $region5
  $region4: #{_lambda_.102} parent=0 // pred_region
    _
  $region5: #{_lambda_.102} parent=0 // pred_fallthru
    _
  // Predicated region
  $region6: #{_lambda_.102} parent=0 // pred_check
    _
  $region7: #{_lambda_.102} parent=0 // pred_check_branch
    %12 = sbr.rel (0) target = $region9
  $region8: #{_lambda_.102} parent=0 // pred_region
    _
  $region9: #{_lambda_.102} parent=0 // pred_fallthru
    _
  // Predicated region
  $region10: #{_lambda_.102} parent=0 // pred_check
    _
  $region11: #{_lambda_.102} parent=0 // pred_check_branch
    %14 = sbr.rel (0) target = $region13
  $region12: #{_lambda_.102} parent=0 // pred_region
    _
  $region13: #{_lambda_.102} parent=0 // pred_fallthru
    _
  // Predicated region
  $region14: #{_lambda_.102} parent=0 // pred_check
    _
  $region15: #{_lambda_.102} parent=0 // pred_check_branch
    %16 = sbr.rel (0) target = $region17
  $region16: #{_lambda_.102} parent=0 // pred_region
    _
  $region17: #{_lambda_.102} parent=0 // pred_fallthru
    _
  %p18 = scmp.eq.s32.totalorder 0, 0
  // Predicated region
  $region18: #{_lambda_.102} parent=0 // pred_check
    %p19 = pneg %p18
  $region19: #{_lambda_.102} parent=0 // pred_check_branch
    %21 = sbr.rel (%p19) target = $region21
  $region20: #{_lambda_.102} parent=0 // pred_region
    %22 = vst [vmem:[#allocation2] sm:$0xff] 0.0
    %23 = vst [vmem:[#allocation2 + $0x8] sm:$0xff] 0.0
  $region21: #{_lambda_.102} parent=0 // pred_fallthru
    _
  %v24 = vld [vmem:[#allocation2] sm:$0xff]
  %v25 = vld [vmem:[#allocation2 + $0x8] sm:$0xff]
  %v26 = vld [vmem:[%s0] sm:$0xf]
  %v27 = vld [vmem:[%s1] sm:$0xff]
  %v28 = vld [vmem:[%s1 + $0x8] sm:$0xff]
  %v29 = vld [vmem:[%s1 + $0x10] sm:$0xff]
  %v30 = vld [vmem:[%s1 + $0x18] sm:$0xff]
  %v31 = vld [vmem:[%s1 + $0x20] sm:$0xff]
  %v32 = vld [vmem:[%s1 + $0x28] sm:$0xff]
  %v33 = vld [vmem:[%s1 + $0x30] sm:$0xff]
  %v34 = vld [vmem:[%s1 + $0x38] sm:$0xff]
  %v35 = vld [vmem:[%s1 + $0x40] sm:$0xff]
  %v36 = vld [vmem:[%s1 + $0x48] sm:$0xff]
  %v37 = vld [vmem:[%s1 + $0x50] sm:$0xff]
  %v38 = vld [vmem:[%s1 + $0x58] sm:$0xff]
  %v39 = vld [vmem:[%s1 + $0x60] sm:$0xff]
  %v40 = vld [vmem:[%s1 + $0x68] sm:$0xff]
  %v41 = vld [vmem:[%s1 + $0x70] sm:$0xff]
  %v42 = vld [vmem:[%s1 + $0x78] sm:$0xff]
  %v59 = vunpack.c.l.b16 %v27
  %v60 = vunpack.c.h.b16 %v27
  %v61 = vunpack.c.l.b16 %v28
  %v62 = vunpack.c.h.b16 %v28
  %v63 = vunpack.c.l.b16 %v29
  %v64 = vunpack.c.h.b16 %v29
  %v65 = vunpack.c.l.b16 %v30
  %v66 = vunpack.c.h.b16 %v30
  %v67 = vunpack.c.l.b16 %v31
  %v68 = vunpack.c.h.b16 %v31
  %v69 = vunpack.c.l.b16 %v32
  %v70 = vunpack.c.h.b16 %v32
  %v71 = vunpack.c.l.b16 %v33
  %v72 = vunpack.c.h.b16 %v33
  %v73 = vunpack.c.l.b16 %v34
  %v74 = vunpack.c.h.b16 %v34
  %v75 = vunpack.c.l.b16 %v35
  %v76 = vunpack.c.h.b16 %v35
  %v77 = vunpack.c.l.b16 %v36
  %v78 = vunpack.c.h.b16 %v36
  %v79 = vunpack.c.l.b16 %v37
  %v80 = vunpack.c.h.b16 %v37
  %v81 = vunpack.c.l.b16 %v38
  %v82 = vunpack.c.h.b16 %v38
  %v83 = vunpack.c.l.b16 %v39
  %v84 = vunpack.c.h.b16 %v39
  %v85 = vunpack.c.l.b16 %v40
  %v86 = vunpack.c.h.b16 %v40
  %v87 = vunpack.c.l.b16 %v41
  %v88 = vunpack.c.h.b16 %v41
  %v89 = vunpack.c.l.b16 %v42
  %v90 = vunpack.c.h.b16 %v42
  %v91 = vpack.c.b16 %v61, %v59
  %v92 = vpack.c.b16 %v62, %v60
  %v93 = vpack.c.b16 %v65, %v63
  %v94 = vpack.c.b16 %v66, %v64
  %v95 = vpack.c.b16 %v69, %v67
  %v96 = vpack.c.b16 %v70, %v68
  %v97 = vpack.c.b16 %v73, %v71
  %v98 = vpack.c.b16 %v74, %v72
  %v99 = vpack.c.b16 %v77, %v75
  %v100 = vpack.c.b16 %v78, %v76
  %v101 = vpack.c.b16 %v81, %v79
  %v102 = vpack.c.b16 %v82, %v80
  %v103 = vpack.c.b16 %v85, %v83
  %v104 = vpack.c.b16 %v86, %v84
  %v105 = vpack.c.b16 %v89, %v87
  %v106 = vpack.c.b16 %v90, %v88
  %123 = vmatprep.subr.bf16.mxu0 %v106
  %124 = vmatpush1.bf16.msra.mxu0 %v105
  %125 = vmatprep.subr.bf16.mxu0 %v104
  %126 = vmatpush1.bf16.msra.mxu0 %v103
  %127 = vmatprep.subr.bf16.mxu0 %v102
  %128 = vmatpush1.bf16.msra.mxu0 %v101
  %129 = vmatprep.subr.bf16.mxu0 %v100
  %130 = vmatpush1.bf16.msra.mxu0 %v99
  %131 = vmatprep.subr.bf16.mxu0 %v98
  %132 = vmatpush1.bf16.msra.mxu0 %v97
  %133 = vmatprep.subr.bf16.mxu0 %v96
  %134 = vmatpush1.bf16.msra.mxu0 %v95
  %135 = vmatprep.subr.bf16.mxu0 %v94
  %136 = vmatpush1.bf16.msra.mxu0 %v93
  %137 = vmatprep.subr.bf16.mxu0 %v92
  %138 = vmatpush1.bf16.msra.mxu0 %v91
  %139 = vmatprep.subr.bf16.mxu0 0
  %140 = vmatpush2.bf16.msra.mxu0 0
  %141 = vmatprep.subr.bf16.mxu0 0
  %142 = vmatpush2.bf16.msra.mxu0 0
  %143 = vmatprep.subr.bf16.mxu0 0
  %144 = vmatpush2.bf16.msra.mxu0 0
  %145 = vmatprep.subr.bf16.mxu0 0
  %146 = vmatpush2.bf16.msra.mxu0 0
  %147 = vmatprep.subr.bf16.mxu0 0
  %148 = vmatpush2.bf16.msra.mxu0 0
  %149 = vmatprep.subr.bf16.mxu0 0
  %150 = vmatpush2.bf16.msra.mxu0 0
  %151 = vmatprep.subr.bf16.mxu0 0
  %152 = vmatpush2.bf16.msra.mxu0 0
  %153 = vmatprep.subr.bf16.mxu0 0
  %154 = vmatpush2.bf16.msra.mxu0 0
  %155 = vmatprep.mubr.bf16.mxu0 0
  %156 = vmatmul.mubr.bf16.gmra.mxu0 %v26
  %v157 = vpop.f32.mrf.mxu0
  %v158 = vadd.f32 0.0, %v157
  %v159 = vpop.f32.mrf.mxu0
  %v160 = vadd.f32 0.0, %v159
  %v161 = vpop.f32.mrf.mxu0
  %v162 = vpop.f32.mrf.mxu0
  %163 = vdwg.mxu0
  %v164 = vadd.f32 %v24, %v158
  %v165 = vadd.f32 %v25, %v160
  %166 = vst [vmem:[#allocation2] sm:$0xff] %v164
  %167 = vst [vmem:[#allocation2 + $0x8] sm:$0xff] %v165
  // Predicated region
  $region22: #{_lambda_.102} parent=0 // pred_check
    %p168 = pneg %p18
  $region23: #{_lambda_.102} parent=0 // pred_check_branch
    %170 = sbr.rel (%p168) target = $region25
  $region24: #{_lambda_.102} parent=0 // pred_region
    %v171 = vld [vmem:[#allocation2] sm:$0xff]
    %v172 = vld [vmem:[#allocation2 + $0x8] sm:$0xff]
    %v173 = vld [vmem:[%s2] sm:$0x3]
    %v175 = vlaneseq
    %v176 = vshrl.u32 %v175, 7
    %v177 = vsub.s32 0, %v176
    %v178 = vrot.slane %v173, %v177
    %v179 = vlaneseq
    %v180 = vshrl.u32 %v179, 7
    %v181 = vsub.s32 1, %v180
    %v182 = vrot.slane %v173, %v181
    %v185 = vadd.f32 %v171, %v178
    %v186 = vadd.f32 %v172, %v182
    %v187 = vld [vmem:[%s3] sm:$0xff]
    %v188 = vunpack.c.l.bf16 %v187
    %v189 = vunpack.c.h.bf16 %v187
    %v190 = vadd.f32 %v185, %v188
    %v191 = vadd.f32 %v186, %v189
    %v192 = vmax.f32 %v190, 0.0
    %v193 = vmax.f32 %v191, 0.0
    %v194 = vpack.c.bf16 %v192, %v192
    %v195 = vpack.c.bf16 %v193, %v193
    %v198 = vunpack.c.l.b16 %v194
    %v199 = vunpack.c.l.b16 %v195
    %v200 = vpack.c.b16 %v199, %v198
    %202 = vst [vmem:[%s4] sm:$0xff] %v200
  $region25: #{_lambda_.102} parent=0 // pred_fallthru
    _
  // Predicated region
  $region26: #{_lambda_.102} parent=0 // pred_check
    _
  $region27: #{_lambda_.102} parent=0 // pred_check_branch
    %204 = sbr.rel (0) target = $region29
  $region28: #{_lambda_.102} parent=0 // pred_region
    _
  $region29: #{_lambda_.102} parent=0 // pred_fallthru
    _
  // Predicated region
  $region30: #{_lambda_.102} parent=0 // pred_check
    _
  $region31: #{_lambda_.102} parent=0 // pred_check_branch
    %206 = sbr.rel (0) target = $region33
  $region32: #{_lambda_.102} parent=0 // pred_region
    _
  $region33: #{_lambda_.102} parent=0 // pred_fallthru
    _

// kernel: _lambda_.103
$region0: #{_lambda_.103}
  #allocation0 [shape = 'u32[]', space=smem, size = 0x4, offset = 0x4, fixed_abs, tag = 'smem constant byte address 0x4 - core index']
  #allocation1 [shape = 'u32[144,128]{1,0:T(1,128)}', space=vmem, size = 0x12000, scoped, tag = 'internal scratch']
  #allocation2 [shape = 'f32[8,128]{1,0:T(8,128)}', space=vmem, size = 0x1000, scoped, tag = 'scratch operand']
  %s0 = inlined_call_operand.vmem [shape: bf16[8,256], index: 0, kind: input, shape index: {}]
  %s1 = inlined_call_operand.vmem [shape: bf16[256,128], index: 1, kind: input, shape index: {}]
  %s2 = inlined_call_operand.vmem [shape: f32[1,128], index: 2, kind: input, shape index: {}]
  %s3 = inlined_call_operand.vmem [shape: bf16[8,128], index: 3, kind: output, shape index: {}]
  %s4 = sld [smem:[#allocation0]]
  $region30: #{_lambda_.103} parent=0
    _
  %s6 = ssub.s32 1, %s4
  %s7 = scalar_select 0, %s6, %s4
  // Predicated region
  $region2: #{_lambda_.103} parent=0 // pred_check
    _
  $region3: #{_lambda_.103} parent=0 // pred_check_branch
    %9 = sbr.rel (0) target = $region5
  $region4: #{_lambda_.103} parent=0 // pred_region
    _
  $region5: #{_lambda_.103} parent=0 // pred_fallthru
    _
  // Predicated region
  $region6: #{_lambda_.103} parent=0 // pred_check
    _
  $region7: #{_lambda_.103} parent=0 // pred_check_branch
    %11 = sbr.rel (0) target = $region9
  $region8: #{_lambda_.103} parent=0 // pred_region
    _
  $region9: #{_lambda_.103} parent=0 // pred_fallthru
    _
  // Predicated region
  $region10: #{_lambda_.103} parent=0 // pred_check
    _
  $region11: #{_lambda_.103} parent=0 // pred_check_branch
    %13 = sbr.rel (0) target = $region13
  $region12: #{_lambda_.103} parent=0 // pred_region
    _
  $region13: #{_lambda_.103} parent=0 // pred_fallthru
    _
  %p15 = scmp.eq.s32.totalorder 0, 0
  // Predicated region
  $region14: #{_lambda_.103} parent=0 // pred_check
    %p16 = pneg %p15
  $region15: #{_lambda_.103} parent=0 // pred_check_branch
    %18 = sbr.rel (%p16) target = $region17
  $region16: #{_lambda_.103} parent=0 // pred_region
    %19 = vst [vmem:[#allocation2] sm:$0xff] 0.0
  $region17: #{_lambda_.103} parent=0 // pred_fallthru
    _
  %v20 = vld [vmem:[#allocation2] sm:$0xff]
  %v21 = vld [vmem:[%s0] sm:$0xff]
  %v22 = vld [vmem:[%s1] sm:$0xf]
  %v23 = vld [vmem:[%s1 + $0x4] sm:$0xf]
  %v24 = vld [vmem:[%s1 + $0x8] sm:$0xf]
  %v25 = vld [vmem:[%s1 + $0xc] sm:$0xf]
  %v26 = vld [vmem:[%s1 + $0x10] sm:$0xf]
  %v27 = vld [vmem:[%s1 + $0x14] sm:$0xf]
  %v28 = vld [vmem:[%s1 + $0x18] sm:$0xf]
  %v29 = vld [vmem:[%s1 + $0x1c] sm:$0xf]
  %v30 = vld [vmem:[%s1 + $0x20] sm:$0xf]
  %v31 = vld [vmem:[%s1 + $0x24] sm:$0xf]
  %v32 = vld [vmem:[%s1 + $0x28] sm:$0xf]
  %v33 = vld [vmem:[%s1 + $0x2c] sm:$0xf]
  %v34 = vld [vmem:[%s1 + $0x30] sm:$0xf]
  %v35 = vld [vmem:[%s1 + $0x34] sm:$0xf]
  %v36 = vld [vmem:[%s1 + $0x38] sm:$0xf]
  %v37 = vld [vmem:[%s1 + $0x3c] sm:$0xf]
  %v38 = vld [vmem:[%s1 + $0x40] sm:$0xf]
  %v39 = vld [vmem:[%s1 + $0x44] sm:$0xf]
  %v40 = vld [vmem:[%s1 + $0x48] sm:$0xf]
  %v41 = vld [vmem:[%s1 + $0x4c] sm:$0xf]
  %v42 = vld [vmem:[%s1 + $0x50] sm:$0xf]
  %v43 = vld [vmem:[%s1 + $0x54] sm:$0xf]
  %v44 = vld [vmem:[%s1 + $0x58] sm:$0xf]
  %v45 = vld [vmem:[%s1 + $0x5c] sm:$0xf]
  %v46 = vld [vmem:[%s1 + $0x60] sm:$0xf]
  %v47 = vld [vmem:[%s1 + $0x64] sm:$0xf]
  %v48 = vld [vmem:[%s1 + $0x68] sm:$0xf]
  %v49 = vld [vmem:[%s1 + $0x6c] sm:$0xf]
  %v50 = vld [vmem:[%s1 + $0x70] sm:$0xf]
  %v51 = vld [vmem:[%s1 + $0x74] sm:$0xf]
  %v52 = vld [vmem:[%s1 + $0x78] sm:$0xf]
  %v53 = vld [vmem:[%s1 + $0x7c] sm:$0xf]
  %v55 = vunpack.c.l.b16 %v21
  %v56 = vunpack.c.h.b16 %v21
  %v57 = vpack.c.b16 %v55, %v55
  %v58 = vpack.c.b16 %v56, %v56
  %v93 = vunpack.c.l.b16 %v22
  %v94 = vunpack.c.l.b16 %v23
  %v95 = vunpack.c.l.b16 %v24
  %v96 = vunpack.c.l.b16 %v25
  %v97 = vunpack.c.l.b16 %v26
  %v98 = vunpack.c.l.b16 %v27
  %v99 = vunpack.c.l.b16 %v28
  %v100 = vunpack.c.l.b16 %v29
  %v101 = vunpack.c.l.b16 %v30
  %v102 = vunpack.c.l.b16 %v31
  %v103 = vunpack.c.l.b16 %v32
  %v104 = vunpack.c.l.b16 %v33
  %v105 = vunpack.c.l.b16 %v34
  %v106 = vunpack.c.l.b16 %v35
  %v107 = vunpack.c.l.b16 %v36
  %v108 = vunpack.c.l.b16 %v37
  %v109 = vunpack.c.l.b16 %v38
  %v110 = vunpack.c.l.b16 %v39
  %v111 = vunpack.c.l.b16 %v40
  %v112 = vunpack.c.l.b16 %v41
  %v113 = vunpack.c.l.b16 %v42
  %v114 = vunpack.c.l.b16 %v43
  %v115 = vunpack.c.l.b16 %v44
  %v116 = vunpack.c.l.b16 %v45
  %v117 = vunpack.c.l.b16 %v46
  %v118 = vunpack.c.l.b16 %v47
  %v119 = vunpack.c.l.b16 %v48
  %v120 = vunpack.c.l.b16 %v49
  %v121 = vunpack.c.l.b16 %v50
  %v122 = vunpack.c.l.b16 %v51
  %v123 = vunpack.c.l.b16 %v52
  %v124 = vunpack.c.l.b16 %v53
  %v125 = vpack.c.b16 %v94, %v93
  %v126 = vpack.c.b16 %v96, %v95
  %v127 = vpack.c.b16 %v98, %v97
  %v128 = vpack.c.b16 %v100, %v99
  %v129 = vpack.c.b16 %v102, %v101
  %v130 = vpack.c.b16 %v104, %v103
  %v131 = vpack.c.b16 %v106, %v105
  %v132 = vpack.c.b16 %v108, %v107
  %v133 = vpack.c.b16 %v110, %v109
  %v134 = vpack.c.b16 %v112, %v111
  %v135 = vpack.c.b16 %v114, %v113
  %v136 = vpack.c.b16 %v116, %v115
  %v137 = vpack.c.b16 %v118, %v117
  %v138 = vpack.c.b16 %v120, %v119
  %v139 = vpack.c.b16 %v122, %v121
  %v140 = vpack.c.b16 %v124, %v123
  %157 = vmatprep.subr.bf16.mxu0 0
  %158 = vmatpush1.bf16.msra.mxu0 %v132
  %159 = vmatprep.subr.bf16.mxu0 0
  %160 = vmatpush1.bf16.msra.mxu0 %v131
  %161 = vmatprep.subr.bf16.mxu0 0
  %162 = vmatpush1.bf16.msra.mxu0 %v130
  %163 = vmatprep.subr.bf16.mxu0 0
  %164 = vmatpush1.bf16.msra.mxu0 %v129
  %165 = vmatprep.subr.bf16.mxu0 0
  %166 = vmatpush1.bf16.msra.mxu0 %v128
  %167 = vmatprep.subr.bf16.mxu0 0
  %168 = vmatpush1.bf16.msra.mxu0 %v127
  %169 = vmatprep.subr.bf16.mxu0 0
  %170 = vmatpush1.bf16.msra.mxu0 %v126
  %171 = vmatprep.subr.bf16.mxu0 0
  %172 = vmatpush1.bf16.msra.mxu0 %v125
  %173 = vmatprep.subr.bf16.mxu0 0
  %174 = vmatpush2.bf16.msra.mxu0 %v140
  %175 = vmatprep.subr.bf16.mxu0 0
  %176 = vmatpush2.bf16.msra.mxu0 %v139
  %177 = vmatprep.subr.bf16.mxu0 0
  %178 = vmatpush2.bf16.msra.mxu0 %v138
  %179 = vmatprep.subr.bf16.mxu0 0
  %180 = vmatpush2.bf16.msra.mxu0 %v137
  %181 = vmatprep.subr.bf16.mxu0 0
  %182 = vmatpush2.bf16.msra.mxu0 %v136
  %183 = vmatprep.subr.bf16.mxu0 0
  %184 = vmatpush2.bf16.msra.mxu0 %v135
  %185 = vmatprep.subr.bf16.mxu0 0
  %186 = vmatpush2.bf16.msra.mxu0 %v134
  %187 = vmatprep.subr.bf16.mxu0 0
  %188 = vmatpush2.bf16.msra.mxu0 %v133
  %189 = vmatprep.mubr.bf16.mxu0 %v58
  %190 = vmatmul.mubr.bf16.gmra.mxu0 %v57
  %v191 = vpop.f32.mrf.mxu0
  %v192 = vadd.f32 0.0, %v191
  %v193 = vpop.f32.mrf.mxu0
  %v194 = vpop.f32.mrf.mxu0
  %v195 = vpop.f32.mrf.mxu0
  %196 = vdwg.mxu0
  %v197 = vadd.f32 %v20, %v192
  %198 = vst [vmem:[#allocation2] sm:$0xff] %v197
  // Predicated region
  $region18: #{_lambda_.103} parent=0 // pred_check
    %p199 = pneg %p15
  $region19: #{_lambda_.103} parent=0 // pred_check_branch
    %201 = sbr.rel (%p199) target = $region21
  $region20: #{_lambda_.103} parent=0 // pred_region
    %v202 = vld [vmem:[#allocation2] sm:$0xff]
    %v203 = vld [vmem:[%s2] sm:$0x1]
    %v205 = vlaneseq
    %v206 = vshrl.u32 %v205, 7
    %v207 = vsub.s32 0, %v206
    %v208 = vrot.slane %v203, %v207
    %v210 = vadd.f32 %v202, %v208
    %v211 = vmax.f32 %v210, 0.0
    %v212 = vpack.c.bf16 %v211, %v211
    %213 = vst [vmem:[%s3] sm:$0xf] %v212
  $region21: #{_lambda_.103} parent=0 // pred_fallthru
    _
  // Predicated region
  $region22: #{_lambda_.103} parent=0 // pred_check
    _
  $region23: #{_lambda_.103} parent=0 // pred_check_branch
    %215 = sbr.rel (0) target = $region25
  $region24: #{_lambda_.103} parent=0 // pred_region
    _
  $region25: #{_lambda_.103} parent=0 // pred_fallthru
    _
  // Predicated region
  $region26: #{_lambda_.103} parent=0 // pred_check
    _
  $region27: #{_lambda_.103} parent=0 // pred_check_branch
    %217 = sbr.rel (0) target = $region29
  $region28: #{_lambda_.103} parent=0 // pred_region
    _
  $region29: #{_lambda_.103} parent=0 // pred_fallthru
    _

// kernel: _lambda_.109
$region0: #{_lambda_.109}
  #allocation0 [shape = 'u32[]', space=smem, size = 0x4, offset = 0x4, fixed_abs, tag = 'smem constant byte address 0x4 - core index']
  #allocation1 [shape = 'u32[144,128]{1,0:T(1,128)}', space=vmem, size = 0x12000, scoped, tag = 'internal scratch']
  #allocation2 [shape = 'f32[8,128]{1,0:T(8,128)}', space=vmem, size = 0x1000, scoped, tag = 'scratch operand']
  %s0 = inlined_call_operand.vmem [shape: bf16[8,256], index: 0, kind: input, shape index: {}]
  %s1 = inlined_call_operand.vmem [shape: bf16[256,128], index: 1, kind: input, shape index: {}]
  %s2 = inlined_call_operand.vmem [shape: f32[2,8], index: 2, kind: input, shape index: {}]
  %s3 = inlined_call_operand.hbm [shape: f32[2,128], index: 3, kind: output, shape index: {0}]
  %s4 = inlined_call_operand.vmem [shape: f32[8,128], index: 4, kind: output, shape index: {1}]
  %5 = xla_tuple %s3, %s4
  %s6 = sld [smem:[#allocation0]]
  $region38: #{_lambda_.109} parent=0
    _
  %s8 = ssub.s32 1, %s6
  %s9 = scalar_select 0, %s8, %s6
  $region1: #{_lambda_.109} parent=0
    #allocation3 [shape = 'u8[1024]{0}', space=vmem, size = 0x400, scoped, tag = 'output window, operand 0, single buffered']
    #allocation4 [shape = 's32[1]{0}', space=sflag, size = 0x4, scoped, tag = 'scoped memory for _lambda_.109']
    %10 = vsyncpa [#allocation4], 0
    // Predicated region
    $region2: #{_lambda_.109} parent=1 // pred_check
      _
    $region3: #{_lambda_.109} parent=1 // pred_check_branch
      %12 = sbr.rel (0) target = $region5
    $region4: #{_lambda_.109} parent=1 // pred_region
      _
    $region5: #{_lambda_.109} parent=1 // pred_fallthru
      _
    // Predicated region
    $region6: #{_lambda_.109} parent=1 // pred_check
      _
    $region7: #{_lambda_.109} parent=1 // pred_check_branch
      %14 = sbr.rel (0) target = $region9
    $region8: #{_lambda_.109} parent=1 // pred_region
      _
    $region9: #{_lambda_.109} parent=1 // pred_fallthru
      _
    // Predicated region
    $region10: #{_lambda_.109} parent=1 // pred_check
      _
    $region11: #{_lambda_.109} parent=1 // pred_check_branch
      %16 = sbr.rel (0) target = $region13
    $region12: #{_lambda_.109} parent=1 // pred_region
      _
    $region13: #{_lambda_.109} parent=1 // pred_fallthru
      _
    %p18 = scmp.eq.s32.totalorder 0, 0
    // Predicated region
    $region14: #{_lambda_.109} parent=1 // pred_check
      %p19 = pneg %p18
    $region15: #{_lambda_.109} parent=1 // pred_check_branch
      %21 = sbr.rel (%p19) target = $region17
    $region16: #{_lambda_.109} parent=1 // pred_region
      %22 = vst [vmem:[#allocation2] sm:$0xff] 0.0
    $region17: #{_lambda_.109} parent=1 // pred_fallthru
      _
    %v23 = vld [vmem:[#allocation2] sm:$0xff]
    %v24 = vld [vmem:[%s0] sm:$0xff]
    %v25 = vld [vmem:[%s1] sm:$0xf]
    %v26 = vld [vmem:[%s1 + $0x4] sm:$0xf]
    %v27 = vld [vmem:[%s1 + $0x8] sm:$0xf]
    %v28 = vld [vmem:[%s1 + $0xc] sm:$0xf]
    %v29 = vld [vmem:[%s1 + $0x10] sm:$0xf]
    %v30 = vld [vmem:[%s1 + $0x14] sm:$0xf]
    %v31 = vld [vmem:[%s1 + $0x18] sm:$0xf]
    %v32 = vld [vmem:[%s1 + $0x1c] sm:$0xf]
    %v33 = vld [vmem:[%s1 + $0x20] sm:$0xf]
    %v34 = vld [vmem:[%s1 + $0x24] sm:$0xf]
    %v35 = vld [vmem:[%s1 + $0x28] sm:$0xf]
    %v36 = vld [vmem:[%s1 + $0x2c] sm:$0xf]
    %v37 = vld [vmem:[%s1 + $0x30] sm:$0xf]
    %v38 = vld [vmem:[%s1 + $0x34] sm:$0xf]
    %v39 = vld [vmem:[%s1 + $0x38] sm:$0xf]
    %v40 = vld [vmem:[%s1 + $0x3c] sm:$0xf]
    %v41 = vld [vmem:[%s1 + $0x40] sm:$0xf]
    %v42 = vld [vmem:[%s1 + $0x44] sm:$0xf]
    %v43 = vld [vmem:[%s1 + $0x48] sm:$0xf]
    %v44 = vld [vmem:[%s1 + $0x4c] sm:$0xf]
    %v45 = vld [vmem:[%s1 + $0x50] sm:$0xf]
    %v46 = vld [vmem:[%s1 + $0x54] sm:$0xf]
    %v47 = vld [vmem:[%s1 + $0x58] sm:$0xf]
    %v48 = vld [vmem:[%s1 + $0x5c] sm:$0xf]
    %v49 = vld [vmem:[%s1 + $0x60] sm:$0xf]
    %v50 = vld [vmem:[%s1 + $0x64] sm:$0xf]
    %v51 = vld [vmem:[%s1 + $0x68] sm:$0xf]
    %v52 = vld [vmem:[%s1 + $0x6c] sm:$0xf]
    %v53 = vld [vmem:[%s1 + $0x70] sm:$0xf]
    %v54 = vld [vmem:[%s1 + $0x74] sm:$0xf]
    %v55 = vld [vmem:[%s1 + $0x78] sm:$0xf]
    %v56 = vld [vmem:[%s1 + $0x7c] sm:$0xf]
    %v58 = vunpack.c.l.b16 %v24
    %v59 = vunpack.c.h.b16 %v24
    %v60 = vpack.c.b16 %v58, %v58
    %v61 = vpack.c.b16 %v59, %v59
    %v96 = vunpack.c.l.b16 %v25
    %v97 = vunpack.c.l.b16 %v26
    %v98 = vunpack.c.l.b16 %v27
    %v99 = vunpack.c.l.b16 %v28
    %v100 = vunpack.c.l.b16 %v29
    %v101 = vunpack.c.l.b16 %v30
    %v102 = vunpack.c.l.b16 %v31
    %v103 = vunpack.c.l.b16 %v32
    %v104 = vunpack.c.l.b16 %v33
    %v105 = vunpack.c.l.b16 %v34
    %v106 = vunpack.c.l.b16 %v35
    %v107 = vunpack.c.l.b16 %v36
    %v108 = vunpack.c.l.b16 %v37
    %v109 = vunpack.c.l.b16 %v38
    %v110 = vunpack.c.l.b16 %v39
    %v111 = vunpack.c.l.b16 %v40
    %v112 = vunpack.c.l.b16 %v41
    %v113 = vunpack.c.l.b16 %v42
    %v114 = vunpack.c.l.b16 %v43
    %v115 = vunpack.c.l.b16 %v44
    %v116 = vunpack.c.l.b16 %v45
    %v117 = vunpack.c.l.b16 %v46
    %v118 = vunpack.c.l.b16 %v47
    %v119 = vunpack.c.l.b16 %v48
    %v120 = vunpack.c.l.b16 %v49
    %v121 = vunpack.c.l.b16 %v50
    %v122 = vunpack.c.l.b16 %v51
    %v123 = vunpack.c.l.b16 %v52
    %v124 = vunpack.c.l.b16 %v53
    %v125 = vunpack.c.l.b16 %v54
    %v126 = vunpack.c.l.b16 %v55
    %v127 = vunpack.c.l.b16 %v56
    %v128 = vpack.c.b16 %v97, %v96
    %v129 = vpack.c.b16 %v99, %v98
    %v130 = vpack.c.b16 %v101, %v100
    %v131 = vpack.c.b16 %v103, %v102
    %v132 = vpack.c.b16 %v105, %v104
    %v133 = vpack.c.b16 %v107, %v106
    %v134 = vpack.c.b16 %v109, %v108
    %v135 = vpack.c.b16 %v111, %v110
    %v136 = vpack.c.b16 %v113, %v112
    %v137 = vpack.c.b16 %v115, %v114
    %v138 = vpack.c.b16 %v117, %v116
    %v139 = vpack.c.b16 %v119, %v118
    %v140 = vpack.c.b16 %v121, %v120
    %v141 = vpack.c.b16 %v123, %v122
    %v142 = vpack.c.b16 %v125, %v124
    %v143 = vpack.c.b16 %v127, %v126
    %160 = vmatprep.subr.bf16.mxu0 0
    %161 = vmatpush1.bf16.msra.mxu0 %v135
    %162 = vmatprep.subr.bf16.mxu0 0
    %163 = vmatpush1.bf16.msra.mxu0 %v134
    %164 = vmatprep.subr.bf16.mxu0 0
    %165 = vmatpush1.bf16.msra.mxu0 %v133
    %166 = vmatprep.subr.bf16.mxu0 0
    %167 = vmatpush1.bf16.msra.mxu0 %v132
    %168 = vmatprep.subr.bf16.mxu0 0
    %169 = vmatpush1.bf16.msra.mxu0 %v131
    %170 = vmatprep.subr.bf16.mxu0 0
    %171 = vmatpush1.bf16.msra.mxu0 %v130
    %172 = vmatprep.subr.bf16.mxu0 0
    %173 = vmatpush1.bf16.msra.mxu0 %v129
    %174 = vmatprep.subr.bf16.mxu0 0
    %175 = vmatpush1.bf16.msra.mxu0 %v128
    %176 = vmatprep.subr.bf16.mxu0 0
    %177 = vmatpush2.bf16.msra.mxu0 %v143
    %178 = vmatprep.subr.bf16.mxu0 0
    %179 = vmatpush2.bf16.msra.mxu0 %v142
    %180 = vmatprep.subr.bf16.mxu0 0
    %181 = vmatpush2.bf16.msra.mxu0 %v141
    %182 = vmatprep.subr.bf16.mxu0 0
    %183 = vmatpush2.bf16.msra.mxu0 %v140
    %184 = vmatprep.subr.bf16.mxu0 0
    %185 = vmatpush2.bf16.msra.mxu0 %v139
    %186 = vmatprep.subr.bf16.mxu0 0
    %187 = vmatpush2.bf16.msra.mxu0 %v138
    %188 = vmatprep.subr.bf16.mxu0 0
    %189 = vmatpush2.bf16.msra.mxu0 %v137
    %190 = vmatprep.subr.bf16.mxu0 0
    %191 = vmatpush2.bf16.msra.mxu0 %v136
    %192 = vmatprep.mubr.bf16.mxu0 %v61
    %193 = vmatmul.mubr.bf16.gmra.mxu0 %v60
    %v194 = vpop.f32.mrf.mxu0
    %v195 = vadd.f32 0.0, %v194
    %v196 = vpop.f32.mrf.mxu0
    %v197 = vpop.f32.mrf.mxu0
    %v198 = vpop.f32.mrf.mxu0
    %199 = vdwg.mxu0
    %v200 = vadd.f32 %v23, %v195
    %201 = vst [vmem:[#allocation2] sm:$0xff] %v200
    // Predicated region
    $region18: #{_lambda_.109} parent=1 // pred_check
      %p202 = pneg %p18
    $region19: #{_lambda_.109} parent=1 // pred_check_branch
      %204 = sbr.rel (%p202) target = $region21
    $region20: #{_lambda_.109} parent=1 // pred_region
      %v205 = vld [vmem:[#allocation2] sm:$0xff]
      %v206 = vmax.f32 %v205, 0.0
      %207 = vst [vmem:[%s4] sm:$0xff] %v206
      %v208 = vld [vmem:[%s2] sm:$0x3]
      %vm209 = vcmask 64512
      %v211 = vsel %vm209, %v208, 0
      %213 = vmatprep.subr.mxu0 0.0
      %214 = vmatpush1.msra.mxu0 0.0
      %215 = vmatprep.subr.mxu0 0.0
      %216 = vmatpush1.msra.mxu0 0.0
      %217 = vmatprep.subr.mxu0 0.0
      %218 = vmatpush1.msra.mxu0 0.0
      %219 = vmatprep.subr.mxu0 0.0
      %220 = vmatpush1.msra.mxu0 0.0
      %221 = vmatprep.subr.mxu0 0.0
      %222 = vmatpush1.msra.mxu0 0.0
      %223 = vmatprep.subr.mxu0 0.0
      %224 = vmatpush1.msra.mxu0 0.0
      %225 = vmatprep.subr.mxu0 0.0
      %226 = vmatpush1.msra.mxu0 0.0
      %227 = vmatprep.subr.mxu0 0.0
      %228 = vmatpush1.msra.mxu0 0.0
      %229 = vmatprep.subr.mxu0 0.0
      %230 = vmatpush1.msra.mxu0 0.0
      %231 = vmatprep.subr.mxu0 0.0
      %232 = vmatpush1.msra.mxu0 0.0
      %233 = vmatprep.subr.mxu0 0.0
      %234 = vmatpush1.msra.mxu0 0.0
      %235 = vmatprep.subr.mxu0 0.0
      %236 = vmatpush1.msra.mxu0 0.0
      %237 = vmatprep.subr.mxu0 0.0
      %238 = vmatpush1.msra.mxu0 0.0
      %239 = vmatprep.subr.mxu0 0.0
      %240 = vmatpush1.msra.mxu0 0.0
      %241 = vmatprep.subr.mxu0 0.0
      %242 = vmatpush1.msra.mxu0 0.0
      %243 = vmatprep.subr.mxu0 0.0
      %244 = vmatpush1.msra.mxu0 %v205
      %245 = vmatprep.subr.mxu0 0.0
      %246 = vmatpush2.msra.mxu0 0.0
      %247 = vmatprep.subr.mxu0 0.0
      %248 = vmatpush2.msra.mxu0 0.0
      %249 = vmatprep.subr.mxu0 0.0
      %250 = vmatpush2.msra.mxu0 0.0
      %251 = vmatprep.subr.mxu0 0.0
      %252 = vmatpush2.msra.mxu0 0.0
      %253 = vmatprep.subr.mxu0 0.0
      %254 = vmatpush2.msra.mxu0 0.0
      %255 = vmatprep.subr.mxu0 0.0
      %256 = vmatpush2.msra.mxu0 0.0
      %257 = vmatprep.subr.mxu0 0.0
      %258 = vmatpush2.msra.mxu0 0.0
      %259 = vmatprep.subr.mxu0 0.0
      %260 = vmatpush2.msra.mxu0 0.0
      %261 = vmatprep.subr.mxu0 0.0
      %262 = vmatpush2.msra.mxu0 0.0
      %263 = vmatprep.subr.mxu0 0.0
      %264 = vmatpush2.msra.mxu0 0.0
      %265 = vmatprep.subr.mxu0 0.0
      %266 = vmatpush2.msra.mxu0 0.0
      %267 = vmatprep.subr.mxu0 0.0
      %268 = vmatpush2.msra.mxu0 0.0
      %269 = vmatprep.subr.mxu0 0.0
      %270 = vmatpush2.msra.mxu0 0.0
      %271 = vmatprep.subr.mxu0 0.0
      %272 = vmatpush2.msra.mxu0 0.0
      %273 = vmatprep.subr.mxu0 0.0
      %274 = vmatpush2.msra.mxu0 0.0
      %275 = vmatprep.subr.mxu0 0.0
      %276 = vmatpush2.msra.mxu0 0.0
      %277 = vmatprep.mubr.f32.mxu0 0.0
      %278 = vmatmul.mubr.f32.gmra.mxu0 %v211
      %v279 = vpop.f32.mrf.mxu0
      %v280 = vadd.f32 0.0, %v279
      %v281 = vpop.f32.mrf.mxu0
      %282 = vdwg.mxu0
      %283 = vst [vmem:[#allocation3] sm:$0x3] %v280
    $region21: #{_lambda_.109} parent=1 // pred_fallthru
      _
    // Predicated region
    $region22: #{_lambda_.109} parent=1 // pred_check
      _
    $region23: #{_lambda_.109} parent=1 // pred_check_branch
      %285 = sbr.rel (0) target = $region25
    $region24: #{_lambda_.109} parent=1 // pred_region
      %s287 = ssub.s32 32, 32
      %288 = vsyncadd [#allocation4], %s287
      %s290 = sshll.u32 [#allocation3], 4
      %s291 = int_to_ptr.vmem [resolvable:$true] %s290
      %293 = dma.vmem_to_hbm [thread:$0]  %s291, 32, %s3, [#allocation4]
    $region25: #{_lambda_.109} parent=1 // pred_fallthru
      _
    // Predicated region
    $region26: #{_lambda_.109} parent=1 // pred_check
      _
    $region27: #{_lambda_.109} parent=1 // pred_check_branch
      %295 = sbr.rel (0) target = $region29
    $region28: #{_lambda_.109} parent=1 // pred_region
      _
    $region29: #{_lambda_.109} parent=1 // pred_fallthru
      _
    // Predicated region
    $region30: #{_lambda_.109} parent=1 // pred_check
      _
    $region31: #{_lambda_.109} parent=1 // pred_check_branch
      %297 = sbr.rel (0) target = $region33
    $region32: #{_lambda_.109} parent=1 // pred_region
      %298 = dma.done [#allocation4], 32
    $region33: #{_lambda_.109} parent=1 // pred_fallthru
      _
    // Predicated region
    $region34: #{_lambda_.109} parent=1 // pred_check
      _
    $region35: #{_lambda_.109} parent=1 // pred_check_branch
      %300 = sbr.rel (0) target = $region37
    $region36: #{_lambda_.109} parent=1 // pred_region
      _
    $region37: #{_lambda_.109} parent=1 // pred_fallthru
      _
    %301 = vsyncpa [#allocation4], 1

</llo_original>
